<compile_context>
chip_gen: v6e
topology: v6e:2x2x1
jax: 0.10.0
libtpu: 0.0.40
codegen_flags: <defaults>
</compile_context>

<pallas_src>
import functools
import math

import jax
import jax.numpy as jnp
from jax.experimental import pallas as pl
from jax.experimental.pallas import tpu as pltpu


# Matmul operand dtype. f32 by default to match the PyTorch reference numerics exactly.
# On v6e/v7x, set to jnp.bfloat16 for ~2x MXU throughput and half the weight-DMA bytes
# (accumulation stays f32 via preferred_element_type). Keep f32 on v5e elementwise paths.
_MXU_DTYPE = jnp.float32

# Explicit scoped-VMEM budget: safe on v5e/v6e (128 MiB phys) and v7x (64 MiB phys).
_VMEM_LIMIT = 32 * 1024 * 1024


# ----------------------------- in-kernel helpers -----------------------------

def _mm(a, b):
    """MXU matmul with f32 accumulation; operands optionally cast to bf16 via _MXU_DTYPE."""
    return jnp.dot(a.astype(_MXU_DTYPE), b.astype(_MXU_DTYPE),
                   preferred_element_type=jnp.float32)


def _layernorm(x, gamma, beta):
    """nn.LayerNorm over the last dim: biased variance, eps=1e-5, affine."""
    mu = jnp.mean(x, axis=-1, keepdims=True)
    d = x - mu
    var = jnp.mean(d * d, axis=-1, keepdims=True)
    return d * jax.lax.rsqrt(var + 1e-5) * gamma + beta


def _mha_block(q_all, k_all, v_all, wo, bo, keep_mask, *, num_heads, head_dim):
    """Multi-head attention on already-projected, head-concatenated q/k/v.

    Folds the output projection per head (acc += (p @ v_h) @ Wo[h-rows]) so no
    concatenate/relayout is needed. `keep_mask` is a (Tq, Tk) bool (True = attend)
    or None for the unmasked encoder path.
    """
    h_dim = wo.shape[1]
    inv_scale = 1.0 / math.sqrt(head_dim)
    acc = jnp.zeros((q_all.shape[0], h_dim), jnp.float32)
    for h in range(num_heads):
        lo = h * head_dim
        qh = q_all[:, lo:lo + head_dim]
        kh = k_all[:, lo:lo + head_dim]
        vh = v_all[:, lo:lo + head_dim]
        att = _mm(qh, kh.T) * inv_scale                      # (Tq, Tk)
        if keep_mask is not None:
            # Finite large-negative instead of -inf: masked rows can never be all-masked
            # here (diagonal always kept), and finite values avoid NaN fragility.
            att = jnp.where(keep_mask, att, -1e30)
        m = jnp.max(att, axis=-1, keepdims=True)
        e = jnp.exp(att - m)
        denom = jnp.sum(e, axis=-1, keepdims=True)
        p = e * pl.reciprocal(denom, approx=True)            # EUP reciprocal, not VPU divide
        acc = acc + _mm(_mm(p, vh), wo[lo:lo + head_dim, :])  # fold through out-proj
    return acc + bo


# ----------------------------- fused layer kernels -----------------------------

def _encoder_layer_kernel(x_ref, wqkv_ref, wo_ref, bo_ref, g1_ref, be1_ref,
                          w1_ref, bf1_ref, w2_ref, bf2_ref, g2_ref, be2_ref,
                          o_ref, *, num_heads, head_dim):
    h_dim = num_heads * head_dim
    x = x_ref[0]                                             # (T, H)

    # --- self-attention (mask=None in the reference encoder path: no masking work at all) ---
    qkv = _mm(x, wqkv_ref[...])                              # (T, 3H) = [Q | K | V]
    attn = _mha_block(qkv[:, :h_dim], qkv[:, h_dim:2 * h_dim], qkv[:, 2 * h_dim:],
                      wo_ref[...], bo_ref[...], None,
                      num_heads=num_heads, head_dim=head_dim)
    x = _layernorm(attn + x, g1_ref[...], be1_ref[...])

    # --- feed-forward ---
    hdn = jnp.maximum(_mm(x, w1_ref[...]) + bf1_ref[...], 0.0)
    ffn = _mm(hdn, w2_ref[...]) + bf2_ref[...]
    o_ref[0] = _layernorm(ffn + x, g2_ref[...], be2_ref[...])


def _decoder_layer_kernel(x_ref, enc_ref,
                          wqkv_s_ref, wo_s_ref, bo_s_ref, g1_ref, be1_ref,
                          wq_c_ref, wkv_c_ref, wo_c_ref, bo_c_ref, g2_ref, be2_ref,
                          w1_ref, bf1_ref, w2_ref, bf2_ref, g3_ref, be3_ref,
                          o_ref, *, num_heads, head_dim):
    h_dim = num_heads * head_dim
    x = x_ref[0]                                             # (Td, H)
    enc = enc_ref[0]                                         # (Te, H)
    t_dec = x.shape[0]

    # Reference mask = triu(ones, diagonal=0): keep column >= row (current & future tokens),
    # exactly matching the PyTorch module. Generated in-kernel from iota -> no mask DMA.
    row = jax.lax.broadcasted_iota(jnp.int32, (t_dec, t_dec), 0)
    col = jax.lax.broadcasted_iota(jnp.int32, (t_dec, t_dec), 1)
    keep = col >= row
    # The reference applies the same (Td, Td) mask to cross-attention (assumes Te == Td;
    # guarded in the wrapper).

    # --- masked self-attention ---
    qkv = _mm(x, wqkv_s_ref[...])                            # (Td, 3H)
    attn = _mha_block(qkv[:, :h_dim], qkv[:, h_dim:2 * h_dim], qkv[:, 2 * h_dim:],
                      wo_s_ref[...], bo_s_ref[...], keep,
                      num_heads=num_heads, head_dim=head_dim)
    x = _layernorm(attn + x, g1_ref[...], be1_ref[...])

    # --- cross-attention (q from decoder state, k/v from encoder output) ---
    q = _mm(x, wq_c_ref[...])                                # (Td, H)
    kv = _mm(enc, wkv_c_ref[...])                            # (Te, 2H) = [K | V]
    attn = _mha_block(q, kv[:, :h_dim], kv[:, h_dim:],
                      wo_c_ref[...], bo_c_ref[...], keep,
                      num_heads=num_heads, head_dim=head_dim)
    x = _layernorm(attn + x, g2_ref[...], be2_ref[...])

    # --- feed-forward ---
    hdn = jnp.maximum(_mm(x, w1_ref[...]) + bf1_ref[...], 0.0)
    ffn = _mm(hdn, w2_ref[...]) + bf2_ref[...]
    o_ref[0] = _layernorm(ffn + x, g3_ref[...], be3_ref[...])


def _classifier_kernel(x_ref, w_ref, b_ref, o_ref):
    # Lane-dense store: w/b are zero-padded so the output last dim is a multiple of 128.
    o_ref[...] = _mm(x_ref[...], w_ref[...]) + b_ref[...]


# ----------------------------- pallas_call wrappers -----------------------------

def _full_spec(shape):
    return pl.BlockSpec(shape, lambda b: (0,) * len(shape))


def encoder_layer_pallas(x, layer_params, *, num_heads):
    B, T, H = x.shape
    (wqkv, wo, bo, g1, b1, w1, bf1, w2, bf2, g2, b2) = layer_params
    d_ff = w1.shape[1]
    kernel = functools.partial(_encoder_layer_kernel, num_heads=num_heads,
                               head_dim=H // num_heads)
    return pl.pallas_call(
        kernel,
        out_shape=jax.ShapeDtypeStruct((B, T, H), jnp.float32),
        grid=(B,),
        in_specs=[
            pl.BlockSpec((1, T, H), lambda b: (b, 0, 0)),
            _full_spec((H, 3 * H)), _full_spec((H, H)), _full_spec((1, H)),
            _full_spec((1, H)), _full_spec((1, H)),
            _full_spec((H, d_ff)), _full_spec((1, d_ff)),
            _full_spec((d_ff, H)), _full_spec((1, H)),
            _full_spec((1, H)), _full_spec((1, H)),
        ],
        out_specs=pl.BlockSpec((1, T, H), lambda b: (b, 0, 0)),
        compiler_params=pltpu.CompilerParams(
            dimension_semantics=("parallel",),
            vmem_limit_bytes=_VMEM_LIMIT),
    )(x, wqkv, wo, bo, g1, b1, w1, bf1, w2, bf2, g2, b2)


def decoder_layer_pallas(x, x_enc, layer_params, *, num_heads):
    B, Td, H = x.shape
    Te = x_enc.shape[1]
    # The reference applies a (Td, Td) mask to cross-attention -> requires Te == Td.
    assert Te == Td, "reference decoder cross-attention mask assumes T_enc == T_dec"
    (wqkv_s, wo_s, bo_s, g1, b1, wq_c, wkv_c, wo_c, bo_c,
     g2, b2, w1, bf1, w2, bf2, g3, b3) = layer_params
    d_ff = w1.shape[1]
    kernel = functools.partial(_decoder_layer_kernel, num_heads=num_heads,
                               head_dim=H // num_heads)
    return pl.pallas_call(
        kernel,
        out_shape=jax.ShapeDtypeStruct((B, Td, H), jnp.float32),
        grid=(B,),
        in_specs=[
            pl.BlockSpec((1, Td, H), lambda b: (b, 0, 0)),
            pl.BlockSpec((1, Te, H), lambda b: (b, 0, 0)),
            _full_spec((H, 3 * H)), _full_spec((H, H)), _full_spec((1, H)),
            _full_spec((1, H)), _full_spec((1, H)),
            _full_spec((H, H)), _full_spec((H, 2 * H)), _full_spec((H, H)),
            _full_spec((1, H)), _full_spec((1, H)), _full_spec((1, H)),
            _full_spec((H, d_ff)), _full_spec((1, d_ff)),
            _full_spec((d_ff, H)), _full_spec((1, H)),
            _full_spec((1, H)), _full_spec((1, H)),
        ],
        out_specs=pl.BlockSpec((1, Td, H), lambda b: (b, 0, 0)),
        compiler_params=pltpu.CompilerParams(
            dimension_semantics=("parallel",),
            vmem_limit_bytes=_VMEM_LIMIT),
    )(x, x_enc, wqkv_s, wo_s, bo_s, g1, b1, wq_c, wkv_c, wo_c, bo_c,
      g2, b2, w1, bf1, w2, bf2, g3, b3)


def classifier_pallas(x, w_pad, b_pad):
    """Final linear layer on the flattened (B*T, H) slab with a 128-lane-padded output."""
    B, T, H = x.shape
    c_pad = w_pad.shape[1]
    x2 = x.reshape(B * T, H)
    out = pl.pallas_call(
        _classifier_kernel,
        out_shape=jax.ShapeDtypeStruct((B * T, c_pad), jnp.float32),
        compiler_params=pltpu.CompilerParams(vmem_limit_bytes=_VMEM_LIMIT),
    )(x2, w_pad, b_pad)
    return out.reshape(B, T, c_pad)


# ----------------------------- model glue (plain JAX) -----------------------------

def encoder_forward(x, enc_params, *, num_heads):
    T = x.shape[1]
    x = x + enc_params["pos_emb"][:T][None, :, :]
    for lp in enc_params["layers"]:
        x = encoder_layer_pallas(x, lp, num_heads=num_heads)
    return x


def decoder_forward(x, x_enc, dec_params, *, num_heads):
    T = x.shape[1]
    x = x + dec_params["pos_emb"][:T][None, :, :]
    for lp in dec_params["layers"]:
        x = decoder_layer_pallas(x, x_enc, lp, num_heads=num_heads)
    return x


def transformer_forward(x_enc, x_dec, params, *, num_heads, num_classes):
    x_enc = encoder_forward(x_enc, params["enc"], num_heads=num_heads)
    x_dec = decoder_forward(x_dec, x_enc, params["dec"], num_heads=num_heads)
    logits_padded = classifier_pallas(x_dec, params["clf_w"], params["clf_b"])
    return logits_padded[:, :, :num_classes]


# ----------------------------- deterministic parameter init -----------------------------

def _round_up(n, m):
    return ((n + m - 1) // m) * m


def _uniform(key, shape, fan_in):
    bound = 1.0 / math.sqrt(fan_in)
    return jax.random.uniform(key, shape, jnp.float32, -bound, bound)


def _init_self_mha(key, h_dim):
    kqkv, kow, kob = jax.random.split(key, 3)
    wqkv = _uniform(kqkv, (h_dim, 3 * h_dim), h_dim)     # per-head q/k/v stacked along cols
    wo = _uniform(kow, (h_dim, h_dim), h_dim)
    bo = _uniform(kob, (1, h_dim), h_dim)
    return wqkv, wo, bo


def _init_cross_mha(key, h_dim):
    kq, kkv, kow, kob = jax.random.split(key, 4)
    wq = _uniform(kq, (h_dim, h_dim), h_dim)
    wkv = _uniform(kkv, (h_dim, 2 * h_dim), h_dim)
    wo = _uniform(kow, (h_dim, h_dim), h_dim)
    bo = _uniform(kob, (1, h_dim), h_dim)
    return wq, wkv, wo, bo


def _init_ffn(key, h_dim, d_ff):
    k1, kb1, k2, kb2 = jax.random.split(key, 4)
    w1 = _uniform(k1, (h_dim, d_ff), h_dim)
    b1 = _uniform(kb1, (1, d_ff), h_dim)
    w2 = _uniform(k2, (d_ff, h_dim), d_ff)
    b2 = _uniform(kb2, (1, h_dim), d_ff)
    return w1, b1, w2, b2


def _init_ln(h_dim):
    return jnp.ones((1, h_dim), jnp.float32), jnp.zeros((1, h_dim), jnp.float32)


def init_transformer_params(key, *, num_layers_enc, num_layers_dec, h_dim, num_heads,
                            num_classes, d_ff, max_time_steps_enc, max_time_steps_dec):
    keys = jax.random.split(key, 6)

    enc_layers = []
    for i in range(num_layers_enc):
        k = jax.random.fold_in(keys[0], i)
        ka, kf = jax.random.split(k)
        wqkv, wo, bo = _init_self_mha(ka, h_dim)
        w1, bf1, w2, bf2 = _init_ffn(kf, h_dim, d_ff)
        g1, b1 = _init_ln(h_dim)
        g2, b2 = _init_ln(h_dim)
        enc_layers.append((wqkv, wo, bo, g1, b1, w1, bf1, w2, bf2, g2, b2))

    dec_layers = []
    for i in range(num_layers_dec):
        k = jax.random.fold_in(keys[1], i)
        km, kc, kf = jax.random.split(k, 3)
        wqkv_s, wo_s, bo_s = _init_self_mha(km, h_dim)
        wq_c, wkv_c, wo_c, bo_c = _init_cross_mha(kc, h_dim)
        w1, bf1, w2, bf2 = _init_ffn(kf, h_dim, d_ff)
        g1, b1 = _init_ln(h_dim)
        g2, b2 = _init_ln(h_dim)
        g3, b3 = _init_ln(h_dim)
        dec_layers.append((wqkv_s, wo_s, bo_s, g1, b1, wq_c, wkv_c, wo_c, bo_c,
                           g2, b2, w1, bf1, w2, bf2, g3, b3))

    # Classifier: zero-pad the output width to a multiple of 128 for lane-dense stores.
    c_pad = _round_up(max(num_classes, 1), 128)
    kw, kb = jax.random.split(keys[2])
    w = _uniform(kw, (h_dim, num_classes), h_dim)
    b = _uniform(kb, (1, num_classes), h_dim)
    clf_w = jnp.zeros((h_dim, c_pad), jnp.float32).at[:, :num_classes].set(w)
    clf_b = jnp.zeros((1, c_pad), jnp.float32).at[:, :num_classes].set(b)

    return dict(
        enc=dict(layers=enc_layers,
                 pos_emb=jax.random.normal(keys[3], (max_time_steps_enc, h_dim), jnp.float32)),
        dec=dict(layers=dec_layers,
                 pos_emb=jax.random.normal(keys[4], (max_time_steps_dec, h_dim), jnp.float32)),
        clf_w=clf_w, clf_b=clf_b,
    )


# ----------------------------- main -----------------------------

if __name__ == "__main__":
    B, T, H = 2, 8, 32
    num_heads = 4
    num_layers_enc = 2
    num_layers_dec = 2
    num_classes = 10
    d_ff = 2048          # hardcoded in the reference layer constructors
    max_T = 16

    key = jax.random.PRNGKey(0)
    k_params, k_enc, k_dec = jax.random.split(key, 3)

    params = init_transformer_params(
        k_params,
        num_layers_enc=num_layers_enc, num_layers_dec=num_layers_dec,
        h_dim=H, num_heads=num_heads, num_classes=num_classes, d_ff=d_ff,
        max_time_steps_enc=max_T, max_time_steps_dec=max_T)

    x_enc = jax.random.normal(k_enc, (B, T, H), jnp.float32)
    x_dec = jax.random.normal(k_dec, (B, T, H), jnp.float32)

    fwd = jax.jit(functools.partial(transformer_forward,
                                    num_heads=num_heads, num_classes=num_classes))
    logits = fwd(x_enc, x_dec, params)
    logits = jax.block_until_ready(logits)

    assert logits.shape == (B, T, num_classes)
    assert bool(jnp.all(jnp.isfinite(logits)))
    print("KERNEL_OK")
</pallas_src>

<mosaic_0001>
module attributes {stable_mosaic.version = 11 : i64} {
  func.func @_encoder_layer_kernel(%arg0: i32, %arg1: memref<1x8x32xf32, #tpu.memory_space<vmem>>, %arg2: memref<32x96xf32, #tpu.memory_space<vmem>>, %arg3: memref<32x32xf32, #tpu.memory_space<vmem>>, %arg4: memref<1x32xf32, #tpu.memory_space<vmem>>, %arg5: memref<1x32xf32, #tpu.memory_space<vmem>>, %arg6: memref<1x32xf32, #tpu.memory_space<vmem>>, %arg7: memref<32x2048xf32, #tpu.memory_space<vmem>>, %arg8: memref<1x2048xf32, #tpu.memory_space<vmem>>, %arg9: memref<2048x32xf32, #tpu.memory_space<vmem>>, %arg10: memref<1x32xf32, #tpu.memory_space<vmem>>, %arg11: memref<1x32xf32, #tpu.memory_space<vmem>>, %arg12: memref<1x32xf32, #tpu.memory_space<vmem>>, %arg13: memref<1x8x32xf32, #tpu.memory_space<vmem>>) attributes {dimension_semantics = [#tpu.dimension_semantics<parallel>], iteration_bounds = array<i64: 2>, scalar_prefetch = 0 : i64, scratch_operands = 0 : i64, tpu.core_type = #tpu.core_type<tc>, window_params = [{transform_indices = @transform_0, window_bounds = array<i64: 1, 8, 32>}, {pipeline_mode = #tpu.pipeline_mode<synchronous>, transform_indices = @transform_1, window_bounds = array<i64: 32, 96>}, {pipeline_mode = #tpu.pipeline_mode<synchronous>, transform_indices = @transform_2, window_bounds = array<i64: 32, 32>}, {pipeline_mode = #tpu.pipeline_mode<synchronous>, transform_indices = @transform_3, window_bounds = array<i64: 1, 32>}, {pipeline_mode = #tpu.pipeline_mode<synchronous>, transform_indices = @transform_4, window_bounds = array<i64: 1, 32>}, {pipeline_mode = #tpu.pipeline_mode<synchronous>, transform_indices = @transform_5, window_bounds = array<i64: 1, 32>}, {pipeline_mode = #tpu.pipeline_mode<synchronous>, transform_indices = @transform_6, window_bounds = array<i64: 32, 2048>}, {pipeline_mode = #tpu.pipeline_mode<synchronous>, transform_indices = @transform_7, window_bounds = array<i64: 1, 2048>}, {pipeline_mode = #tpu.pipeline_mode<synchronous>, transform_indices = @transform_8, window_bounds = array<i64: 2048, 32>}, {pipeline_mode = #tpu.pipeline_mode<synchronous>, transform_indices = @transform_9, window_bounds = array<i64: 1, 32>}, {pipeline_mode = #tpu.pipeline_mode<synchronous>, transform_indices = @transform_10, window_bounds = array<i64: 1, 32>}, {pipeline_mode = #tpu.pipeline_mode<synchronous>, transform_indices = @transform_11, window_bounds = array<i64: 1, 32>}, {transform_indices = @transform_12, window_bounds = array<i64: 1, 8, 32>}]} {
    %c0 = arith.constant 0 : index
    %c0_0 = arith.constant 0 : index
    %c0_1 = arith.constant 0 : index
    %0 = vector.load %arg1[%c0, %c0_0, %c0_1] : memref<1x8x32xf32, #tpu.memory_space<vmem>>, vector<1x8x32xf32>
    %1 = vector.shape_cast %0 : vector<1x8x32xf32> to vector<8x32xf32>
    %c0_2 = arith.constant 0 : index
    %c0_3 = arith.constant 0 : index
    %2 = vector.load %arg2[%c0_2, %c0_3] : memref<32x96xf32, #tpu.memory_space<vmem>>, vector<32x96xf32>
    %cst = arith.constant dense<0.000000e+00> : vector<8x96xf32>
    %3 = tpu.matmul %1, %2, %cst {dimension_numbers = #tpu.dot_dimension_numbers<[1], [0], [0], [1], [0, 0, 1, 1], [], []>} : vector<8x32xf32>, vector<32x96xf32>, vector<8x96xf32> -> vector<8x96xf32>
    %4 = vector.extract_strided_slice %3 {offsets = [0, 0], sizes = [8, 32], strides = [1, 1]} : vector<8x96xf32> to vector<8x32xf32>
    %5 = vector.extract_strided_slice %3 {offsets = [0, 32], sizes = [8, 32], strides = [1, 1]} : vector<8x96xf32> to vector<8x32xf32>
    %6 = vector.extract_strided_slice %3 {offsets = [0, 64], sizes = [8, 32], strides = [1, 1]} : vector<8x96xf32> to vector<8x32xf32>
    %c0_4 = arith.constant 0 : index
    %c0_5 = arith.constant 0 : index
    %7 = vector.load %arg3[%c0_4, %c0_5] : memref<32x32xf32, #tpu.memory_space<vmem>>, vector<32x32xf32>
    %c0_6 = arith.constant 0 : index
    %c0_7 = arith.constant 0 : index
    %8 = vector.load %arg4[%c0_6, %c0_7] : memref<1x32xf32, #tpu.memory_space<vmem>>, vector<1x32xf32>
    %cst_8 = arith.constant 0.000000e+00 : f32
    %9 = vector.broadcast %cst_8 : f32 to vector<8x32xf32>
    %10 = vector.extract_strided_slice %4 {offsets = [0, 0], sizes = [8, 8], strides = [1, 1]} : vector<8x32xf32> to vector<8x8xf32>
    %11 = vector.extract_strided_slice %5 {offsets = [0, 0], sizes = [8, 8], strides = [1, 1]} : vector<8x32xf32> to vector<8x8xf32>
    %12 = vector.extract_strided_slice %6 {offsets = [0, 0], sizes = [8, 8], strides = [1, 1]} : vector<8x32xf32> to vector<8x8xf32>
    %13 = tpu.transpose %11, [1, 0] : vector<8x8xf32> -> vector<8x8xf32>
    %cst_9 = arith.constant dense<0.000000e+00> : vector<8x8xf32>
    %14 = tpu.matmul %10, %13, %cst_9 {dimension_numbers = #tpu.dot_dimension_numbers<[1], [0], [0], [1], [0, 0, 1, 1], [], []>} : vector<8x8xf32>, vector<8x8xf32>, vector<8x8xf32> -> vector<8x8xf32>
    %cst_10 = arith.constant 0.353553385 : f32
    %15 = vector.broadcast %cst_10 : f32 to vector<8x8xf32>
    %16 = arith.mulf %14, %15 : vector<8x8xf32>
    %cst_11 = arith.constant dense<0xFF800000> : vector<8xf32>
    %17 = vector.multi_reduction <maximumf>, %16, %cst_11 [1] : vector<8x8xf32> to vector<8xf32>
    %18 = vector.shape_cast %17 : vector<8xf32> to vector<8x1xf32>
    %19 = vector.broadcast %18 : vector<8x1xf32> to vector<8x8xf32>
    %20 = arith.subf %16, %19 : vector<8x8xf32>
    %21 = math.exp %20 : vector<8x8xf32>
    %cst_12 = arith.constant dense<0.000000e+00> : vector<8xf32>
    %22 = vector.multi_reduction <add>, %21, %cst_12 [1] : vector<8x8xf32> to vector<8xf32>
    %23 = vector.shape_cast %22 : vector<8xf32> to vector<8x1xf32>
    %24 = tpu.reciprocal %23 {approx = true} : vector<8x1xf32> -> vector<8x1xf32>
    %25 = vector.broadcast %24 : vector<8x1xf32> to vector<8x8xf32>
    %26 = arith.mulf %21, %25 : vector<8x8xf32>
    %cst_13 = arith.constant dense<0.000000e+00> : vector<8x8xf32>
    %27 = tpu.matmul %26, %12, %cst_13 {dimension_numbers = #tpu.dot_dimension_numbers<[1], [0], [0], [1], [0, 0, 1, 1], [], []>} : vector<8x8xf32>, vector<8x8xf32>, vector<8x8xf32> -> vector<8x8xf32>
    %28 = vector.extract_strided_slice %7 {offsets = [0, 0], sizes = [8, 32], strides = [1, 1]} : vector<32x32xf32> to vector<8x32xf32>
    %cst_14 = arith.constant dense<0.000000e+00> : vector<8x32xf32>
    %29 = tpu.matmul %27, %28, %cst_14 {dimension_numbers = #tpu.dot_dimension_numbers<[1], [0], [0], [1], [0, 0, 1, 1], [], []>} : vector<8x8xf32>, vector<8x32xf32>, vector<8x32xf32> -> vector<8x32xf32>
    %30 = arith.addf %9, %29 : vector<8x32xf32>
    %31 = vector.extract_strided_slice %4 {offsets = [0, 8], sizes = [8, 8], strides = [1, 1]} : vector<8x32xf32> to vector<8x8xf32>
    %32 = vector.extract_strided_slice %5 {offsets = [0, 8], sizes = [8, 8], strides = [1, 1]} : vector<8x32xf32> to vector<8x8xf32>
    %33 = vector.extract_strided_slice %6 {offsets = [0, 8], sizes = [8, 8], strides = [1, 1]} : vector<8x32xf32> to vector<8x8xf32>
    %34 = tpu.transpose %32, [1, 0] : vector<8x8xf32> -> vector<8x8xf32>
    %cst_15 = arith.constant dense<0.000000e+00> : vector<8x8xf32>
    %35 = tpu.matmul %31, %34, %cst_15 {dimension_numbers = #tpu.dot_dimension_numbers<[1], [0], [0], [1], [0, 0, 1, 1], [], []>} : vector<8x8xf32>, vector<8x8xf32>, vector<8x8xf32> -> vector<8x8xf32>
    %cst_16 = arith.constant 0.353553385 : f32
    %36 = vector.broadcast %cst_16 : f32 to vector<8x8xf32>
    %37 = arith.mulf %35, %36 : vector<8x8xf32>
    %cst_17 = arith.constant dense<0xFF800000> : vector<8xf32>
    %38 = vector.multi_reduction <maximumf>, %37, %cst_17 [1] : vector<8x8xf32> to vector<8xf32>
    %39 = vector.shape_cast %38 : vector<8xf32> to vector<8x1xf32>
    %40 = vector.broadcast %39 : vector<8x1xf32> to vector<8x8xf32>
    %41 = arith.subf %37, %40 : vector<8x8xf32>
    %42 = math.exp %41 : vector<8x8xf32>
    %cst_18 = arith.constant dense<0.000000e+00> : vector<8xf32>
    %43 = vector.multi_reduction <add>, %42, %cst_18 [1] : vector<8x8xf32> to vector<8xf32>
    %44 = vector.shape_cast %43 : vector<8xf32> to vector<8x1xf32>
    %45 = tpu.reciprocal %44 {approx = true} : vector<8x1xf32> -> vector<8x1xf32>
    %46 = vector.broadcast %45 : vector<8x1xf32> to vector<8x8xf32>
    %47 = arith.mulf %42, %46 : vector<8x8xf32>
    %cst_19 = arith.constant dense<0.000000e+00> : vector<8x8xf32>
    %48 = tpu.matmul %47, %33, %cst_19 {dimension_numbers = #tpu.dot_dimension_numbers<[1], [0], [0], [1], [0, 0, 1, 1], [], []>} : vector<8x8xf32>, vector<8x8xf32>, vector<8x8xf32> -> vector<8x8xf32>
    %49 = vector.extract_strided_slice %7 {offsets = [8, 0], sizes = [8, 32], strides = [1, 1]} : vector<32x32xf32> to vector<8x32xf32>
    %cst_20 = arith.constant dense<0.000000e+00> : vector<8x32xf32>
    %50 = tpu.matmul %48, %49, %cst_20 {dimension_numbers = #tpu.dot_dimension_numbers<[1], [0], [0], [1], [0, 0, 1, 1], [], []>} : vector<8x8xf32>, vector<8x32xf32>, vector<8x32xf32> -> vector<8x32xf32>
    %51 = arith.addf %30, %50 : vector<8x32xf32>
    %52 = vector.extract_strided_slice %4 {offsets = [0, 16], sizes = [8, 8], strides = [1, 1]} : vector<8x32xf32> to vector<8x8xf32>
    %53 = vector.extract_strided_slice %5 {offsets = [0, 16], sizes = [8, 8], strides = [1, 1]} : vector<8x32xf32> to vector<8x8xf32>
    %54 = vector.extract_strided_slice %6 {offsets = [0, 16], sizes = [8, 8], strides = [1, 1]} : vector<8x32xf32> to vector<8x8xf32>
    %55 = tpu.transpose %53, [1, 0] : vector<8x8xf32> -> vector<8x8xf32>
    %cst_21 = arith.constant dense<0.000000e+00> : vector<8x8xf32>
    %56 = tpu.matmul %52, %55, %cst_21 {dimension_numbers = #tpu.dot_dimension_numbers<[1], [0], [0], [1], [0, 0, 1, 1], [], []>} : vector<8x8xf32>, vector<8x8xf32>, vector<8x8xf32> -> vector<8x8xf32>
    %cst_22 = arith.constant 0.353553385 : f32
    %57 = vector.broadcast %cst_22 : f32 to vector<8x8xf32>
    %58 = arith.mulf %56, %57 : vector<8x8xf32>
    %cst_23 = arith.constant dense<0xFF800000> : vector<8xf32>
    %59 = vector.multi_reduction <maximumf>, %58, %cst_23 [1] : vector<8x8xf32> to vector<8xf32>
    %60 = vector.shape_cast %59 : vector<8xf32> to vector<8x1xf32>
    %61 = vector.broadcast %60 : vector<8x1xf32> to vector<8x8xf32>
    %62 = arith.subf %58, %61 : vector<8x8xf32>
    %63 = math.exp %62 : vector<8x8xf32>
    %cst_24 = arith.constant dense<0.000000e+00> : vector<8xf32>
    %64 = vector.multi_reduction <add>, %63, %cst_24 [1] : vector<8x8xf32> to vector<8xf32>
    %65 = vector.shape_cast %64 : vector<8xf32> to vector<8x1xf32>
    %66 = tpu.reciprocal %65 {approx = true} : vector<8x1xf32> -> vector<8x1xf32>
    %67 = vector.broadcast %66 : vector<8x1xf32> to vector<8x8xf32>
    %68 = arith.mulf %63, %67 : vector<8x8xf32>
    %cst_25 = arith.constant dense<0.000000e+00> : vector<8x8xf32>
    %69 = tpu.matmul %68, %54, %cst_25 {dimension_numbers = #tpu.dot_dimension_numbers<[1], [0], [0], [1], [0, 0, 1, 1], [], []>} : vector<8x8xf32>, vector<8x8xf32>, vector<8x8xf32> -> vector<8x8xf32>
    %70 = vector.extract_strided_slice %7 {offsets = [16, 0], sizes = [8, 32], strides = [1, 1]} : vector<32x32xf32> to vector<8x32xf32>
    %cst_26 = arith.constant dense<0.000000e+00> : vector<8x32xf32>
    %71 = tpu.matmul %69, %70, %cst_26 {dimension_numbers = #tpu.dot_dimension_numbers<[1], [0], [0], [1], [0, 0, 1, 1], [], []>} : vector<8x8xf32>, vector<8x32xf32>, vector<8x32xf32> -> vector<8x32xf32>
    %72 = arith.addf %51, %71 : vector<8x32xf32>
    %73 = vector.extract_strided_slice %4 {offsets = [0, 24], sizes = [8, 8], strides = [1, 1]} : vector<8x32xf32> to vector<8x8xf32>
    %74 = vector.extract_strided_slice %5 {offsets = [0, 24], sizes = [8, 8], strides = [1, 1]} : vector<8x32xf32> to vector<8x8xf32>
    %75 = vector.extract_strided_slice %6 {offsets = [0, 24], sizes = [8, 8], strides = [1, 1]} : vector<8x32xf32> to vector<8x8xf32>
    %76 = tpu.transpose %74, [1, 0] : vector<8x8xf32> -> vector<8x8xf32>
    %cst_27 = arith.constant dense<0.000000e+00> : vector<8x8xf32>
    %77 = tpu.matmul %73, %76, %cst_27 {dimension_numbers = #tpu.dot_dimension_numbers<[1], [0], [0], [1], [0, 0, 1, 1], [], []>} : vector<8x8xf32>, vector<8x8xf32>, vector<8x8xf32> -> vector<8x8xf32>
    %cst_28 = arith.constant 0.353553385 : f32
    %78 = vector.broadcast %cst_28 : f32 to vector<8x8xf32>
    %79 = arith.mulf %77, %78 : vector<8x8xf32>
    %cst_29 = arith.constant dense<0xFF800000> : vector<8xf32>
    %80 = vector.multi_reduction <maximumf>, %79, %cst_29 [1] : vector<8x8xf32> to vector<8xf32>
    %81 = vector.shape_cast %80 : vector<8xf32> to vector<8x1xf32>
    %82 = vector.broadcast %81 : vector<8x1xf32> to vector<8x8xf32>
    %83 = arith.subf %79, %82 : vector<8x8xf32>
    %84 = math.exp %83 : vector<8x8xf32>
    %cst_30 = arith.constant dense<0.000000e+00> : vector<8xf32>
    %85 = vector.multi_reduction <add>, %84, %cst_30 [1] : vector<8x8xf32> to vector<8xf32>
    %86 = vector.shape_cast %85 : vector<8xf32> to vector<8x1xf32>
    %87 = tpu.reciprocal %86 {approx = true} : vector<8x1xf32> -> vector<8x1xf32>
    %88 = vector.broadcast %87 : vector<8x1xf32> to vector<8x8xf32>
    %89 = arith.mulf %84, %88 : vector<8x8xf32>
    %cst_31 = arith.constant dense<0.000000e+00> : vector<8x8xf32>
    %90 = tpu.matmul %89, %75, %cst_31 {dimension_numbers = #tpu.dot_dimension_numbers<[1], [0], [0], [1], [0, 0, 1, 1], [], []>} : vector<8x8xf32>, vector<8x8xf32>, vector<8x8xf32> -> vector<8x8xf32>
    %91 = vector.extract_strided_slice %7 {offsets = [24, 0], sizes = [8, 32], strides = [1, 1]} : vector<32x32xf32> to vector<8x32xf32>
    %cst_32 = arith.constant dense<0.000000e+00> : vector<8x32xf32>
    %92 = tpu.matmul %90, %91, %cst_32 {dimension_numbers = #tpu.dot_dimension_numbers<[1], [0], [0], [1], [0, 0, 1, 1], [], []>} : vector<8x8xf32>, vector<8x32xf32>, vector<8x32xf32> -> vector<8x32xf32>
    %93 = arith.addf %72, %92 : vector<8x32xf32>
    %94 = vector.broadcast %8 : vector<1x32xf32> to vector<8x32xf32>
    %95 = arith.addf %93, %94 : vector<8x32xf32>
    %96 = arith.addf %95, %1 : vector<8x32xf32>
    %c0_33 = arith.constant 0 : index
    %c0_34 = arith.constant 0 : index
    %97 = vector.load %arg5[%c0_33, %c0_34] : memref<1x32xf32, #tpu.memory_space<vmem>>, vector<1x32xf32>
    %c0_35 = arith.constant 0 : index
    %c0_36 = arith.constant 0 : index
    %98 = vector.load %arg6[%c0_35, %c0_36] : memref<1x32xf32, #tpu.memory_space<vmem>>, vector<1x32xf32>
    %cst_37 = arith.constant dense<0.000000e+00> : vector<8xf32>
    %99 = vector.multi_reduction <add>, %96, %cst_37 [1] : vector<8x32xf32> to vector<8xf32>
    %100 = vector.shape_cast %99 : vector<8xf32> to vector<8x1xf32>
    %cst_38 = arith.constant 3.200000e+01 : f32
    %101 = vector.broadcast %cst_38 : f32 to vector<8x1xf32>
    %102 = arith.divf %100, %101 : vector<8x1xf32>
    %103 = vector.broadcast %102 : vector<8x1xf32> to vector<8x32xf32>
    %104 = arith.subf %96, %103 : vector<8x32xf32>
    %105 = arith.mulf %104, %104 : vector<8x32xf32>
    %cst_39 = arith.constant dense<0.000000e+00> : vector<8xf32>
    %106 = vector.multi_reduction <add>, %105, %cst_39 [1] : vector<8x32xf32> to vector<8xf32>
    %107 = vector.shape_cast %106 : vector<8xf32> to vector<8x1xf32>
    %cst_40 = arith.constant 3.200000e+01 : f32
    %108 = vector.broadcast %cst_40 : f32 to vector<8x1xf32>
    %109 = arith.divf %107, %108 : vector<8x1xf32>
    %cst_41 = arith.constant 9.99999974E-6 : f32
    %110 = vector.broadcast %cst_41 : f32 to vector<8x1xf32>
    %111 = arith.addf %109, %110 : vector<8x1xf32>
    %112 = math.rsqrt %111 : vector<8x1xf32>
    %113 = vector.broadcast %112 : vector<8x1xf32> to vector<8x32xf32>
    %114 = arith.mulf %104, %113 : vector<8x32xf32>
    %115 = vector.broadcast %97 : vector<1x32xf32> to vector<8x32xf32>
    %116 = arith.mulf %114, %115 : vector<8x32xf32>
    %117 = vector.broadcast %98 : vector<1x32xf32> to vector<8x32xf32>
    %118 = arith.addf %116, %117 : vector<8x32xf32>
    %c0_42 = arith.constant 0 : index
    %c0_43 = arith.constant 0 : index
    %119 = vector.load %arg7[%c0_42, %c0_43] : memref<32x2048xf32, #tpu.memory_space<vmem>>, vector<32x2048xf32>
    %cst_44 = arith.constant dense<0.000000e+00> : vector<8x2048xf32>
    %120 = tpu.matmul %118, %119, %cst_44 {dimension_numbers = #tpu.dot_dimension_numbers<[1], [0], [0], [1], [0, 0, 1, 1], [], []>} : vector<8x32xf32>, vector<32x2048xf32>, vector<8x2048xf32> -> vector<8x2048xf32>
    %c0_45 = arith.constant 0 : index
    %c0_46 = arith.constant 0 : index
    %121 = vector.load %arg8[%c0_45, %c0_46] : memref<1x2048xf32, #tpu.memory_space<vmem>>, vector<1x2048xf32>
    %122 = vector.broadcast %121 : vector<1x2048xf32> to vector<8x2048xf32>
    %123 = arith.addf %120, %122 : vector<8x2048xf32>
    %cst_47 = arith.constant 0.000000e+00 : f32
    %124 = vector.broadcast %cst_47 : f32 to vector<8x2048xf32>
    %125 = arith.maximumf %123, %124 : vector<8x2048xf32>
    %c0_48 = arith.constant 0 : index
    %c0_49 = arith.constant 0 : index
    %126 = vector.load %arg9[%c0_48, %c0_49] : memref<2048x32xf32, #tpu.memory_space<vmem>>, vector<2048x32xf32>
    %cst_50 = arith.constant dense<0.000000e+00> : vector<8x32xf32>
    %127 = tpu.matmul %125, %126, %cst_50 {dimension_numbers = #tpu.dot_dimension_numbers<[1], [0], [0], [1], [0, 0, 1, 1], [], []>} : vector<8x2048xf32>, vector<2048x32xf32>, vector<8x32xf32> -> vector<8x32xf32>
    %c0_51 = arith.constant 0 : index
    %c0_52 = arith.constant 0 : index
    %128 = vector.load %arg10[%c0_51, %c0_52] : memref<1x32xf32, #tpu.memory_space<vmem>>, vector<1x32xf32>
    %129 = vector.broadcast %128 : vector<1x32xf32> to vector<8x32xf32>
    %130 = arith.addf %127, %129 : vector<8x32xf32>
    %131 = arith.addf %130, %118 : vector<8x32xf32>
    %c0_53 = arith.constant 0 : index
    %c0_54 = arith.constant 0 : index
    %132 = vector.load %arg11[%c0_53, %c0_54] : memref<1x32xf32, #tpu.memory_space<vmem>>, vector<1x32xf32>
    %c0_55 = arith.constant 0 : index
    %c0_56 = arith.constant 0 : index
    %133 = vector.load %arg12[%c0_55, %c0_56] : memref<1x32xf32, #tpu.memory_space<vmem>>, vector<1x32xf32>
    %cst_57 = arith.constant dense<0.000000e+00> : vector<8xf32>
    %134 = vector.multi_reduction <add>, %131, %cst_57 [1] : vector<8x32xf32> to vector<8xf32>
    %135 = vector.shape_cast %134 : vector<8xf32> to vector<8x1xf32>
    %cst_58 = arith.constant 3.200000e+01 : f32
    %136 = vector.broadcast %cst_58 : f32 to vector<8x1xf32>
    %137 = arith.divf %135, %136 : vector<8x1xf32>
    %138 = vector.broadcast %137 : vector<8x1xf32> to vector<8x32xf32>
    %139 = arith.subf %131, %138 : vector<8x32xf32>
    %140 = arith.mulf %139, %139 : vector<8x32xf32>
    %cst_59 = arith.constant dense<0.000000e+00> : vector<8xf32>
    %141 = vector.multi_reduction <add>, %140, %cst_59 [1] : vector<8x32xf32> to vector<8xf32>
    %142 = vector.shape_cast %141 : vector<8xf32> to vector<8x1xf32>
    %cst_60 = arith.constant 3.200000e+01 : f32
    %143 = vector.broadcast %cst_60 : f32 to vector<8x1xf32>
    %144 = arith.divf %142, %143 : vector<8x1xf32>
    %cst_61 = arith.constant 9.99999974E-6 : f32
    %145 = vector.broadcast %cst_61 : f32 to vector<8x1xf32>
    %146 = arith.addf %144, %145 : vector<8x1xf32>
    %147 = math.rsqrt %146 : vector<8x1xf32>
    %148 = vector.broadcast %147 : vector<8x1xf32> to vector<8x32xf32>
    %149 = arith.mulf %139, %148 : vector<8x32xf32>
    %150 = vector.broadcast %132 : vector<1x32xf32> to vector<8x32xf32>
    %151 = arith.mulf %149, %150 : vector<8x32xf32>
    %152 = vector.broadcast %133 : vector<1x32xf32> to vector<8x32xf32>
    %153 = arith.addf %151, %152 : vector<8x32xf32>
    %c0_62 = arith.constant 0 : index
    %c0_63 = arith.constant 0 : index
    %c0_64 = arith.constant 0 : index
    %154 = vector.load %arg13[%c0_62, %c0_63, %c0_64] : memref<1x8x32xf32, #tpu.memory_space<vmem>>, vector<1x8x32xf32>
    %155 = vector.shape_cast %154 : vector<1x8x32xf32> to vector<8x32xf32>
    %156 = vector.shape_cast %153 : vector<8x32xf32> to vector<1x8x32xf32>
    tpu.vector_store %arg13[%c0_62, %c0_63, %c0_64], %156 {strides = array<i32>} : memref<1x8x32xf32, #tpu.memory_space<vmem>>, vector<1x8x32xf32>,
    return
  }
  func.func @transform_0(%arg0: i32) -> (i32, i32, i32) {
    %c0_i32 = arith.constant 0 : i32
    %c0_i32_0 = arith.constant 0 : i32
    %c0_i32_1 = arith.constant 0 : i32
    return %arg0, %c0_i32, %c0_i32_0 : i32, i32, i32
  }
  func.func @transform_1(%arg0: i32) -> (i32, i32) {
    %c0_i32 = arith.constant 0 : i32
    %c0_i32_0 = arith.constant 0 : i32
    %c0_i32_1 = arith.constant 0 : i32
    return %c0_i32, %c0_i32_0 : i32, i32
  }
  func.func @transform_2(%arg0: i32) -> (i32, i32) {
    %c0_i32 = arith.constant 0 : i32
    %c0_i32_0 = arith.constant 0 : i32
    %c0_i32_1 = arith.constant 0 : i32
    return %c0_i32, %c0_i32_0 : i32, i32
  }
  func.func @transform_3(%arg0: i32) -> (i32, i32) {
    %c0_i32 = arith.constant 0 : i32
    %c0_i32_0 = arith.constant 0 : i32
    %c0_i32_1 = arith.constant 0 : i32
    return %c0_i32, %c0_i32_0 : i32, i32
  }
  func.func @transform_4(%arg0: i32) -> (i32, i32) {
    %c0_i32 = arith.constant 0 : i32
    %c0_i32_0 = arith.constant 0 : i32
    %c0_i32_1 = arith.constant 0 : i32
    return %c0_i32, %c0_i32_0 : i32, i32
  }
  func.func @transform_5(%arg0: i32) -> (i32, i32) {
    %c0_i32 = arith.constant 0 : i32
    %c0_i32_0 = arith.constant 0 : i32
    %c0_i32_1 = arith.constant 0 : i32
    return %c0_i32, %c0_i32_0 : i32, i32
  }
  func.func @transform_6(%arg0: i32) -> (i32, i32) {
    %c0_i32 = arith.constant 0 : i32
    %c0_i32_0 = arith.constant 0 : i32
    %c0_i32_1 = arith.constant 0 : i32
    return %c0_i32, %c0_i32_0 : i32, i32
  }
  func.func @transform_7(%arg0: i32) -> (i32, i32) {
    %c0_i32 = arith.constant 0 : i32
    %c0_i32_0 = arith.constant 0 : i32
    %c0_i32_1 = arith.constant 0 : i32
    return %c0_i32, %c0_i32_0 : i32, i32
  }
  func.func @transform_8(%arg0: i32) -> (i32, i32) {
    %c0_i32 = arith.constant 0 : i32
    %c0_i32_0 = arith.constant 0 : i32
    %c0_i32_1 = arith.constant 0 : i32
    return %c0_i32, %c0_i32_0 : i32, i32
  }
  func.func @transform_9(%arg0: i32) -> (i32, i32) {
    %c0_i32 = arith.constant 0 : i32
    %c0_i32_0 = arith.constant 0 : i32
    %c0_i32_1 = arith.constant 0 : i32
    return %c0_i32, %c0_i32_0 : i32, i32
  }
  func.func @transform_10(%arg0: i32) -> (i32, i32) {
    %c0_i32 = arith.constant 0 : i32
    %c0_i32_0 = arith.constant 0 : i32
    %c0_i32_1 = arith.constant 0 : i32
    return %c0_i32, %c0_i32_0 : i32, i32
  }
  func.func @transform_11(%arg0: i32) -> (i32, i32) {
    %c0_i32 = arith.constant 0 : i32
    %c0_i32_0 = arith.constant 0 : i32
    %c0_i32_1 = arith.constant 0 : i32
    return %c0_i32, %c0_i32_0 : i32, i32
  }
  func.func @transform_12(%arg0: i32) -> (i32, i32, i32) {
    %c0_i32 = arith.constant 0 : i32
    %c0_i32_0 = arith.constant 0 : i32
    %c0_i32_1 = arith.constant 0 : i32
    return %arg0, %c0_i32, %c0_i32_0 : i32, i32, i32
  }
}

module attributes {stable_mosaic.version = 11 : i64} {
  func.func @_classifier_kernel(%arg0: memref<16x32xf32, #tpu.memory_space<vmem>>, %arg1: memref<32x128xf32, #tpu.memory_space<vmem>>, %arg2: memref<1x128xf32, #tpu.memory_space<vmem>>, %arg3: memref<16x128xf32, #tpu.memory_space<vmem>>) attributes {dimension_semantics = [], scalar_prefetch = 0 : i64, scratch_operands = 0 : i64, tpu.core_type = #tpu.core_type<tc>} {
    %c0 = arith.constant 0 : index
    %c0_0 = arith.constant 0 : index
    %0 = vector.load %arg0[%c0, %c0_0] : memref<16x32xf32, #tpu.memory_space<vmem>>, vector<16x32xf32>
    %c0_1 = arith.constant 0 : index
    %c0_2 = arith.constant 0 : index
    %1 = vector.load %arg1[%c0_1, %c0_2] : memref<32x128xf32, #tpu.memory_space<vmem>>, vector<32x128xf32>
    %cst = arith.constant dense<0.000000e+00> : vector<16x128xf32>
    %2 = tpu.matmul %0, %1, %cst {dimension_numbers = #tpu.dot_dimension_numbers<[1], [0], [0], [1], [0, 0, 1, 1], [], []>} : vector<16x32xf32>, vector<32x128xf32>, vector<16x128xf32> -> vector<16x128xf32>
    %c0_3 = arith.constant 0 : index
    %c0_4 = arith.constant 0 : index
    %3 = vector.load %arg2[%c0_3, %c0_4] : memref<1x128xf32, #tpu.memory_space<vmem>>, vector<1x128xf32>
    %4 = vector.broadcast %3 : vector<1x128xf32> to vector<16x128xf32>
    %5 = arith.addf %2, %4 : vector<16x128xf32>
    %c0_5 = arith.constant 0 : index
    %c0_6 = arith.constant 0 : index
    %6 = vector.load %arg3[%c0_5, %c0_6] : memref<16x128xf32, #tpu.memory_space<vmem>>, vector<16x128xf32>
    tpu.vector_store %arg3[%c0_5, %c0_6], %5 {strides = array<i32>} : memref<16x128xf32, #tpu.memory_space<vmem>>, vector<16x128xf32>,
    return
  }
}

module attributes {stable_mosaic.version = 11 : i64} {
  func.func @_decoder_layer_kernel(%arg0: i32, %arg1: memref<1x8x32xf32, #tpu.memory_space<vmem>>, %arg2: memref<1x8x32xf32, #tpu.memory_space<vmem>>, %arg3: memref<32x96xf32, #tpu.memory_space<vmem>>, %arg4: memref<32x32xf32, #tpu.memory_space<vmem>>, %arg5: memref<1x32xf32, #tpu.memory_space<vmem>>, %arg6: memref<1x32xf32, #tpu.memory_space<vmem>>, %arg7: memref<1x32xf32, #tpu.memory_space<vmem>>, %arg8: memref<32x32xf32, #tpu.memory_space<vmem>>, %arg9: memref<32x64xf32, #tpu.memory_space<vmem>>, %arg10: memref<32x32xf32, #tpu.memory_space<vmem>>, %arg11: memref<1x32xf32, #tpu.memory_space<vmem>>, %arg12: memref<1x32xf32, #tpu.memory_space<vmem>>, %arg13: memref<1x32xf32, #tpu.memory_space<vmem>>, %arg14: memref<32x2048xf32, #tpu.memory_space<vmem>>, %arg15: memref<1x2048xf32, #tpu.memory_space<vmem>>, %arg16: memref<2048x32xf32, #tpu.memory_space<vmem>>, %arg17: memref<1x32xf32, #tpu.memory_space<vmem>>, %arg18: memref<1x32xf32, #tpu.memory_space<vmem>>, %arg19: memref<1x32xf32, #tpu.memory_space<vmem>>, %arg20: memref<1x8x32xf32, #tpu.memory_space<vmem>>) attributes {dimension_semantics = [#tpu.dimension_semantics<parallel>], iteration_bounds = array<i64: 2>, scalar_prefetch = 0 : i64, scratch_operands = 0 : i64, tpu.core_type = #tpu.core_type<tc>, window_params = [{transform_indices = @transform_0, window_bounds = array<i64: 1, 8, 32>}, {transform_indices = @transform_1, window_bounds = array<i64: 1, 8, 32>}, {pipeline_mode = #tpu.pipeline_mode<synchronous>, transform_indices = @transform_2, window_bounds = array<i64: 32, 96>}, {pipeline_mode = #tpu.pipeline_mode<synchronous>, transform_indices = @transform_3, window_bounds = array<i64: 32, 32>}, {pipeline_mode = #tpu.pipeline_mode<synchronous>, transform_indices = @transform_4, window_bounds = array<i64: 1, 32>}, {pipeline_mode = #tpu.pipeline_mode<synchronous>, transform_indices = @transform_5, window_bounds = array<i64: 1, 32>}, {pipeline_mode = #tpu.pipeline_mode<synchronous>, transform_indices = @transform_6, window_bounds = array<i64: 1, 32>}, {pipeline_mode = #tpu.pipeline_mode<synchronous>, transform_indices = @transform_7, window_bounds = array<i64: 32, 32>}, {pipeline_mode = #tpu.pipeline_mode<synchronous>, transform_indices = @transform_8, window_bounds = array<i64: 32, 64>}, {pipeline_mode = #tpu.pipeline_mode<synchronous>, transform_indices = @transform_9, window_bounds = array<i64: 32, 32>}, {pipeline_mode = #tpu.pipeline_mode<synchronous>, transform_indices = @transform_10, window_bounds = array<i64: 1, 32>}, {pipeline_mode = #tpu.pipeline_mode<synchronous>, transform_indices = @transform_11, window_bounds = array<i64: 1, 32>}, {pipeline_mode = #tpu.pipeline_mode<synchronous>, transform_indices = @transform_12, window_bounds = array<i64: 1, 32>}, {pipeline_mode = #tpu.pipeline_mode<synchronous>, transform_indices = @transform_13, window_bounds = array<i64: 32, 2048>}, {pipeline_mode = #tpu.pipeline_mode<synchronous>, transform_indices = @transform_14, window_bounds = array<i64: 1, 2048>}, {pipeline_mode = #tpu.pipeline_mode<synchronous>, transform_indices = @transform_15, window_bounds = array<i64: 2048, 32>}, {pipeline_mode = #tpu.pipeline_mode<synchronous>, transform_indices = @transform_16, window_bounds = array<i64: 1, 32>}, {pipeline_mode = #tpu.pipeline_mode<synchronous>, transform_indices = @transform_17, window_bounds = array<i64: 1, 32>}, {pipeline_mode = #tpu.pipeline_mode<synchronous>, transform_indices = @transform_18, window_bounds = array<i64: 1, 32>}, {transform_indices = @transform_19, window_bounds = array<i64: 1, 8, 32>}]} {
    %c0 = arith.constant 0 : index
    %c0_0 = arith.constant 0 : index
    %c0_1 = arith.constant 0 : index
    %0 = vector.load %arg1[%c0, %c0_0, %c0_1] : memref<1x8x32xf32, #tpu.memory_space<vmem>>, vector<1x8x32xf32>
    %1 = vector.shape_cast %0 : vector<1x8x32xf32> to vector<8x32xf32>
    %c0_2 = arith.constant 0 : index
    %c0_3 = arith.constant 0 : index
    %c0_4 = arith.constant 0 : index
    %2 = vector.load %arg2[%c0_2, %c0_3, %c0_4] : memref<1x8x32xf32, #tpu.memory_space<vmem>>, vector<1x8x32xf32>
    %3 = vector.shape_cast %2 : vector<1x8x32xf32> to vector<8x32xf32>
    %4 = tpu.iota {dimensions = array<i32: 0>} : vector<8x8xi32>
    %5 = tpu.iota {dimensions = array<i32: 1>} : vector<8x8xi32>
    %6 = arith.cmpi sge, %5, %4 : vector<8x8xi32>
    %c0_5 = arith.constant 0 : index
    %c0_6 = arith.constant 0 : index
    %7 = vector.load %arg3[%c0_5, %c0_6] : memref<32x96xf32, #tpu.memory_space<vmem>>, vector<32x96xf32>
    %cst = arith.constant dense<0.000000e+00> : vector<8x96xf32>
    %8 = tpu.matmul %1, %7, %cst {dimension_numbers = #tpu.dot_dimension_numbers<[1], [0], [0], [1], [0, 0, 1, 1], [], []>} : vector<8x32xf32>, vector<32x96xf32>, vector<8x96xf32> -> vector<8x96xf32>
    %9 = vector.extract_strided_slice %8 {offsets = [0, 0], sizes = [8, 32], strides = [1, 1]} : vector<8x96xf32> to vector<8x32xf32>
    %10 = vector.extract_strided_slice %8 {offsets = [0, 32], sizes = [8, 32], strides = [1, 1]} : vector<8x96xf32> to vector<8x32xf32>
    %11 = vector.extract_strided_slice %8 {offsets = [0, 64], sizes = [8, 32], strides = [1, 1]} : vector<8x96xf32> to vector<8x32xf32>
    %c0_7 = arith.constant 0 : index
    %c0_8 = arith.constant 0 : index
    %12 = vector.load %arg4[%c0_7, %c0_8] : memref<32x32xf32, #tpu.memory_space<vmem>>, vector<32x32xf32>
    %c0_9 = arith.constant 0 : index
    %c0_10 = arith.constant 0 : index
    %13 = vector.load %arg5[%c0_9, %c0_10] : memref<1x32xf32, #tpu.memory_space<vmem>>, vector<1x32xf32>
    %cst_11 = arith.constant 0.000000e+00 : f32
    %14 = vector.broadcast %cst_11 : f32 to vector<8x32xf32>
    %15 = vector.extract_strided_slice %9 {offsets = [0, 0], sizes = [8, 8], strides = [1, 1]} : vector<8x32xf32> to vector<8x8xf32>
    %16 = vector.extract_strided_slice %10 {offsets = [0, 0], sizes = [8, 8], strides = [1, 1]} : vector<8x32xf32> to vector<8x8xf32>
    %17 = vector.extract_strided_slice %11 {offsets = [0, 0], sizes = [8, 8], strides = [1, 1]} : vector<8x32xf32> to vector<8x8xf32>
    %18 = tpu.transpose %16, [1, 0] : vector<8x8xf32> -> vector<8x8xf32>
    %cst_12 = arith.constant dense<0.000000e+00> : vector<8x8xf32>
    %19 = tpu.matmul %15, %18, %cst_12 {dimension_numbers = #tpu.dot_dimension_numbers<[1], [0], [0], [1], [0, 0, 1, 1], [], []>} : vector<8x8xf32>, vector<8x8xf32>, vector<8x8xf32> -> vector<8x8xf32>
    %cst_13 = arith.constant 0.353553385 : f32
    %20 = vector.broadcast %cst_13 : f32 to vector<8x8xf32>
    %21 = arith.mulf %19, %20 : vector<8x8xf32>
    %cst_14 = arith.constant -1.000000e+30 : f32
    %22 = vector.broadcast %cst_14 : f32 to vector<8x8xf32>
    %23 = arith.select %6, %21, %22 : vector<8x8xi1>, vector<8x8xf32>
    %cst_15 = arith.constant dense<0xFF800000> : vector<8xf32>
    %24 = vector.multi_reduction <maximumf>, %23, %cst_15 [1] : vector<8x8xf32> to vector<8xf32>
    %25 = vector.shape_cast %24 : vector<8xf32> to vector<8x1xf32>
    %26 = vector.broadcast %25 : vector<8x1xf32> to vector<8x8xf32>
    %27 = arith.subf %23, %26 : vector<8x8xf32>
    %28 = math.exp %27 : vector<8x8xf32>
    %cst_16 = arith.constant dense<0.000000e+00> : vector<8xf32>
    %29 = vector.multi_reduction <add>, %28, %cst_16 [1] : vector<8x8xf32> to vector<8xf32>
    %30 = vector.shape_cast %29 : vector<8xf32> to vector<8x1xf32>
    %31 = tpu.reciprocal %30 {approx = true} : vector<8x1xf32> -> vector<8x1xf32>
    %32 = vector.broadcast %31 : vector<8x1xf32> to vector<8x8xf32>
    %33 = arith.mulf %28, %32 : vector<8x8xf32>
    %cst_17 = arith.constant dense<0.000000e+00> : vector<8x8xf32>
    %34 = tpu.matmul %33, %17, %cst_17 {dimension_numbers = #tpu.dot_dimension_numbers<[1], [0], [0], [1], [0, 0, 1, 1], [], []>} : vector<8x8xf32>, vector<8x8xf32>, vector<8x8xf32> -> vector<8x8xf32>
    %35 = vector.extract_strided_slice %12 {offsets = [0, 0], sizes = [8, 32], strides = [1, 1]} : vector<32x32xf32> to vector<8x32xf32>
    %cst_18 = arith.constant dense<0.000000e+00> : vector<8x32xf32>
    %36 = tpu.matmul %34, %35, %cst_18 {dimension_numbers = #tpu.dot_dimension_numbers<[1], [0], [0], [1], [0, 0, 1, 1], [], []>} : vector<8x8xf32>, vector<8x32xf32>, vector<8x32xf32> -> vector<8x32xf32>
    %37 = arith.addf %14, %36 : vector<8x32xf32>
    %38 = vector.extract_strided_slice %9 {offsets = [0, 8], sizes = [8, 8], strides = [1, 1]} : vector<8x32xf32> to vector<8x8xf32>
    %39 = vector.extract_strided_slice %10 {offsets = [0, 8], sizes = [8, 8], strides = [1, 1]} : vector<8x32xf32> to vector<8x8xf32>
    %40 = vector.extract_strided_slice %11 {offsets = [0, 8], sizes = [8, 8], strides = [1, 1]} : vector<8x32xf32> to vector<8x8xf32>
    %41 = tpu.transpose %39, [1, 0] : vector<8x8xf32> -> vector<8x8xf32>
    %cst_19 = arith.constant dense<0.000000e+00> : vector<8x8xf32>
    %42 = tpu.matmul %38, %41, %cst_19 {dimension_numbers = #tpu.dot_dimension_numbers<[1], [0], [0], [1], [0, 0, 1, 1], [], []>} : vector<8x8xf32>, vector<8x8xf32>, vector<8x8xf32> -> vector<8x8xf32>
    %cst_20 = arith.constant 0.353553385 : f32
    %43 = vector.broadcast %cst_20 : f32 to vector<8x8xf32>
    %44 = arith.mulf %42, %43 : vector<8x8xf32>
    %cst_21 = arith.constant -1.000000e+30 : f32
    %45 = vector.broadcast %cst_21 : f32 to vector<8x8xf32>
    %46 = arith.select %6, %44, %45 : vector<8x8xi1>, vector<8x8xf32>
    %cst_22 = arith.constant dense<0xFF800000> : vector<8xf32>
    %47 = vector.multi_reduction <maximumf>, %46, %cst_22 [1] : vector<8x8xf32> to vector<8xf32>
    %48 = vector.shape_cast %47 : vector<8xf32> to vector<8x1xf32>
    %49 = vector.broadcast %48 : vector<8x1xf32> to vector<8x8xf32>
    %50 = arith.subf %46, %49 : vector<8x8xf32>
    %51 = math.exp %50 : vector<8x8xf32>
    %cst_23 = arith.constant dense<0.000000e+00> : vector<8xf32>
    %52 = vector.multi_reduction <add>, %51, %cst_23 [1] : vector<8x8xf32> to vector<8xf32>
    %53 = vector.shape_cast %52 : vector<8xf32> to vector<8x1xf32>
    %54 = tpu.reciprocal %53 {approx = true} : vector<8x1xf32> -> vector<8x1xf32>
    %55 = vector.broadcast %54 : vector<8x1xf32> to vector<8x8xf32>
    %56 = arith.mulf %51, %55 : vector<8x8xf32>
    %cst_24 = arith.constant dense<0.000000e+00> : vector<8x8xf32>
    %57 = tpu.matmul %56, %40, %cst_24 {dimension_numbers = #tpu.dot_dimension_numbers<[1], [0], [0], [1], [0, 0, 1, 1], [], []>} : vector<8x8xf32>, vector<8x8xf32>, vector<8x8xf32> -> vector<8x8xf32>
    %58 = vector.extract_strided_slice %12 {offsets = [8, 0], sizes = [8, 32], strides = [1, 1]} : vector<32x32xf32> to vector<8x32xf32>
    %cst_25 = arith.constant dense<0.000000e+00> : vector<8x32xf32>
    %59 = tpu.matmul %57, %58, %cst_25 {dimension_numbers = #tpu.dot_dimension_numbers<[1], [0], [0], [1], [0, 0, 1, 1], [], []>} : vector<8x8xf32>, vector<8x32xf32>, vector<8x32xf32> -> vector<8x32xf32>
    %60 = arith.addf %37, %59 : vector<8x32xf32>
    %61 = vector.extract_strided_slice %9 {offsets = [0, 16], sizes = [8, 8], strides = [1, 1]} : vector<8x32xf32> to vector<8x8xf32>
    %62 = vector.extract_strided_slice %10 {offsets = [0, 16], sizes = [8, 8], strides = [1, 1]} : vector<8x32xf32> to vector<8x8xf32>
    %63 = vector.extract_strided_slice %11 {offsets = [0, 16], sizes = [8, 8], strides = [1, 1]} : vector<8x32xf32> to vector<8x8xf32>
    %64 = tpu.transpose %62, [1, 0] : vector<8x8xf32> -> vector<8x8xf32>
    %cst_26 = arith.constant dense<0.000000e+00> : vector<8x8xf32>
    %65 = tpu.matmul %61, %64, %cst_26 {dimension_numbers = #tpu.dot_dimension_numbers<[1], [0], [0], [1], [0, 0, 1, 1], [], []>} : vector<8x8xf32>, vector<8x8xf32>, vector<8x8xf32> -> vector<8x8xf32>
    %cst_27 = arith.constant 0.353553385 : f32
    %66 = vector.broadcast %cst_27 : f32 to vector<8x8xf32>
    %67 = arith.mulf %65, %66 : vector<8x8xf32>
    %cst_28 = arith.constant -1.000000e+30 : f32
    %68 = vector.broadcast %cst_28 : f32 to vector<8x8xf32>
    %69 = arith.select %6, %67, %68 : vector<8x8xi1>, vector<8x8xf32>
    %cst_29 = arith.constant dense<0xFF800000> : vector<8xf32>
    %70 = vector.multi_reduction <maximumf>, %69, %cst_29 [1] : vector<8x8xf32> to vector<8xf32>
    %71 = vector.shape_cast %70 : vector<8xf32> to vector<8x1xf32>
    %72 = vector.broadcast %71 : vector<8x1xf32> to vector<8x8xf32>
    %73 = arith.subf %69, %72 : vector<8x8xf32>
    %74 = math.exp %73 : vector<8x8xf32>
    %cst_30 = arith.constant dense<0.000000e+00> : vector<8xf32>
    %75 = vector.multi_reduction <add>, %74, %cst_30 [1] : vector<8x8xf32> to vector<8xf32>
    %76 = vector.shape_cast %75 : vector<8xf32> to vector<8x1xf32>
    %77 = tpu.reciprocal %76 {approx = true} : vector<8x1xf32> -> vector<8x1xf32>
    %78 = vector.broadcast %77 : vector<8x1xf32> to vector<8x8xf32>
    %79 = arith.mulf %74, %78 : vector<8x8xf32>
    %cst_31 = arith.constant dense<0.000000e+00> : vector<8x8xf32>
    %80 = tpu.matmul %79, %63, %cst_31 {dimension_numbers = #tpu.dot_dimension_numbers<[1], [0], [0], [1], [0, 0, 1, 1], [], []>} : vector<8x8xf32>, vector<8x8xf32>, vector<8x8xf32> -> vector<8x8xf32>
    %81 = vector.extract_strided_slice %12 {offsets = [16, 0], sizes = [8, 32], strides = [1, 1]} : vector<32x32xf32> to vector<8x32xf32>
    %cst_32 = arith.constant dense<0.000000e+00> : vector<8x32xf32>
    %82 = tpu.matmul %80, %81, %cst_32 {dimension_numbers = #tpu.dot_dimension_numbers<[1], [0], [0], [1], [0, 0, 1, 1], [], []>} : vector<8x8xf32>, vector<8x32xf32>, vector<8x32xf32> -> vector<8x32xf32>
    %83 = arith.addf %60, %82 : vector<8x32xf32>
    %84 = vector.extract_strided_slice %9 {offsets = [0, 24], sizes = [8, 8], strides = [1, 1]} : vector<8x32xf32> to vector<8x8xf32>
    %85 = vector.extract_strided_slice %10 {offsets = [0, 24], sizes = [8, 8], strides = [1, 1]} : vector<8x32xf32> to vector<8x8xf32>
    %86 = vector.extract_strided_slice %11 {offsets = [0, 24], sizes = [8, 8], strides = [1, 1]} : vector<8x32xf32> to vector<8x8xf32>
    %87 = tpu.transpose %85, [1, 0] : vector<8x8xf32> -> vector<8x8xf32>
    %cst_33 = arith.constant dense<0.000000e+00> : vector<8x8xf32>
    %88 = tpu.matmul %84, %87, %cst_33 {dimension_numbers = #tpu.dot_dimension_numbers<[1], [0], [0], [1], [0, 0, 1, 1], [], []>} : vector<8x8xf32>, vector<8x8xf32>, vector<8x8xf32> -> vector<8x8xf32>
    %cst_34 = arith.constant 0.353553385 : f32
    %89 = vector.broadcast %cst_34 : f32 to vector<8x8xf32>
    %90 = arith.mulf %88, %89 : vector<8x8xf32>
    %cst_35 = arith.constant -1.000000e+30 : f32
    %91 = vector.broadcast %cst_35 : f32 to vector<8x8xf32>
    %92 = arith.select %6, %90, %91 : vector<8x8xi1>, vector<8x8xf32>
    %cst_36 = arith.constant dense<0xFF800000> : vector<8xf32>
    %93 = vector.multi_reduction <maximumf>, %92, %cst_36 [1] : vector<8x8xf32> to vector<8xf32>
    %94 = vector.shape_cast %93 : vector<8xf32> to vector<8x1xf32>
    %95 = vector.broadcast %94 : vector<8x1xf32> to vector<8x8xf32>
    %96 = arith.subf %92, %95 : vector<8x8xf32>
    %97 = math.exp %96 : vector<8x8xf32>
    %cst_37 = arith.constant dense<0.000000e+00> : vector<8xf32>
    %98 = vector.multi_reduction <add>, %97, %cst_37 [1] : vector<8x8xf32> to vector<8xf32>
    %99 = vector.shape_cast %98 : vector<8xf32> to vector<8x1xf32>
    %100 = tpu.reciprocal %99 {approx = true} : vector<8x1xf32> -> vector<8x1xf32>
    %101 = vector.broadcast %100 : vector<8x1xf32> to vector<8x8xf32>
    %102 = arith.mulf %97, %101 : vector<8x8xf32>
    %cst_38 = arith.constant dense<0.000000e+00> : vector<8x8xf32>
    %103 = tpu.matmul %102, %86, %cst_38 {dimension_numbers = #tpu.dot_dimension_numbers<[1], [0], [0], [1], [0, 0, 1, 1], [], []>} : vector<8x8xf32>, vector<8x8xf32>, vector<8x8xf32> -> vector<8x8xf32>
    %104 = vector.extract_strided_slice %12 {offsets = [24, 0], sizes = [8, 32], strides = [1, 1]} : vector<32x32xf32> to vector<8x32xf32>
    %cst_39 = arith.constant dense<0.000000e+00> : vector<8x32xf32>
    %105 = tpu.matmul %103, %104, %cst_39 {dimension_numbers = #tpu.dot_dimension_numbers<[1], [0], [0], [1], [0, 0, 1, 1], [], []>} : vector<8x8xf32>, vector<8x32xf32>, vector<8x32xf32> -> vector<8x32xf32>
    %106 = arith.addf %83, %105 : vector<8x32xf32>
    %107 = vector.broadcast %13 : vector<1x32xf32> to vector<8x32xf32>
    %108 = arith.addf %106, %107 : vector<8x32xf32>
    %109 = arith.addf %108, %1 : vector<8x32xf32>
    %c0_40 = arith.constant 0 : index
    %c0_41 = arith.constant 0 : index
    %110 = vector.load %arg6[%c0_40, %c0_41] : memref<1x32xf32, #tpu.memory_space<vmem>>, vector<1x32xf32>
    %c0_42 = arith.constant 0 : index
    %c0_43 = arith.constant 0 : index
    %111 = vector.load %arg7[%c0_42, %c0_43] : memref<1x32xf32, #tpu.memory_space<vmem>>, vector<1x32xf32>
    %cst_44 = arith.constant dense<0.000000e+00> : vector<8xf32>
    %112 = vector.multi_reduction <add>, %109, %cst_44 [1] : vector<8x32xf32> to vector<8xf32>
    %113 = vector.shape_cast %112 : vector<8xf32> to vector<8x1xf32>
    %cst_45 = arith.constant 3.200000e+01 : f32
    %114 = vector.broadcast %cst_45 : f32 to vector<8x1xf32>
    %115 = arith.divf %113, %114 : vector<8x1xf32>
    %116 = vector.broadcast %115 : vector<8x1xf32> to vector<8x32xf32>
    %117 = arith.subf %109, %116 : vector<8x32xf32>
    %118 = arith.mulf %117, %117 : vector<8x32xf32>
    %cst_46 = arith.constant dense<0.000000e+00> : vector<8xf32>
    %119 = vector.multi_reduction <add>, %118, %cst_46 [1] : vector<8x32xf32> to vector<8xf32>
    %120 = vector.shape_cast %119 : vector<8xf32> to vector<8x1xf32>
    %cst_47 = arith.constant 3.200000e+01 : f32
    %121 = vector.broadcast %cst_47 : f32 to vector<8x1xf32>
    %122 = arith.divf %120, %121 : vector<8x1xf32>
    %cst_48 = arith.constant 9.99999974E-6 : f32
    %123 = vector.broadcast %cst_48 : f32 to vector<8x1xf32>
    %124 = arith.addf %122, %123 : vector<8x1xf32>
    %125 = math.rsqrt %124 : vector<8x1xf32>
    %126 = vector.broadcast %125 : vector<8x1xf32> to vector<8x32xf32>
    %127 = arith.mulf %117, %126 : vector<8x32xf32>
    %128 = vector.broadcast %110 : vector<1x32xf32> to vector<8x32xf32>
    %129 = arith.mulf %127, %128 : vector<8x32xf32>
    %130 = vector.broadcast %111 : vector<1x32xf32> to vector<8x32xf32>
    %131 = arith.addf %129, %130 : vector<8x32xf32>
    %c0_49 = arith.constant 0 : index
    %c0_50 = arith.constant 0 : index
    %132 = vector.load %arg8[%c0_49, %c0_50] : memref<32x32xf32, #tpu.memory_space<vmem>>, vector<32x32xf32>
    %cst_51 = arith.constant dense<0.000000e+00> : vector<8x32xf32>
    %133 = tpu.matmul %131, %132, %cst_51 {dimension_numbers = #tpu.dot_dimension_numbers<[1], [0], [0], [1], [0, 0, 1, 1], [], []>} : vector<8x32xf32>, vector<32x32xf32>, vector<8x32xf32> -> vector<8x32xf32>
    %c0_52 = arith.constant 0 : index
    %c0_53 = arith.constant 0 : index
    %134 = vector.load %arg9[%c0_52, %c0_53] : memref<32x64xf32, #tpu.memory_space<vmem>>, vector<32x64xf32>
    %cst_54 = arith.constant dense<0.000000e+00> : vector<8x64xf32>
    %135 = tpu.matmul %3, %134, %cst_54 {dimension_numbers = #tpu.dot_dimension_numbers<[1], [0], [0], [1], [0, 0, 1, 1], [], []>} : vector<8x32xf32>, vector<32x64xf32>, vector<8x64xf32> -> vector<8x64xf32>
    %136 = vector.extract_strided_slice %135 {offsets = [0, 0], sizes = [8, 32], strides = [1, 1]} : vector<8x64xf32> to vector<8x32xf32>
    %137 = vector.extract_strided_slice %135 {offsets = [0, 32], sizes = [8, 32], strides = [1, 1]} : vector<8x64xf32> to vector<8x32xf32>
    %c0_55 = arith.constant 0 : index
    %c0_56 = arith.constant 0 : index
    %138 = vector.load %arg10[%c0_55, %c0_56] : memref<32x32xf32, #tpu.memory_space<vmem>>, vector<32x32xf32>
    %c0_57 = arith.constant 0 : index
    %c0_58 = arith.constant 0 : index
    %139 = vector.load %arg11[%c0_57, %c0_58] : memref<1x32xf32, #tpu.memory_space<vmem>>, vector<1x32xf32>
    %cst_59 = arith.constant 0.000000e+00 : f32
    %140 = vector.broadcast %cst_59 : f32 to vector<8x32xf32>
    %141 = vector.extract_strided_slice %133 {offsets = [0, 0], sizes = [8, 8], strides = [1, 1]} : vector<8x32xf32> to vector<8x8xf32>
    %142 = vector.extract_strided_slice %136 {offsets = [0, 0], sizes = [8, 8], strides = [1, 1]} : vector<8x32xf32> to vector<8x8xf32>
    %143 = vector.extract_strided_slice %137 {offsets = [0, 0], sizes = [8, 8], strides = [1, 1]} : vector<8x32xf32> to vector<8x8xf32>
    %144 = tpu.transpose %142, [1, 0] : vector<8x8xf32> -> vector<8x8xf32>
    %cst_60 = arith.constant dense<0.000000e+00> : vector<8x8xf32>
    %145 = tpu.matmul %141, %144, %cst_60 {dimension_numbers = #tpu.dot_dimension_numbers<[1], [0], [0], [1], [0, 0, 1, 1], [], []>} : vector<8x8xf32>, vector<8x8xf32>, vector<8x8xf32> -> vector<8x8xf32>
    %cst_61 = arith.constant 0.353553385 : f32
    %146 = vector.broadcast %cst_61 : f32 to vector<8x8xf32>
    %147 = arith.mulf %145, %146 : vector<8x8xf32>
    %cst_62 = arith.constant -1.000000e+30 : f32
    %148 = vector.broadcast %cst_62 : f32 to vector<8x8xf32>
    %149 = arith.select %6, %147, %148 : vector<8x8xi1>, vector<8x8xf32>
    %cst_63 = arith.constant dense<0xFF800000> : vector<8xf32>
    %150 = vector.multi_reduction <maximumf>, %149, %cst_63 [1] : vector<8x8xf32> to vector<8xf32>
    %151 = vector.shape_cast %150 : vector<8xf32> to vector<8x1xf32>
    %152 = vector.broadcast %151 : vector<8x1xf32> to vector<8x8xf32>
    %153 = arith.subf %149, %152 : vector<8x8xf32>
    %154 = math.exp %153 : vector<8x8xf32>
    %cst_64 = arith.constant dense<0.000000e+00> : vector<8xf32>
    %155 = vector.multi_reduction <add>, %154, %cst_64 [1] : vector<8x8xf32> to vector<8xf32>
    %156 = vector.shape_cast %155 : vector<8xf32> to vector<8x1xf32>
    %157 = tpu.reciprocal %156 {approx = true} : vector<8x1xf32> -> vector<8x1xf32>
    %158 = vector.broadcast %157 : vector<8x1xf32> to vector<8x8xf32>
    %159 = arith.mulf %154, %158 : vector<8x8xf32>
    %cst_65 = arith.constant dense<0.000000e+00> : vector<8x8xf32>
    %160 = tpu.matmul %159, %143, %cst_65 {dimension_numbers = #tpu.dot_dimension_numbers<[1], [0], [0], [1], [0, 0, 1, 1], [], []>} : vector<8x8xf32>, vector<8x8xf32>, vector<8x8xf32> -> vector<8x8xf32>
    %161 = vector.extract_strided_slice %138 {offsets = [0, 0], sizes = [8, 32], strides = [1, 1]} : vector<32x32xf32> to vector<8x32xf32>
    %cst_66 = arith.constant dense<0.000000e+00> : vector<8x32xf32>
    %162 = tpu.matmul %160, %161, %cst_66 {dimension_numbers = #tpu.dot_dimension_numbers<[1], [0], [0], [1], [0, 0, 1, 1], [], []>} : vector<8x8xf32>, vector<8x32xf32>, vector<8x32xf32> -> vector<8x32xf32>
    %163 = arith.addf %140, %162 : vector<8x32xf32>
    %164 = vector.extract_strided_slice %133 {offsets = [0, 8], sizes = [8, 8], strides = [1, 1]} : vector<8x32xf32> to vector<8x8xf32>
    %165 = vector.extract_strided_slice %136 {offsets = [0, 8], sizes = [8, 8], strides = [1, 1]} : vector<8x32xf32> to vector<8x8xf32>
    %166 = vector.extract_strided_slice %137 {offsets = [0, 8], sizes = [8, 8], strides = [1, 1]} : vector<8x32xf32> to vector<8x8xf32>
    %167 = tpu.transpose %165, [1, 0] : vector<8x8xf32> -> vector<8x8xf32>
    %cst_67 = arith.constant dense<0.000000e+00> : vector<8x8xf32>
    %168 = tpu.matmul %164, %167, %cst_67 {dimension_numbers = #tpu.dot_dimension_numbers<[1], [0], [0], [1], [0, 0, 1, 1], [], []>} : vector<8x8xf32>, vector<8x8xf32>, vector<8x8xf32> -> vector<8x8xf32>
    %cst_68 = arith.constant 0.353553385 : f32
    %169 = vector.broadcast %cst_68 : f32 to vector<8x8xf32>
    %170 = arith.mulf %168, %169 : vector<8x8xf32>
    %cst_69 = arith.constant -1.000000e+30 : f32
    %171 = vector.broadcast %cst_69 : f32 to vector<8x8xf32>
    %172 = arith.select %6, %170, %171 : vector<8x8xi1>, vector<8x8xf32>
    %cst_70 = arith.constant dense<0xFF800000> : vector<8xf32>
    %173 = vector.multi_reduction <maximumf>, %172, %cst_70 [1] : vector<8x8xf32> to vector<8xf32>
    %174 = vector.shape_cast %173 : vector<8xf32> to vector<8x1xf32>
    %175 = vector.broadcast %174 : vector<8x1xf32> to vector<8x8xf32>
    %176 = arith.subf %172, %175 : vector<8x8xf32>
    %177 = math.exp %176 : vector<8x8xf32>
    %cst_71 = arith.constant dense<0.000000e+00> : vector<8xf32>
    %178 = vector.multi_reduction <add>, %177, %cst_71 [1] : vector<8x8xf32> to vector<8xf32>
    %179 = vector.shape_cast %178 : vector<8xf32> to vector<8x1xf32>
    %180 = tpu.reciprocal %179 {approx = true} : vector<8x1xf32> -> vector<8x1xf32>
    %181 = vector.broadcast %180 : vector<8x1xf32> to vector<8x8xf32>
    %182 = arith.mulf %177, %181 : vector<8x8xf32>
    %cst_72 = arith.constant dense<0.000000e+00> : vector<8x8xf32>
    %183 = tpu.matmul %182, %166, %cst_72 {dimension_numbers = #tpu.dot_dimension_numbers<[1], [0], [0], [1], [0, 0, 1, 1], [], []>} : vector<8x8xf32>, vector<8x8xf32>, vector<8x8xf32> -> vector<8x8xf32>
    %184 = vector.extract_strided_slice %138 {offsets = [8, 0], sizes = [8, 32], strides = [1, 1]} : vector<32x32xf32> to vector<8x32xf32>
    %cst_73 = arith.constant dense<0.000000e+00> : vector<8x32xf32>
    %185 = tpu.matmul %183, %184, %cst_73 {dimension_numbers = #tpu.dot_dimension_numbers<[1], [0], [0], [1], [0, 0, 1, 1], [], []>} : vector<8x8xf32>, vector<8x32xf32>, vector<8x32xf32> -> vector<8x32xf32>
    %186 = arith.addf %163, %185 : vector<8x32xf32>
    %187 = vector.extract_strided_slice %133 {offsets = [0, 16], sizes = [8, 8], strides = [1, 1]} : vector<8x32xf32> to vector<8x8xf32>
    %188 = vector.extract_strided_slice %136 {offsets = [0, 16], sizes = [8, 8], strides = [1, 1]} : vector<8x32xf32> to vector<8x8xf32>
    %189 = vector.extract_strided_slice %137 {offsets = [0, 16], sizes = [8, 8], strides = [1, 1]} : vector<8x32xf32> to vector<8x8xf32>
    %190 = tpu.transpose %188, [1, 0] : vector<8x8xf32> -> vector<8x8xf32>
    %cst_74 = arith.constant dense<0.000000e+00> : vector<8x8xf32>
    %191 = tpu.matmul %187, %190, %cst_74 {dimension_numbers = #tpu.dot_dimension_numbers<[1], [0], [0], [1], [0, 0, 1, 1], [], []>} : vector<8x8xf32>, vector<8x8xf32>, vector<8x8xf32> -> vector<8x8xf32>
    %cst_75 = arith.constant 0.353553385 : f32
    %192 = vector.broadcast %cst_75 : f32 to vector<8x8xf32>
    %193 = arith.mulf %191, %192 : vector<8x8xf32>
    %cst_76 = arith.constant -1.000000e+30 : f32
    %194 = vector.broadcast %cst_76 : f32 to vector<8x8xf32>
    %195 = arith.select %6, %193, %194 : vector<8x8xi1>, vector<8x8xf32>
    %cst_77 = arith.constant dense<0xFF800000> : vector<8xf32>
    %196 = vector.multi_reduction <maximumf>, %195, %cst_77 [1] : vector<8x8xf32> to vector<8xf32>
    %197 = vector.shape_cast %196 : vector<8xf32> to vector<8x1xf32>
    %198 = vector.broadcast %197 : vector<8x1xf32> to vector<8x8xf32>
    %199 = arith.subf %195, %198 : vector<8x8xf32>
    %200 = math.exp %199 : vector<8x8xf32>
    %cst_78 = arith.constant dense<0.000000e+00> : vector<8xf32>
    %201 = vector.multi_reduction <add>, %200, %cst_78 [1] : vector<8x8xf32> to vector<8xf32>
    %202 = vector.shape_cast %201 : vector<8xf32> to vector<8x1xf32>
    %203 = tpu.reciprocal %202 {approx = true} : vector<8x1xf32> -> vector<8x1xf32>
    %204 = vector.broadcast %203 : vector<8x1xf32> to vector<8x8xf32>
    %205 = arith.mulf %200, %204 : vector<8x8xf32>
    %cst_79 = arith.constant dense<0.000000e+00> : vector<8x8xf32>
    %206 = tpu.matmul %205, %189, %cst_79 {dimension_numbers = #tpu.dot_dimension_numbers<[1], [0], [0], [1], [0, 0, 1, 1], [], []>} : vector<8x8xf32>, vector<8x8xf32>, vector<8x8xf32> -> vector<8x8xf32>
    %207 = vector.extract_strided_slice %138 {offsets = [16, 0], sizes = [8, 32], strides = [1, 1]} : vector<32x32xf32> to vector<8x32xf32>
    %cst_80 = arith.constant dense<0.000000e+00> : vector<8x32xf32>
    %208 = tpu.matmul %206, %207, %cst_80 {dimension_numbers = #tpu.dot_dimension_numbers<[1], [0], [0], [1], [0, 0, 1, 1], [], []>} : vector<8x8xf32>, vector<8x32xf32>, vector<8x32xf32> -> vector<8x32xf32>
    %209 = arith.addf %186, %208 : vector<8x32xf32>
    %210 = vector.extract_strided_slice %133 {offsets = [0, 24], sizes = [8, 8], strides = [1, 1]} : vector<8x32xf32> to vector<8x8xf32>
    %211 = vector.extract_strided_slice %136 {offsets = [0, 24], sizes = [8, 8], strides = [1, 1]} : vector<8x32xf32> to vector<8x8xf32>
    %212 = vector.extract_strided_slice %137 {offsets = [0, 24], sizes = [8, 8], strides = [1, 1]} : vector<8x32xf32> to vector<8x8xf32>
    %213 = tpu.transpose %211, [1, 0] : vector<8x8xf32> -> vector<8x8xf32>
    %cst_81 = arith.constant dense<0.000000e+00> : vector<8x8xf32>
    %214 = tpu.matmul %210, %213, %cst_81 {dimension_numbers = #tpu.dot_dimension_numbers<[1], [0], [0], [1], [0, 0, 1, 1], [], []>} : vector<8x8xf32>, vector<8x8xf32>, vector<8x8xf32> -> vector<8x8xf32>
    %cst_82 = arith.constant 0.353553385 : f32
    %215 = vector.broadcast %cst_82 : f32 to vector<8x8xf32>
    %216 = arith.mulf %214, %215 : vector<8x8xf32>
    %cst_83 = arith.constant -1.000000e+30 : f32
    %217 = vector.broadcast %cst_83 : f32 to vector<8x8xf32>
    %218 = arith.select %6, %216, %217 : vector<8x8xi1>, vector<8x8xf32>
    %cst_84 = arith.constant dense<0xFF800000> : vector<8xf32>
    %219 = vector.multi_reduction <maximumf>, %218, %cst_84 [1] : vector<8x8xf32> to vector<8xf32>
    %220 = vector.shape_cast %219 : vector<8xf32> to vector<8x1xf32>
    %221 = vector.broadcast %220 : vector<8x1xf32> to vector<8x8xf32>
    %222 = arith.subf %218, %221 : vector<8x8xf32>
    %223 = math.exp %222 : vector<8x8xf32>
    %cst_85 = arith.constant dense<0.000000e+00> : vector<8xf32>
    %224 = vector.multi_reduction <add>, %223, %cst_85 [1] : vector<8x8xf32> to vector<8xf32>
    %225 = vector.shape_cast %224 : vector<8xf32> to vector<8x1xf32>
    %226 = tpu.reciprocal %225 {approx = true} : vector<8x1xf32> -> vector<8x1xf32>
    %227 = vector.broadcast %226 : vector<8x1xf32> to vector<8x8xf32>
    %228 = arith.mulf %223, %227 : vector<8x8xf32>
    %cst_86 = arith.constant dense<0.000000e+00> : vector<8x8xf32>
    %229 = tpu.matmul %228, %212, %cst_86 {dimension_numbers = #tpu.dot_dimension_numbers<[1], [0], [0], [1], [0, 0, 1, 1], [], []>} : vector<8x8xf32>, vector<8x8xf32>, vector<8x8xf32> -> vector<8x8xf32>
    %230 = vector.extract_strided_slice %138 {offsets = [24, 0], sizes = [8, 32], strides = [1, 1]} : vector<32x32xf32> to vector<8x32xf32>
    %cst_87 = arith.constant dense<0.000000e+00> : vector<8x32xf32>
    %231 = tpu.matmul %229, %230, %cst_87 {dimension_numbers = #tpu.dot_dimension_numbers<[1], [0], [0], [1], [0, 0, 1, 1], [], []>} : vector<8x8xf32>, vector<8x32xf32>, vector<8x32xf32> -> vector<8x32xf32>
    %232 = arith.addf %209, %231 : vector<8x32xf32>
    %233 = vector.broadcast %139 : vector<1x32xf32> to vector<8x32xf32>
    %234 = arith.addf %232, %233 : vector<8x32xf32>
    %235 = arith.addf %234, %131 : vector<8x32xf32>
    %c0_88 = arith.constant 0 : index
    %c0_89 = arith.constant 0 : index
    %236 = vector.load %arg12[%c0_88, %c0_89] : memref<1x32xf32, #tpu.memory_space<vmem>>, vector<1x32xf32>
    %c0_90 = arith.constant 0 : index
    %c0_91 = arith.constant 0 : index
    %237 = vector.load %arg13[%c0_90, %c0_91] : memref<1x32xf32, #tpu.memory_space<vmem>>, vector<1x32xf32>
    %cst_92 = arith.constant dense<0.000000e+00> : vector<8xf32>
    %238 = vector.multi_reduction <add>, %235, %cst_92 [1] : vector<8x32xf32> to vector<8xf32>
    %239 = vector.shape_cast %238 : vector<8xf32> to vector<8x1xf32>
    %cst_93 = arith.constant 3.200000e+01 : f32
    %240 = vector.broadcast %cst_93 : f32 to vector<8x1xf32>
    %241 = arith.divf %239, %240 : vector<8x1xf32>
    %242 = vector.broadcast %241 : vector<8x1xf32> to vector<8x32xf32>
    %243 = arith.subf %235, %242 : vector<8x32xf32>
    %244 = arith.mulf %243, %243 : vector<8x32xf32>
    %cst_94 = arith.constant dense<0.000000e+00> : vector<8xf32>
    %245 = vector.multi_reduction <add>, %244, %cst_94 [1] : vector<8x32xf32> to vector<8xf32>
    %246 = vector.shape_cast %245 : vector<8xf32> to vector<8x1xf32>
    %cst_95 = arith.constant 3.200000e+01 : f32
    %247 = vector.broadcast %cst_95 : f32 to vector<8x1xf32>
    %248 = arith.divf %246, %247 : vector<8x1xf32>
    %cst_96 = arith.constant 9.99999974E-6 : f32
    %249 = vector.broadcast %cst_96 : f32 to vector<8x1xf32>
    %250 = arith.addf %248, %249 : vector<8x1xf32>
    %251 = math.rsqrt %250 : vector<8x1xf32>
    %252 = vector.broadcast %251 : vector<8x1xf32> to vector<8x32xf32>
    %253 = arith.mulf %243, %252 : vector<8x32xf32>
    %254 = vector.broadcast %236 : vector<1x32xf32> to vector<8x32xf32>
    %255 = arith.mulf %253, %254 : vector<8x32xf32>
    %256 = vector.broadcast %237 : vector<1x32xf32> to vector<8x32xf32>
    %257 = arith.addf %255, %256 : vector<8x32xf32>
    %c0_97 = arith.constant 0 : index
    %c0_98 = arith.constant 0 : index
    %258 = vector.load %arg14[%c0_97, %c0_98] : memref<32x2048xf32, #tpu.memory_space<vmem>>, vector<32x2048xf32>
    %cst_99 = arith.constant dense<0.000000e+00> : vector<8x2048xf32>
    %259 = tpu.matmul %257, %258, %cst_99 {dimension_numbers = #tpu.dot_dimension_numbers<[1], [0], [0], [1], [0, 0, 1, 1], [], []>} : vector<8x32xf32>, vector<32x2048xf32>, vector<8x2048xf32> -> vector<8x2048xf32>
    %c0_100 = arith.constant 0 : index
    %c0_101 = arith.constant 0 : index
    %260 = vector.load %arg15[%c0_100, %c0_101] : memref<1x2048xf32, #tpu.memory_space<vmem>>, vector<1x2048xf32>
    %261 = vector.broadcast %260 : vector<1x2048xf32> to vector<8x2048xf32>
    %262 = arith.addf %259, %261 : vector<8x2048xf32>
    %cst_102 = arith.constant 0.000000e+00 : f32
    %263 = vector.broadcast %cst_102 : f32 to vector<8x2048xf32>
    %264 = arith.maximumf %262, %263 : vector<8x2048xf32>
    %c0_103 = arith.constant 0 : index
    %c0_104 = arith.constant 0 : index
    %265 = vector.load %arg16[%c0_103, %c0_104] : memref<2048x32xf32, #tpu.memory_space<vmem>>, vector<2048x32xf32>
    %cst_105 = arith.constant dense<0.000000e+00> : vector<8x32xf32>
    %266 = tpu.matmul %264, %265, %cst_105 {dimension_numbers = #tpu.dot_dimension_numbers<[1], [0], [0], [1], [0, 0, 1, 1], [], []>} : vector<8x2048xf32>, vector<2048x32xf32>, vector<8x32xf32> -> vector<8x32xf32>
    %c0_106 = arith.constant 0 : index
    %c0_107 = arith.constant 0 : index
    %267 = vector.load %arg17[%c0_106, %c0_107] : memref<1x32xf32, #tpu.memory_space<vmem>>, vector<1x32xf32>
    %268 = vector.broadcast %267 : vector<1x32xf32> to vector<8x32xf32>
    %269 = arith.addf %266, %268 : vector<8x32xf32>
    %270 = arith.addf %269, %257 : vector<8x32xf32>
    %c0_108 = arith.constant 0 : index
    %c0_109 = arith.constant 0 : index
    %271 = vector.load %arg18[%c0_108, %c0_109] : memref<1x32xf32, #tpu.memory_space<vmem>>, vector<1x32xf32>
    %c0_110 = arith.constant 0 : index
    %c0_111 = arith.constant 0 : index
    %272 = vector.load %arg19[%c0_110, %c0_111] : memref<1x32xf32, #tpu.memory_space<vmem>>, vector<1x32xf32>
    %cst_112 = arith.constant dense<0.000000e+00> : vector<8xf32>
    %273 = vector.multi_reduction <add>, %270, %cst_112 [1] : vector<8x32xf32> to vector<8xf32>
    %274 = vector.shape_cast %273 : vector<8xf32> to vector<8x1xf32>
    %cst_113 = arith.constant 3.200000e+01 : f32
    %275 = vector.broadcast %cst_113 : f32 to vector<8x1xf32>
    %276 = arith.divf %274, %275 : vector<8x1xf32>
    %277 = vector.broadcast %276 : vector<8x1xf32> to vector<8x32xf32>
    %278 = arith.subf %270, %277 : vector<8x32xf32>
    %279 = arith.mulf %278, %278 : vector<8x32xf32>
    %cst_114 = arith.constant dense<0.000000e+00> : vector<8xf32>
    %280 = vector.multi_reduction <add>, %279, %cst_114 [1] : vector<8x32xf32> to vector<8xf32>
    %281 = vector.shape_cast %280 : vector<8xf32> to vector<8x1xf32>
    %cst_115 = arith.constant 3.200000e+01 : f32
    %282 = vector.broadcast %cst_115 : f32 to vector<8x1xf32>
    %283 = arith.divf %281, %282 : vector<8x1xf32>
    %cst_116 = arith.constant 9.99999974E-6 : f32
    %284 = vector.broadcast %cst_116 : f32 to vector<8x1xf32>
    %285 = arith.addf %283, %284 : vector<8x1xf32>
    %286 = math.rsqrt %285 : vector<8x1xf32>
    %287 = vector.broadcast %286 : vector<8x1xf32> to vector<8x32xf32>
    %288 = arith.mulf %278, %287 : vector<8x32xf32>
    %289 = vector.broadcast %271 : vector<1x32xf32> to vector<8x32xf32>
    %290 = arith.mulf %288, %289 : vector<8x32xf32>
    %291 = vector.broadcast %272 : vector<1x32xf32> to vector<8x32xf32>
    %292 = arith.addf %290, %291 : vector<8x32xf32>
    %c0_117 = arith.constant 0 : index
    %c0_118 = arith.constant 0 : index
    %c0_119 = arith.constant 0 : index
    %293 = vector.load %arg20[%c0_117, %c0_118, %c0_119] : memref<1x8x32xf32, #tpu.memory_space<vmem>>, vector<1x8x32xf32>
    %294 = vector.shape_cast %293 : vector<1x8x32xf32> to vector<8x32xf32>
    %295 = vector.shape_cast %292 : vector<8x32xf32> to vector<1x8x32xf32>
    tpu.vector_store %arg20[%c0_117, %c0_118, %c0_119], %295 {strides = array<i32>} : memref<1x8x32xf32, #tpu.memory_space<vmem>>, vector<1x8x32xf32>,
    return
  }
  func.func @transform_0(%arg0: i32) -> (i32, i32, i32) {
    %c0_i32 = arith.constant 0 : i32
    %c0_i32_0 = arith.constant 0 : i32
    %c0_i32_1 = arith.constant 0 : i32
    return %arg0, %c0_i32, %c0_i32_0 : i32, i32, i32
  }
  func.func @transform_1(%arg0: i32) -> (i32, i32, i32) {
    %c0_i32 = arith.constant 0 : i32
    %c0_i32_0 = arith.constant 0 : i32
    %c0_i32_1 = arith.constant 0 : i32
    return %arg0, %c0_i32, %c0_i32_0 : i32, i32, i32
  }
  func.func @transform_2(%arg0: i32) -> (i32, i32) {
    %c0_i32 = arith.constant 0 : i32
    %c0_i32_0 = arith.constant 0 : i32
    %c0_i32_1 = arith.constant 0 : i32
    return %c0_i32, %c0_i32_0 : i32, i32
  }
  func.func @transform_3(%arg0: i32) -> (i32, i32) {
    %c0_i32 = arith.constant 0 : i32
    %c0_i32_0 = arith.constant 0 : i32
    %c0_i32_1 = arith.constant 0 : i32
    return %c0_i32, %c0_i32_0 : i32, i32
  }
  func.func @transform_4(%arg0: i32) -> (i32, i32) {
    %c0_i32 = arith.constant 0 : i32
    %c0_i32_0 = arith.constant 0 : i32
    %c0_i32_1 = arith.constant 0 : i32
    return %c0_i32, %c0_i32_0 : i32, i32
  }
  func.func @transform_5(%arg0: i32) -> (i32, i32) {
    %c0_i32 = arith.constant 0 : i32
    %c0_i32_0 = arith.constant 0 : i32
    %c0_i32_1 = arith.constant 0 : i32
    return %c0_i32, %c0_i32_0 : i32, i32
  }
  func.func @transform_6(%arg0: i32) -> (i32, i32) {
    %c0_i32 = arith.constant 0 : i32
    %c0_i32_0 = arith.constant 0 : i32
    %c0_i32_1 = arith.constant 0 : i32
    return %c0_i32, %c0_i32_0 : i32, i32
  }
  func.func @transform_7(%arg0: i32) -> (i32, i32) {
    %c0_i32 = arith.constant 0 : i32
    %c0_i32_0 = arith.constant 0 : i32
    %c0_i32_1 = arith.constant 0 : i32
    return %c0_i32, %c0_i32_0 : i32, i32
  }
  func.func @transform_8(%arg0: i32) -> (i32, i32) {
    %c0_i32 = arith.constant 0 : i32
    %c0_i32_0 = arith.constant 0 : i32
    %c0_i32_1 = arith.constant 0 : i32
    return %c0_i32, %c0_i32_0 : i32, i32
  }
  func.func @transform_9(%arg0: i32) -> (i32, i32) {
    %c0_i32 = arith.constant 0 : i32
    %c0_i32_0 = arith.constant 0 : i32
    %c0_i32_1 = arith.constant 0 : i32
    return %c0_i32, %c0_i32_0 : i32, i32
  }
  func.func @transform_10(%arg0: i32) -> (i32, i32) {
    %c0_i32 = arith.constant 0 : i32
    %c0_i32_0 = arith.constant 0 : i32
    %c0_i32_1 = arith.constant 0 : i32
    return %c0_i32, %c0_i32_0 : i32, i32
  }
  func.func @transform_11(%arg0: i32) -> (i32, i32) {
    %c0_i32 = arith.constant 0 : i32
    %c0_i32_0 = arith.constant 0 : i32
    %c0_i32_1 = arith.constant 0 : i32
    return %c0_i32, %c0_i32_0 : i32, i32
  }
  func.func @transform_12(%arg0: i32) -> (i32, i32) {
    %c0_i32 = arith.constant 0 : i32
    %c0_i32_0 = arith.constant 0 : i32
    %c0_i32_1 = arith.constant 0 : i32
    return %c0_i32, %c0_i32_0 : i32, i32
  }
  func.func @transform_13(%arg0: i32) -> (i32, i32) {
    %c0_i32 = arith.constant 0 : i32
    %c0_i32_0 = arith.constant 0 : i32
    %c0_i32_1 = arith.constant 0 : i32
    return %c0_i32, %c0_i32_0 : i32, i32
  }
  func.func @transform_14(%arg0: i32) -> (i32, i32) {
    %c0_i32 = arith.constant 0 : i32
    %c0_i32_0 = arith.constant 0 : i32
    %c0_i32_1 = arith.constant 0 : i32
    return %c0_i32, %c0_i32_0 : i32, i32
  }
  func.func @transform_15(%arg0: i32) -> (i32, i32) {
    %c0_i32 = arith.constant 0 : i32
    %c0_i32_0 = arith.constant 0 : i32
    %c0_i32_1 = arith.constant 0 : i32
    return %c0_i32, %c0_i32_0 : i32, i32
  }
  func.func @transform_16(%arg0: i32) -> (i32, i32) {
    %c0_i32 = arith.constant 0 : i32
    %c0_i32_0 = arith.constant 0 : i32
    %c0_i32_1 = arith.constant 0 : i32
    return %c0_i32, %c0_i32_0 : i32, i32
  }
  func.func @transform_17(%arg0: i32) -> (i32, i32) {
    %c0_i32 = arith.constant 0 : i32
    %c0_i32_0 = arith.constant 0 : i32
    %c0_i32_1 = arith.constant 0 : i32
    return %c0_i32, %c0_i32_0 : i32, i32
  }
  func.func @transform_18(%arg0: i32) -> (i32, i32) {
    %c0_i32 = arith.constant 0 : i32
    %c0_i32_0 = arith.constant 0 : i32
    %c0_i32_1 = arith.constant 0 : i32
    return %c0_i32, %c0_i32_0 : i32, i32
  }
  func.func @transform_19(%arg0: i32) -> (i32, i32, i32) {
    %c0_i32 = arith.constant 0 : i32
    %c0_i32_0 = arith.constant 0 : i32
    %c0_i32_1 = arith.constant 0 : i32
    return %arg0, %c0_i32, %c0_i32_0 : i32, i32, i32
  }
}

</mosaic_0001>

<llo_original>
// kernel: transformer_forward.9
$region0: #{transformer_forward.9}
  #allocation0 [shape = 'u32[]', space=smem, size = 0x4, offset = 0x4, fixed_abs, tag = 'smem constant byte address 0x4 - core index']
  #allocation1 [shape = 'u32[144,128]{1,0:T(1,128)}', space=vmem, size = 0x12000, scoped, tag = 'internal scratch']
  %s0 = inlined_call_operand.vmem [shape: f32[16,32], index: 0, kind: input, shape index: {}]
  %s1 = inlined_call_operand.vmem [shape: f32[32,128], index: 1, kind: input, shape index: {}]
  %s2 = inlined_call_operand.vmem [shape: f32[1,128], index: 2, kind: input, shape index: {}]
  %s3 = inlined_call_operand.hbm [shape: f32[16,128], index: 3, kind: output, shape index: {}]
  %s4 = sld [smem:[#allocation0]]
  $region22: #{transformer_forward.9} parent=0
    _
  %s6 = ssub.s32 1, %s4
  %s7 = scalar_select 0, %s6, %s4
  $region1: #{transformer_forward.9} parent=0
    #allocation2 [shape = 'u8[8192]{0}', space=vmem, size = 0x2000, scoped, tag = 'output window, operand 0, single buffered']
    #allocation3 [shape = 's32[1]{0}', space=sflag, size = 0x4, scoped, tag = 'scoped memory for transformer_forward.9']
    %8 = vsyncpa [#allocation3], 0
    // Predicated region
    $region2: #{transformer_forward.9} parent=1 // pred_check
      _
    $region3: #{transformer_forward.9} parent=1 // pred_check_branch
      %10 = sbr.rel (0) target = $region5
    $region4: #{transformer_forward.9} parent=1 // pred_region
      _
    $region5: #{transformer_forward.9} parent=1 // pred_fallthru
      _
    // Predicated region
    $region6: #{transformer_forward.9} parent=1 // pred_check
      _
    $region7: #{transformer_forward.9} parent=1 // pred_check_branch
      %12 = sbr.rel (0) target = $region9
    $region8: #{transformer_forward.9} parent=1 // pred_region
      _
    $region9: #{transformer_forward.9} parent=1 // pred_fallthru
      _
    // Predicated region
    $region10: #{transformer_forward.9} parent=1 // pred_check
      _
    $region11: #{transformer_forward.9} parent=1 // pred_check_branch
      %14 = sbr.rel (0) target = $region13
    $region12: #{transformer_forward.9} parent=1 // pred_region
      _
    $region13: #{transformer_forward.9} parent=1 // pred_fallthru
      _
    %v15 = vld [vmem:[%s0] sm:$0xff]
    %v16 = vld [vmem:[%s0 + $0x8] sm:$0xff]
    %v17 = vld [vmem:[%s1] sm:$0xff]
    %v18 = vld [vmem:[%s1 + $0x8] sm:$0xff]
    %v19 = vld [vmem:[%s1 + $0x10] sm:$0xff]
    %v20 = vld [vmem:[%s1 + $0x18] sm:$0xff]
    %v21 = vld [vmem:[%s2] sm:$0x1]
    %v23 = vlaneseq
    %v24 = vshrl.u32 %v23, 7
    %v25 = vsub.s32 0, %v24
    %v26 = vrot.slane %v21, %v25
    %vm28 = vcmask 261120
    %v30 = vsel %vm28, %v15, 0
    %v33 = vsel %vm28, %v16, 0
    %35 = vmatprep.subr.mxu0 0.0
    %36 = vmatpush1.msra.mxu0 0.0
    %37 = vmatprep.subr.mxu0 0.0
    %38 = vmatpush1.msra.mxu0 0.0
    %39 = vmatprep.subr.mxu0 0.0
    %40 = vmatpush1.msra.mxu0 0.0
    %41 = vmatprep.subr.mxu0 0.0
    %42 = vmatpush1.msra.mxu0 0.0
    %43 = vmatprep.subr.mxu0 0.0
    %44 = vmatpush1.msra.mxu0 0.0
    %45 = vmatprep.subr.mxu0 0.0
    %46 = vmatpush1.msra.mxu0 0.0
    %47 = vmatprep.subr.mxu0 0.0
    %48 = vmatpush1.msra.mxu0 0.0
    %49 = vmatprep.subr.mxu0 0.0
    %50 = vmatpush1.msra.mxu0 0.0
    %51 = vmatprep.subr.mxu0 0.0
    %52 = vmatpush1.msra.mxu0 0.0
    %53 = vmatprep.subr.mxu0 0.0
    %54 = vmatpush1.msra.mxu0 0.0
    %55 = vmatprep.subr.mxu0 0.0
    %56 = vmatpush1.msra.mxu0 0.0
    %57 = vmatprep.subr.mxu0 0.0
    %58 = vmatpush1.msra.mxu0 0.0
    %59 = vmatprep.subr.mxu0 0.0
    %60 = vmatpush1.msra.mxu0 %v20
    %61 = vmatprep.subr.mxu0 0.0
    %62 = vmatpush1.msra.mxu0 %v19
    %63 = vmatprep.subr.mxu0 0.0
    %64 = vmatpush1.msra.mxu0 %v18
    %65 = vmatprep.subr.mxu0 0.0
    %66 = vmatpush1.msra.mxu0 %v17
    %67 = vmatprep.subr.mxu0 0.0
    %68 = vmatpush2.msra.mxu0 0.0
    %69 = vmatprep.subr.mxu0 0.0
    %70 = vmatpush2.msra.mxu0 0.0
    %71 = vmatprep.subr.mxu0 0.0
    %72 = vmatpush2.msra.mxu0 0.0
    %73 = vmatprep.subr.mxu0 0.0
    %74 = vmatpush2.msra.mxu0 0.0
    %75 = vmatprep.subr.mxu0 0.0
    %76 = vmatpush2.msra.mxu0 0.0
    %77 = vmatprep.subr.mxu0 0.0
    %78 = vmatpush2.msra.mxu0 0.0
    %79 = vmatprep.subr.mxu0 0.0
    %80 = vmatpush2.msra.mxu0 0.0
    %81 = vmatprep.subr.mxu0 0.0
    %82 = vmatpush2.msra.mxu0 0.0
    %83 = vmatprep.subr.mxu0 0.0
    %84 = vmatpush2.msra.mxu0 0.0
    %85 = vmatprep.subr.mxu0 0.0
    %86 = vmatpush2.msra.mxu0 0.0
    %87 = vmatprep.subr.mxu0 0.0
    %88 = vmatpush2.msra.mxu0 0.0
    %89 = vmatprep.subr.mxu0 0.0
    %90 = vmatpush2.msra.mxu0 0.0
    %91 = vmatprep.subr.mxu0 0.0
    %92 = vmatpush2.msra.mxu0 0.0
    %93 = vmatprep.subr.mxu0 0.0
    %94 = vmatpush2.msra.mxu0 0.0
    %95 = vmatprep.subr.mxu0 0.0
    %96 = vmatpush2.msra.mxu0 0.0
    %97 = vmatprep.subr.mxu0 0.0
    %98 = vmatpush2.msra.mxu0 0.0
    %99 = vmatprep.mubr.f32.mxu0 0.0
    %100 = vmatmul.mubr.f32.gmra.mxu0 %v30
    %v101 = vpop.f32.mrf.mxu0
    %v102 = vadd.f32 %v26, %v101
    %v103 = vpop.f32.mrf.mxu0
    %104 = vmatprep.mubr.f32.mxu0 0.0
    %105 = vmatmul.mubr.f32.gmra.mxu0 %v33
    %v106 = vpop.f32.mrf.mxu0
    %v107 = vadd.f32 %v26, %v106
    %v108 = vpop.f32.mrf.mxu0
    %109 = vdwg.mxu0
    %110 = vst [vmem:[#allocation2] sm:$0xff] %v102
    %111 = vst [vmem:[#allocation2 + $0x8] sm:$0xff] %v107
    // Predicated region
    $region14: #{transformer_forward.9} parent=1 // pred_check
      _
    $region15: #{transformer_forward.9} parent=1 // pred_check_branch
      %113 = sbr.rel (0) target = $region17
    $region16: #{transformer_forward.9} parent=1 // pred_region
      %s115 = ssub.s32 256, 256
      %116 = vsyncadd [#allocation3], %s115
      %s117 = sshll.u32 [#allocation2], 4
      %s118 = int_to_ptr.vmem [resolvable:$true] %s117
      %123 = dma.vmem_to_hbm [thread:$0]  %s118, 256, %s3, [#allocation3], 128, 128, 8
    $region17: #{transformer_forward.9} parent=1 // pred_fallthru
      _
    // Predicated region
    $region18: #{transformer_forward.9} parent=1 // pred_check
      _
    $region19: #{transformer_forward.9} parent=1 // pred_check_branch
      %125 = sbr.rel (0) target = $region21
    $region20: #{transformer_forward.9} parent=1 // pred_region
      %126 = dma.done [#allocation3], 256
    $region21: #{transformer_forward.9} parent=1 // pred_fallthru
      _
    %127 = vsyncpa [#allocation3], 1

// kernel: transformer_forward.5
$region0: #{transformer_forward.5}
  #allocation0 [shape = 'u32[]', space=smem, size = 0x4, offset = 0x4, fixed_abs, tag = 'smem constant byte address 0x4 - core index']
  #allocation1 [shape = 'u32[144,128]{1,0:T(1,128)}', space=vmem, size = 0x12000, scoped, tag = 'internal scratch']
  %s0 = inlined_call_operand.vmem [shape: f32[2,8,32], index: 0, kind: input, shape index: {}]
  %s1 = inlined_call_operand.vmem [shape: f32[32,96], index: 1, kind: input, shape index: {}]
  %s2 = inlined_call_operand.vmem [shape: f32[32,32], index: 2, kind: input, shape index: {}]
  %s3 = inlined_call_operand.vmem [shape: f32[1,32], index: 3, kind: input, shape index: {}]
  %s4 = inlined_call_operand.vmem [shape: f32[1,32], index: 4, kind: input, shape index: {}]
  %s5 = inlined_call_operand.vmem [shape: f32[1,32], index: 5, kind: input, shape index: {}]
  %s6 = inlined_call_operand.vmem [shape: f32[32,2048], index: 6, kind: input, shape index: {}]
  %s7 = inlined_call_operand.vmem [shape: f32[1,2048], index: 7, kind: input, shape index: {}]
  %s8 = inlined_call_operand.vmem [shape: f32[2048,32], index: 8, kind: input, shape index: {}]
  %s9 = inlined_call_operand.vmem [shape: f32[1,32], index: 9, kind: input, shape index: {}]
  %s10 = inlined_call_operand.vmem [shape: f32[1,32], index: 10, kind: input, shape index: {}]
  %s11 = inlined_call_operand.vmem [shape: f32[1,32], index: 11, kind: input, shape index: {}]
  %s12 = inlined_call_operand.vmem [shape: f32[2,8,32], index: 12, kind: output, shape index: {}]
  %s13 = sld [smem:[#allocation0]]
  $region81: #{transformer_forward.5} parent=0
    _
  %s15 = ssub.s32 1, %s13
  %s16 = scalar_select 0, %s15, %s13
  loop: start=0, step=1, limit=4
  $region2: #{transformer_forward.5} parent=0 // loop_pre_header
    _
  $region3: #{transformer_forward.5} parent=0 // loop_header
    %s18 = sphi 0, %s22
    %p19 = scmp.ge.s32.totalorder %s18, 4
    %s28 = sphi 0, %s30
    %s31 = sphi 0, %s28
    %s32 = sphi 0, %s31
    %s48 = sphi 0, %s32
    %s52 = sphi 0, %s52
    %s54 = sphi 0, %s52
    %s55 = sphi 0, %s54
    %s69 = sphi 0, %s55
    %s73 = sphi 0, %s73
    %s75 = sphi 0, %s73
    %s76 = sphi 0, %s75
    %s90 = sphi 0, %s76
    %s94 = sphi 0, %s94
    %s96 = sphi 0, %s94
    %s97 = sphi 0, %s96
    %s111 = sphi 0, %s97
    %s115 = sphi 0, %s115
    %s117 = sphi 0, %s115
    %s118 = sphi 0, %s117
    %s132 = sphi 0, %s118
    %s136 = sphi 0, %s136
    %s138 = sphi 0, %s136
    %s139 = sphi 0, %s138
    %s153 = sphi 0, %s139
    %s157 = sphi 0, %s157
    %s159 = sphi 0, %s157
    %s160 = sphi 0, %s159
    %s174 = sphi 0, %s160
    %s178 = sphi 0, %s178
    %s180 = sphi 0, %s178
    %s181 = sphi 0, %s180
    %s195 = sphi 0, %s181
    %s199 = sphi 0, %s199
    %s201 = sphi 0, %s199
    %s202 = sphi 0, %s201
    %s216 = sphi 0, %s202
    %s220 = sphi 0, %s220
    %s222 = sphi 0, %s220
    %s223 = sphi 0, %s222
    %s237 = sphi 0, %s223
    %s241 = sphi 0, %s241
    %s243 = sphi 0, %s241
    %s244 = sphi 0, %s243
    %s258 = sphi 0, %s244
    %s262 = sphi 0, %s262
    %s264 = sphi 0, %s262
    %s265 = sphi 0, %s264
    %s279 = sphi 0, %s265
    %s285 = sphi 0, %s287
    %s288 = sphi 0, %s285
    %s289 = sphi 0, %s288
    %s305 = sphi 0, %s289
  $region4: #{transformer_forward.5} parent=0 // loop_header_branch
    %21 = sbr.rel (%p19) target = $region8
  $region5: #{transformer_forward.5} parent=0 // loop_body
    %s23 = ssub.s32 %s18, 1
    %s24 = ssub.s32 %s18, 2
    %s25 = sadd.s32 %s18, 1
    %s26 = ssub.s32 %s18, %s25
    %p27 = scmp.eq.s32.totalorder %s26, 0
    %s29 = sadd.s32 %s28, 1
    %s30 = scalar_select %p27, %s28, %s29
    %p33 = pneg %p27
    %p34 = scmp.eq.s32.totalorder %s18, 1
    %p35 = por %p33, %p34
    %p36 = scmp.ne.s32.totalorder %s28, %s31
    %p37 = scmp.eq.s32.totalorder %s18, 0
    %p38 = por %p36, %p37
    %p39 = scmp.ne.s32.totalorder %s28, %s31
    %p40 = scmp.eq.s32.totalorder %s23, 1
    %p41 = por %p39, %p40
    %p42 = scmp.ne.s32.totalorder %s31, %s32
    %p43 = scmp.eq.s32.totalorder %s23, 0
    %p44 = por %p42, %p43
    %p45 = scmp.ne.s32.totalorder %s31, %s32
    %p46 = scmp.eq.s32.totalorder %s24, 1
    %p47 = por %p45, %p46
    %p49 = scmp.ne.s32.totalorder %s32, %s48
    %p50 = scmp.eq.s32.totalorder %s24, 0
    %p51 = por %p49, %p50
    %s53 = sadd.s32 %s52, 1
    %p56 = scmp.eq.s32.totalorder %s18, 1
    %p57 = scmp.ne.s32.totalorder %s52, %s54
    %p58 = scmp.eq.s32.totalorder %s18, 0
    %p59 = por %p57, %p58
    %p60 = scmp.ne.s32.totalorder %s52, %s54
    %p61 = scmp.eq.s32.totalorder %s23, 1
    %p62 = por %p60, %p61
    %p63 = scmp.ne.s32.totalorder %s54, %s55
    %p64 = scmp.eq.s32.totalorder %s23, 0
    %p65 = por %p63, %p64
    %p66 = scmp.ne.s32.totalorder %s54, %s55
    %p67 = scmp.eq.s32.totalorder %s24, 1
    %p68 = por %p66, %p67
    %p70 = scmp.ne.s32.totalorder %s55, %s69
    %p71 = scmp.eq.s32.totalorder %s24, 0
    %p72 = por %p70, %p71
    %s74 = sadd.s32 %s73, 1
    %p77 = scmp.eq.s32.totalorder %s18, 1
    %p78 = scmp.ne.s32.totalorder %s73, %s75
    %p79 = scmp.eq.s32.totalorder %s18, 0
    %p80 = por %p78, %p79
    %p81 = scmp.ne.s32.totalorder %s73, %s75
    %p82 = scmp.eq.s32.totalorder %s23, 1
    %p83 = por %p81, %p82
    %p84 = scmp.ne.s32.totalorder %s75, %s76
    %p85 = scmp.eq.s32.totalorder %s23, 0
    %p86 = por %p84, %p85
    %p87 = scmp.ne.s32.totalorder %s75, %s76
    %p88 = scmp.eq.s32.totalorder %s24, 1
    %p89 = por %p87, %p88
    %p91 = scmp.ne.s32.totalorder %s76, %s90
    %p92 = scmp.eq.s32.totalorder %s24, 0
    %p93 = por %p91, %p92
    %s95 = sadd.s32 %s94, 1
    %p98 = scmp.eq.s32.totalorder %s18, 1
    %p99 = scmp.ne.s32.totalorder %s94, %s96
    %p100 = scmp.eq.s32.totalorder %s18, 0
    %p101 = por %p99, %p100
    %p102 = scmp.ne.s32.totalorder %s94, %s96
    %p103 = scmp.eq.s32.totalorder %s23, 1
    %p104 = por %p102, %p103
    %p105 = scmp.ne.s32.totalorder %s96, %s97
    %p106 = scmp.eq.s32.totalorder %s23, 0
    %p107 = por %p105, %p106
    %p108 = scmp.ne.s32.totalorder %s96, %s97
    %p109 = scmp.eq.s32.totalorder %s24, 1
    %p110 = por %p108, %p109
    %p112 = scmp.ne.s32.totalorder %s97, %s111
    %p113 = scmp.eq.s32.totalorder %s24, 0
    %p114 = por %p112, %p113
    %s116 = sadd.s32 %s115, 1
    %p119 = scmp.eq.s32.totalorder %s18, 1
    %p120 = scmp.ne.s32.totalorder %s115, %s117
    %p121 = scmp.eq.s32.totalorder %s18, 0
    %p122 = por %p120, %p121
    %p123 = scmp.ne.s32.totalorder %s115, %s117
    %p124 = scmp.eq.s32.totalorder %s23, 1
    %p125 = por %p123, %p124
    %p126 = scmp.ne.s32.totalorder %s117, %s118
    %p127 = scmp.eq.s32.totalorder %s23, 0
    %p128 = por %p126, %p127
    %p129 = scmp.ne.s32.totalorder %s117, %s118
    %p130 = scmp.eq.s32.totalorder %s24, 1
    %p131 = por %p129, %p130
    %p133 = scmp.ne.s32.totalorder %s118, %s132
    %p134 = scmp.eq.s32.totalorder %s24, 0
    %p135 = por %p133, %p134
    %s137 = sadd.s32 %s136, 1
    %p140 = scmp.eq.s32.totalorder %s18, 1
    %p141 = scmp.ne.s32.totalorder %s136, %s138
    %p142 = scmp.eq.s32.totalorder %s18, 0
    %p143 = por %p141, %p142
    %p144 = scmp.ne.s32.totalorder %s136, %s138
    %p145 = scmp.eq.s32.totalorder %s23, 1
    %p146 = por %p144, %p145
    %p147 = scmp.ne.s32.totalorder %s138, %s139
    %p148 = scmp.eq.s32.totalorder %s23, 0
    %p149 = por %p147, %p148
    %p150 = scmp.ne.s32.totalorder %s138, %s139
    %p151 = scmp.eq.s32.totalorder %s24, 1
    %p152 = por %p150, %p151
    %p154 = scmp.ne.s32.totalorder %s139, %s153
    %p155 = scmp.eq.s32.totalorder %s24, 0
    %p156 = por %p154, %p155
    %s158 = sadd.s32 %s157, 1
    %p161 = scmp.eq.s32.totalorder %s18, 1
    %p162 = scmp.ne.s32.totalorder %s157, %s159
    %p163 = scmp.eq.s32.totalorder %s18, 0
    %p164 = por %p162, %p163
    %p165 = scmp.ne.s32.totalorder %s157, %s159
    %p166 = scmp.eq.s32.totalorder %s23, 1
    %p167 = por %p165, %p166
    %p168 = scmp.ne.s32.totalorder %s159, %s160
    %p169 = scmp.eq.s32.totalorder %s23, 0
    %p170 = por %p168, %p169
    %p171 = scmp.ne.s32.totalorder %s159, %s160
    %p172 = scmp.eq.s32.totalorder %s24, 1
    %p173 = por %p171, %p172
    %p175 = scmp.ne.s32.totalorder %s160, %s174
    %p176 = scmp.eq.s32.totalorder %s24, 0
    %p177 = por %p175, %p176
    %s179 = sadd.s32 %s178, 1
    %p182 = scmp.eq.s32.totalorder %s18, 1
    %p183 = scmp.ne.s32.totalorder %s178, %s180
    %p184 = scmp.eq.s32.totalorder %s18, 0
    %p185 = por %p183, %p184
    %p186 = scmp.ne.s32.totalorder %s178, %s180
    %p187 = scmp.eq.s32.totalorder %s23, 1
    %p188 = por %p186, %p187
    %p189 = scmp.ne.s32.totalorder %s180, %s181
    %p190 = scmp.eq.s32.totalorder %s23, 0
    %p191 = por %p189, %p190
    %p192 = scmp.ne.s32.totalorder %s180, %s181
    %p193 = scmp.eq.s32.totalorder %s24, 1
    %p194 = por %p192, %p193
    %p196 = scmp.ne.s32.totalorder %s181, %s195
    %p197 = scmp.eq.s32.totalorder %s24, 0
    %p198 = por %p196, %p197
    %s200 = sadd.s32 %s199, 1
    %p203 = scmp.eq.s32.totalorder %s18, 1
    %p204 = scmp.ne.s32.totalorder %s199, %s201
    %p205 = scmp.eq.s32.totalorder %s18, 0
    %p206 = por %p204, %p205
    %p207 = scmp.ne.s32.totalorder %s199, %s201
    %p208 = scmp.eq.s32.totalorder %s23, 1
    %p209 = por %p207, %p208
    %p210 = scmp.ne.s32.totalorder %s201, %s202
    %p211 = scmp.eq.s32.totalorder %s23, 0
    %p212 = por %p210, %p211
    %p213 = scmp.ne.s32.totalorder %s201, %s202
    %p214 = scmp.eq.s32.totalorder %s24, 1
    %p215 = por %p213, %p214
    %p217 = scmp.ne.s32.totalorder %s202, %s216
    %p218 = scmp.eq.s32.totalorder %s24, 0
    %p219 = por %p217, %p218
    %s221 = sadd.s32 %s220, 1
    %p224 = scmp.eq.s32.totalorder %s18, 1
    %p225 = scmp.ne.s32.totalorder %s220, %s222
    %p226 = scmp.eq.s32.totalorder %s18, 0
    %p227 = por %p225, %p226
    %p228 = scmp.ne.s32.totalorder %s220, %s222
    %p229 = scmp.eq.s32.totalorder %s23, 1
    %p230 = por %p228, %p229
    %p231 = scmp.ne.s32.totalorder %s222, %s223
    %p232 = scmp.eq.s32.totalorder %s23, 0
    %p233 = por %p231, %p232
    %p234 = scmp.ne.s32.totalorder %s222, %s223
    %p235 = scmp.eq.s32.totalorder %s24, 1
    %p236 = por %p234, %p235
    %p238 = scmp.ne.s32.totalorder %s223, %s237
    %p239 = scmp.eq.s32.totalorder %s24, 0
    %p240 = por %p238, %p239
    %s242 = sadd.s32 %s241, 1
    %p245 = scmp.eq.s32.totalorder %s18, 1
    %p246 = scmp.ne.s32.totalorder %s241, %s243
    %p247 = scmp.eq.s32.totalorder %s18, 0
    %p248 = por %p246, %p247
    %p249 = scmp.ne.s32.totalorder %s241, %s243
    %p250 = scmp.eq.s32.totalorder %s23, 1
    %p251 = por %p249, %p250
    %p252 = scmp.ne.s32.totalorder %s243, %s244
    %p253 = scmp.eq.s32.totalorder %s23, 0
    %p254 = por %p252, %p253
    %p255 = scmp.ne.s32.totalorder %s243, %s244
    %p256 = scmp.eq.s32.totalorder %s24, 1
    %p257 = por %p255, %p256
    %p259 = scmp.ne.s32.totalorder %s244, %s258
    %p260 = scmp.eq.s32.totalorder %s24, 0
    %p261 = por %p259, %p260
    %s263 = sadd.s32 %s262, 1
    %p266 = scmp.eq.s32.totalorder %s18, 1
    %p267 = scmp.ne.s32.totalorder %s262, %s264
    %p268 = scmp.eq.s32.totalorder %s18, 0
    %p269 = por %p267, %p268
    %p270 = scmp.ne.s32.totalorder %s262, %s264
    %p271 = scmp.eq.s32.totalorder %s23, 1
    %p272 = por %p270, %p271
    %p273 = scmp.ne.s32.totalorder %s264, %s265
    %p274 = scmp.eq.s32.totalorder %s23, 0
    %p275 = por %p273, %p274
    %p276 = scmp.ne.s32.totalorder %s264, %s265
    %p277 = scmp.eq.s32.totalorder %s24, 1
    %p278 = por %p276, %p277
    %p280 = scmp.ne.s32.totalorder %s265, %s279
    %p281 = scmp.eq.s32.totalorder %s24, 0
    %p282 = por %p280, %p281
    %s283 = ssub.s32 %s18, %s25
    %p284 = scmp.eq.s32.totalorder %s283, 0
    %s286 = sadd.s32 %s285, 1
    %s287 = scalar_select %p284, %s285, %s286
    %p290 = pneg %p284
    %p291 = scmp.eq.s32.totalorder %s18, 1
    %p292 = por %p290, %p291
    %p293 = scmp.ne.s32.totalorder %s285, %s288
    %p294 = scmp.eq.s32.totalorder %s18, 0
    %p295 = por %p293, %p294
    %p296 = scmp.ne.s32.totalorder %s285, %s288
    %p297 = scmp.eq.s32.totalorder %s23, 1
    %p298 = por %p296, %p297
    %p299 = scmp.ne.s32.totalorder %s288, %s289
    %p300 = scmp.eq.s32.totalorder %s23, 0
    %p301 = por %p299, %p300
    %p302 = scmp.ne.s32.totalorder %s288, %s289
    %p303 = scmp.eq.s32.totalorder %s24, 1
    %p304 = por %p302, %p303
    %p306 = scmp.ne.s32.totalorder %s289, %s305
    %p307 = scmp.eq.s32.totalorder %s24, 0
    %p308 = por %p306, %p307
    %p309 = scmp.le.s32.totalorder 1, %s18
    %p310 = scmp.lt.s32.totalorder %s18, 3
    %p311 = pnand %p309, %p310
    %p312 = pneg %p311
    // Predicated region
    $region9: #{transformer_forward.5} parent=5 // pred_check
      _
    $region10: #{transformer_forward.5} parent=5 // pred_check_branch
      %314 = sbr.rel (%p311) target = $region12
    $region11: #{transformer_forward.5} parent=5 // pred_region
      %s315 = ssub.s32 %s18, 1
      // Predicated region
      $region13: #{transformer_forward.5} parent=11 // pred_check
        %p316 = pneg %p65
      $region14: #{transformer_forward.5} parent=11 // pred_check_branch
        %318 = sbr.rel (%p316) target = $region16
      $region15: #{transformer_forward.5} parent=11 // pred_region
        _
      $region16: #{transformer_forward.5} parent=11 // pred_fallthru
        _
      // Predicated region
      $region17: #{transformer_forward.5} parent=11 // pred_check
        %p319 = pneg %p86
      $region18: #{transformer_forward.5} parent=11 // pred_check_branch
        %321 = sbr.rel (%p319) target = $region20
      $region19: #{transformer_forward.5} parent=11 // pred_region
        _
      $region20: #{transformer_forward.5} parent=11 // pred_fallthru
        _
      // Predicated region
      $region21: #{transformer_forward.5} parent=11 // pred_check
        %p322 = pneg %p107
      $region22: #{transformer_forward.5} parent=11 // pred_check_branch
        %324 = sbr.rel (%p322) target = $region24
      $region23: #{transformer_forward.5} parent=11 // pred_region
        _
      $region24: #{transformer_forward.5} parent=11 // pred_fallthru
        _
      // Predicated region
      $region25: #{transformer_forward.5} parent=11 // pred_check
        %p325 = pneg %p128
      $region26: #{transformer_forward.5} parent=11 // pred_check_branch
        %327 = sbr.rel (%p325) target = $region28
      $region27: #{transformer_forward.5} parent=11 // pred_region
        _
      $region28: #{transformer_forward.5} parent=11 // pred_fallthru
        _
      // Predicated region
      $region29: #{transformer_forward.5} parent=11 // pred_check
        %p328 = pneg %p149
      $region30: #{transformer_forward.5} parent=11 // pred_check_branch
        %330 = sbr.rel (%p328) target = $region32
      $region31: #{transformer_forward.5} parent=11 // pred_region
        _
      $region32: #{transformer_forward.5} parent=11 // pred_fallthru
        _
      // Predicated region
      $region33: #{transformer_forward.5} parent=11 // pred_check
        %p331 = pneg %p170
      $region34: #{transformer_forward.5} parent=11 // pred_check_branch
        %333 = sbr.rel (%p331) target = $region36
      $region35: #{transformer_forward.5} parent=11 // pred_region
        _
      $region36: #{transformer_forward.5} parent=11 // pred_fallthru
        _
      // Predicated region
      $region37: #{transformer_forward.5} parent=11 // pred_check
        %p334 = pneg %p191
      $region38: #{transformer_forward.5} parent=11 // pred_check_branch
        %336 = sbr.rel (%p334) target = $region40
      $region39: #{transformer_forward.5} parent=11 // pred_region
        _
      $region40: #{transformer_forward.5} parent=11 // pred_fallthru
        _
      // Predicated region
      $region41: #{transformer_forward.5} parent=11 // pred_check
        %p337 = pneg %p212
      $region42: #{transformer_forward.5} parent=11 // pred_check_branch
        %339 = sbr.rel (%p337) target = $region44
      $region43: #{transformer_forward.5} parent=11 // pred_region
        _
      $region44: #{transformer_forward.5} parent=11 // pred_fallthru
        _
      // Predicated region
      $region45: #{transformer_forward.5} parent=11 // pred_check
        %p340 = pneg %p233
      $region46: #{transformer_forward.5} parent=11 // pred_check_branch
        %342 = sbr.rel (%p340) target = $region48
      $region47: #{transformer_forward.5} parent=11 // pred_region
        _
      $region48: #{transformer_forward.5} parent=11 // pred_fallthru
        _
      // Predicated region
      $region49: #{transformer_forward.5} parent=11 // pred_check
        %p343 = pneg %p254
      $region50: #{transformer_forward.5} parent=11 // pred_check_branch
        %345 = sbr.rel (%p343) target = $region52
      $region51: #{transformer_forward.5} parent=11 // pred_region
        _
      $region52: #{transformer_forward.5} parent=11 // pred_fallthru
        _
      // Predicated region
      $region53: #{transformer_forward.5} parent=11 // pred_check
        %p346 = pneg %p275
      $region54: #{transformer_forward.5} parent=11 // pred_check_branch
        %348 = sbr.rel (%p346) target = $region56
      $region55: #{transformer_forward.5} parent=11 // pred_region
        _
      $region56: #{transformer_forward.5} parent=11 // pred_fallthru
        _
    $region12: #{transformer_forward.5} parent=5 // pred_fallthru
      _
    %p349 = scmp.lt.s32.totalorder %s18, 2
    // Predicated region
    $region57: #{transformer_forward.5} parent=5 // pred_check
      %p350 = pneg %p349
    $region58: #{transformer_forward.5} parent=5 // pred_check_branch
      %352 = sbr.rel (%p350) target = $region60
    $region59: #{transformer_forward.5} parent=5 // pred_region
      // Predicated region
      $region61: #{transformer_forward.5} parent=59 // pred_check
        %p353 = pneg %p38
      $region62: #{transformer_forward.5} parent=59 // pred_check_branch
        %355 = sbr.rel (%p353) target = $region64
      $region63: #{transformer_forward.5} parent=59 // pred_region
        %p356 = scmp.lt.s32.totalorder %s18, 1
        %s357 = scalar_select %p356, %s18, 1
        %s358 = smul.addr %s357, 8
        %s359 = scalar_lea.vmem %s0, %s358
      $region64: #{transformer_forward.5} parent=59 // pred_fallthru
        _
    $region60: #{transformer_forward.5} parent=5 // pred_fallthru
      _
    %p360 = scmp.le.s32.totalorder 1, %s18
    %p361 = scmp.lt.s32.totalorder %s18, 3
    %p362 = pnand %p360, %p361
    %p363 = pneg %p362
    // Predicated region
    $region65: #{transformer_forward.5} parent=5 // pred_check
      _
    $region66: #{transformer_forward.5} parent=5 // pred_check_branch
      %365 = sbr.rel (%p362) target = $region68
    $region67: #{transformer_forward.5} parent=5 // pred_region
      %s366 = ssub.s32 %s18, 1
      %p367 = scmp.lt.s32.totalorder %s23, 1
      %s368 = scalar_select %p367, %s23, 1
      %s369 = smul.addr %s368, 8
      %s370 = scalar_lea.vmem %s0, %s369
      %p371 = pneg %p44
      %p372 = pneg %p41
      %p373 = pneg %p65
      %p374 = pneg %p62
      %p375 = pneg %p86
      %p376 = pneg %p83
      %p377 = pneg %p107
      %p378 = pneg %p104
      %p379 = pneg %p128
      %p380 = pneg %p125
      %p381 = pneg %p149
      %p382 = pneg %p146
      %p383 = pneg %p170
      %p384 = pneg %p167
      %p385 = pneg %p191
      %p386 = pneg %p188
      %p387 = pneg %p212
      %p388 = pneg %p209
      %p389 = pneg %p233
      %p390 = pneg %p230
      %p391 = pneg %p254
      %p392 = pneg %p251
      %p393 = pneg %p275
      %p394 = pneg %p272
      %p395 = pneg %p301
      %p396 = pneg %p298
      %p397 = scmp.lt.s32.totalorder %s23, 1
      %s398 = scalar_select %p397, %s23, 1
      %s399 = smul.addr %s398, 8
      %s400 = scalar_lea.vmem %s12, %s399
      %p401 = scmp.lt.s32.totalorder %s23, 1
      %s402 = scalar_select %p401, %s23, 1
      %s403 = smul.addr %s402, 8
      %s404 = scalar_lea.vmem %s0, %s403
      %p405 = scmp.lt.s32.totalorder %s23, 1
      %s406 = scalar_select %p405, %s23, 1
      %s407 = smul.addr %s406, 8
      %s408 = scalar_lea.vmem %s12, %s407
      %v409 = vld [vmem:[%s404] sm:$0xff]
      %v410 = vld [vmem:[%s1] sm:$0xff]
      %v411 = vld [vmem:[%s1 + $0x8] sm:$0xff]
      %v412 = vld [vmem:[%s1 + $0x10] sm:$0xff]
      %v413 = vld [vmem:[%s1 + $0x18] sm:$0xff]
      %vm414 = vcmask 261120
      %v416 = vsel %vm414, %v409, 0
      %418 = vmatprep.subr.mxu0 0.0
      %419 = vmatpush1.msra.mxu0 0.0
      %420 = vmatprep.subr.mxu0 0.0
      %421 = vmatpush1.msra.mxu0 0.0
      %422 = vmatprep.subr.mxu0 0.0
      %423 = vmatpush1.msra.mxu0 0.0
      %424 = vmatprep.subr.mxu0 0.0
      %425 = vmatpush1.msra.mxu0 0.0
      %426 = vmatprep.subr.mxu0 0.0
      %427 = vmatpush1.msra.mxu0 0.0
      %428 = vmatprep.subr.mxu0 0.0
      %429 = vmatpush1.msra.mxu0 0.0
      %430 = vmatprep.subr.mxu0 0.0
      %431 = vmatpush1.msra.mxu0 0.0
      %432 = vmatprep.subr.mxu0 0.0
      %433 = vmatpush1.msra.mxu0 0.0
      %434 = vmatprep.subr.mxu0 0.0
      %435 = vmatpush1.msra.mxu0 0.0
      %436 = vmatprep.subr.mxu0 0.0
      %437 = vmatpush1.msra.mxu0 0.0
      %438 = vmatprep.subr.mxu0 0.0
      %439 = vmatpush1.msra.mxu0 0.0
      %440 = vmatprep.subr.mxu0 0.0
      %441 = vmatpush1.msra.mxu0 0.0
      %442 = vmatprep.subr.mxu0 0.0
      %443 = vmatpush1.msra.mxu0 %v413
      %444 = vmatprep.subr.mxu0 0.0
      %445 = vmatpush1.msra.mxu0 %v412
      %446 = vmatprep.subr.mxu0 0.0
      %447 = vmatpush1.msra.mxu0 %v411
      %448 = vmatprep.subr.mxu0 0.0
      %449 = vmatpush1.msra.mxu0 %v410
      %450 = vmatprep.subr.mxu0 0.0
      %451 = vmatpush2.msra.mxu0 0.0
      %452 = vmatprep.subr.mxu0 0.0
      %453 = vmatpush2.msra.mxu0 0.0
      %454 = vmatprep.subr.mxu0 0.0
      %455 = vmatpush2.msra.mxu0 0.0
      %456 = vmatprep.subr.mxu0 0.0
      %457 = vmatpush2.msra.mxu0 0.0
      %458 = vmatprep.subr.mxu0 0.0
      %459 = vmatpush2.msra.mxu0 0.0
      %460 = vmatprep.subr.mxu0 0.0
      %461 = vmatpush2.msra.mxu0 0.0
      %462 = vmatprep.subr.mxu0 0.0
      %463 = vmatpush2.msra.mxu0 0.0
      %464 = vmatprep.subr.mxu0 0.0
      %465 = vmatpush2.msra.mxu0 0.0
      %466 = vmatprep.subr.mxu0 0.0
      %467 = vmatpush2.msra.mxu0 0.0
      %468 = vmatprep.subr.mxu0 0.0
      %469 = vmatpush2.msra.mxu0 0.0
      %470 = vmatprep.subr.mxu0 0.0
      %471 = vmatpush2.msra.mxu0 0.0
      %472 = vmatprep.subr.mxu0 0.0
      %473 = vmatpush2.msra.mxu0 0.0
      %474 = vmatprep.subr.mxu0 0.0
      %475 = vmatpush2.msra.mxu0 0.0
      %476 = vmatprep.subr.mxu0 0.0
      %477 = vmatpush2.msra.mxu0 0.0
      %478 = vmatprep.subr.mxu0 0.0
      %479 = vmatpush2.msra.mxu0 0.0
      %480 = vmatprep.subr.mxu0 0.0
      %481 = vmatpush2.msra.mxu0 0.0
      %482 = vmatprep.mubr.f32.mxu0 0.0
      %483 = vmatmul.mubr.f32.gmra.mxu0 %v416
      %v484 = vpop.f32.mrf.mxu0
      %v485 = vadd.f32 0.0, %v484
      %v486 = vpop.f32.mrf.mxu0
      %487 = vdwg.mxu0
      %v488 = vld [vmem:[%s2] sm:$0xff]
      %v489 = vld [vmem:[%s2 + $0x8] sm:$0xff]
      %v490 = vld [vmem:[%s2 + $0x10] sm:$0xff]
      %v491 = vld [vmem:[%s2 + $0x18] sm:$0xff]
      %v492 = vld [vmem:[%s3] sm:$0x1]
      %494 = vrot.lane.b32.xlu0 %v485, 96
      %v495 = vpop.permute.xlu0 %494
      %vm496 = vcmask 64512
      %v497 = vsel %vm496, %v485, 0
      %v499 = vsel %vm496, %v495, 0
      %501 = vmatprep.subr.mxu0 0.0
      %502 = vmatpush1.xpose.msra.mxu0 0.0
      %503 = vmatprep.subr.mxu0 0.0
      %504 = vmatpush1.xpose.msra.mxu0 0.0
      %505 = vmatprep.subr.mxu0 0.0
      %506 = vmatpush1.xpose.msra.mxu0 0.0
      %507 = vmatprep.subr.mxu0 0.0
      %508 = vmatpush1.xpose.msra.mxu0 0.0
      %509 = vmatprep.subr.mxu0 0.0
      %510 = vmatpush1.xpose.msra.mxu0 0.0
      %511 = vmatprep.subr.mxu0 0.0
      %512 = vmatpush1.xpose.msra.mxu0 0.0
      %513 = vmatprep.subr.mxu0 0.0
      %514 = vmatpush1.xpose.msra.mxu0 0.0
      %515 = vmatprep.subr.mxu0 0.0
      %516 = vmatpush1.xpose.msra.mxu0 0.0
      %517 = vmatprep.subr.mxu0 0.0
      %518 = vmatpush1.xpose.msra.mxu0 0.0
      %519 = vmatprep.subr.mxu0 0.0
      %520 = vmatpush1.xpose.msra.mxu0 0.0
      %521 = vmatprep.subr.mxu0 0.0
      %522 = vmatpush1.xpose.msra.mxu0 0.0
      %523 = vmatprep.subr.mxu0 0.0
      %524 = vmatpush1.xpose.msra.mxu0 0.0
      %525 = vmatprep.subr.mxu0 0.0
      %526 = vmatpush1.xpose.msra.mxu0 0.0
      %527 = vmatprep.subr.mxu0 0.0
      %528 = vmatpush1.xpose.msra.mxu0 0.0
      %529 = vmatprep.subr.mxu0 0.0
      %530 = vmatpush1.xpose.msra.mxu0 0.0
      %531 = vmatprep.subr.mxu0 0.0
      %532 = vmatpush1.xpose.msra.mxu0 %v499
      %533 = vmatprep.subr.mxu0 0.0
      %534 = vmatpush2.xpose.msra.mxu0 0.0
      %535 = vmatprep.subr.mxu0 0.0
      %536 = vmatpush2.xpose.msra.mxu0 0.0
      %537 = vmatprep.subr.mxu0 0.0
      %538 = vmatpush2.xpose.msra.mxu0 0.0
      %539 = vmatprep.subr.mxu0 0.0
      %540 = vmatpush2.xpose.msra.mxu0 0.0
      %541 = vmatprep.subr.mxu0 0.0
      %542 = vmatpush2.xpose.msra.mxu0 0.0
      %543 = vmatprep.subr.mxu0 0.0
      %544 = vmatpush2.xpose.msra.mxu0 0.0
      %545 = vmatprep.subr.mxu0 0.0
      %546 = vmatpush2.xpose.msra.mxu0 0.0
      %547 = vmatprep.subr.mxu0 0.0
      %548 = vmatpush2.xpose.msra.mxu0 0.0
      %549 = vmatprep.subr.mxu0 0.0
      %550 = vmatpush2.xpose.msra.mxu0 0.0
      %551 = vmatprep.subr.mxu0 0.0
      %552 = vmatpush2.xpose.msra.mxu0 0.0
      %553 = vmatprep.subr.mxu0 0.0
      %554 = vmatpush2.xpose.msra.mxu0 0.0
      %555 = vmatprep.subr.mxu0 0.0
      %556 = vmatpush2.xpose.msra.mxu0 0.0
      %557 = vmatprep.subr.mxu0 0.0
      %558 = vmatpush2.xpose.msra.mxu0 0.0
      %559 = vmatprep.subr.mxu0 0.0
      %560 = vmatpush2.xpose.msra.mxu0 0.0
      %561 = vmatprep.subr.mxu0 0.0
      %562 = vmatpush2.xpose.msra.mxu0 0.0
      %563 = vmatprep.subr.mxu0 0.0
      %564 = vmatpush2.xpose.msra.mxu0 0.0
      %565 = vmatprep.mubr.f32.mxu0 0.0
      %566 = vmatmul.mubr.f32.gmra.mxu0 %v497
      %v567 = vpop.f32.mrf.mxu0
      %v568 = vadd.f32 0.0, %v567
      %v569 = vpop.f32.mrf.mxu0
      %570 = vdwg.mxu0
      %v571 = vmul.f32 %v568, 0.35355338
      %v572 = vsel %vm496, %v571, -inf
      %573 = vmax.xlane.f32.xlu0 %v572
      %v574 = vpop.xlane.xlu0 %573
      %v575 = vsub.f32 %v571, %v574
      %v576 = vmul.f32 %v575, 1.442695
      %v577 = vpow.pop %v576
      %v578 = vsel %vm496, %v577, 0.0
      %579 = vadd.xlane.f32.xlu0 %v578
      %v580 = vpop.xlane.xlu0 %579
      %v581 = vrcp.pop %v580
      %v582 = vmul.f32 %v577, %v581
      %583 = vrot.lane.b32.xlu0 %v485, 64
      %v584 = vpop.permute.xlu0 %583
      %v587 = vsel %vm496, %v582, 0
      %589 = vmatprep.subr.mxu0 0.0
      %590 = vmatpush1.msra.mxu0 0.0
      %591 = vmatprep.subr.mxu0 0.0
      %592 = vmatpush1.msra.mxu0 0.0
      %593 = vmatprep.subr.mxu0 0.0
      %594 = vmatpush1.msra.mxu0 0.0
      %595 = vmatprep.subr.mxu0 0.0
      %596 = vmatpush1.msra.mxu0 0.0
      %597 = vmatprep.subr.mxu0 0.0
      %598 = vmatpush1.msra.mxu0 0.0
      %599 = vmatprep.subr.mxu0 0.0
      %600 = vmatpush1.msra.mxu0 0.0
      %601 = vmatprep.subr.mxu0 0.0
      %602 = vmatpush1.msra.mxu0 0.0
      %603 = vmatprep.subr.mxu0 0.0
      %604 = vmatpush1.msra.mxu0 0.0
      %605 = vmatprep.subr.mxu0 0.0
      %606 = vmatpush1.msra.mxu0 0.0
      %607 = vmatprep.subr.mxu0 0.0
      %608 = vmatpush1.msra.mxu0 0.0
      %609 = vmatprep.subr.mxu0 0.0
      %610 = vmatpush1.msra.mxu0 0.0
      %611 = vmatprep.subr.mxu0 0.0
      %612 = vmatpush1.msra.mxu0 0.0
      %613 = vmatprep.subr.mxu0 0.0
      %614 = vmatpush1.msra.mxu0 0.0
      %615 = vmatprep.subr.mxu0 0.0
      %616 = vmatpush1.msra.mxu0 0.0
      %617 = vmatprep.subr.mxu0 0.0
      %618 = vmatpush1.msra.mxu0 0.0
      %619 = vmatprep.subr.mxu0 0.0
      %620 = vmatpush1.msra.mxu0 %v584
      %621 = vmatprep.subr.mxu0 0.0
      %622 = vmatpush2.msra.mxu0 0.0
      %623 = vmatprep.subr.mxu0 0.0
      %624 = vmatpush2.msra.mxu0 0.0
      %625 = vmatprep.subr.mxu0 0.0
      %626 = vmatpush2.msra.mxu0 0.0
      %627 = vmatprep.subr.mxu0 0.0
      %628 = vmatpush2.msra.mxu0 0.0
      %629 = vmatprep.subr.mxu0 0.0
      %630 = vmatpush2.msra.mxu0 0.0
      %631 = vmatprep.subr.mxu0 0.0
      %632 = vmatpush2.msra.mxu0 0.0
      %633 = vmatprep.subr.mxu0 0.0
      %634 = vmatpush2.msra.mxu0 0.0
      %635 = vmatprep.subr.mxu0 0.0
      %636 = vmatpush2.msra.mxu0 0.0
      %637 = vmatprep.subr.mxu0 0.0
      %638 = vmatpush2.msra.mxu0 0.0
      %639 = vmatprep.subr.mxu0 0.0
      %640 = vmatpush2.msra.mxu0 0.0
      %641 = vmatprep.subr.mxu0 0.0
      %642 = vmatpush2.msra.mxu0 0.0
      %643 = vmatprep.subr.mxu0 0.0
      %644 = vmatpush2.msra.mxu0 0.0
      %645 = vmatprep.subr.mxu0 0.0
      %646 = vmatpush2.msra.mxu0 0.0
      %647 = vmatprep.subr.mxu0 0.0
      %648 = vmatpush2.msra.mxu0 0.0
      %649 = vmatprep.subr.mxu0 0.0
      %650 = vmatpush2.msra.mxu0 0.0
      %651 = vmatprep.subr.mxu0 0.0
      %652 = vmatpush2.msra.mxu0 0.0
      %653 = vmatprep.mubr.f32.mxu0 0.0
      %654 = vmatmul.mubr.f32.gmra.mxu0 %v587
      %v655 = vpop.f32.mrf.mxu0
      %v656 = vadd.f32 0.0, %v655
      %v657 = vpop.f32.mrf.mxu0
      %658 = vdwg.mxu0
      %659 = vrot.lane.b32.xlu0 %v485, 120
      %v660 = vpop.permute.xlu0 %659
      %661 = vrot.lane.b32.xlu0 %v485, 88
      %v662 = vpop.permute.xlu0 %661
      %v663 = vsel %vm496, %v660, 0
      %v665 = vsel %vm496, %v662, 0
      %667 = vmatprep.subr.mxu0 0.0
      %668 = vmatpush1.xpose.msra.mxu0 0.0
      %669 = vmatprep.subr.mxu0 0.0
      %670 = vmatpush1.xpose.msra.mxu0 0.0
      %671 = vmatprep.subr.mxu0 0.0
      %672 = vmatpush1.xpose.msra.mxu0 0.0
      %673 = vmatprep.subr.mxu0 0.0
      %674 = vmatpush1.xpose.msra.mxu0 0.0
      %675 = vmatprep.subr.mxu0 0.0
      %676 = vmatpush1.xpose.msra.mxu0 0.0
      %677 = vmatprep.subr.mxu0 0.0
      %678 = vmatpush1.xpose.msra.mxu0 0.0
      %679 = vmatprep.subr.mxu0 0.0
      %680 = vmatpush1.xpose.msra.mxu0 0.0
      %681 = vmatprep.subr.mxu0 0.0
      %682 = vmatpush1.xpose.msra.mxu0 0.0
      %683 = vmatprep.subr.mxu0 0.0
      %684 = vmatpush1.xpose.msra.mxu0 0.0
      %685 = vmatprep.subr.mxu0 0.0
      %686 = vmatpush1.xpose.msra.mxu0 0.0
      %687 = vmatprep.subr.mxu0 0.0
      %688 = vmatpush1.xpose.msra.mxu0 0.0
      %689 = vmatprep.subr.mxu0 0.0
      %690 = vmatpush1.xpose.msra.mxu0 0.0
      %691 = vmatprep.subr.mxu0 0.0
      %692 = vmatpush1.xpose.msra.mxu0 0.0
      %693 = vmatprep.subr.mxu0 0.0
      %694 = vmatpush1.xpose.msra.mxu0 0.0
      %695 = vmatprep.subr.mxu0 0.0
      %696 = vmatpush1.xpose.msra.mxu0 0.0
      %697 = vmatprep.subr.mxu0 0.0
      %698 = vmatpush1.xpose.msra.mxu0 %v665
      %699 = vmatprep.subr.mxu0 0.0
      %700 = vmatpush2.xpose.msra.mxu0 0.0
      %701 = vmatprep.subr.mxu0 0.0
      %702 = vmatpush2.xpose.msra.mxu0 0.0
      %703 = vmatprep.subr.mxu0 0.0
      %704 = vmatpush2.xpose.msra.mxu0 0.0
      %705 = vmatprep.subr.mxu0 0.0
      %706 = vmatpush2.xpose.msra.mxu0 0.0
      %707 = vmatprep.subr.mxu0 0.0
      %708 = vmatpush2.xpose.msra.mxu0 0.0
      %709 = vmatprep.subr.mxu0 0.0
      %710 = vmatpush2.xpose.msra.mxu0 0.0
      %711 = vmatprep.subr.mxu0 0.0
      %712 = vmatpush2.xpose.msra.mxu0 0.0
      %713 = vmatprep.subr.mxu0 0.0
      %714 = vmatpush2.xpose.msra.mxu0 0.0
      %715 = vmatprep.subr.mxu0 0.0
      %716 = vmatpush2.xpose.msra.mxu0 0.0
      %717 = vmatprep.subr.mxu0 0.0
      %718 = vmatpush2.xpose.msra.mxu0 0.0
      %719 = vmatprep.subr.mxu0 0.0
      %720 = vmatpush2.xpose.msra.mxu0 0.0
      %721 = vmatprep.subr.mxu0 0.0
      %722 = vmatpush2.xpose.msra.mxu0 0.0
      %723 = vmatprep.subr.mxu0 0.0
      %724 = vmatpush2.xpose.msra.mxu0 0.0
      %725 = vmatprep.subr.mxu0 0.0
      %726 = vmatpush2.xpose.msra.mxu0 0.0
      %727 = vmatprep.subr.mxu0 0.0
      %728 = vmatpush2.xpose.msra.mxu0 0.0
      %729 = vmatprep.subr.mxu0 0.0
      %730 = vmatpush2.xpose.msra.mxu0 0.0
      %731 = vmatprep.mubr.f32.mxu0 0.0
      %732 = vmatmul.mubr.f32.gmra.mxu0 %v663
      %v733 = vpop.f32.mrf.mxu0
      %v734 = vadd.f32 0.0, %v733
      %v735 = vpop.f32.mrf.mxu0
      %736 = vdwg.mxu0
      %v737 = vmul.f32 %v734, 0.35355338
      %v738 = vsel %vm496, %v737, -inf
      %739 = vmax.xlane.f32.xlu0 %v738
      %v740 = vpop.xlane.xlu0 %739
      %v741 = vsub.f32 %v737, %v740
      %v742 = vmul.f32 %v741, 1.442695
      %v743 = vpow.pop %v742
      %v744 = vsel %vm496, %v743, 0.0
      %745 = vadd.xlane.f32.xlu0 %v744
      %v746 = vpop.xlane.xlu0 %745
      %v747 = vrcp.pop %v746
      %v748 = vmul.f32 %v743, %v747
      %749 = vrot.lane.b32.xlu0 %v485, 56
      %v750 = vpop.permute.xlu0 %749
      %v753 = vsel %vm496, %v748, 0
      %755 = vmatprep.subr.mxu0 0.0
      %756 = vmatpush1.msra.mxu0 0.0
      %757 = vmatprep.subr.mxu0 0.0
      %758 = vmatpush1.msra.mxu0 0.0
      %759 = vmatprep.subr.mxu0 0.0
      %760 = vmatpush1.msra.mxu0 0.0
      %761 = vmatprep.subr.mxu0 0.0
      %762 = vmatpush1.msra.mxu0 0.0
      %763 = vmatprep.subr.mxu0 0.0
      %764 = vmatpush1.msra.mxu0 0.0
      %765 = vmatprep.subr.mxu0 0.0
      %766 = vmatpush1.msra.mxu0 0.0
      %767 = vmatprep.subr.mxu0 0.0
      %768 = vmatpush1.msra.mxu0 0.0
      %769 = vmatprep.subr.mxu0 0.0
      %770 = vmatpush1.msra.mxu0 0.0
      %771 = vmatprep.subr.mxu0 0.0
      %772 = vmatpush1.msra.mxu0 0.0
      %773 = vmatprep.subr.mxu0 0.0
      %774 = vmatpush1.msra.mxu0 0.0
      %775 = vmatprep.subr.mxu0 0.0
      %776 = vmatpush1.msra.mxu0 0.0
      %777 = vmatprep.subr.mxu0 0.0
      %778 = vmatpush1.msra.mxu0 0.0
      %779 = vmatprep.subr.mxu0 0.0
      %780 = vmatpush1.msra.mxu0 0.0
      %781 = vmatprep.subr.mxu0 0.0
      %782 = vmatpush1.msra.mxu0 0.0
      %783 = vmatprep.subr.mxu0 0.0
      %784 = vmatpush1.msra.mxu0 0.0
      %785 = vmatprep.subr.mxu0 0.0
      %786 = vmatpush1.msra.mxu0 %v750
      %787 = vmatprep.subr.mxu0 0.0
      %788 = vmatpush2.msra.mxu0 0.0
      %789 = vmatprep.subr.mxu0 0.0
      %790 = vmatpush2.msra.mxu0 0.0
      %791 = vmatprep.subr.mxu0 0.0
      %792 = vmatpush2.msra.mxu0 0.0
      %793 = vmatprep.subr.mxu0 0.0
      %794 = vmatpush2.msra.mxu0 0.0
      %795 = vmatprep.subr.mxu0 0.0
      %796 = vmatpush2.msra.mxu0 0.0
      %797 = vmatprep.subr.mxu0 0.0
      %798 = vmatpush2.msra.mxu0 0.0
      %799 = vmatprep.subr.mxu0 0.0
      %800 = vmatpush2.msra.mxu0 0.0
      %801 = vmatprep.subr.mxu0 0.0
      %802 = vmatpush2.msra.mxu0 0.0
      %803 = vmatprep.subr.mxu0 0.0
      %804 = vmatpush2.msra.mxu0 0.0
      %805 = vmatprep.subr.mxu0 0.0
      %806 = vmatpush2.msra.mxu0 0.0
      %807 = vmatprep.subr.mxu0 0.0
      %808 = vmatpush2.msra.mxu0 0.0
      %809 = vmatprep.subr.mxu0 0.0
      %810 = vmatpush2.msra.mxu0 0.0
      %811 = vmatprep.subr.mxu0 0.0
      %812 = vmatpush2.msra.mxu0 0.0
      %813 = vmatprep.subr.mxu0 0.0
      %814 = vmatpush2.msra.mxu0 0.0
      %815 = vmatprep.subr.mxu0 0.0
      %816 = vmatpush2.msra.mxu0 0.0
      %817 = vmatprep.subr.mxu0 0.0
      %818 = vmatpush2.msra.mxu0 0.0
      %819 = vmatprep.mubr.f32.mxu0 0.0
      %820 = vmatmul.mubr.f32.gmra.mxu0 %v753
      %v821 = vpop.f32.mrf.mxu0
      %v822 = vadd.f32 0.0, %v821
      %v823 = vpop.f32.mrf.mxu0
      %824 = vdwg.mxu0
      %v826 = vsel %vm496, %v822, 0
      %828 = vmatprep.subr.mxu0 0.0
      %829 = vmatpush1.msra.mxu0 0.0
      %830 = vmatprep.subr.mxu0 0.0
      %831 = vmatpush1.msra.mxu0 0.0
      %832 = vmatprep.subr.mxu0 0.0
      %833 = vmatpush1.msra.mxu0 0.0
      %834 = vmatprep.subr.mxu0 0.0
      %835 = vmatpush1.msra.mxu0 0.0
      %836 = vmatprep.subr.mxu0 0.0
      %837 = vmatpush1.msra.mxu0 0.0
      %838 = vmatprep.subr.mxu0 0.0
      %839 = vmatpush1.msra.mxu0 0.0
      %840 = vmatprep.subr.mxu0 0.0
      %841 = vmatpush1.msra.mxu0 0.0
      %842 = vmatprep.subr.mxu0 0.0
      %843 = vmatpush1.msra.mxu0 0.0
      %844 = vmatprep.subr.mxu0 0.0
      %845 = vmatpush1.msra.mxu0 0.0
      %846 = vmatprep.subr.mxu0 0.0
      %847 = vmatpush1.msra.mxu0 0.0
      %848 = vmatprep.subr.mxu0 0.0
      %849 = vmatpush1.msra.mxu0 0.0
      %850 = vmatprep.subr.mxu0 0.0
      %851 = vmatpush1.msra.mxu0 0.0
      %852 = vmatprep.subr.mxu0 0.0
      %853 = vmatpush1.msra.mxu0 0.0
      %854 = vmatprep.subr.mxu0 0.0
      %855 = vmatpush1.msra.mxu0 0.0
      %856 = vmatprep.subr.mxu0 0.0
      %857 = vmatpush1.msra.mxu0 0.0
      %858 = vmatprep.subr.mxu0 0.0
      %859 = vmatpush1.msra.mxu0 %v489
      %860 = vmatprep.subr.mxu0 0.0
      %861 = vmatpush2.msra.mxu0 0.0
      %862 = vmatprep.subr.mxu0 0.0
      %863 = vmatpush2.msra.mxu0 0.0
      %864 = vmatprep.subr.mxu0 0.0
      %865 = vmatpush2.msra.mxu0 0.0
      %866 = vmatprep.subr.mxu0 0.0
      %867 = vmatpush2.msra.mxu0 0.0
      %868 = vmatprep.subr.mxu0 0.0
      %869 = vmatpush2.msra.mxu0 0.0
      %870 = vmatprep.subr.mxu0 0.0
      %871 = vmatpush2.msra.mxu0 0.0
      %872 = vmatprep.subr.mxu0 0.0
      %873 = vmatpush2.msra.mxu0 0.0
      %874 = vmatprep.subr.mxu0 0.0
      %875 = vmatpush2.msra.mxu0 0.0
      %876 = vmatprep.subr.mxu0 0.0
      %877 = vmatpush2.msra.mxu0 0.0
      %878 = vmatprep.subr.mxu0 0.0
      %879 = vmatpush2.msra.mxu0 0.0
      %880 = vmatprep.subr.mxu0 0.0
      %881 = vmatpush2.msra.mxu0 0.0
      %882 = vmatprep.subr.mxu0 0.0
      %883 = vmatpush2.msra.mxu0 0.0
      %884 = vmatprep.subr.mxu0 0.0
      %885 = vmatpush2.msra.mxu0 0.0
      %886 = vmatprep.subr.mxu0 0.0
      %887 = vmatpush2.msra.mxu0 0.0
      %888 = vmatprep.subr.mxu0 0.0
      %889 = vmatpush2.msra.mxu0 0.0
      %890 = vmatprep.subr.mxu0 0.0
      %891 = vmatpush2.msra.mxu0 0.0
      %892 = vmatprep.mubr.f32.mxu0 0.0
      %893 = vmatmul.mubr.f32.gmra.mxu0 %v826
      %v894 = vpop.f32.mrf.mxu0
      %v895 = vadd.f32 0.0, %v894
      %v896 = vpop.f32.mrf.mxu0
      %897 = vdwg.mxu0
      %v899 = vsel %vm496, %v656, 0
      %901 = vmatprep.subr.mxu0 0.0
      %902 = vmatpush1.msra.mxu0 0.0
      %903 = vmatprep.subr.mxu0 0.0
      %904 = vmatpush1.msra.mxu0 0.0
      %905 = vmatprep.subr.mxu0 0.0
      %906 = vmatpush1.msra.mxu0 0.0
      %907 = vmatprep.subr.mxu0 0.0
      %908 = vmatpush1.msra.mxu0 0.0
      %909 = vmatprep.subr.mxu0 0.0
      %910 = vmatpush1.msra.mxu0 0.0
      %911 = vmatprep.subr.mxu0 0.0
      %912 = vmatpush1.msra.mxu0 0.0
      %913 = vmatprep.subr.mxu0 0.0
      %914 = vmatpush1.msra.mxu0 0.0
      %915 = vmatprep.subr.mxu0 0.0
      %916 = vmatpush1.msra.mxu0 0.0
      %917 = vmatprep.subr.mxu0 0.0
      %918 = vmatpush1.msra.mxu0 0.0
      %919 = vmatprep.subr.mxu0 0.0
      %920 = vmatpush1.msra.mxu0 0.0
      %921 = vmatprep.subr.mxu0 0.0
      %922 = vmatpush1.msra.mxu0 0.0
      %923 = vmatprep.subr.mxu0 0.0
      %924 = vmatpush1.msra.mxu0 0.0
      %925 = vmatprep.subr.mxu0 0.0
      %926 = vmatpush1.msra.mxu0 0.0
      %927 = vmatprep.subr.mxu0 0.0
      %928 = vmatpush1.msra.mxu0 0.0
      %929 = vmatprep.subr.mxu0 0.0
      %930 = vmatpush1.msra.mxu0 0.0
      %931 = vmatprep.subr.mxu0 0.0
      %932 = vmatpush1.msra.mxu0 %v488
      %933 = vmatprep.subr.mxu0 0.0
      %934 = vmatpush2.msra.mxu0 0.0
      %935 = vmatprep.subr.mxu0 0.0
      %936 = vmatpush2.msra.mxu0 0.0
      %937 = vmatprep.subr.mxu0 0.0
      %938 = vmatpush2.msra.mxu0 0.0
      %939 = vmatprep.subr.mxu0 0.0
      %940 = vmatpush2.msra.mxu0 0.0
      %941 = vmatprep.subr.mxu0 0.0
      %942 = vmatpush2.msra.mxu0 0.0
      %943 = vmatprep.subr.mxu0 0.0
      %944 = vmatpush2.msra.mxu0 0.0
      %945 = vmatprep.subr.mxu0 0.0
      %946 = vmatpush2.msra.mxu0 0.0
      %947 = vmatprep.subr.mxu0 0.0
      %948 = vmatpush2.msra.mxu0 0.0
      %949 = vmatprep.subr.mxu0 0.0
      %950 = vmatpush2.msra.mxu0 0.0
      %951 = vmatprep.subr.mxu0 0.0
      %952 = vmatpush2.msra.mxu0 0.0
      %953 = vmatprep.subr.mxu0 0.0
      %954 = vmatpush2.msra.mxu0 0.0
      %955 = vmatprep.subr.mxu0 0.0
      %956 = vmatpush2.msra.mxu0 0.0
      %957 = vmatprep.subr.mxu0 0.0
      %958 = vmatpush2.msra.mxu0 0.0
      %959 = vmatprep.subr.mxu0 0.0
      %960 = vmatpush2.msra.mxu0 0.0
      %961 = vmatprep.subr.mxu0 0.0
      %962 = vmatpush2.msra.mxu0 0.0
      %963 = vmatprep.subr.mxu0 0.0
      %964 = vmatpush2.msra.mxu0 0.0
      %965 = vmatprep.mubr.f32.mxu0 0.0
      %966 = vmatmul.mubr.f32.gmra.mxu0 %v899
      %v967 = vpop.f32.mrf.mxu0
      %v968 = vadd.f32 %v895, %v967
      %v969 = vpop.f32.mrf.mxu0
      %970 = vdwg.mxu0
      %971 = vrot.lane.b32.xlu0 %v485, 112
      %v972 = vpop.permute.xlu0 %971
      %973 = vrot.lane.b32.xlu0 %v485, 80
      %v974 = vpop.permute.xlu0 %973
      %v975 = vsel %vm496, %v972, 0
      %v977 = vsel %vm496, %v974, 0
      %979 = vmatprep.subr.mxu0 0.0
      %980 = vmatpush1.xpose.msra.mxu0 0.0
      %981 = vmatprep.subr.mxu0 0.0
      %982 = vmatpush1.xpose.msra.mxu0 0.0
      %983 = vmatprep.subr.mxu0 0.0
      %984 = vmatpush1.xpose.msra.mxu0 0.0
      %985 = vmatprep.subr.mxu0 0.0
      %986 = vmatpush1.xpose.msra.mxu0 0.0
      %987 = vmatprep.subr.mxu0 0.0
      %988 = vmatpush1.xpose.msra.mxu0 0.0
      %989 = vmatprep.subr.mxu0 0.0
      %990 = vmatpush1.xpose.msra.mxu0 0.0
      %991 = vmatprep.subr.mxu0 0.0
      %992 = vmatpush1.xpose.msra.mxu0 0.0
      %993 = vmatprep.subr.mxu0 0.0
      %994 = vmatpush1.xpose.msra.mxu0 0.0
      %995 = vmatprep.subr.mxu0 0.0
      %996 = vmatpush1.xpose.msra.mxu0 0.0
      %997 = vmatprep.subr.mxu0 0.0
      %998 = vmatpush1.xpose.msra.mxu0 0.0
      %999 = vmatprep.subr.mxu0 0.0
      %1000 = vmatpush1.xpose.msra.mxu0 0.0
      %1001 = vmatprep.subr.mxu0 0.0
      %1002 = vmatpush1.xpose.msra.mxu0 0.0
      %1003 = vmatprep.subr.mxu0 0.0
      %1004 = vmatpush1.xpose.msra.mxu0 0.0
      %1005 = vmatprep.subr.mxu0 0.0
      %1006 = vmatpush1.xpose.msra.mxu0 0.0
      %1007 = vmatprep.subr.mxu0 0.0
      %1008 = vmatpush1.xpose.msra.mxu0 0.0
      %1009 = vmatprep.subr.mxu0 0.0
      %1010 = vmatpush1.xpose.msra.mxu0 %v977
      %1011 = vmatprep.subr.mxu0 0.0
      %1012 = vmatpush2.xpose.msra.mxu0 0.0
      %1013 = vmatprep.subr.mxu0 0.0
      %1014 = vmatpush2.xpose.msra.mxu0 0.0
      %1015 = vmatprep.subr.mxu0 0.0
      %1016 = vmatpush2.xpose.msra.mxu0 0.0
      %1017 = vmatprep.subr.mxu0 0.0
      %1018 = vmatpush2.xpose.msra.mxu0 0.0
      %1019 = vmatprep.subr.mxu0 0.0
      %1020 = vmatpush2.xpose.msra.mxu0 0.0
      %1021 = vmatprep.subr.mxu0 0.0
      %1022 = vmatpush2.xpose.msra.mxu0 0.0
      %1023 = vmatprep.subr.mxu0 0.0
      %1024 = vmatpush2.xpose.msra.mxu0 0.0
      %1025 = vmatprep.subr.mxu0 0.0
      %1026 = vmatpush2.xpose.msra.mxu0 0.0
      %1027 = vmatprep.subr.mxu0 0.0
      %1028 = vmatpush2.xpose.msra.mxu0 0.0
      %1029 = vmatprep.subr.mxu0 0.0
      %1030 = vmatpush2.xpose.msra.mxu0 0.0
      %1031 = vmatprep.subr.mxu0 0.0
      %1032 = vmatpush2.xpose.msra.mxu0 0.0
      %1033 = vmatprep.subr.mxu0 0.0
      %1034 = vmatpush2.xpose.msra.mxu0 0.0
      %1035 = vmatprep.subr.mxu0 0.0
      %1036 = vmatpush2.xpose.msra.mxu0 0.0
      %1037 = vmatprep.subr.mxu0 0.0
      %1038 = vmatpush2.xpose.msra.mxu0 0.0
      %1039 = vmatprep.subr.mxu0 0.0
      %1040 = vmatpush2.xpose.msra.mxu0 0.0
      %1041 = vmatprep.subr.mxu0 0.0
      %1042 = vmatpush2.xpose.msra.mxu0 0.0
      %1043 = vmatprep.mubr.f32.mxu0 0.0
      %1044 = vmatmul.mubr.f32.gmra.mxu0 %v975
      %v1045 = vpop.f32.mrf.mxu0
      %v1046 = vadd.f32 0.0, %v1045
      %v1047 = vpop.f32.mrf.mxu0
      %1048 = vdwg.mxu0
      %v1049 = vmul.f32 %v1046, 0.35355338
      %v1050 = vsel %vm496, %v1049, -inf
      %1051 = vmax.xlane.f32.xlu0 %v1050
      %v1052 = vpop.xlane.xlu0 %1051
      %v1053 = vsub.f32 %v1049, %v1052
      %v1054 = vmul.f32 %v1053, 1.442695
      %v1055 = vpow.pop %v1054
      %v1056 = vsel %vm496, %v1055, 0.0
      %1057 = vadd.xlane.f32.xlu0 %v1056
      %v1058 = vpop.xlane.xlu0 %1057
      %v1059 = vrcp.pop %v1058
      %v1060 = vmul.f32 %v1055, %v1059
      %1061 = vrot.lane.b32.xlu0 %v485, 48
      %v1062 = vpop.permute.xlu0 %1061
      %v1065 = vsel %vm496, %v1060, 0
      %1067 = vmatprep.subr.mxu0 0.0
      %1068 = vmatpush1.msra.mxu0 0.0
      %1069 = vmatprep.subr.mxu0 0.0
      %1070 = vmatpush1.msra.mxu0 0.0
      %1071 = vmatprep.subr.mxu0 0.0
      %1072 = vmatpush1.msra.mxu0 0.0
      %1073 = vmatprep.subr.mxu0 0.0
      %1074 = vmatpush1.msra.mxu0 0.0
      %1075 = vmatprep.subr.mxu0 0.0
      %1076 = vmatpush1.msra.mxu0 0.0
      %1077 = vmatprep.subr.mxu0 0.0
      %1078 = vmatpush1.msra.mxu0 0.0
      %1079 = vmatprep.subr.mxu0 0.0
      %1080 = vmatpush1.msra.mxu0 0.0
      %1081 = vmatprep.subr.mxu0 0.0
      %1082 = vmatpush1.msra.mxu0 0.0
      %1083 = vmatprep.subr.mxu0 0.0
      %1084 = vmatpush1.msra.mxu0 0.0
      %1085 = vmatprep.subr.mxu0 0.0
      %1086 = vmatpush1.msra.mxu0 0.0
      %1087 = vmatprep.subr.mxu0 0.0
      %1088 = vmatpush1.msra.mxu0 0.0
      %1089 = vmatprep.subr.mxu0 0.0
      %1090 = vmatpush1.msra.mxu0 0.0
      %1091 = vmatprep.subr.mxu0 0.0
      %1092 = vmatpush1.msra.mxu0 0.0
      %1093 = vmatprep.subr.mxu0 0.0
      %1094 = vmatpush1.msra.mxu0 0.0
      %1095 = vmatprep.subr.mxu0 0.0
      %1096 = vmatpush1.msra.mxu0 0.0
      %1097 = vmatprep.subr.mxu0 0.0
      %1098 = vmatpush1.msra.mxu0 %v1062
      %1099 = vmatprep.subr.mxu0 0.0
      %1100 = vmatpush2.msra.mxu0 0.0
      %1101 = vmatprep.subr.mxu0 0.0
      %1102 = vmatpush2.msra.mxu0 0.0
      %1103 = vmatprep.subr.mxu0 0.0
      %1104 = vmatpush2.msra.mxu0 0.0
      %1105 = vmatprep.subr.mxu0 0.0
      %1106 = vmatpush2.msra.mxu0 0.0
      %1107 = vmatprep.subr.mxu0 0.0
      %1108 = vmatpush2.msra.mxu0 0.0
      %1109 = vmatprep.subr.mxu0 0.0
      %1110 = vmatpush2.msra.mxu0 0.0
      %1111 = vmatprep.subr.mxu0 0.0
      %1112 = vmatpush2.msra.mxu0 0.0
      %1113 = vmatprep.subr.mxu0 0.0
      %1114 = vmatpush2.msra.mxu0 0.0
      %1115 = vmatprep.subr.mxu0 0.0
      %1116 = vmatpush2.msra.mxu0 0.0
      %1117 = vmatprep.subr.mxu0 0.0
      %1118 = vmatpush2.msra.mxu0 0.0
      %1119 = vmatprep.subr.mxu0 0.0
      %1120 = vmatpush2.msra.mxu0 0.0
      %1121 = vmatprep.subr.mxu0 0.0
      %1122 = vmatpush2.msra.mxu0 0.0
      %1123 = vmatprep.subr.mxu0 0.0
      %1124 = vmatpush2.msra.mxu0 0.0
      %1125 = vmatprep.subr.mxu0 0.0
      %1126 = vmatpush2.msra.mxu0 0.0
      %1127 = vmatprep.subr.mxu0 0.0
      %1128 = vmatpush2.msra.mxu0 0.0
      %1129 = vmatprep.subr.mxu0 0.0
      %1130 = vmatpush2.msra.mxu0 0.0
      %1131 = vmatprep.mubr.f32.mxu0 0.0
      %1132 = vmatmul.mubr.f32.gmra.mxu0 %v1065
      %v1133 = vpop.f32.mrf.mxu0
      %v1134 = vadd.f32 0.0, %v1133
      %v1135 = vpop.f32.mrf.mxu0
      %1136 = vdwg.mxu0
      %v1138 = vsel %vm496, %v1134, 0
      %1140 = vmatprep.subr.mxu0 0.0
      %1141 = vmatpush1.msra.mxu0 0.0
      %1142 = vmatprep.subr.mxu0 0.0
      %1143 = vmatpush1.msra.mxu0 0.0
      %1144 = vmatprep.subr.mxu0 0.0
      %1145 = vmatpush1.msra.mxu0 0.0
      %1146 = vmatprep.subr.mxu0 0.0
      %1147 = vmatpush1.msra.mxu0 0.0
      %1148 = vmatprep.subr.mxu0 0.0
      %1149 = vmatpush1.msra.mxu0 0.0
      %1150 = vmatprep.subr.mxu0 0.0
      %1151 = vmatpush1.msra.mxu0 0.0
      %1152 = vmatprep.subr.mxu0 0.0
      %1153 = vmatpush1.msra.mxu0 0.0
      %1154 = vmatprep.subr.mxu0 0.0
      %1155 = vmatpush1.msra.mxu0 0.0
      %1156 = vmatprep.subr.mxu0 0.0
      %1157 = vmatpush1.msra.mxu0 0.0
      %1158 = vmatprep.subr.mxu0 0.0
      %1159 = vmatpush1.msra.mxu0 0.0
      %1160 = vmatprep.subr.mxu0 0.0
      %1161 = vmatpush1.msra.mxu0 0.0
      %1162 = vmatprep.subr.mxu0 0.0
      %1163 = vmatpush1.msra.mxu0 0.0
      %1164 = vmatprep.subr.mxu0 0.0
      %1165 = vmatpush1.msra.mxu0 0.0
      %1166 = vmatprep.subr.mxu0 0.0
      %1167 = vmatpush1.msra.mxu0 0.0
      %1168 = vmatprep.subr.mxu0 0.0
      %1169 = vmatpush1.msra.mxu0 0.0
      %1170 = vmatprep.subr.mxu0 0.0
      %1171 = vmatpush1.msra.mxu0 %v490
      %1172 = vmatprep.subr.mxu0 0.0
      %1173 = vmatpush2.msra.mxu0 0.0
      %1174 = vmatprep.subr.mxu0 0.0
      %1175 = vmatpush2.msra.mxu0 0.0
      %1176 = vmatprep.subr.mxu0 0.0
      %1177 = vmatpush2.msra.mxu0 0.0
      %1178 = vmatprep.subr.mxu0 0.0
      %1179 = vmatpush2.msra.mxu0 0.0
      %1180 = vmatprep.subr.mxu0 0.0
      %1181 = vmatpush2.msra.mxu0 0.0
      %1182 = vmatprep.subr.mxu0 0.0
      %1183 = vmatpush2.msra.mxu0 0.0
      %1184 = vmatprep.subr.mxu0 0.0
      %1185 = vmatpush2.msra.mxu0 0.0
      %1186 = vmatprep.subr.mxu0 0.0
      %1187 = vmatpush2.msra.mxu0 0.0
      %1188 = vmatprep.subr.mxu0 0.0
      %1189 = vmatpush2.msra.mxu0 0.0
      %1190 = vmatprep.subr.mxu0 0.0
      %1191 = vmatpush2.msra.mxu0 0.0
      %1192 = vmatprep.subr.mxu0 0.0
      %1193 = vmatpush2.msra.mxu0 0.0
      %1194 = vmatprep.subr.mxu0 0.0
      %1195 = vmatpush2.msra.mxu0 0.0
      %1196 = vmatprep.subr.mxu0 0.0
      %1197 = vmatpush2.msra.mxu0 0.0
      %1198 = vmatprep.subr.mxu0 0.0
      %1199 = vmatpush2.msra.mxu0 0.0
      %1200 = vmatprep.subr.mxu0 0.0
      %1201 = vmatpush2.msra.mxu0 0.0
      %1202 = vmatprep.subr.mxu0 0.0
      %1203 = vmatpush2.msra.mxu0 0.0
      %1204 = vmatprep.mubr.f32.mxu0 0.0
      %1205 = vmatmul.mubr.f32.gmra.mxu0 %v1138
      %v1206 = vpop.f32.mrf.mxu0
      %v1207 = vadd.f32 0.0, %v1206
      %v1208 = vpop.f32.mrf.mxu0
      %1209 = vdwg.mxu0
      %v1210 = vadd.f32 %v968, %v1207
      %1211 = vrot.lane.b32.xlu0 %v485, 104
      %v1212 = vpop.permute.xlu0 %1211
      %1213 = vrot.lane.b32.xlu0 %v485, 72
      %v1214 = vpop.permute.xlu0 %1213
      %v1215 = vsel %vm496, %v1212, 0
      %v1217 = vsel %vm496, %v1214, 0
      %1219 = vmatprep.subr.mxu0 0.0
      %1220 = vmatpush1.xpose.msra.mxu0 0.0
      %1221 = vmatprep.subr.mxu0 0.0
      %1222 = vmatpush1.xpose.msra.mxu0 0.0
      %1223 = vmatprep.subr.mxu0 0.0
      %1224 = vmatpush1.xpose.msra.mxu0 0.0
      %1225 = vmatprep.subr.mxu0 0.0
      %1226 = vmatpush1.xpose.msra.mxu0 0.0
      %1227 = vmatprep.subr.mxu0 0.0
      %1228 = vmatpush1.xpose.msra.mxu0 0.0
      %1229 = vmatprep.subr.mxu0 0.0
      %1230 = vmatpush1.xpose.msra.mxu0 0.0
      %1231 = vmatprep.subr.mxu0 0.0
      %1232 = vmatpush1.xpose.msra.mxu0 0.0
      %1233 = vmatprep.subr.mxu0 0.0
      %1234 = vmatpush1.xpose.msra.mxu0 0.0
      %1235 = vmatprep.subr.mxu0 0.0
      %1236 = vmatpush1.xpose.msra.mxu0 0.0
      %1237 = vmatprep.subr.mxu0 0.0
      %1238 = vmatpush1.xpose.msra.mxu0 0.0
      %1239 = vmatprep.subr.mxu0 0.0
      %1240 = vmatpush1.xpose.msra.mxu0 0.0
      %1241 = vmatprep.subr.mxu0 0.0
      %1242 = vmatpush1.xpose.msra.mxu0 0.0
      %1243 = vmatprep.subr.mxu0 0.0
      %1244 = vmatpush1.xpose.msra.mxu0 0.0
      %1245 = vmatprep.subr.mxu0 0.0
      %1246 = vmatpush1.xpose.msra.mxu0 0.0
      %1247 = vmatprep.subr.mxu0 0.0
      %1248 = vmatpush1.xpose.msra.mxu0 0.0
      %1249 = vmatprep.subr.mxu0 0.0
      %1250 = vmatpush1.xpose.msra.mxu0 %v1217
      %1251 = vmatprep.subr.mxu0 0.0
      %1252 = vmatpush2.xpose.msra.mxu0 0.0
      %1253 = vmatprep.subr.mxu0 0.0
      %1254 = vmatpush2.xpose.msra.mxu0 0.0
      %1255 = vmatprep.subr.mxu0 0.0
      %1256 = vmatpush2.xpose.msra.mxu0 0.0
      %1257 = vmatprep.subr.mxu0 0.0
      %1258 = vmatpush2.xpose.msra.mxu0 0.0
      %1259 = vmatprep.subr.mxu0 0.0
      %1260 = vmatpush2.xpose.msra.mxu0 0.0
      %1261 = vmatprep.subr.mxu0 0.0
      %1262 = vmatpush2.xpose.msra.mxu0 0.0
      %1263 = vmatprep.subr.mxu0 0.0
      %1264 = vmatpush2.xpose.msra.mxu0 0.0
      %1265 = vmatprep.subr.mxu0 0.0
      %1266 = vmatpush2.xpose.msra.mxu0 0.0
      %1267 = vmatprep.subr.mxu0 0.0
      %1268 = vmatpush2.xpose.msra.mxu0 0.0
      %1269 = vmatprep.subr.mxu0 0.0
      %1270 = vmatpush2.xpose.msra.mxu0 0.0
      %1271 = vmatprep.subr.mxu0 0.0
      %1272 = vmatpush2.xpose.msra.mxu0 0.0
      %1273 = vmatprep.subr.mxu0 0.0
      %1274 = vmatpush2.xpose.msra.mxu0 0.0
      %1275 = vmatprep.subr.mxu0 0.0
      %1276 = vmatpush2.xpose.msra.mxu0 0.0
      %1277 = vmatprep.subr.mxu0 0.0
      %1278 = vmatpush2.xpose.msra.mxu0 0.0
      %1279 = vmatprep.subr.mxu0 0.0
      %1280 = vmatpush2.xpose.msra.mxu0 0.0
      %1281 = vmatprep.subr.mxu0 0.0
      %1282 = vmatpush2.xpose.msra.mxu0 0.0
      %1283 = vmatprep.mubr.f32.mxu0 0.0
      %1284 = vmatmul.mubr.f32.gmra.mxu0 %v1215
      %v1285 = vpop.f32.mrf.mxu0
      %v1286 = vadd.f32 0.0, %v1285
      %v1287 = vpop.f32.mrf.mxu0
      %1288 = vdwg.mxu0
      %v1289 = vmul.f32 %v1286, 0.35355338
      %v1290 = vsel %vm496, %v1289, -inf
      %1291 = vmax.xlane.f32.xlu0 %v1290
      %v1292 = vpop.xlane.xlu0 %1291
      %v1293 = vsub.f32 %v1289, %v1292
      %v1294 = vmul.f32 %v1293, 1.442695
      %v1295 = vpow.pop %v1294
      %v1296 = vsel %vm496, %v1295, 0.0
      %1297 = vadd.xlane.f32.xlu0 %v1296
      %v1298 = vpop.xlane.xlu0 %1297
      %v1299 = vrcp.pop %v1298
      %v1300 = vmul.f32 %v1295, %v1299
      %1301 = vrot.lane.b32.xlu0 %v485, 40
      %v1302 = vpop.permute.xlu0 %1301
      %v1305 = vsel %vm496, %v1300, 0
      %1307 = vmatprep.subr.mxu0 0.0
      %1308 = vmatpush1.msra.mxu0 0.0
      %1309 = vmatprep.subr.mxu0 0.0
      %1310 = vmatpush1.msra.mxu0 0.0
      %1311 = vmatprep.subr.mxu0 0.0
      %1312 = vmatpush1.msra.mxu0 0.0
      %1313 = vmatprep.subr.mxu0 0.0
      %1314 = vmatpush1.msra.mxu0 0.0
      %1315 = vmatprep.subr.mxu0 0.0
      %1316 = vmatpush1.msra.mxu0 0.0
      %1317 = vmatprep.subr.mxu0 0.0
      %1318 = vmatpush1.msra.mxu0 0.0
      %1319 = vmatprep.subr.mxu0 0.0
      %1320 = vmatpush1.msra.mxu0 0.0
      %1321 = vmatprep.subr.mxu0 0.0
      %1322 = vmatpush1.msra.mxu0 0.0
      %1323 = vmatprep.subr.mxu0 0.0
      %1324 = vmatpush1.msra.mxu0 0.0
      %1325 = vmatprep.subr.mxu0 0.0
      %1326 = vmatpush1.msra.mxu0 0.0
      %1327 = vmatprep.subr.mxu0 0.0
      %1328 = vmatpush1.msra.mxu0 0.0
      %1329 = vmatprep.subr.mxu0 0.0
      %1330 = vmatpush1.msra.mxu0 0.0
      %1331 = vmatprep.subr.mxu0 0.0
      %1332 = vmatpush1.msra.mxu0 0.0
      %1333 = vmatprep.subr.mxu0 0.0
      %1334 = vmatpush1.msra.mxu0 0.0
      %1335 = vmatprep.subr.mxu0 0.0
      %1336 = vmatpush1.msra.mxu0 0.0
      %1337 = vmatprep.subr.mxu0 0.0
      %1338 = vmatpush1.msra.mxu0 %v1302
      %1339 = vmatprep.subr.mxu0 0.0
      %1340 = vmatpush2.msra.mxu0 0.0
      %1341 = vmatprep.subr.mxu0 0.0
      %1342 = vmatpush2.msra.mxu0 0.0
      %1343 = vmatprep.subr.mxu0 0.0
      %1344 = vmatpush2.msra.mxu0 0.0
      %1345 = vmatprep.subr.mxu0 0.0
      %1346 = vmatpush2.msra.mxu0 0.0
      %1347 = vmatprep.subr.mxu0 0.0
      %1348 = vmatpush2.msra.mxu0 0.0
      %1349 = vmatprep.subr.mxu0 0.0
      %1350 = vmatpush2.msra.mxu0 0.0
      %1351 = vmatprep.subr.mxu0 0.0
      %1352 = vmatpush2.msra.mxu0 0.0
      %1353 = vmatprep.subr.mxu0 0.0
      %1354 = vmatpush2.msra.mxu0 0.0
      %1355 = vmatprep.subr.mxu0 0.0
      %1356 = vmatpush2.msra.mxu0 0.0
      %1357 = vmatprep.subr.mxu0 0.0
      %1358 = vmatpush2.msra.mxu0 0.0
      %1359 = vmatprep.subr.mxu0 0.0
      %1360 = vmatpush2.msra.mxu0 0.0
      %1361 = vmatprep.subr.mxu0 0.0
      %1362 = vmatpush2.msra.mxu0 0.0
      %1363 = vmatprep.subr.mxu0 0.0
      %1364 = vmatpush2.msra.mxu0 0.0
      %1365 = vmatprep.subr.mxu0 0.0
      %1366 = vmatpush2.msra.mxu0 0.0
      %1367 = vmatprep.subr.mxu0 0.0
      %1368 = vmatpush2.msra.mxu0 0.0
      %1369 = vmatprep.subr.mxu0 0.0
      %1370 = vmatpush2.msra.mxu0 0.0
      %1371 = vmatprep.mubr.f32.mxu0 0.0
      %1372 = vmatmul.mubr.f32.gmra.mxu0 %v1305
      %v1373 = vpop.f32.mrf.mxu0
      %v1374 = vadd.f32 0.0, %v1373
      %v1375 = vpop.f32.mrf.mxu0
      %1376 = vdwg.mxu0
      %v1378 = vsel %vm496, %v1374, 0
      %1380 = vmatprep.subr.mxu0 0.0
      %1381 = vmatpush1.msra.mxu0 0.0
      %1382 = vmatprep.subr.mxu0 0.0
      %1383 = vmatpush1.msra.mxu0 0.0
      %1384 = vmatprep.subr.mxu0 0.0
      %1385 = vmatpush1.msra.mxu0 0.0
      %1386 = vmatprep.subr.mxu0 0.0
      %1387 = vmatpush1.msra.mxu0 0.0
      %1388 = vmatprep.subr.mxu0 0.0
      %1389 = vmatpush1.msra.mxu0 0.0
      %1390 = vmatprep.subr.mxu0 0.0
      %1391 = vmatpush1.msra.mxu0 0.0
      %1392 = vmatprep.subr.mxu0 0.0
      %1393 = vmatpush1.msra.mxu0 0.0
      %1394 = vmatprep.subr.mxu0 0.0
      %1395 = vmatpush1.msra.mxu0 0.0
      %1396 = vmatprep.subr.mxu0 0.0
      %1397 = vmatpush1.msra.mxu0 0.0
      %1398 = vmatprep.subr.mxu0 0.0
      %1399 = vmatpush1.msra.mxu0 0.0
      %1400 = vmatprep.subr.mxu0 0.0
      %1401 = vmatpush1.msra.mxu0 0.0
      %1402 = vmatprep.subr.mxu0 0.0
      %1403 = vmatpush1.msra.mxu0 0.0
      %1404 = vmatprep.subr.mxu0 0.0
      %1405 = vmatpush1.msra.mxu0 0.0
      %1406 = vmatprep.subr.mxu0 0.0
      %1407 = vmatpush1.msra.mxu0 0.0
      %1408 = vmatprep.subr.mxu0 0.0
      %1409 = vmatpush1.msra.mxu0 0.0
      %1410 = vmatprep.subr.mxu0 0.0
      %1411 = vmatpush1.msra.mxu0 %v491
      %1412 = vmatprep.subr.mxu0 0.0
      %1413 = vmatpush2.msra.mxu0 0.0
      %1414 = vmatprep.subr.mxu0 0.0
      %1415 = vmatpush2.msra.mxu0 0.0
      %1416 = vmatprep.subr.mxu0 0.0
      %1417 = vmatpush2.msra.mxu0 0.0
      %1418 = vmatprep.subr.mxu0 0.0
      %1419 = vmatpush2.msra.mxu0 0.0
      %1420 = vmatprep.subr.mxu0 0.0
      %1421 = vmatpush2.msra.mxu0 0.0
      %1422 = vmatprep.subr.mxu0 0.0
      %1423 = vmatpush2.msra.mxu0 0.0
      %1424 = vmatprep.subr.mxu0 0.0
      %1425 = vmatpush2.msra.mxu0 0.0
      %1426 = vmatprep.subr.mxu0 0.0
      %1427 = vmatpush2.msra.mxu0 0.0
      %1428 = vmatprep.subr.mxu0 0.0
      %1429 = vmatpush2.msra.mxu0 0.0
      %1430 = vmatprep.subr.mxu0 0.0
      %1431 = vmatpush2.msra.mxu0 0.0
      %1432 = vmatprep.subr.mxu0 0.0
      %1433 = vmatpush2.msra.mxu0 0.0
      %1434 = vmatprep.subr.mxu0 0.0
      %1435 = vmatpush2.msra.mxu0 0.0
      %1436 = vmatprep.subr.mxu0 0.0
      %1437 = vmatpush2.msra.mxu0 0.0
      %1438 = vmatprep.subr.mxu0 0.0
      %1439 = vmatpush2.msra.mxu0 0.0
      %1440 = vmatprep.subr.mxu0 0.0
      %1441 = vmatpush2.msra.mxu0 0.0
      %1442 = vmatprep.subr.mxu0 0.0
      %1443 = vmatpush2.msra.mxu0 0.0
      %1444 = vmatprep.mubr.f32.mxu0 0.0
      %1445 = vmatmul.mubr.f32.gmra.mxu0 %v1378
      %v1446 = vpop.f32.mrf.mxu0
      %v1447 = vadd.f32 0.0, %v1446
      %v1448 = vpop.f32.mrf.mxu0
      %1449 = vdwg.mxu0
      %v1450 = vadd.f32 %v1210, %v1447
      %v1452 = vlaneseq
      %v1453 = vshrl.u32 %v1452, 7
      %v1454 = vsub.s32 0, %v1453
      %v1455 = vrot.slane %v492, %v1454
      %v1457 = vadd.f32 %v1450, %v1455
      %v1458 = vadd.f32 %v1457, %v409
      %v1459 = vld [vmem:[%s4] sm:$0x1]
      %v1460 = vld [vmem:[%s5] sm:$0x1]
      %v1461 = vsel %vm414, %v1458, 0.0
      %1462 = vadd.xlane.f32.xlu0 %v1461
      %v1463 = vpop.xlane.xlu0 %1462
      %v1464 = vrcp.pop 32.0
      %v1465 = vmul.f32 %v1463, %v1464
      %v1466 = vsub.f32 %v1458, %v1465
      %v1467 = vmul.f32 %v1466, %v1466
      %v1468 = vsel %vm414, %v1467, 0.0
      %1469 = vadd.xlane.f32.xlu0 %v1468
      %v1470 = vpop.xlane.xlu0 %1469
      %v1471 = vmul.f32 %v1470, %v1464
      %v1472 = vadd.f32 %v1471, 1e-05
      %v1473 = vrsqrt.pop %v1472
      %v1474 = vmul.f32 %v1466, %v1473
      %v1476 = vlaneseq
      %v1477 = vshrl.u32 %v1476, 7
      %v1478 = vsub.s32 0, %v1477
      %v1479 = vrot.slane %v1459, %v1478
      %v1481 = vmul.f32 %v1474, %v1479
      %v1483 = vlaneseq
      %v1484 = vshrl.u32 %v1483, 7
      %v1485 = vsub.s32 0, %v1484
      %v1486 = vrot.slane %v1460, %v1485
      %v1488 = vadd.f32 %v1481, %v1486
      %v1489 = vld [vmem:[%s6] sm:$0xff]
      %v1490 = vld [vmem:[%s6 + $0x8] sm:$0xff]
      %v1491 = vld [vmem:[%s6 + $0x10] sm:$0xff]
      %v1492 = vld [vmem:[%s6 + $0x18] sm:$0xff]
      %v1493 = vld [vmem:[%s6 + $0x20] sm:$0xff]
      %v1494 = vld [vmem:[%s6 + $0x28] sm:$0xff]
      %v1495 = vld [vmem:[%s6 + $0x30] sm:$0xff]
      %v1496 = vld [vmem:[%s6 + $0x38] sm:$0xff]
      %v1497 = vld [vmem:[%s6 + $0x40] sm:$0xff]
      %v1498 = vld [vmem:[%s6 + $0x48] sm:$0xff]
      %v1499 = vld [vmem:[%s6 + $0x50] sm:$0xff]
      %v1500 = vld [vmem:[%s6 + $0x58] sm:$0xff]
      %v1501 = vld [vmem:[%s6 + $0x60] sm:$0xff]
      %v1502 = vld [vmem:[%s6 + $0x68] sm:$0xff]
      %v1503 = vld [vmem:[%s6 + $0x70] sm:$0xff]
      %v1504 = vld [vmem:[%s6 + $0x78] sm:$0xff]
      %v1505 = vld [vmem:[%s6 + $0x80] sm:$0xff]
      %v1506 = vld [vmem:[%s6 + $0x88] sm:$0xff]
      %v1507 = vld [vmem:[%s6 + $0x90] sm:$0xff]
      %v1508 = vld [vmem:[%s6 + $0x98] sm:$0xff]
      %v1509 = vld [vmem:[%s6 + $0xa0] sm:$0xff]
      %v1510 = vld [vmem:[%s6 + $0xa8] sm:$0xff]
      %v1511 = vld [vmem:[%s6 + $0xb0] sm:$0xff]
      %v1512 = vld [vmem:[%s6 + $0xb8] sm:$0xff]
      %v1513 = vld [vmem:[%s6 + $0xc0] sm:$0xff]
      %v1514 = vld [vmem:[%s6 + $0xc8] sm:$0xff]
      %v1515 = vld [vmem:[%s6 + $0xd0] sm:$0xff]
      %v1516 = vld [vmem:[%s6 + $0xd8] sm:$0xff]
      %v1517 = vld [vmem:[%s6 + $0xe0] sm:$0xff]
      %v1518 = vld [vmem:[%s6 + $0xe8] sm:$0xff]
      %v1519 = vld [vmem:[%s6 + $0xf0] sm:$0xff]
      %v1520 = vld [vmem:[%s6 + $0xf8] sm:$0xff]
      %v1521 = vld [vmem:[%s6 + $0x100] sm:$0xff]
      %v1522 = vld [vmem:[%s6 + $0x108] sm:$0xff]
      %v1523 = vld [vmem:[%s6 + $0x110] sm:$0xff]
      %v1524 = vld [vmem:[%s6 + $0x118] sm:$0xff]
      %v1525 = vld [vmem:[%s6 + $0x120] sm:$0xff]
      %v1526 = vld [vmem:[%s6 + $0x128] sm:$0xff]
      %v1527 = vld [vmem:[%s6 + $0x130] sm:$0xff]
      %v1528 = vld [vmem:[%s6 + $0x138] sm:$0xff]
      %v1529 = vld [vmem:[%s6 + $0x140] sm:$0xff]
      %v1530 = vld [vmem:[%s6 + $0x148] sm:$0xff]
      %v1531 = vld [vmem:[%s6 + $0x150] sm:$0xff]
      %v1532 = vld [vmem:[%s6 + $0x158] sm:$0xff]
      %v1533 = vld [vmem:[%s6 + $0x160] sm:$0xff]
      %v1534 = vld [vmem:[%s6 + $0x168] sm:$0xff]
      %v1535 = vld [vmem:[%s6 + $0x170] sm:$0xff]
      %v1536 = vld [vmem:[%s6 + $0x178] sm:$0xff]
      %v1537 = vld [vmem:[%s6 + $0x180] sm:$0xff]
      %v1538 = vld [vmem:[%s6 + $0x188] sm:$0xff]
      %v1539 = vld [vmem:[%s6 + $0x190] sm:$0xff]
      %v1540 = vld [vmem:[%s6 + $0x198] sm:$0xff]
      %v1541 = vld [vmem:[%s6 + $0x1a0] sm:$0xff]
      %v1542 = vld [vmem:[%s6 + $0x1a8] sm:$0xff]
      %v1543 = vld [vmem:[%s6 + $0x1b0] sm:$0xff]
      %v1544 = vld [vmem:[%s6 + $0x1b8] sm:$0xff]
      %v1545 = vld [vmem:[%s6 + $0x1c0] sm:$0xff]
      %v1546 = vld [vmem:[%s6 + $0x1c8] sm:$0xff]
      %v1547 = vld [vmem:[%s6 + $0x1d0] sm:$0xff]
      %v1548 = vld [vmem:[%s6 + $0x1d8] sm:$0xff]
      %v1549 = vld [vmem:[%s6 + $0x1e0] sm:$0xff]
      %v1550 = vld [vmem:[%s6 + $0x1e8] sm:$0xff]
      %v1551 = vld [vmem:[%s6 + $0x1f0] sm:$0xff]
      %v1552 = vld [vmem:[%s6 + $0x1f8] sm:$0xff]
      %v1553 = vld [vmem:[%s7] sm:$0xff]
      %v1554 = vld [vmem:[%s7 + $0x8] sm:$0xff]
      %v1557 = vlaneseq
      %v1558 = vshrl.u32 %v1557, 7
      %v1559 = vsub.s32 0, %v1558
      %v1560 = vrot.slane %v1553, %v1559
      %v1561 = vlaneseq
      %v1562 = vshrl.u32 %v1561, 7
      %v1563 = vsub.s32 1, %v1562
      %v1564 = vrot.slane %v1553, %v1563
      %v1565 = vlaneseq
      %v1566 = vshrl.u32 %v1565, 7
      %v1567 = vsub.s32 2, %v1566
      %v1568 = vrot.slane %v1553, %v1567
      %v1569 = vlaneseq
      %v1570 = vshrl.u32 %v1569, 7
      %v1571 = vsub.s32 3, %v1570
      %v1572 = vrot.slane %v1553, %v1571
      %v1573 = vlaneseq
      %v1574 = vshrl.u32 %v1573, 7
      %v1575 = vsub.s32 4, %v1574
      %v1576 = vrot.slane %v1553, %v1575
      %v1577 = vlaneseq
      %v1578 = vshrl.u32 %v1577, 7
      %v1579 = vsub.s32 5, %v1578
      %v1580 = vrot.slane %v1553, %v1579
      %v1581 = vlaneseq
      %v1582 = vshrl.u32 %v1581, 7
      %v1583 = vsub.s32 6, %v1582
      %v1584 = vrot.slane %v1553, %v1583
      %v1585 = vlaneseq
      %v1586 = vshrl.u32 %v1585, 7
      %v1587 = vsub.s32 7, %v1586
      %v1588 = vrot.slane %v1553, %v1587
      %v1589 = vlaneseq
      %v1590 = vshrl.u32 %v1589, 7
      %v1591 = vsub.s32 0, %v1590
      %v1592 = vrot.slane %v1554, %v1591
      %v1593 = vlaneseq
      %v1594 = vshrl.u32 %v1593, 7
      %v1595 = vsub.s32 1, %v1594
      %v1596 = vrot.slane %v1554, %v1595
      %v1597 = vlaneseq
      %v1598 = vshrl.u32 %v1597, 7
      %v1599 = vsub.s32 2, %v1598
      %v1600 = vrot.slane %v1554, %v1599
      %v1601 = vlaneseq
      %v1602 = vshrl.u32 %v1601, 7
      %v1603 = vsub.s32 3, %v1602
      %v1604 = vrot.slane %v1554, %v1603
      %v1605 = vlaneseq
      %v1606 = vshrl.u32 %v1605, 7
      %v1607 = vsub.s32 4, %v1606
      %v1608 = vrot.slane %v1554, %v1607
      %v1609 = vlaneseq
      %v1610 = vshrl.u32 %v1609, 7
      %v1611 = vsub.s32 5, %v1610
      %v1612 = vrot.slane %v1554, %v1611
      %v1613 = vlaneseq
      %v1614 = vshrl.u32 %v1613, 7
      %v1615 = vsub.s32 6, %v1614
      %v1616 = vrot.slane %v1554, %v1615
      %v1617 = vlaneseq
      %v1618 = vshrl.u32 %v1617, 7
      %v1619 = vsub.s32 7, %v1618
      %v1620 = vrot.slane %v1554, %v1619
      %v1638 = vsel %vm414, %v1488, 0
      %1640 = vmatprep.subr.mxu0 0.0
      %1641 = vmatpush1.msra.mxu0 0.0
      %1642 = vmatprep.subr.mxu0 0.0
      %1643 = vmatpush1.msra.mxu0 0.0
      %1644 = vmatprep.subr.mxu0 0.0
      %1645 = vmatpush1.msra.mxu0 0.0
      %1646 = vmatprep.subr.mxu0 0.0
      %1647 = vmatpush1.msra.mxu0 0.0
      %1648 = vmatprep.subr.mxu0 0.0
      %1649 = vmatpush1.msra.mxu0 0.0
      %1650 = vmatprep.subr.mxu0 0.0
      %1651 = vmatpush1.msra.mxu0 0.0
      %1652 = vmatprep.subr.mxu0 0.0
      %1653 = vmatpush1.msra.mxu0 0.0
      %1654 = vmatprep.subr.mxu0 0.0
      %1655 = vmatpush1.msra.mxu0 0.0
      %1656 = vmatprep.subr.mxu0 0.0
      %1657 = vmatpush1.msra.mxu0 0.0
      %1658 = vmatprep.subr.mxu0 0.0
      %1659 = vmatpush1.msra.mxu0 0.0
      %1660 = vmatprep.subr.mxu0 0.0
      %1661 = vmatpush1.msra.mxu0 0.0
      %1662 = vmatprep.subr.mxu0 0.0
      %1663 = vmatpush1.msra.mxu0 0.0
      %1664 = vmatprep.subr.mxu0 %v1538
      %1665 = vmatpush1.msra.mxu0 %v1537
      %1666 = vmatprep.subr.mxu0 %v1522
      %1667 = vmatpush1.msra.mxu0 %v1521
      %1668 = vmatprep.subr.mxu0 %v1506
      %1669 = vmatpush1.msra.mxu0 %v1505
      %1670 = vmatprep.subr.mxu0 %v1490
      %1671 = vmatpush1.msra.mxu0 %v1489
      %1672 = vmatprep.subr.mxu0 0.0
      %1673 = vmatpush2.msra.mxu0 0.0
      %1674 = vmatprep.subr.mxu0 0.0
      %1675 = vmatpush2.msra.mxu0 0.0
      %1676 = vmatprep.subr.mxu0 0.0
      %1677 = vmatpush2.msra.mxu0 0.0
      %1678 = vmatprep.subr.mxu0 0.0
      %1679 = vmatpush2.msra.mxu0 0.0
      %1680 = vmatprep.subr.mxu0 0.0
      %1681 = vmatpush2.msra.mxu0 0.0
      %1682 = vmatprep.subr.mxu0 0.0
      %1683 = vmatpush2.msra.mxu0 0.0
      %1684 = vmatprep.subr.mxu0 0.0
      %1685 = vmatpush2.msra.mxu0 0.0
      %1686 = vmatprep.subr.mxu0 0.0
      %1687 = vmatpush2.msra.mxu0 0.0
      %1688 = vmatprep.subr.mxu0 0.0
      %1689 = vmatpush2.msra.mxu0 0.0
      %1690 = vmatprep.subr.mxu0 0.0
      %1691 = vmatpush2.msra.mxu0 0.0
      %1692 = vmatprep.subr.mxu0 0.0
      %1693 = vmatpush2.msra.mxu0 0.0
      %1694 = vmatprep.subr.mxu0 0.0
      %1695 = vmatpush2.msra.mxu0 0.0
      %1696 = vmatprep.subr.mxu0 0.0
      %1697 = vmatpush2.msra.mxu0 0.0
      %1698 = vmatprep.subr.mxu0 0.0
      %1699 = vmatpush2.msra.mxu0 0.0
      %1700 = vmatprep.subr.mxu0 0.0
      %1701 = vmatpush2.msra.mxu0 0.0
      %1702 = vmatprep.subr.mxu0 0.0
      %1703 = vmatpush2.msra.mxu0 0.0
      %1704 = vmatprep.mubr.f32.mxu0 0.0
      %1705 = vmatmul.mubr.f32.gmra.mxu0 %v1638
      %v1706 = vpop.f32.mrf.mxu0
      %v1707 = vadd.f32 %v1560, %v1706
      %v1708 = vpop.f32.mrf.mxu0
      %v1709 = vadd.f32 %v1564, %v1708
      %1710 = vdwg.mxu0
      %1711 = vmatprep.subr.mxu0 0.0
      %1712 = vmatpush1.msra.mxu0 0.0
      %1713 = vmatprep.subr.mxu0 0.0
      %1714 = vmatpush1.msra.mxu0 0.0
      %1715 = vmatprep.subr.mxu0 0.0
      %1716 = vmatpush1.msra.mxu0 0.0
      %1717 = vmatprep.subr.mxu0 0.0
      %1718 = vmatpush1.msra.mxu0 0.0
      %1719 = vmatprep.subr.mxu0 0.0
      %1720 = vmatpush1.msra.mxu0 0.0
      %1721 = vmatprep.subr.mxu0 0.0
      %1722 = vmatpush1.msra.mxu0 0.0
      %1723 = vmatprep.subr.mxu0 0.0
      %1724 = vmatpush1.msra.mxu0 0.0
      %1725 = vmatprep.subr.mxu0 0.0
      %1726 = vmatpush1.msra.mxu0 0.0
      %1727 = vmatprep.subr.mxu0 0.0
      %1728 = vmatpush1.msra.mxu0 0.0
      %1729 = vmatprep.subr.mxu0 0.0
      %1730 = vmatpush1.msra.mxu0 0.0
      %1731 = vmatprep.subr.mxu0 0.0
      %1732 = vmatpush1.msra.mxu0 0.0
      %1733 = vmatprep.subr.mxu0 0.0
      %1734 = vmatpush1.msra.mxu0 0.0
      %1735 = vmatprep.subr.mxu0 %v1540
      %1736 = vmatpush1.msra.mxu0 %v1539
      %1737 = vmatprep.subr.mxu0 %v1524
      %1738 = vmatpush1.msra.mxu0 %v1523
      %1739 = vmatprep.subr.mxu0 %v1508
      %1740 = vmatpush1.msra.mxu0 %v1507
      %1741 = vmatprep.subr.mxu0 %v1492
      %1742 = vmatpush1.msra.mxu0 %v1491
      %1743 = vmatprep.subr.mxu0 0.0
      %1744 = vmatpush2.msra.mxu0 0.0
      %1745 = vmatprep.subr.mxu0 0.0
      %1746 = vmatpush2.msra.mxu0 0.0
      %1747 = vmatprep.subr.mxu0 0.0
      %1748 = vmatpush2.msra.mxu0 0.0
      %1749 = vmatprep.subr.mxu0 0.0
      %1750 = vmatpush2.msra.mxu0 0.0
      %1751 = vmatprep.subr.mxu0 0.0
      %1752 = vmatpush2.msra.mxu0 0.0
      %1753 = vmatprep.subr.mxu0 0.0
      %1754 = vmatpush2.msra.mxu0 0.0
      %1755 = vmatprep.subr.mxu0 0.0
      %1756 = vmatpush2.msra.mxu0 0.0
      %1757 = vmatprep.subr.mxu0 0.0
      %1758 = vmatpush2.msra.mxu0 0.0
      %1759 = vmatprep.subr.mxu0 0.0
      %1760 = vmatpush2.msra.mxu0 0.0
      %1761 = vmatprep.subr.mxu0 0.0
      %1762 = vmatpush2.msra.mxu0 0.0
      %1763 = vmatprep.subr.mxu0 0.0
      %1764 = vmatpush2.msra.mxu0 0.0
      %1765 = vmatprep.subr.mxu0 0.0
      %1766 = vmatpush2.msra.mxu0 0.0
      %1767 = vmatprep.subr.mxu0 0.0
      %1768 = vmatpush2.msra.mxu0 0.0
      %1769 = vmatprep.subr.mxu0 0.0
      %1770 = vmatpush2.msra.mxu0 0.0
      %1771 = vmatprep.subr.mxu0 0.0
      %1772 = vmatpush2.msra.mxu0 0.0
      %1773 = vmatprep.subr.mxu0 0.0
      %1774 = vmatpush2.msra.mxu0 0.0
      %1775 = vmatprep.mubr.f32.mxu0 0.0
      %1776 = vmatmul.mubr.f32.gmra.mxu0 %v1638
      %v1777 = vpop.f32.mrf.mxu0
      %v1778 = vadd.f32 %v1568, %v1777
      %v1779 = vpop.f32.mrf.mxu0
      %v1780 = vadd.f32 %v1572, %v1779
      %1781 = vdwg.mxu0
      %1782 = vmatprep.subr.mxu0 0.0
      %1783 = vmatpush1.msra.mxu0 0.0
      %1784 = vmatprep.subr.mxu0 0.0
      %1785 = vmatpush1.msra.mxu0 0.0
      %1786 = vmatprep.subr.mxu0 0.0
      %1787 = vmatpush1.msra.mxu0 0.0
      %1788 = vmatprep.subr.mxu0 0.0
      %1789 = vmatpush1.msra.mxu0 0.0
      %1790 = vmatprep.subr.mxu0 0.0
      %1791 = vmatpush1.msra.mxu0 0.0
      %1792 = vmatprep.subr.mxu0 0.0
      %1793 = vmatpush1.msra.mxu0 0.0
      %1794 = vmatprep.subr.mxu0 0.0
      %1795 = vmatpush1.msra.mxu0 0.0
      %1796 = vmatprep.subr.mxu0 0.0
      %1797 = vmatpush1.msra.mxu0 0.0
      %1798 = vmatprep.subr.mxu0 0.0
      %1799 = vmatpush1.msra.mxu0 0.0
      %1800 = vmatprep.subr.mxu0 0.0
      %1801 = vmatpush1.msra.mxu0 0.0
      %1802 = vmatprep.subr.mxu0 0.0
      %1803 = vmatpush1.msra.mxu0 0.0
      %1804 = vmatprep.subr.mxu0 0.0
      %1805 = vmatpush1.msra.mxu0 0.0
      %1806 = vmatprep.subr.mxu0 %v1542
      %1807 = vmatpush1.msra.mxu0 %v1541
      %1808 = vmatprep.subr.mxu0 %v1526
      %1809 = vmatpush1.msra.mxu0 %v1525
      %1810 = vmatprep.subr.mxu0 %v1510
      %1811 = vmatpush1.msra.mxu0 %v1509
      %1812 = vmatprep.subr.mxu0 %v1494
      %1813 = vmatpush1.msra.mxu0 %v1493
      %1814 = vmatprep.subr.mxu0 0.0
      %1815 = vmatpush2.msra.mxu0 0.0
      %1816 = vmatprep.subr.mxu0 0.0
      %1817 = vmatpush2.msra.mxu0 0.0
      %1818 = vmatprep.subr.mxu0 0.0
      %1819 = vmatpush2.msra.mxu0 0.0
      %1820 = vmatprep.subr.mxu0 0.0
      %1821 = vmatpush2.msra.mxu0 0.0
      %1822 = vmatprep.subr.mxu0 0.0
      %1823 = vmatpush2.msra.mxu0 0.0
      %1824 = vmatprep.subr.mxu0 0.0
      %1825 = vmatpush2.msra.mxu0 0.0
      %1826 = vmatprep.subr.mxu0 0.0
      %1827 = vmatpush2.msra.mxu0 0.0
      %1828 = vmatprep.subr.mxu0 0.0
      %1829 = vmatpush2.msra.mxu0 0.0
      %1830 = vmatprep.subr.mxu0 0.0
      %1831 = vmatpush2.msra.mxu0 0.0
      %1832 = vmatprep.subr.mxu0 0.0
      %1833 = vmatpush2.msra.mxu0 0.0
      %1834 = vmatprep.subr.mxu0 0.0
      %1835 = vmatpush2.msra.mxu0 0.0
      %1836 = vmatprep.subr.mxu0 0.0
      %1837 = vmatpush2.msra.mxu0 0.0
      %1838 = vmatprep.subr.mxu0 0.0
      %1839 = vmatpush2.msra.mxu0 0.0
      %1840 = vmatprep.subr.mxu0 0.0
      %1841 = vmatpush2.msra.mxu0 0.0
      %1842 = vmatprep.subr.mxu0 0.0
      %1843 = vmatpush2.msra.mxu0 0.0
      %1844 = vmatprep.subr.mxu0 0.0
      %1845 = vmatpush2.msra.mxu0 0.0
      %1846 = vmatprep.mubr.f32.mxu0 0.0
      %1847 = vmatmul.mubr.f32.gmra.mxu0 %v1638
      %v1848 = vpop.f32.mrf.mxu0
      %v1849 = vadd.f32 %v1576, %v1848
      %v1850 = vpop.f32.mrf.mxu0
      %v1851 = vadd.f32 %v1580, %v1850
      %1852 = vdwg.mxu0
      %1853 = vmatprep.subr.mxu0 0.0
      %1854 = vmatpush1.msra.mxu0 0.0
      %1855 = vmatprep.subr.mxu0 0.0
      %1856 = vmatpush1.msra.mxu0 0.0
      %1857 = vmatprep.subr.mxu0 0.0
      %1858 = vmatpush1.msra.mxu0 0.0
      %1859 = vmatprep.subr.mxu0 0.0
      %1860 = vmatpush1.msra.mxu0 0.0
      %1861 = vmatprep.subr.mxu0 0.0
      %1862 = vmatpush1.msra.mxu0 0.0
      %1863 = vmatprep.subr.mxu0 0.0
      %1864 = vmatpush1.msra.mxu0 0.0
      %1865 = vmatprep.subr.mxu0 0.0
      %1866 = vmatpush1.msra.mxu0 0.0
      %1867 = vmatprep.subr.mxu0 0.0
      %1868 = vmatpush1.msra.mxu0 0.0
      %1869 = vmatprep.subr.mxu0 0.0
      %1870 = vmatpush1.msra.mxu0 0.0
      %1871 = vmatprep.subr.mxu0 0.0
      %1872 = vmatpush1.msra.mxu0 0.0
      %1873 = vmatprep.subr.mxu0 0.0
      %1874 = vmatpush1.msra.mxu0 0.0
      %1875 = vmatprep.subr.mxu0 0.0
      %1876 = vmatpush1.msra.mxu0 0.0
      %1877 = vmatprep.subr.mxu0 %v1544
      %1878 = vmatpush1.msra.mxu0 %v1543
      %1879 = vmatprep.subr.mxu0 %v1528
      %1880 = vmatpush1.msra.mxu0 %v1527
      %1881 = vmatprep.subr.mxu0 %v1512
      %1882 = vmatpush1.msra.mxu0 %v1511
      %1883 = vmatprep.subr.mxu0 %v1496
      %1884 = vmatpush1.msra.mxu0 %v1495
      %1885 = vmatprep.subr.mxu0 0.0
      %1886 = vmatpush2.msra.mxu0 0.0
      %1887 = vmatprep.subr.mxu0 0.0
      %1888 = vmatpush2.msra.mxu0 0.0
      %1889 = vmatprep.subr.mxu0 0.0
      %1890 = vmatpush2.msra.mxu0 0.0
      %1891 = vmatprep.subr.mxu0 0.0
      %1892 = vmatpush2.msra.mxu0 0.0
      %1893 = vmatprep.subr.mxu0 0.0
      %1894 = vmatpush2.msra.mxu0 0.0
      %1895 = vmatprep.subr.mxu0 0.0
      %1896 = vmatpush2.msra.mxu0 0.0
      %1897 = vmatprep.subr.mxu0 0.0
      %1898 = vmatpush2.msra.mxu0 0.0
      %1899 = vmatprep.subr.mxu0 0.0
      %1900 = vmatpush2.msra.mxu0 0.0
      %1901 = vmatprep.subr.mxu0 0.0
      %1902 = vmatpush2.msra.mxu0 0.0
      %1903 = vmatprep.subr.mxu0 0.0
      %1904 = vmatpush2.msra.mxu0 0.0
      %1905 = vmatprep.subr.mxu0 0.0
      %1906 = vmatpush2.msra.mxu0 0.0
      %1907 = vmatprep.subr.mxu0 0.0
      %1908 = vmatpush2.msra.mxu0 0.0
      %1909 = vmatprep.subr.mxu0 0.0
      %1910 = vmatpush2.msra.mxu0 0.0
      %1911 = vmatprep.subr.mxu0 0.0
      %1912 = vmatpush2.msra.mxu0 0.0
      %1913 = vmatprep.subr.mxu0 0.0
      %1914 = vmatpush2.msra.mxu0 0.0
      %1915 = vmatprep.subr.mxu0 0.0
      %1916 = vmatpush2.msra.mxu0 0.0
      %1917 = vmatprep.mubr.f32.mxu0 0.0
      %1918 = vmatmul.mubr.f32.gmra.mxu0 %v1638
      %v1919 = vpop.f32.mrf.mxu0
      %v1920 = vadd.f32 %v1584, %v1919
      %v1921 = vpop.f32.mrf.mxu0
      %v1922 = vadd.f32 %v1588, %v1921
      %1923 = vdwg.mxu0
      %1924 = vmatprep.subr.mxu0 0.0
      %1925 = vmatpush1.msra.mxu0 0.0
      %1926 = vmatprep.subr.mxu0 0.0
      %1927 = vmatpush1.msra.mxu0 0.0
      %1928 = vmatprep.subr.mxu0 0.0
      %1929 = vmatpush1.msra.mxu0 0.0
      %1930 = vmatprep.subr.mxu0 0.0
      %1931 = vmatpush1.msra.mxu0 0.0
      %1932 = vmatprep.subr.mxu0 0.0
      %1933 = vmatpush1.msra.mxu0 0.0
      %1934 = vmatprep.subr.mxu0 0.0
      %1935 = vmatpush1.msra.mxu0 0.0
      %1936 = vmatprep.subr.mxu0 0.0
      %1937 = vmatpush1.msra.mxu0 0.0
      %1938 = vmatprep.subr.mxu0 0.0
      %1939 = vmatpush1.msra.mxu0 0.0
      %1940 = vmatprep.subr.mxu0 0.0
      %1941 = vmatpush1.msra.mxu0 0.0
      %1942 = vmatprep.subr.mxu0 0.0
      %1943 = vmatpush1.msra.mxu0 0.0
      %1944 = vmatprep.subr.mxu0 0.0
      %1945 = vmatpush1.msra.mxu0 0.0
      %1946 = vmatprep.subr.mxu0 0.0
      %1947 = vmatpush1.msra.mxu0 0.0
      %1948 = vmatprep.subr.mxu0 %v1546
      %1949 = vmatpush1.msra.mxu0 %v1545
      %1950 = vmatprep.subr.mxu0 %v1530
      %1951 = vmatpush1.msra.mxu0 %v1529
      %1952 = vmatprep.subr.mxu0 %v1514
      %1953 = vmatpush1.msra.mxu0 %v1513
      %1954 = vmatprep.subr.mxu0 %v1498
      %1955 = vmatpush1.msra.mxu0 %v1497
      %1956 = vmatprep.subr.mxu0 0.0
      %1957 = vmatpush2.msra.mxu0 0.0
      %1958 = vmatprep.subr.mxu0 0.0
      %1959 = vmatpush2.msra.mxu0 0.0
      %1960 = vmatprep.subr.mxu0 0.0
      %1961 = vmatpush2.msra.mxu0 0.0
      %1962 = vmatprep.subr.mxu0 0.0
      %1963 = vmatpush2.msra.mxu0 0.0
      %1964 = vmatprep.subr.mxu0 0.0
      %1965 = vmatpush2.msra.mxu0 0.0
      %1966 = vmatprep.subr.mxu0 0.0
      %1967 = vmatpush2.msra.mxu0 0.0
      %1968 = vmatprep.subr.mxu0 0.0
      %1969 = vmatpush2.msra.mxu0 0.0
      %1970 = vmatprep.subr.mxu0 0.0
      %1971 = vmatpush2.msra.mxu0 0.0
      %1972 = vmatprep.subr.mxu0 0.0
      %1973 = vmatpush2.msra.mxu0 0.0
      %1974 = vmatprep.subr.mxu0 0.0
      %1975 = vmatpush2.msra.mxu0 0.0
      %1976 = vmatprep.subr.mxu0 0.0
      %1977 = vmatpush2.msra.mxu0 0.0
      %1978 = vmatprep.subr.mxu0 0.0
      %1979 = vmatpush2.msra.mxu0 0.0
      %1980 = vmatprep.subr.mxu0 0.0
      %1981 = vmatpush2.msra.mxu0 0.0
      %1982 = vmatprep.subr.mxu0 0.0
      %1983 = vmatpush2.msra.mxu0 0.0
      %1984 = vmatprep.subr.mxu0 0.0
      %1985 = vmatpush2.msra.mxu0 0.0
      %1986 = vmatprep.subr.mxu0 0.0
      %1987 = vmatpush2.msra.mxu0 0.0
      %1988 = vmatprep.mubr.f32.mxu0 0.0
      %1989 = vmatmul.mubr.f32.gmra.mxu0 %v1638
      %v1990 = vpop.f32.mrf.mxu0
      %v1991 = vadd.f32 %v1592, %v1990
      %v1992 = vpop.f32.mrf.mxu0
      %v1993 = vadd.f32 %v1596, %v1992
      %1994 = vdwg.mxu0
      %1995 = vmatprep.subr.mxu0 0.0
      %1996 = vmatpush1.msra.mxu0 0.0
      %1997 = vmatprep.subr.mxu0 0.0
      %1998 = vmatpush1.msra.mxu0 0.0
      %1999 = vmatprep.subr.mxu0 0.0
      %2000 = vmatpush1.msra.mxu0 0.0
      %2001 = vmatprep.subr.mxu0 0.0
      %2002 = vmatpush1.msra.mxu0 0.0
      %2003 = vmatprep.subr.mxu0 0.0
      %2004 = vmatpush1.msra.mxu0 0.0
      %2005 = vmatprep.subr.mxu0 0.0
      %2006 = vmatpush1.msra.mxu0 0.0
      %2007 = vmatprep.subr.mxu0 0.0
      %2008 = vmatpush1.msra.mxu0 0.0
      %2009 = vmatprep.subr.mxu0 0.0
      %2010 = vmatpush1.msra.mxu0 0.0
      %2011 = vmatprep.subr.mxu0 0.0
      %2012 = vmatpush1.msra.mxu0 0.0
      %2013 = vmatprep.subr.mxu0 0.0
      %2014 = vmatpush1.msra.mxu0 0.0
      %2015 = vmatprep.subr.mxu0 0.0
      %2016 = vmatpush1.msra.mxu0 0.0
      %2017 = vmatprep.subr.mxu0 0.0
      %2018 = vmatpush1.msra.mxu0 0.0
      %2019 = vmatprep.subr.mxu0 %v1548
      %2020 = vmatpush1.msra.mxu0 %v1547
      %2021 = vmatprep.subr.mxu0 %v1532
      %2022 = vmatpush1.msra.mxu0 %v1531
      %2023 = vmatprep.subr.mxu0 %v1516
      %2024 = vmatpush1.msra.mxu0 %v1515
      %2025 = vmatprep.subr.mxu0 %v1500
      %2026 = vmatpush1.msra.mxu0 %v1499
      %2027 = vmatprep.subr.mxu0 0.0
      %2028 = vmatpush2.msra.mxu0 0.0
      %2029 = vmatprep.subr.mxu0 0.0
      %2030 = vmatpush2.msra.mxu0 0.0
      %2031 = vmatprep.subr.mxu0 0.0
      %2032 = vmatpush2.msra.mxu0 0.0
      %2033 = vmatprep.subr.mxu0 0.0
      %2034 = vmatpush2.msra.mxu0 0.0
      %2035 = vmatprep.subr.mxu0 0.0
      %2036 = vmatpush2.msra.mxu0 0.0
      %2037 = vmatprep.subr.mxu0 0.0
      %2038 = vmatpush2.msra.mxu0 0.0
      %2039 = vmatprep.subr.mxu0 0.0
      %2040 = vmatpush2.msra.mxu0 0.0
      %2041 = vmatprep.subr.mxu0 0.0
      %2042 = vmatpush2.msra.mxu0 0.0
      %2043 = vmatprep.subr.mxu0 0.0
      %2044 = vmatpush2.msra.mxu0 0.0
      %2045 = vmatprep.subr.mxu0 0.0
      %2046 = vmatpush2.msra.mxu0 0.0
      %2047 = vmatprep.subr.mxu0 0.0
      %2048 = vmatpush2.msra.mxu0 0.0
      %2049 = vmatprep.subr.mxu0 0.0
      %2050 = vmatpush2.msra.mxu0 0.0
      %2051 = vmatprep.subr.mxu0 0.0
      %2052 = vmatpush2.msra.mxu0 0.0
      %2053 = vmatprep.subr.mxu0 0.0
      %2054 = vmatpush2.msra.mxu0 0.0
      %2055 = vmatprep.subr.mxu0 0.0
      %2056 = vmatpush2.msra.mxu0 0.0
      %2057 = vmatprep.subr.mxu0 0.0
      %2058 = vmatpush2.msra.mxu0 0.0
      %2059 = vmatprep.mubr.f32.mxu0 0.0
      %2060 = vmatmul.mubr.f32.gmra.mxu0 %v1638
      %v2061 = vpop.f32.mrf.mxu0
      %v2062 = vadd.f32 %v1600, %v2061
      %v2063 = vpop.f32.mrf.mxu0
      %v2064 = vadd.f32 %v1604, %v2063
      %2065 = vdwg.mxu0
      %2066 = vmatprep.subr.mxu0 0.0
      %2067 = vmatpush1.msra.mxu0 0.0
      %2068 = vmatprep.subr.mxu0 0.0
      %2069 = vmatpush1.msra.mxu0 0.0
      %2070 = vmatprep.subr.mxu0 0.0
      %2071 = vmatpush1.msra.mxu0 0.0
      %2072 = vmatprep.subr.mxu0 0.0
      %2073 = vmatpush1.msra.mxu0 0.0
      %2074 = vmatprep.subr.mxu0 0.0
      %2075 = vmatpush1.msra.mxu0 0.0
      %2076 = vmatprep.subr.mxu0 0.0
      %2077 = vmatpush1.msra.mxu0 0.0
      %2078 = vmatprep.subr.mxu0 0.0
      %2079 = vmatpush1.msra.mxu0 0.0
      %2080 = vmatprep.subr.mxu0 0.0
      %2081 = vmatpush1.msra.mxu0 0.0
      %2082 = vmatprep.subr.mxu0 0.0
      %2083 = vmatpush1.msra.mxu0 0.0
      %2084 = vmatprep.subr.mxu0 0.0
      %2085 = vmatpush1.msra.mxu0 0.0
      %2086 = vmatprep.subr.mxu0 0.0
      %2087 = vmatpush1.msra.mxu0 0.0
      %2088 = vmatprep.subr.mxu0 0.0
      %2089 = vmatpush1.msra.mxu0 0.0
      %2090 = vmatprep.subr.mxu0 %v1550
      %2091 = vmatpush1.msra.mxu0 %v1549
      %2092 = vmatprep.subr.mxu0 %v1534
      %2093 = vmatpush1.msra.mxu0 %v1533
      %2094 = vmatprep.subr.mxu0 %v1518
      %2095 = vmatpush1.msra.mxu0 %v1517
      %2096 = vmatprep.subr.mxu0 %v1502
      %2097 = vmatpush1.msra.mxu0 %v1501
      %2098 = vmatprep.subr.mxu0 0.0
      %2099 = vmatpush2.msra.mxu0 0.0
      %2100 = vmatprep.subr.mxu0 0.0
      %2101 = vmatpush2.msra.mxu0 0.0
      %2102 = vmatprep.subr.mxu0 0.0
      %2103 = vmatpush2.msra.mxu0 0.0
      %2104 = vmatprep.subr.mxu0 0.0
      %2105 = vmatpush2.msra.mxu0 0.0
      %2106 = vmatprep.subr.mxu0 0.0
      %2107 = vmatpush2.msra.mxu0 0.0
      %2108 = vmatprep.subr.mxu0 0.0
      %2109 = vmatpush2.msra.mxu0 0.0
      %2110 = vmatprep.subr.mxu0 0.0
      %2111 = vmatpush2.msra.mxu0 0.0
      %2112 = vmatprep.subr.mxu0 0.0
      %2113 = vmatpush2.msra.mxu0 0.0
      %2114 = vmatprep.subr.mxu0 0.0
      %2115 = vmatpush2.msra.mxu0 0.0
      %2116 = vmatprep.subr.mxu0 0.0
      %2117 = vmatpush2.msra.mxu0 0.0
      %2118 = vmatprep.subr.mxu0 0.0
      %2119 = vmatpush2.msra.mxu0 0.0
      %2120 = vmatprep.subr.mxu0 0.0
      %2121 = vmatpush2.msra.mxu0 0.0
      %2122 = vmatprep.subr.mxu0 0.0
      %2123 = vmatpush2.msra.mxu0 0.0
      %2124 = vmatprep.subr.mxu0 0.0
      %2125 = vmatpush2.msra.mxu0 0.0
      %2126 = vmatprep.subr.mxu0 0.0
      %2127 = vmatpush2.msra.mxu0 0.0
      %2128 = vmatprep.subr.mxu0 0.0
      %2129 = vmatpush2.msra.mxu0 0.0
      %2130 = vmatprep.mubr.f32.mxu0 0.0
      %2131 = vmatmul.mubr.f32.gmra.mxu0 %v1638
      %v2132 = vpop.f32.mrf.mxu0
      %v2133 = vadd.f32 %v1608, %v2132
      %v2134 = vpop.f32.mrf.mxu0
      %v2135 = vadd.f32 %v1612, %v2134
      %2136 = vdwg.mxu0
      %2137 = vmatprep.subr.mxu0 0.0
      %2138 = vmatpush1.msra.mxu0 0.0
      %2139 = vmatprep.subr.mxu0 0.0
      %2140 = vmatpush1.msra.mxu0 0.0
      %2141 = vmatprep.subr.mxu0 0.0
      %2142 = vmatpush1.msra.mxu0 0.0
      %2143 = vmatprep.subr.mxu0 0.0
      %2144 = vmatpush1.msra.mxu0 0.0
      %2145 = vmatprep.subr.mxu0 0.0
      %2146 = vmatpush1.msra.mxu0 0.0
      %2147 = vmatprep.subr.mxu0 0.0
      %2148 = vmatpush1.msra.mxu0 0.0
      %2149 = vmatprep.subr.mxu0 0.0
      %2150 = vmatpush1.msra.mxu0 0.0
      %2151 = vmatprep.subr.mxu0 0.0
      %2152 = vmatpush1.msra.mxu0 0.0
      %2153 = vmatprep.subr.mxu0 0.0
      %2154 = vmatpush1.msra.mxu0 0.0
      %2155 = vmatprep.subr.mxu0 0.0
      %2156 = vmatpush1.msra.mxu0 0.0
      %2157 = vmatprep.subr.mxu0 0.0
      %2158 = vmatpush1.msra.mxu0 0.0
      %2159 = vmatprep.subr.mxu0 0.0
      %2160 = vmatpush1.msra.mxu0 0.0
      %2161 = vmatprep.subr.mxu0 %v1552
      %2162 = vmatpush1.msra.mxu0 %v1551
      %2163 = vmatprep.subr.mxu0 %v1536
      %2164 = vmatpush1.msra.mxu0 %v1535
      %2165 = vmatprep.subr.mxu0 %v1520
      %2166 = vmatpush1.msra.mxu0 %v1519
      %2167 = vmatprep.subr.mxu0 %v1504
      %2168 = vmatpush1.msra.mxu0 %v1503
      %2169 = vmatprep.subr.mxu0 0.0
      %2170 = vmatpush2.msra.mxu0 0.0
      %2171 = vmatprep.subr.mxu0 0.0
      %2172 = vmatpush2.msra.mxu0 0.0
      %2173 = vmatprep.subr.mxu0 0.0
      %2174 = vmatpush2.msra.mxu0 0.0
      %2175 = vmatprep.subr.mxu0 0.0
      %2176 = vmatpush2.msra.mxu0 0.0
      %2177 = vmatprep.subr.mxu0 0.0
      %2178 = vmatpush2.msra.mxu0 0.0
      %2179 = vmatprep.subr.mxu0 0.0
      %2180 = vmatpush2.msra.mxu0 0.0
      %2181 = vmatprep.subr.mxu0 0.0
      %2182 = vmatpush2.msra.mxu0 0.0
      %2183 = vmatprep.subr.mxu0 0.0
      %2184 = vmatpush2.msra.mxu0 0.0
      %2185 = vmatprep.subr.mxu0 0.0
      %2186 = vmatpush2.msra.mxu0 0.0
      %2187 = vmatprep.subr.mxu0 0.0
      %2188 = vmatpush2.msra.mxu0 0.0
      %2189 = vmatprep.subr.mxu0 0.0
      %2190 = vmatpush2.msra.mxu0 0.0
      %2191 = vmatprep.subr.mxu0 0.0
      %2192 = vmatpush2.msra.mxu0 0.0
      %2193 = vmatprep.subr.mxu0 0.0
      %2194 = vmatpush2.msra.mxu0 0.0
      %2195 = vmatprep.subr.mxu0 0.0
      %2196 = vmatpush2.msra.mxu0 0.0
      %2197 = vmatprep.subr.mxu0 0.0
      %2198 = vmatpush2.msra.mxu0 0.0
      %2199 = vmatprep.subr.mxu0 0.0
      %2200 = vmatpush2.msra.mxu0 0.0
      %2201 = vmatprep.mubr.f32.mxu0 0.0
      %2202 = vmatmul.mubr.f32.gmra.mxu0 %v1638
      %v2203 = vpop.f32.mrf.mxu0
      %v2204 = vadd.f32 %v1616, %v2203
      %v2205 = vpop.f32.mrf.mxu0
      %v2206 = vadd.f32 %v1620, %v2205
      %2207 = vdwg.mxu0
      %v2208 = vmax.f32 %v1707, 0.0
      %v2209 = vmax.f32 %v1709, 0.0
      %v2210 = vmax.f32 %v1778, 0.0
      %v2211 = vmax.f32 %v1780, 0.0
      %v2212 = vmax.f32 %v1849, 0.0
      %v2213 = vmax.f32 %v1851, 0.0
      %v2214 = vmax.f32 %v1920, 0.0
      %v2215 = vmax.f32 %v1922, 0.0
      %v2216 = vmax.f32 %v1991, 0.0
      %v2217 = vmax.f32 %v1993, 0.0
      %v2218 = vmax.f32 %v2062, 0.0
      %v2219 = vmax.f32 %v2064, 0.0
      %v2220 = vmax.f32 %v2133, 0.0
      %v2221 = vmax.f32 %v2135, 0.0
      %v2222 = vmax.f32 %v2204, 0.0
      %v2223 = vmax.f32 %v2206, 0.0
      %v2224 = vld [vmem:[%s8] sm:$0xff]
      %v2225 = vld [vmem:[%s8 + $0x8] sm:$0xff]
      %v2226 = vld [vmem:[%s8 + $0x10] sm:$0xff]
      %v2227 = vld [vmem:[%s8 + $0x18] sm:$0xff]
      %v2228 = vld [vmem:[%s8 + $0x20] sm:$0xff]
      %v2229 = vld [vmem:[%s8 + $0x28] sm:$0xff]
      %v2230 = vld [vmem:[%s8 + $0x30] sm:$0xff]
      %v2231 = vld [vmem:[%s8 + $0x38] sm:$0xff]
      %v2232 = vld [vmem:[%s8 + $0x40] sm:$0xff]
      %v2233 = vld [vmem:[%s8 + $0x48] sm:$0xff]
      %v2234 = vld [vmem:[%s8 + $0x50] sm:$0xff]
      %v2235 = vld [vmem:[%s8 + $0x58] sm:$0xff]
      %v2236 = vld [vmem:[%s8 + $0x60] sm:$0xff]
      %v2237 = vld [vmem:[%s8 + $0x68] sm:$0xff]
      %v2238 = vld [vmem:[%s8 + $0x70] sm:$0xff]
      %v2239 = vld [vmem:[%s8 + $0x78] sm:$0xff]
      %v2240 = vld [vmem:[%s8 + $0x80] sm:$0xff]
      %v2241 = vld [vmem:[%s8 + $0x88] sm:$0xff]
      %v2242 = vld [vmem:[%s8 + $0x90] sm:$0xff]
      %v2243 = vld [vmem:[%s8 + $0x98] sm:$0xff]
      %v2244 = vld [vmem:[%s8 + $0xa0] sm:$0xff]
      %v2245 = vld [vmem:[%s8 + $0xa8] sm:$0xff]
      %v2246 = vld [vmem:[%s8 + $0xb0] sm:$0xff]
      %v2247 = vld [vmem:[%s8 + $0xb8] sm:$0xff]
      %v2248 = vld [vmem:[%s8 + $0xc0] sm:$0xff]
      %v2249 = vld [vmem:[%s8 + $0xc8] sm:$0xff]
      %v2250 = vld [vmem:[%s8 + $0xd0] sm:$0xff]
      %v2251 = vld [vmem:[%s8 + $0xd8] sm:$0xff]
      %v2252 = vld [vmem:[%s8 + $0xe0] sm:$0xff]
      %v2253 = vld [vmem:[%s8 + $0xe8] sm:$0xff]
      %v2254 = vld [vmem:[%s8 + $0xf0] sm:$0xff]
      %v2255 = vld [vmem:[%s8 + $0xf8] sm:$0xff]
      %v2256 = vld [vmem:[%s8 + $0x100] sm:$0xff]
      %v2257 = vld [vmem:[%s8 + $0x108] sm:$0xff]
      %v2258 = vld [vmem:[%s8 + $0x110] sm:$0xff]
      %v2259 = vld [vmem:[%s8 + $0x118] sm:$0xff]
      %v2260 = vld [vmem:[%s8 + $0x120] sm:$0xff]
      %v2261 = vld [vmem:[%s8 + $0x128] sm:$0xff]
      %v2262 = vld [vmem:[%s8 + $0x130] sm:$0xff]
      %v2263 = vld [vmem:[%s8 + $0x138] sm:$0xff]
      %v2264 = vld [vmem:[%s8 + $0x140] sm:$0xff]
      %v2265 = vld [vmem:[%s8 + $0x148] sm:$0xff]
      %v2266 = vld [vmem:[%s8 + $0x150] sm:$0xff]
      %v2267 = vld [vmem:[%s8 + $0x158] sm:$0xff]
      %v2268 = vld [vmem:[%s8 + $0x160] sm:$0xff]
      %v2269 = vld [vmem:[%s8 + $0x168] sm:$0xff]
      %v2270 = vld [vmem:[%s8 + $0x170] sm:$0xff]
      %v2271 = vld [vmem:[%s8 + $0x178] sm:$0xff]
      %v2272 = vld [vmem:[%s8 + $0x180] sm:$0xff]
      %v2273 = vld [vmem:[%s8 + $0x188] sm:$0xff]
      %v2274 = vld [vmem:[%s8 + $0x190] sm:$0xff]
      %v2275 = vld [vmem:[%s8 + $0x198] sm:$0xff]
      %v2276 = vld [vmem:[%s8 + $0x1a0] sm:$0xff]
      %v2277 = vld [vmem:[%s8 + $0x1a8] sm:$0xff]
      %v2278 = vld [vmem:[%s8 + $0x1b0] sm:$0xff]
      %v2279 = vld [vmem:[%s8 + $0x1b8] sm:$0xff]
      %v2280 = vld [vmem:[%s8 + $0x1c0] sm:$0xff]
      %v2281 = vld [vmem:[%s8 + $0x1c8] sm:$0xff]
      %v2282 = vld [vmem:[%s8 + $0x1d0] sm:$0xff]
      %v2283 = vld [vmem:[%s8 + $0x1d8] sm:$0xff]
      %v2284 = vld [vmem:[%s8 + $0x1e0] sm:$0xff]
      %v2285 = vld [vmem:[%s8 + $0x1e8] sm:$0xff]
      %v2286 = vld [vmem:[%s8 + $0x1f0] sm:$0xff]
      %v2287 = vld [vmem:[%s8 + $0x1f8] sm:$0xff]
      %v2288 = vld [vmem:[%s8 + $0x200] sm:$0xff]
      %v2289 = vld [vmem:[%s8 + $0x208] sm:$0xff]
      %v2290 = vld [vmem:[%s8 + $0x210] sm:$0xff]
      %v2291 = vld [vmem:[%s8 + $0x218] sm:$0xff]
      %v2292 = vld [vmem:[%s8 + $0x220] sm:$0xff]
      %v2293 = vld [vmem:[%s8 + $0x228] sm:$0xff]
      %v2294 = vld [vmem:[%s8 + $0x230] sm:$0xff]
      %v2295 = vld [vmem:[%s8 + $0x238] sm:$0xff]
      %v2296 = vld [vmem:[%s8 + $0x240] sm:$0xff]
      %v2297 = vld [vmem:[%s8 + $0x248] sm:$0xff]
      %v2298 = vld [vmem:[%s8 + $0x250] sm:$0xff]
      %v2299 = vld [vmem:[%s8 + $0x258] sm:$0xff]
      %v2300 = vld [vmem:[%s8 + $0x260] sm:$0xff]
      %v2301 = vld [vmem:[%s8 + $0x268] sm:$0xff]
      %v2302 = vld [vmem:[%s8 + $0x270] sm:$0xff]
      %v2303 = vld [vmem:[%s8 + $0x278] sm:$0xff]
      %v2304 = vld [vmem:[%s8 + $0x280] sm:$0xff]
      %v2305 = vld [vmem:[%s8 + $0x288] sm:$0xff]
      %v2306 = vld [vmem:[%s8 + $0x290] sm:$0xff]
      %v2307 = vld [vmem:[%s8 + $0x298] sm:$0xff]
      %v2308 = vld [vmem:[%s8 + $0x2a0] sm:$0xff]
      %v2309 = vld [vmem:[%s8 + $0x2a8] sm:$0xff]
      %v2310 = vld [vmem:[%s8 + $0x2b0] sm:$0xff]
      %v2311 = vld [vmem:[%s8 + $0x2b8] sm:$0xff]
      %v2312 = vld [vmem:[%s8 + $0x2c0] sm:$0xff]
      %v2313 = vld [vmem:[%s8 + $0x2c8] sm:$0xff]
      %v2314 = vld [vmem:[%s8 + $0x2d0] sm:$0xff]
      %v2315 = vld [vmem:[%s8 + $0x2d8] sm:$0xff]
      %v2316 = vld [vmem:[%s8 + $0x2e0] sm:$0xff]
      %v2317 = vld [vmem:[%s8 + $0x2e8] sm:$0xff]
      %v2318 = vld [vmem:[%s8 + $0x2f0] sm:$0xff]
      %v2319 = vld [vmem:[%s8 + $0x2f8] sm:$0xff]
      %v2320 = vld [vmem:[%s8 + $0x300] sm:$0xff]
      %v2321 = vld [vmem:[%s8 + $0x308] sm:$0xff]
      %v2322 = vld [vmem:[%s8 + $0x310] sm:$0xff]
      %v2323 = vld [vmem:[%s8 + $0x318] sm:$0xff]
      %v2324 = vld [vmem:[%s8 + $0x320] sm:$0xff]
      %v2325 = vld [vmem:[%s8 + $0x328] sm:$0xff]
      %v2326 = vld [vmem:[%s8 + $0x330] sm:$0xff]
      %v2327 = vld [vmem:[%s8 + $0x338] sm:$0xff]
      %v2328 = vld [vmem:[%s8 + $0x340] sm:$0xff]
      %v2329 = vld [vmem:[%s8 + $0x348] sm:$0xff]
      %v2330 = vld [vmem:[%s8 + $0x350] sm:$0xff]
      %v2331 = vld [vmem:[%s8 + $0x358] sm:$0xff]
      %v2332 = vld [vmem:[%s8 + $0x360] sm:$0xff]
      %v2333 = vld [vmem:[%s8 + $0x368] sm:$0xff]
      %v2334 = vld [vmem:[%s8 + $0x370] sm:$0xff]
      %v2335 = vld [vmem:[%s8 + $0x378] sm:$0xff]
      %v2336 = vld [vmem:[%s8 + $0x380] sm:$0xff]
      %v2337 = vld [vmem:[%s8 + $0x388] sm:$0xff]
      %v2338 = vld [vmem:[%s8 + $0x390] sm:$0xff]
      %v2339 = vld [vmem:[%s8 + $0x398] sm:$0xff]
      %v2340 = vld [vmem:[%s8 + $0x3a0] sm:$0xff]
      %v2341 = vld [vmem:[%s8 + $0x3a8] sm:$0xff]
      %v2342 = vld [vmem:[%s8 + $0x3b0] sm:$0xff]
      %v2343 = vld [vmem:[%s8 + $0x3b8] sm:$0xff]
      %v2344 = vld [vmem:[%s8 + $0x3c0] sm:$0xff]
      %v2345 = vld [vmem:[%s8 + $0x3c8] sm:$0xff]
      %v2346 = vld [vmem:[%s8 + $0x3d0] sm:$0xff]
      %v2347 = vld [vmem:[%s8 + $0x3d8] sm:$0xff]
      %v2348 = vld [vmem:[%s8 + $0x3e0] sm:$0xff]
      %v2349 = vld [vmem:[%s8 + $0x3e8] sm:$0xff]
      %v2350 = vld [vmem:[%s8 + $0x3f0] sm:$0xff]
      %v2351 = vld [vmem:[%s8 + $0x3f8] sm:$0xff]
      %v2352 = vld [vmem:[%s8 + $0x400] sm:$0xff]
      %v2353 = vld [vmem:[%s8 + $0x408] sm:$0xff]
      %v2354 = vld [vmem:[%s8 + $0x410] sm:$0xff]
      %v2355 = vld [vmem:[%s8 + $0x418] sm:$0xff]
      %v2356 = vld [vmem:[%s8 + $0x420] sm:$0xff]
      %v2357 = vld [vmem:[%s8 + $0x428] sm:$0xff]
      %v2358 = vld [vmem:[%s8 + $0x430] sm:$0xff]
      %v2359 = vld [vmem:[%s8 + $0x438] sm:$0xff]
      %v2360 = vld [vmem:[%s8 + $0x440] sm:$0xff]
      %v2361 = vld [vmem:[%s8 + $0x448] sm:$0xff]
      %v2362 = vld [vmem:[%s8 + $0x450] sm:$0xff]
      %v2363 = vld [vmem:[%s8 + $0x458] sm:$0xff]
      %v2364 = vld [vmem:[%s8 + $0x460] sm:$0xff]
      %v2365 = vld [vmem:[%s8 + $0x468] sm:$0xff]
      %v2366 = vld [vmem:[%s8 + $0x470] sm:$0xff]
      %v2367 = vld [vmem:[%s8 + $0x478] sm:$0xff]
      %v2368 = vld [vmem:[%s8 + $0x480] sm:$0xff]
      %v2369 = vld [vmem:[%s8 + $0x488] sm:$0xff]
      %v2370 = vld [vmem:[%s8 + $0x490] sm:$0xff]
      %v2371 = vld [vmem:[%s8 + $0x498] sm:$0xff]
      %v2372 = vld [vmem:[%s8 + $0x4a0] sm:$0xff]
      %v2373 = vld [vmem:[%s8 + $0x4a8] sm:$0xff]
      %v2374 = vld [vmem:[%s8 + $0x4b0] sm:$0xff]
      %v2375 = vld [vmem:[%s8 + $0x4b8] sm:$0xff]
      %v2376 = vld [vmem:[%s8 + $0x4c0] sm:$0xff]
      %v2377 = vld [vmem:[%s8 + $0x4c8] sm:$0xff]
      %v2378 = vld [vmem:[%s8 + $0x4d0] sm:$0xff]
      %v2379 = vld [vmem:[%s8 + $0x4d8] sm:$0xff]
      %v2380 = vld [vmem:[%s8 + $0x4e0] sm:$0xff]
      %v2381 = vld [vmem:[%s8 + $0x4e8] sm:$0xff]
      %v2382 = vld [vmem:[%s8 + $0x4f0] sm:$0xff]
      %v2383 = vld [vmem:[%s8 + $0x4f8] sm:$0xff]
      %v2384 = vld [vmem:[%s8 + $0x500] sm:$0xff]
      %v2385 = vld [vmem:[%s8 + $0x508] sm:$0xff]
      %v2386 = vld [vmem:[%s8 + $0x510] sm:$0xff]
      %v2387 = vld [vmem:[%s8 + $0x518] sm:$0xff]
      %v2388 = vld [vmem:[%s8 + $0x520] sm:$0xff]
      %v2389 = vld [vmem:[%s8 + $0x528] sm:$0xff]
      %v2390 = vld [vmem:[%s8 + $0x530] sm:$0xff]
      %v2391 = vld [vmem:[%s8 + $0x538] sm:$0xff]
      %v2392 = vld [vmem:[%s8 + $0x540] sm:$0xff]
      %v2393 = vld [vmem:[%s8 + $0x548] sm:$0xff]
      %v2394 = vld [vmem:[%s8 + $0x550] sm:$0xff]
      %v2395 = vld [vmem:[%s8 + $0x558] sm:$0xff]
      %v2396 = vld [vmem:[%s8 + $0x560] sm:$0xff]
      %v2397 = vld [vmem:[%s8 + $0x568] sm:$0xff]
      %v2398 = vld [vmem:[%s8 + $0x570] sm:$0xff]
      %v2399 = vld [vmem:[%s8 + $0x578] sm:$0xff]
      %v2400 = vld [vmem:[%s8 + $0x580] sm:$0xff]
      %v2401 = vld [vmem:[%s8 + $0x588] sm:$0xff]
      %v2402 = vld [vmem:[%s8 + $0x590] sm:$0xff]
      %v2403 = vld [vmem:[%s8 + $0x598] sm:$0xff]
      %v2404 = vld [vmem:[%s8 + $0x5a0] sm:$0xff]
      %v2405 = vld [vmem:[%s8 + $0x5a8] sm:$0xff]
      %v2406 = vld [vmem:[%s8 + $0x5b0] sm:$0xff]
      %v2407 = vld [vmem:[%s8 + $0x5b8] sm:$0xff]
      %v2408 = vld [vmem:[%s8 + $0x5c0] sm:$0xff]
      %v2409 = vld [vmem:[%s8 + $0x5c8] sm:$0xff]
      %v2410 = vld [vmem:[%s8 + $0x5d0] sm:$0xff]
      %v2411 = vld [vmem:[%s8 + $0x5d8] sm:$0xff]
      %v2412 = vld [vmem:[%s8 + $0x5e0] sm:$0xff]
      %v2413 = vld [vmem:[%s8 + $0x5e8] sm:$0xff]
      %v2414 = vld [vmem:[%s8 + $0x5f0] sm:$0xff]
      %v2415 = vld [vmem:[%s8 + $0x5f8] sm:$0xff]
      %v2416 = vld [vmem:[%s8 + $0x600] sm:$0xff]
      %v2417 = vld [vmem:[%s8 + $0x608] sm:$0xff]
      %v2418 = vld [vmem:[%s8 + $0x610] sm:$0xff]
      %v2419 = vld [vmem:[%s8 + $0x618] sm:$0xff]
      %v2420 = vld [vmem:[%s8 + $0x620] sm:$0xff]
      %v2421 = vld [vmem:[%s8 + $0x628] sm:$0xff]
      %v2422 = vld [vmem:[%s8 + $0x630] sm:$0xff]
      %v2423 = vld [vmem:[%s8 + $0x638] sm:$0xff]
      %v2424 = vld [vmem:[%s8 + $0x640] sm:$0xff]
      %v2425 = vld [vmem:[%s8 + $0x648] sm:$0xff]
      %v2426 = vld [vmem:[%s8 + $0x650] sm:$0xff]
      %v2427 = vld [vmem:[%s8 + $0x658] sm:$0xff]
      %v2428 = vld [vmem:[%s8 + $0x660] sm:$0xff]
      %v2429 = vld [vmem:[%s8 + $0x668] sm:$0xff]
      %v2430 = vld [vmem:[%s8 + $0x670] sm:$0xff]
      %v2431 = vld [vmem:[%s8 + $0x678] sm:$0xff]
      %v2432 = vld [vmem:[%s8 + $0x680] sm:$0xff]
      %v2433 = vld [vmem:[%s8 + $0x688] sm:$0xff]
      %v2434 = vld [vmem:[%s8 + $0x690] sm:$0xff]
      %v2435 = vld [vmem:[%s8 + $0x698] sm:$0xff]
      %v2436 = vld [vmem:[%s8 + $0x6a0] sm:$0xff]
      %v2437 = vld [vmem:[%s8 + $0x6a8] sm:$0xff]
      %v2438 = vld [vmem:[%s8 + $0x6b0] sm:$0xff]
      %v2439 = vld [vmem:[%s8 + $0x6b8] sm:$0xff]
      %v2440 = vld [vmem:[%s8 + $0x6c0] sm:$0xff]
      %v2441 = vld [vmem:[%s8 + $0x6c8] sm:$0xff]
      %v2442 = vld [vmem:[%s8 + $0x6d0] sm:$0xff]
      %v2443 = vld [vmem:[%s8 + $0x6d8] sm:$0xff]
      %v2444 = vld [vmem:[%s8 + $0x6e0] sm:$0xff]
      %v2445 = vld [vmem:[%s8 + $0x6e8] sm:$0xff]
      %v2446 = vld [vmem:[%s8 + $0x6f0] sm:$0xff]
      %v2447 = vld [vmem:[%s8 + $0x6f8] sm:$0xff]
      %v2448 = vld [vmem:[%s8 + $0x700] sm:$0xff]
      %v2449 = vld [vmem:[%s8 + $0x708] sm:$0xff]
      %v2450 = vld [vmem:[%s8 + $0x710] sm:$0xff]
      %v2451 = vld [vmem:[%s8 + $0x718] sm:$0xff]
      %v2452 = vld [vmem:[%s8 + $0x720] sm:$0xff]
      %v2453 = vld [vmem:[%s8 + $0x728] sm:$0xff]
      %v2454 = vld [vmem:[%s8 + $0x730] sm:$0xff]
      %v2455 = vld [vmem:[%s8 + $0x738] sm:$0xff]
      %v2456 = vld [vmem:[%s8 + $0x740] sm:$0xff]
      %v2457 = vld [vmem:[%s8 + $0x748] sm:$0xff]
      %v2458 = vld [vmem:[%s8 + $0x750] sm:$0xff]
      %v2459 = vld [vmem:[%s8 + $0x758] sm:$0xff]
      %v2460 = vld [vmem:[%s8 + $0x760] sm:$0xff]
      %v2461 = vld [vmem:[%s8 + $0x768] sm:$0xff]
      %v2462 = vld [vmem:[%s8 + $0x770] sm:$0xff]
      %v2463 = vld [vmem:[%s8 + $0x778] sm:$0xff]
      %v2464 = vld [vmem:[%s8 + $0x780] sm:$0xff]
      %v2465 = vld [vmem:[%s8 + $0x788] sm:$0xff]
      %v2466 = vld [vmem:[%s8 + $0x790] sm:$0xff]
      %v2467 = vld [vmem:[%s8 + $0x798] sm:$0xff]
      %v2468 = vld [vmem:[%s8 + $0x7a0] sm:$0xff]
      %v2469 = vld [vmem:[%s8 + $0x7a8] sm:$0xff]
      %v2470 = vld [vmem:[%s8 + $0x7b0] sm:$0xff]
      %v2471 = vld [vmem:[%s8 + $0x7b8] sm:$0xff]
      %v2472 = vld [vmem:[%s8 + $0x7c0] sm:$0xff]
      %v2473 = vld [vmem:[%s8 + $0x7c8] sm:$0xff]
      %v2474 = vld [vmem:[%s8 + $0x7d0] sm:$0xff]
      %v2475 = vld [vmem:[%s8 + $0x7d8] sm:$0xff]
      %v2476 = vld [vmem:[%s8 + $0x7e0] sm:$0xff]
      %v2477 = vld [vmem:[%s8 + $0x7e8] sm:$0xff]
      %v2478 = vld [vmem:[%s8 + $0x7f0] sm:$0xff]
      %v2479 = vld [vmem:[%s8 + $0x7f8] sm:$0xff]
      %v2480 = vld [vmem:[%s9] sm:$0x1]
      %v2482 = vlaneseq
      %v2483 = vshrl.u32 %v2482, 7
      %v2484 = vsub.s32 0, %v2483
      %v2485 = vrot.slane %v2480, %v2484
      %2487 = vmatprep.subr.mxu0 0.0
      %2488 = vmatpush1.msra.mxu0 %v2239
      %2489 = vmatprep.subr.mxu0 0.0
      %2490 = vmatpush1.msra.mxu0 %v2238
      %2491 = vmatprep.subr.mxu0 0.0
      %2492 = vmatpush1.msra.mxu0 %v2237
      %2493 = vmatprep.subr.mxu0 0.0
      %2494 = vmatpush1.msra.mxu0 %v2236
      %2495 = vmatprep.subr.mxu0 0.0
      %2496 = vmatpush1.msra.mxu0 %v2235
      %2497 = vmatprep.subr.mxu0 0.0
      %2498 = vmatpush1.msra.mxu0 %v2234
      %2499 = vmatprep.subr.mxu0 0.0
      %2500 = vmatpush1.msra.mxu0 %v2233
      %2501 = vmatprep.subr.mxu0 0.0
      %2502 = vmatpush1.msra.mxu0 %v2232
      %2503 = vmatprep.subr.mxu0 0.0
      %2504 = vmatpush1.msra.mxu0 %v2231
      %2505 = vmatprep.subr.mxu0 0.0
      %2506 = vmatpush1.msra.mxu0 %v2230
      %2507 = vmatprep.subr.mxu0 0.0
      %2508 = vmatpush1.msra.mxu0 %v2229
      %2509 = vmatprep.subr.mxu0 0.0
      %2510 = vmatpush1.msra.mxu0 %v2228
      %2511 = vmatprep.subr.mxu0 0.0
      %2512 = vmatpush1.msra.mxu0 %v2227
      %2513 = vmatprep.subr.mxu0 0.0
      %2514 = vmatpush1.msra.mxu0 %v2226
      %2515 = vmatprep.subr.mxu0 0.0
      %2516 = vmatpush1.msra.mxu0 %v2225
      %2517 = vmatprep.subr.mxu0 0.0
      %2518 = vmatpush1.msra.mxu0 %v2224
      %2519 = vmatprep.subr.mxu0 0.0
      %2520 = vmatpush2.msra.mxu0 %v2255
      %2521 = vmatprep.subr.mxu0 0.0
      %2522 = vmatpush2.msra.mxu0 %v2254
      %2523 = vmatprep.subr.mxu0 0.0
      %2524 = vmatpush2.msra.mxu0 %v2253
      %2525 = vmatprep.subr.mxu0 0.0
      %2526 = vmatpush2.msra.mxu0 %v2252
      %2527 = vmatprep.subr.mxu0 0.0
      %2528 = vmatpush2.msra.mxu0 %v2251
      %2529 = vmatprep.subr.mxu0 0.0
      %2530 = vmatpush2.msra.mxu0 %v2250
      %2531 = vmatprep.subr.mxu0 0.0
      %2532 = vmatpush2.msra.mxu0 %v2249
      %2533 = vmatprep.subr.mxu0 0.0
      %2534 = vmatpush2.msra.mxu0 %v2248
      %2535 = vmatprep.subr.mxu0 0.0
      %2536 = vmatpush2.msra.mxu0 %v2247
      %2537 = vmatprep.subr.mxu0 0.0
      %2538 = vmatpush2.msra.mxu0 %v2246
      %2539 = vmatprep.subr.mxu0 0.0
      %2540 = vmatpush2.msra.mxu0 %v2245
      %2541 = vmatprep.subr.mxu0 0.0
      %2542 = vmatpush2.msra.mxu0 %v2244
      %2543 = vmatprep.subr.mxu0 0.0
      %2544 = vmatpush2.msra.mxu0 %v2243
      %2545 = vmatprep.subr.mxu0 0.0
      %2546 = vmatpush2.msra.mxu0 %v2242
      %2547 = vmatprep.subr.mxu0 0.0
      %2548 = vmatpush2.msra.mxu0 %v2241
      %2549 = vmatprep.subr.mxu0 0.0
      %2550 = vmatpush2.msra.mxu0 %v2240
      %2551 = vmatprep.mubr.f32.mxu0 %v2209
      %2552 = vmatmul.mubr.f32.gmra.mxu0 %v2208
      %v2553 = vpop.f32.mrf.mxu0
      %v2554 = vadd.f32 %v2485, %v2553
      %v2555 = vpop.f32.mrf.mxu0
      %2556 = vdwg.mxu0
      %2557 = vmatprep.subr.mxu0 0.0
      %2558 = vmatpush1.msra.mxu0 %v2271
      %2559 = vmatprep.subr.mxu0 0.0
      %2560 = vmatpush1.msra.mxu0 %v2270
      %2561 = vmatprep.subr.mxu0 0.0
      %2562 = vmatpush1.msra.mxu0 %v2269
      %2563 = vmatprep.subr.mxu0 0.0
      %2564 = vmatpush1.msra.mxu0 %v2268
      %2565 = vmatprep.subr.mxu0 0.0
      %2566 = vmatpush1.msra.mxu0 %v2267
      %2567 = vmatprep.subr.mxu0 0.0
      %2568 = vmatpush1.msra.mxu0 %v2266
      %2569 = vmatprep.subr.mxu0 0.0
      %2570 = vmatpush1.msra.mxu0 %v2265
      %2571 = vmatprep.subr.mxu0 0.0
      %2572 = vmatpush1.msra.mxu0 %v2264
      %2573 = vmatprep.subr.mxu0 0.0
      %2574 = vmatpush1.msra.mxu0 %v2263
      %2575 = vmatprep.subr.mxu0 0.0
      %2576 = vmatpush1.msra.mxu0 %v2262
      %2577 = vmatprep.subr.mxu0 0.0
      %2578 = vmatpush1.msra.mxu0 %v2261
      %2579 = vmatprep.subr.mxu0 0.0
      %2580 = vmatpush1.msra.mxu0 %v2260
      %2581 = vmatprep.subr.mxu0 0.0
      %2582 = vmatpush1.msra.mxu0 %v2259
      %2583 = vmatprep.subr.mxu0 0.0
      %2584 = vmatpush1.msra.mxu0 %v2258
      %2585 = vmatprep.subr.mxu0 0.0
      %2586 = vmatpush1.msra.mxu0 %v2257
      %2587 = vmatprep.subr.mxu0 0.0
      %2588 = vmatpush1.msra.mxu0 %v2256
      %2589 = vmatprep.subr.mxu0 0.0
      %2590 = vmatpush2.msra.mxu0 %v2287
      %2591 = vmatprep.subr.mxu0 0.0
      %2592 = vmatpush2.msra.mxu0 %v2286
      %2593 = vmatprep.subr.mxu0 0.0
      %2594 = vmatpush2.msra.mxu0 %v2285
      %2595 = vmatprep.subr.mxu0 0.0
      %2596 = vmatpush2.msra.mxu0 %v2284
      %2597 = vmatprep.subr.mxu0 0.0
      %2598 = vmatpush2.msra.mxu0 %v2283
      %2599 = vmatprep.subr.mxu0 0.0
      %2600 = vmatpush2.msra.mxu0 %v2282
      %2601 = vmatprep.subr.mxu0 0.0
      %2602 = vmatpush2.msra.mxu0 %v2281
      %2603 = vmatprep.subr.mxu0 0.0
      %2604 = vmatpush2.msra.mxu0 %v2280
      %2605 = vmatprep.subr.mxu0 0.0
      %2606 = vmatpush2.msra.mxu0 %v2279
      %2607 = vmatprep.subr.mxu0 0.0
      %2608 = vmatpush2.msra.mxu0 %v2278
      %2609 = vmatprep.subr.mxu0 0.0
      %2610 = vmatpush2.msra.mxu0 %v2277
      %2611 = vmatprep.subr.mxu0 0.0
      %2612 = vmatpush2.msra.mxu0 %v2276
      %2613 = vmatprep.subr.mxu0 0.0
      %2614 = vmatpush2.msra.mxu0 %v2275
      %2615 = vmatprep.subr.mxu0 0.0
      %2616 = vmatpush2.msra.mxu0 %v2274
      %2617 = vmatprep.subr.mxu0 0.0
      %2618 = vmatpush2.msra.mxu0 %v2273
      %2619 = vmatprep.subr.mxu0 0.0
      %2620 = vmatpush2.msra.mxu0 %v2272
      %2621 = vmatprep.mubr.f32.mxu0 %v2211
      %2622 = vmatmul.mubr.f32.gmra.mxu0 %v2210
      %v2623 = vpop.f32.mrf.mxu0
      %v2624 = vadd.f32 %v2554, %v2623
      %v2625 = vpop.f32.mrf.mxu0
      %2626 = vdwg.mxu0
      %2627 = vmatprep.subr.mxu0 0.0
      %2628 = vmatpush1.msra.mxu0 %v2303
      %2629 = vmatprep.subr.mxu0 0.0
      %2630 = vmatpush1.msra.mxu0 %v2302
      %2631 = vmatprep.subr.mxu0 0.0
      %2632 = vmatpush1.msra.mxu0 %v2301
      %2633 = vmatprep.subr.mxu0 0.0
      %2634 = vmatpush1.msra.mxu0 %v2300
      %2635 = vmatprep.subr.mxu0 0.0
      %2636 = vmatpush1.msra.mxu0 %v2299
      %2637 = vmatprep.subr.mxu0 0.0
      %2638 = vmatpush1.msra.mxu0 %v2298
      %2639 = vmatprep.subr.mxu0 0.0
      %2640 = vmatpush1.msra.mxu0 %v2297
      %2641 = vmatprep.subr.mxu0 0.0
      %2642 = vmatpush1.msra.mxu0 %v2296
      %2643 = vmatprep.subr.mxu0 0.0
      %2644 = vmatpush1.msra.mxu0 %v2295
      %2645 = vmatprep.subr.mxu0 0.0
      %2646 = vmatpush1.msra.mxu0 %v2294
      %2647 = vmatprep.subr.mxu0 0.0
      %2648 = vmatpush1.msra.mxu0 %v2293
      %2649 = vmatprep.subr.mxu0 0.0
      %2650 = vmatpush1.msra.mxu0 %v2292
      %2651 = vmatprep.subr.mxu0 0.0
      %2652 = vmatpush1.msra.mxu0 %v2291
      %2653 = vmatprep.subr.mxu0 0.0
      %2654 = vmatpush1.msra.mxu0 %v2290
      %2655 = vmatprep.subr.mxu0 0.0
      %2656 = vmatpush1.msra.mxu0 %v2289
      %2657 = vmatprep.subr.mxu0 0.0
      %2658 = vmatpush1.msra.mxu0 %v2288
      %2659 = vmatprep.subr.mxu0 0.0
      %2660 = vmatpush2.msra.mxu0 %v2319
      %2661 = vmatprep.subr.mxu0 0.0
      %2662 = vmatpush2.msra.mxu0 %v2318
      %2663 = vmatprep.subr.mxu0 0.0
      %2664 = vmatpush2.msra.mxu0 %v2317
      %2665 = vmatprep.subr.mxu0 0.0
      %2666 = vmatpush2.msra.mxu0 %v2316
      %2667 = vmatprep.subr.mxu0 0.0
      %2668 = vmatpush2.msra.mxu0 %v2315
      %2669 = vmatprep.subr.mxu0 0.0
      %2670 = vmatpush2.msra.mxu0 %v2314
      %2671 = vmatprep.subr.mxu0 0.0
      %2672 = vmatpush2.msra.mxu0 %v2313
      %2673 = vmatprep.subr.mxu0 0.0
      %2674 = vmatpush2.msra.mxu0 %v2312
      %2675 = vmatprep.subr.mxu0 0.0
      %2676 = vmatpush2.msra.mxu0 %v2311
      %2677 = vmatprep.subr.mxu0 0.0
      %2678 = vmatpush2.msra.mxu0 %v2310
      %2679 = vmatprep.subr.mxu0 0.0
      %2680 = vmatpush2.msra.mxu0 %v2309
      %2681 = vmatprep.subr.mxu0 0.0
      %2682 = vmatpush2.msra.mxu0 %v2308
      %2683 = vmatprep.subr.mxu0 0.0
      %2684 = vmatpush2.msra.mxu0 %v2307
      %2685 = vmatprep.subr.mxu0 0.0
      %2686 = vmatpush2.msra.mxu0 %v2306
      %2687 = vmatprep.subr.mxu0 0.0
      %2688 = vmatpush2.msra.mxu0 %v2305
      %2689 = vmatprep.subr.mxu0 0.0
      %2690 = vmatpush2.msra.mxu0 %v2304
      %2691 = vmatprep.mubr.f32.mxu0 %v2213
      %2692 = vmatmul.mubr.f32.gmra.mxu0 %v2212
      %v2693 = vpop.f32.mrf.mxu0
      %v2694 = vadd.f32 %v2624, %v2693
      %v2695 = vpop.f32.mrf.mxu0
      %2696 = vdwg.mxu0
      %2697 = vmatprep.subr.mxu0 0.0
      %2698 = vmatpush1.msra.mxu0 %v2335
      %2699 = vmatprep.subr.mxu0 0.0
      %2700 = vmatpush1.msra.mxu0 %v2334
      %2701 = vmatprep.subr.mxu0 0.0
      %2702 = vmatpush1.msra.mxu0 %v2333
      %2703 = vmatprep.subr.mxu0 0.0
      %2704 = vmatpush1.msra.mxu0 %v2332
      %2705 = vmatprep.subr.mxu0 0.0
      %2706 = vmatpush1.msra.mxu0 %v2331
      %2707 = vmatprep.subr.mxu0 0.0
      %2708 = vmatpush1.msra.mxu0 %v2330
      %2709 = vmatprep.subr.mxu0 0.0
      %2710 = vmatpush1.msra.mxu0 %v2329
      %2711 = vmatprep.subr.mxu0 0.0
      %2712 = vmatpush1.msra.mxu0 %v2328
      %2713 = vmatprep.subr.mxu0 0.0
      %2714 = vmatpush1.msra.mxu0 %v2327
      %2715 = vmatprep.subr.mxu0 0.0
      %2716 = vmatpush1.msra.mxu0 %v2326
      %2717 = vmatprep.subr.mxu0 0.0
      %2718 = vmatpush1.msra.mxu0 %v2325
      %2719 = vmatprep.subr.mxu0 0.0
      %2720 = vmatpush1.msra.mxu0 %v2324
      %2721 = vmatprep.subr.mxu0 0.0
      %2722 = vmatpush1.msra.mxu0 %v2323
      %2723 = vmatprep.subr.mxu0 0.0
      %2724 = vmatpush1.msra.mxu0 %v2322
      %2725 = vmatprep.subr.mxu0 0.0
      %2726 = vmatpush1.msra.mxu0 %v2321
      %2727 = vmatprep.subr.mxu0 0.0
      %2728 = vmatpush1.msra.mxu0 %v2320
      %2729 = vmatprep.subr.mxu0 0.0
      %2730 = vmatpush2.msra.mxu0 %v2351
      %2731 = vmatprep.subr.mxu0 0.0
      %2732 = vmatpush2.msra.mxu0 %v2350
      %2733 = vmatprep.subr.mxu0 0.0
      %2734 = vmatpush2.msra.mxu0 %v2349
      %2735 = vmatprep.subr.mxu0 0.0
      %2736 = vmatpush2.msra.mxu0 %v2348
      %2737 = vmatprep.subr.mxu0 0.0
      %2738 = vmatpush2.msra.mxu0 %v2347
      %2739 = vmatprep.subr.mxu0 0.0
      %2740 = vmatpush2.msra.mxu0 %v2346
      %2741 = vmatprep.subr.mxu0 0.0
      %2742 = vmatpush2.msra.mxu0 %v2345
      %2743 = vmatprep.subr.mxu0 0.0
      %2744 = vmatpush2.msra.mxu0 %v2344
      %2745 = vmatprep.subr.mxu0 0.0
      %2746 = vmatpush2.msra.mxu0 %v2343
      %2747 = vmatprep.subr.mxu0 0.0
      %2748 = vmatpush2.msra.mxu0 %v2342
      %2749 = vmatprep.subr.mxu0 0.0
      %2750 = vmatpush2.msra.mxu0 %v2341
      %2751 = vmatprep.subr.mxu0 0.0
      %2752 = vmatpush2.msra.mxu0 %v2340
      %2753 = vmatprep.subr.mxu0 0.0
      %2754 = vmatpush2.msra.mxu0 %v2339
      %2755 = vmatprep.subr.mxu0 0.0
      %2756 = vmatpush2.msra.mxu0 %v2338
      %2757 = vmatprep.subr.mxu0 0.0
      %2758 = vmatpush2.msra.mxu0 %v2337
      %2759 = vmatprep.subr.mxu0 0.0
      %2760 = vmatpush2.msra.mxu0 %v2336
      %2761 = vmatprep.mubr.f32.mxu0 %v2215
      %2762 = vmatmul.mubr.f32.gmra.mxu0 %v2214
      %v2763 = vpop.f32.mrf.mxu0
      %v2764 = vadd.f32 %v2694, %v2763
      %v2765 = vpop.f32.mrf.mxu0
      %2766 = vdwg.mxu0
      %2767 = vmatprep.subr.mxu0 0.0
      %2768 = vmatpush1.msra.mxu0 %v2367
      %2769 = vmatprep.subr.mxu0 0.0
      %2770 = vmatpush1.msra.mxu0 %v2366
      %2771 = vmatprep.subr.mxu0 0.0
      %2772 = vmatpush1.msra.mxu0 %v2365
      %2773 = vmatprep.subr.mxu0 0.0
      %2774 = vmatpush1.msra.mxu0 %v2364
      %2775 = vmatprep.subr.mxu0 0.0
      %2776 = vmatpush1.msra.mxu0 %v2363
      %2777 = vmatprep.subr.mxu0 0.0
      %2778 = vmatpush1.msra.mxu0 %v2362
      %2779 = vmatprep.subr.mxu0 0.0
      %2780 = vmatpush1.msra.mxu0 %v2361
      %2781 = vmatprep.subr.mxu0 0.0
      %2782 = vmatpush1.msra.mxu0 %v2360
      %2783 = vmatprep.subr.mxu0 0.0
      %2784 = vmatpush1.msra.mxu0 %v2359
      %2785 = vmatprep.subr.mxu0 0.0
      %2786 = vmatpush1.msra.mxu0 %v2358
      %2787 = vmatprep.subr.mxu0 0.0
      %2788 = vmatpush1.msra.mxu0 %v2357
      %2789 = vmatprep.subr.mxu0 0.0
      %2790 = vmatpush1.msra.mxu0 %v2356
      %2791 = vmatprep.subr.mxu0 0.0
      %2792 = vmatpush1.msra.mxu0 %v2355
      %2793 = vmatprep.subr.mxu0 0.0
      %2794 = vmatpush1.msra.mxu0 %v2354
      %2795 = vmatprep.subr.mxu0 0.0
      %2796 = vmatpush1.msra.mxu0 %v2353
      %2797 = vmatprep.subr.mxu0 0.0
      %2798 = vmatpush1.msra.mxu0 %v2352
      %2799 = vmatprep.subr.mxu0 0.0
      %2800 = vmatpush2.msra.mxu0 %v2383
      %2801 = vmatprep.subr.mxu0 0.0
      %2802 = vmatpush2.msra.mxu0 %v2382
      %2803 = vmatprep.subr.mxu0 0.0
      %2804 = vmatpush2.msra.mxu0 %v2381
      %2805 = vmatprep.subr.mxu0 0.0
      %2806 = vmatpush2.msra.mxu0 %v2380
      %2807 = vmatprep.subr.mxu0 0.0
      %2808 = vmatpush2.msra.mxu0 %v2379
      %2809 = vmatprep.subr.mxu0 0.0
      %2810 = vmatpush2.msra.mxu0 %v2378
      %2811 = vmatprep.subr.mxu0 0.0
      %2812 = vmatpush2.msra.mxu0 %v2377
      %2813 = vmatprep.subr.mxu0 0.0
      %2814 = vmatpush2.msra.mxu0 %v2376
      %2815 = vmatprep.subr.mxu0 0.0
      %2816 = vmatpush2.msra.mxu0 %v2375
      %2817 = vmatprep.subr.mxu0 0.0
      %2818 = vmatpush2.msra.mxu0 %v2374
      %2819 = vmatprep.subr.mxu0 0.0
      %2820 = vmatpush2.msra.mxu0 %v2373
      %2821 = vmatprep.subr.mxu0 0.0
      %2822 = vmatpush2.msra.mxu0 %v2372
      %2823 = vmatprep.subr.mxu0 0.0
      %2824 = vmatpush2.msra.mxu0 %v2371
      %2825 = vmatprep.subr.mxu0 0.0
      %2826 = vmatpush2.msra.mxu0 %v2370
      %2827 = vmatprep.subr.mxu0 0.0
      %2828 = vmatpush2.msra.mxu0 %v2369
      %2829 = vmatprep.subr.mxu0 0.0
      %2830 = vmatpush2.msra.mxu0 %v2368
      %2831 = vmatprep.mubr.f32.mxu0 %v2217
      %2832 = vmatmul.mubr.f32.gmra.mxu0 %v2216
      %v2833 = vpop.f32.mrf.mxu0
      %v2834 = vadd.f32 %v2764, %v2833
      %v2835 = vpop.f32.mrf.mxu0
      %2836 = vdwg.mxu0
      %2837 = vmatprep.subr.mxu0 0.0
      %2838 = vmatpush1.msra.mxu0 %v2399
      %2839 = vmatprep.subr.mxu0 0.0
      %2840 = vmatpush1.msra.mxu0 %v2398
      %2841 = vmatprep.subr.mxu0 0.0
      %2842 = vmatpush1.msra.mxu0 %v2397
      %2843 = vmatprep.subr.mxu0 0.0
      %2844 = vmatpush1.msra.mxu0 %v2396
      %2845 = vmatprep.subr.mxu0 0.0
      %2846 = vmatpush1.msra.mxu0 %v2395
      %2847 = vmatprep.subr.mxu0 0.0
      %2848 = vmatpush1.msra.mxu0 %v2394
      %2849 = vmatprep.subr.mxu0 0.0
      %2850 = vmatpush1.msra.mxu0 %v2393
      %2851 = vmatprep.subr.mxu0 0.0
      %2852 = vmatpush1.msra.mxu0 %v2392
      %2853 = vmatprep.subr.mxu0 0.0
      %2854 = vmatpush1.msra.mxu0 %v2391
      %2855 = vmatprep.subr.mxu0 0.0
      %2856 = vmatpush1.msra.mxu0 %v2390
      %2857 = vmatprep.subr.mxu0 0.0
      %2858 = vmatpush1.msra.mxu0 %v2389
      %2859 = vmatprep.subr.mxu0 0.0
      %2860 = vmatpush1.msra.mxu0 %v2388
      %2861 = vmatprep.subr.mxu0 0.0
      %2862 = vmatpush1.msra.mxu0 %v2387
      %2863 = vmatprep.subr.mxu0 0.0
      %2864 = vmatpush1.msra.mxu0 %v2386
      %2865 = vmatprep.subr.mxu0 0.0
      %2866 = vmatpush1.msra.mxu0 %v2385
      %2867 = vmatprep.subr.mxu0 0.0
      %2868 = vmatpush1.msra.mxu0 %v2384
      %2869 = vmatprep.subr.mxu0 0.0
      %2870 = vmatpush2.msra.mxu0 %v2415
      %2871 = vmatprep.subr.mxu0 0.0
      %2872 = vmatpush2.msra.mxu0 %v2414
      %2873 = vmatprep.subr.mxu0 0.0
      %2874 = vmatpush2.msra.mxu0 %v2413
      %2875 = vmatprep.subr.mxu0 0.0
      %2876 = vmatpush2.msra.mxu0 %v2412
      %2877 = vmatprep.subr.mxu0 0.0
      %2878 = vmatpush2.msra.mxu0 %v2411
      %2879 = vmatprep.subr.mxu0 0.0
      %2880 = vmatpush2.msra.mxu0 %v2410
      %2881 = vmatprep.subr.mxu0 0.0
      %2882 = vmatpush2.msra.mxu0 %v2409
      %2883 = vmatprep.subr.mxu0 0.0
      %2884 = vmatpush2.msra.mxu0 %v2408
      %2885 = vmatprep.subr.mxu0 0.0
      %2886 = vmatpush2.msra.mxu0 %v2407
      %2887 = vmatprep.subr.mxu0 0.0
      %2888 = vmatpush2.msra.mxu0 %v2406
      %2889 = vmatprep.subr.mxu0 0.0
      %2890 = vmatpush2.msra.mxu0 %v2405
      %2891 = vmatprep.subr.mxu0 0.0
      %2892 = vmatpush2.msra.mxu0 %v2404
      %2893 = vmatprep.subr.mxu0 0.0
      %2894 = vmatpush2.msra.mxu0 %v2403
      %2895 = vmatprep.subr.mxu0 0.0
      %2896 = vmatpush2.msra.mxu0 %v2402
      %2897 = vmatprep.subr.mxu0 0.0
      %2898 = vmatpush2.msra.mxu0 %v2401
      %2899 = vmatprep.subr.mxu0 0.0
      %2900 = vmatpush2.msra.mxu0 %v2400
      %2901 = vmatprep.mubr.f32.mxu0 %v2219
      %2902 = vmatmul.mubr.f32.gmra.mxu0 %v2218
      %v2903 = vpop.f32.mrf.mxu0
      %v2904 = vadd.f32 %v2834, %v2903
      %v2905 = vpop.f32.mrf.mxu0
      %2906 = vdwg.mxu0
      %2907 = vmatprep.subr.mxu0 0.0
      %2908 = vmatpush1.msra.mxu0 %v2431
      %2909 = vmatprep.subr.mxu0 0.0
      %2910 = vmatpush1.msra.mxu0 %v2430
      %2911 = vmatprep.subr.mxu0 0.0
      %2912 = vmatpush1.msra.mxu0 %v2429
      %2913 = vmatprep.subr.mxu0 0.0
      %2914 = vmatpush1.msra.mxu0 %v2428
      %2915 = vmatprep.subr.mxu0 0.0
      %2916 = vmatpush1.msra.mxu0 %v2427
      %2917 = vmatprep.subr.mxu0 0.0
      %2918 = vmatpush1.msra.mxu0 %v2426
      %2919 = vmatprep.subr.mxu0 0.0
      %2920 = vmatpush1.msra.mxu0 %v2425
      %2921 = vmatprep.subr.mxu0 0.0
      %2922 = vmatpush1.msra.mxu0 %v2424
      %2923 = vmatprep.subr.mxu0 0.0
      %2924 = vmatpush1.msra.mxu0 %v2423
      %2925 = vmatprep.subr.mxu0 0.0
      %2926 = vmatpush1.msra.mxu0 %v2422
      %2927 = vmatprep.subr.mxu0 0.0
      %2928 = vmatpush1.msra.mxu0 %v2421
      %2929 = vmatprep.subr.mxu0 0.0
      %2930 = vmatpush1.msra.mxu0 %v2420
      %2931 = vmatprep.subr.mxu0 0.0
      %2932 = vmatpush1.msra.mxu0 %v2419
      %2933 = vmatprep.subr.mxu0 0.0
      %2934 = vmatpush1.msra.mxu0 %v2418
      %2935 = vmatprep.subr.mxu0 0.0
      %2936 = vmatpush1.msra.mxu0 %v2417
      %2937 = vmatprep.subr.mxu0 0.0
      %2938 = vmatpush1.msra.mxu0 %v2416
      %2939 = vmatprep.subr.mxu0 0.0
      %2940 = vmatpush2.msra.mxu0 %v2447
      %2941 = vmatprep.subr.mxu0 0.0
      %2942 = vmatpush2.msra.mxu0 %v2446
      %2943 = vmatprep.subr.mxu0 0.0
      %2944 = vmatpush2.msra.mxu0 %v2445
      %2945 = vmatprep.subr.mxu0 0.0
      %2946 = vmatpush2.msra.mxu0 %v2444
      %2947 = vmatprep.subr.mxu0 0.0
      %2948 = vmatpush2.msra.mxu0 %v2443
      %2949 = vmatprep.subr.mxu0 0.0
      %2950 = vmatpush2.msra.mxu0 %v2442
      %2951 = vmatprep.subr.mxu0 0.0
      %2952 = vmatpush2.msra.mxu0 %v2441
      %2953 = vmatprep.subr.mxu0 0.0
      %2954 = vmatpush2.msra.mxu0 %v2440
      %2955 = vmatprep.subr.mxu0 0.0
      %2956 = vmatpush2.msra.mxu0 %v2439
      %2957 = vmatprep.subr.mxu0 0.0
      %2958 = vmatpush2.msra.mxu0 %v2438
      %2959 = vmatprep.subr.mxu0 0.0
      %2960 = vmatpush2.msra.mxu0 %v2437
      %2961 = vmatprep.subr.mxu0 0.0
      %2962 = vmatpush2.msra.mxu0 %v2436
      %2963 = vmatprep.subr.mxu0 0.0
      %2964 = vmatpush2.msra.mxu0 %v2435
      %2965 = vmatprep.subr.mxu0 0.0
      %2966 = vmatpush2.msra.mxu0 %v2434
      %2967 = vmatprep.subr.mxu0 0.0
      %2968 = vmatpush2.msra.mxu0 %v2433
      %2969 = vmatprep.subr.mxu0 0.0
      %2970 = vmatpush2.msra.mxu0 %v2432
      %2971 = vmatprep.mubr.f32.mxu0 %v2221
      %2972 = vmatmul.mubr.f32.gmra.mxu0 %v2220
      %v2973 = vpop.f32.mrf.mxu0
      %v2974 = vadd.f32 %v2904, %v2973
      %v2975 = vpop.f32.mrf.mxu0
      %2976 = vdwg.mxu0
      %2977 = vmatprep.subr.mxu0 0.0
      %2978 = vmatpush1.msra.mxu0 %v2463
      %2979 = vmatprep.subr.mxu0 0.0
      %2980 = vmatpush1.msra.mxu0 %v2462
      %2981 = vmatprep.subr.mxu0 0.0
      %2982 = vmatpush1.msra.mxu0 %v2461
      %2983 = vmatprep.subr.mxu0 0.0
      %2984 = vmatpush1.msra.mxu0 %v2460
      %2985 = vmatprep.subr.mxu0 0.0
      %2986 = vmatpush1.msra.mxu0 %v2459
      %2987 = vmatprep.subr.mxu0 0.0
      %2988 = vmatpush1.msra.mxu0 %v2458
      %2989 = vmatprep.subr.mxu0 0.0
      %2990 = vmatpush1.msra.mxu0 %v2457
      %2991 = vmatprep.subr.mxu0 0.0
      %2992 = vmatpush1.msra.mxu0 %v2456
      %2993 = vmatprep.subr.mxu0 0.0
      %2994 = vmatpush1.msra.mxu0 %v2455
      %2995 = vmatprep.subr.mxu0 0.0
      %2996 = vmatpush1.msra.mxu0 %v2454
      %2997 = vmatprep.subr.mxu0 0.0
      %2998 = vmatpush1.msra.mxu0 %v2453
      %2999 = vmatprep.subr.mxu0 0.0
      %3000 = vmatpush1.msra.mxu0 %v2452
      %3001 = vmatprep.subr.mxu0 0.0
      %3002 = vmatpush1.msra.mxu0 %v2451
      %3003 = vmatprep.subr.mxu0 0.0
      %3004 = vmatpush1.msra.mxu0 %v2450
      %3005 = vmatprep.subr.mxu0 0.0
      %3006 = vmatpush1.msra.mxu0 %v2449
      %3007 = vmatprep.subr.mxu0 0.0
      %3008 = vmatpush1.msra.mxu0 %v2448
      %3009 = vmatprep.subr.mxu0 0.0
      %3010 = vmatpush2.msra.mxu0 %v2479
      %3011 = vmatprep.subr.mxu0 0.0
      %3012 = vmatpush2.msra.mxu0 %v2478
      %3013 = vmatprep.subr.mxu0 0.0
      %3014 = vmatpush2.msra.mxu0 %v2477
      %3015 = vmatprep.subr.mxu0 0.0
      %3016 = vmatpush2.msra.mxu0 %v2476
      %3017 = vmatprep.subr.mxu0 0.0
      %3018 = vmatpush2.msra.mxu0 %v2475
      %3019 = vmatprep.subr.mxu0 0.0
      %3020 = vmatpush2.msra.mxu0 %v2474
      %3021 = vmatprep.subr.mxu0 0.0
      %3022 = vmatpush2.msra.mxu0 %v2473
      %3023 = vmatprep.subr.mxu0 0.0
      %3024 = vmatpush2.msra.mxu0 %v2472
      %3025 = vmatprep.subr.mxu0 0.0
      %3026 = vmatpush2.msra.mxu0 %v2471
      %3027 = vmatprep.subr.mxu0 0.0
      %3028 = vmatpush2.msra.mxu0 %v2470
      %3029 = vmatprep.subr.mxu0 0.0
      %3030 = vmatpush2.msra.mxu0 %v2469
      %3031 = vmatprep.subr.mxu0 0.0
      %3032 = vmatpush2.msra.mxu0 %v2468
      %3033 = vmatprep.subr.mxu0 0.0
      %3034 = vmatpush2.msra.mxu0 %v2467
      %3035 = vmatprep.subr.mxu0 0.0
      %3036 = vmatpush2.msra.mxu0 %v2466
      %3037 = vmatprep.subr.mxu0 0.0
      %3038 = vmatpush2.msra.mxu0 %v2465
      %3039 = vmatprep.subr.mxu0 0.0
      %3040 = vmatpush2.msra.mxu0 %v2464
      %3041 = vmatprep.mubr.f32.mxu0 %v2223
      %3042 = vmatmul.mubr.f32.gmra.mxu0 %v2222
      %v3043 = vpop.f32.mrf.mxu0
      %v3044 = vadd.f32 %v2974, %v3043
      %v3045 = vpop.f32.mrf.mxu0
      %3046 = vdwg.mxu0
      %v3047 = vadd.f32 %v3044, %v1488
      %v3048 = vld [vmem:[%s10] sm:$0x1]
      %v3049 = vld [vmem:[%s11] sm:$0x1]
      %v3050 = vsel %vm414, %v3047, 0.0
      %3051 = vadd.xlane.f32.xlu0 %v3050
      %v3052 = vpop.xlane.xlu0 %3051
      %v3053 = vmul.f32 %v3052, %v1464
      %v3054 = vsub.f32 %v3047, %v3053
      %v3055 = vmul.f32 %v3054, %v3054
      %v3056 = vsel %vm414, %v3055, 0.0
      %3057 = vadd.xlane.f32.xlu0 %v3056
      %v3058 = vpop.xlane.xlu0 %3057
      %v3059 = vmul.f32 %v3058, %v1464
      %v3060 = vadd.f32 %v3059, 1e-05
      %v3061 = vrsqrt.pop %v3060
      %v3062 = vmul.f32 %v3054, %v3061
      %v3064 = vlaneseq
      %v3065 = vshrl.u32 %v3064, 7
      %v3066 = vsub.s32 0, %v3065
      %v3067 = vrot.slane %v3048, %v3066
      %v3069 = vmul.f32 %v3062, %v3067
      %v3071 = vlaneseq
      %v3072 = vshrl.u32 %v3071, 7
      %v3073 = vsub.s32 0, %v3072
      %v3074 = vrot.slane %v3049, %v3073
      %v3076 = vadd.f32 %v3069, %v3074
      %3077 = vst.msk [vmem:[%s408] sm:$0xff] %vm414, %v3076
      %p3078 = scmp.lt.s32.totalorder %s23, 1
      %s3079 = scalar_select %p3078, %s23, 1
      %s3080 = smul.addr %s3079, 8
      %s3081 = scalar_lea.vmem %s12, %s3080
      // Predicated region
      $region69: #{transformer_forward.5} parent=67 // pred_check
        %p3082 = pneg %p298
      $region70: #{transformer_forward.5} parent=67 // pred_check_branch
        %3084 = sbr.rel (%p3082) target = $region72
      $region71: #{transformer_forward.5} parent=67 // pred_region
        _
      $region72: #{transformer_forward.5} parent=67 // pred_fallthru
        _
    $region68: #{transformer_forward.5} parent=5 // pred_fallthru
      _
    %p3085 = scmp.le.s32.totalorder 2, %s18
    // Predicated region
    $region73: #{transformer_forward.5} parent=5 // pred_check
      %p3086 = pneg %p3085
    $region74: #{transformer_forward.5} parent=5 // pred_check_branch
      %3088 = sbr.rel (%p3086) target = $region76
    $region75: #{transformer_forward.5} parent=5 // pred_region
      %s3089 = ssub.s32 %s18, 2
      // Predicated region
      $region77: #{transformer_forward.5} parent=75 // pred_check
        %p3090 = pneg %p304
      $region78: #{transformer_forward.5} parent=75 // pred_check_branch
        %3092 = sbr.rel (%p3090) target = $region80
      $region79: #{transformer_forward.5} parent=75 // pred_region
        %p3093 = scmp.lt.s32.totalorder %s24, 1
        %s3094 = scalar_select %p3093, %s24, 1
        %s3095 = smul.addr %s3094, 8
        %s3096 = scalar_lea.vmem %s12, %s3095
      $region80: #{transformer_forward.5} parent=75 // pred_fallthru
        _
    $region76: #{transformer_forward.5} parent=5 // pred_fallthru
      _
  $region6: #{transformer_forward.5} parent=0 // loop_footer
    %s22 = sadd.s32 1, %s18
  $region7: #{transformer_forward.5} parent=0 // loop_footer_branch
    %17 = sbr.rel target = $region3
  $region8: #{transformer_forward.5} parent=0 // loop_exit
    _

// kernel: transformer_forward.7
$region0: #{transformer_forward.7}
  #allocation0 [shape = 'u32[]', space=smem, size = 0x4, offset = 0x4, fixed_abs, tag = 'smem constant byte address 0x4 - core index']
  #allocation1 [shape = 'u32[144,128]{1,0:T(1,128)}', space=vmem, size = 0x12000, scoped, tag = 'internal scratch']
  %s0 = inlined_call_operand.vmem [shape: f32[2,8,32], index: 0, kind: input, shape index: {}]
  %s1 = inlined_call_operand.vmem [shape: f32[2,8,32], index: 1, kind: input, shape index: {}]
  %s2 = inlined_call_operand.vmem [shape: f32[32,96], index: 2, kind: input, shape index: {}]
  %s3 = inlined_call_operand.vmem [shape: f32[32,32], index: 3, kind: input, shape index: {}]
  %s4 = inlined_call_operand.vmem [shape: f32[1,32], index: 4, kind: input, shape index: {}]
  %s5 = inlined_call_operand.vmem [shape: f32[1,32], index: 5, kind: input, shape index: {}]
  %s6 = inlined_call_operand.vmem [shape: f32[1,32], index: 6, kind: input, shape index: {}]
  %s7 = inlined_call_operand.vmem [shape: f32[32,32], index: 7, kind: input, shape index: {}]
  %s8 = inlined_call_operand.vmem [shape: f32[32,64], index: 8, kind: input, shape index: {}]
  %s9 = inlined_call_operand.vmem [shape: f32[32,32], index: 9, kind: input, shape index: {}]
  %s10 = inlined_call_operand.vmem [shape: f32[1,32], index: 10, kind: input, shape index: {}]
  %s11 = inlined_call_operand.vmem [shape: f32[1,32], index: 11, kind: input, shape index: {}]
  %s12 = inlined_call_operand.vmem [shape: f32[1,32], index: 12, kind: input, shape index: {}]
  %s13 = inlined_call_operand.vmem [shape: f32[32,2048], index: 13, kind: input, shape index: {}]
  %s14 = inlined_call_operand.vmem [shape: f32[1,2048], index: 14, kind: input, shape index: {}]
  %s15 = inlined_call_operand.vmem [shape: f32[2048,32], index: 15, kind: input, shape index: {}]
  %s16 = inlined_call_operand.vmem [shape: f32[1,32], index: 16, kind: input, shape index: {}]
  %s17 = inlined_call_operand.vmem [shape: f32[1,32], index: 17, kind: input, shape index: {}]
  %s18 = inlined_call_operand.vmem [shape: f32[1,32], index: 18, kind: input, shape index: {}]
  %s19 = inlined_call_operand.vmem [shape: f32[2,8,32], index: 19, kind: output, shape index: {}]
  %s20 = sld [smem:[#allocation0]]
  $region109: #{transformer_forward.7} parent=0
    _
  %s22 = ssub.s32 1, %s20
  %s23 = scalar_select 0, %s22, %s20
  loop: start=0, step=1, limit=4
  $region2: #{transformer_forward.7} parent=0 // loop_pre_header
    _
  $region3: #{transformer_forward.7} parent=0 // loop_header
    %s25 = sphi 0, %s29
    %p26 = scmp.ge.s32.totalorder %s25, 4
    %s35 = sphi 0, %s37
    %s38 = sphi 0, %s35
    %s39 = sphi 0, %s38
    %s55 = sphi 0, %s39
    %s61 = sphi 0, %s63
    %s64 = sphi 0, %s61
    %s65 = sphi 0, %s64
    %s81 = sphi 0, %s65
    %s85 = sphi 0, %s85
    %s87 = sphi 0, %s85
    %s88 = sphi 0, %s87
    %s102 = sphi 0, %s88
    %s106 = sphi 0, %s106
    %s108 = sphi 0, %s106
    %s109 = sphi 0, %s108
    %s123 = sphi 0, %s109
    %s127 = sphi 0, %s127
    %s129 = sphi 0, %s127
    %s130 = sphi 0, %s129
    %s144 = sphi 0, %s130
    %s148 = sphi 0, %s148
    %s150 = sphi 0, %s148
    %s151 = sphi 0, %s150
    %s165 = sphi 0, %s151
    %s169 = sphi 0, %s169
    %s171 = sphi 0, %s169
    %s172 = sphi 0, %s171
    %s186 = sphi 0, %s172
    %s190 = sphi 0, %s190
    %s192 = sphi 0, %s190
    %s193 = sphi 0, %s192
    %s207 = sphi 0, %s193
    %s211 = sphi 0, %s211
    %s213 = sphi 0, %s211
    %s214 = sphi 0, %s213
    %s228 = sphi 0, %s214
    %s232 = sphi 0, %s232
    %s234 = sphi 0, %s232
    %s235 = sphi 0, %s234
    %s249 = sphi 0, %s235
    %s253 = sphi 0, %s253
    %s255 = sphi 0, %s253
    %s256 = sphi 0, %s255
    %s270 = sphi 0, %s256
    %s274 = sphi 0, %s274
    %s276 = sphi 0, %s274
    %s277 = sphi 0, %s276
    %s291 = sphi 0, %s277
    %s295 = sphi 0, %s295
    %s297 = sphi 0, %s295
    %s298 = sphi 0, %s297
    %s312 = sphi 0, %s298
    %s316 = sphi 0, %s316
    %s318 = sphi 0, %s316
    %s319 = sphi 0, %s318
    %s333 = sphi 0, %s319
    %s337 = sphi 0, %s337
    %s339 = sphi 0, %s337
    %s340 = sphi 0, %s339
    %s354 = sphi 0, %s340
    %s358 = sphi 0, %s358
    %s360 = sphi 0, %s358
    %s361 = sphi 0, %s360
    %s375 = sphi 0, %s361
    %s379 = sphi 0, %s379
    %s381 = sphi 0, %s379
    %s382 = sphi 0, %s381
    %s396 = sphi 0, %s382
    %s400 = sphi 0, %s400
    %s402 = sphi 0, %s400
    %s403 = sphi 0, %s402
    %s417 = sphi 0, %s403
    %s421 = sphi 0, %s421
    %s423 = sphi 0, %s421
    %s424 = sphi 0, %s423
    %s438 = sphi 0, %s424
    %s444 = sphi 0, %s446
    %s447 = sphi 0, %s444
    %s448 = sphi 0, %s447
    %s464 = sphi 0, %s448
  $region4: #{transformer_forward.7} parent=0 // loop_header_branch
    %28 = sbr.rel (%p26) target = $region8
  $region5: #{transformer_forward.7} parent=0 // loop_body
    %s30 = ssub.s32 %s25, 1
    %s31 = ssub.s32 %s25, 2
    %s32 = sadd.s32 %s25, 1
    %s33 = ssub.s32 %s25, %s32
    %p34 = scmp.eq.s32.totalorder %s33, 0
    %s36 = sadd.s32 %s35, 1
    %s37 = scalar_select %p34, %s35, %s36
    %p40 = pneg %p34
    %p41 = scmp.eq.s32.totalorder %s25, 1
    %p42 = por %p40, %p41
    %p43 = scmp.ne.s32.totalorder %s35, %s38
    %p44 = scmp.eq.s32.totalorder %s25, 0
    %p45 = por %p43, %p44
    %p46 = scmp.ne.s32.totalorder %s35, %s38
    %p47 = scmp.eq.s32.totalorder %s30, 1
    %p48 = por %p46, %p47
    %p49 = scmp.ne.s32.totalorder %s38, %s39
    %p50 = scmp.eq.s32.totalorder %s30, 0
    %p51 = por %p49, %p50
    %p52 = scmp.ne.s32.totalorder %s38, %s39
    %p53 = scmp.eq.s32.totalorder %s31, 1
    %p54 = por %p52, %p53
    %p56 = scmp.ne.s32.totalorder %s39, %s55
    %p57 = scmp.eq.s32.totalorder %s31, 0
    %p58 = por %p56, %p57
    %s59 = ssub.s32 %s25, %s32
    %p60 = scmp.eq.s32.totalorder %s59, 0
    %s62 = sadd.s32 %s61, 1
    %s63 = scalar_select %p60, %s61, %s62
    %p66 = pneg %p60
    %p67 = scmp.eq.s32.totalorder %s25, 1
    %p68 = por %p66, %p67
    %p69 = scmp.ne.s32.totalorder %s61, %s64
    %p70 = scmp.eq.s32.totalorder %s25, 0
    %p71 = por %p69, %p70
    %p72 = scmp.ne.s32.totalorder %s61, %s64
    %p73 = scmp.eq.s32.totalorder %s30, 1
    %p74 = por %p72, %p73
    %p75 = scmp.ne.s32.totalorder %s64, %s65
    %p76 = scmp.eq.s32.totalorder %s30, 0
    %p77 = por %p75, %p76
    %p78 = scmp.ne.s32.totalorder %s64, %s65
    %p79 = scmp.eq.s32.totalorder %s31, 1
    %p80 = por %p78, %p79
    %p82 = scmp.ne.s32.totalorder %s65, %s81
    %p83 = scmp.eq.s32.totalorder %s31, 0
    %p84 = por %p82, %p83
    %s86 = sadd.s32 %s85, 1
    %p89 = scmp.eq.s32.totalorder %s25, 1
    %p90 = scmp.ne.s32.totalorder %s85, %s87
    %p91 = scmp.eq.s32.totalorder %s25, 0
    %p92 = por %p90, %p91
    %p93 = scmp.ne.s32.totalorder %s85, %s87
    %p94 = scmp.eq.s32.totalorder %s30, 1
    %p95 = por %p93, %p94
    %p96 = scmp.ne.s32.totalorder %s87, %s88
    %p97 = scmp.eq.s32.totalorder %s30, 0
    %p98 = por %p96, %p97
    %p99 = scmp.ne.s32.totalorder %s87, %s88
    %p100 = scmp.eq.s32.totalorder %s31, 1
    %p101 = por %p99, %p100
    %p103 = scmp.ne.s32.totalorder %s88, %s102
    %p104 = scmp.eq.s32.totalorder %s31, 0
    %p105 = por %p103, %p104
    %s107 = sadd.s32 %s106, 1
    %p110 = scmp.eq.s32.totalorder %s25, 1
    %p111 = scmp.ne.s32.totalorder %s106, %s108
    %p112 = scmp.eq.s32.totalorder %s25, 0
    %p113 = por %p111, %p112
    %p114 = scmp.ne.s32.totalorder %s106, %s108
    %p115 = scmp.eq.s32.totalorder %s30, 1
    %p116 = por %p114, %p115
    %p117 = scmp.ne.s32.totalorder %s108, %s109
    %p118 = scmp.eq.s32.totalorder %s30, 0
    %p119 = por %p117, %p118
    %p120 = scmp.ne.s32.totalorder %s108, %s109
    %p121 = scmp.eq.s32.totalorder %s31, 1
    %p122 = por %p120, %p121
    %p124 = scmp.ne.s32.totalorder %s109, %s123
    %p125 = scmp.eq.s32.totalorder %s31, 0
    %p126 = por %p124, %p125
    %s128 = sadd.s32 %s127, 1
    %p131 = scmp.eq.s32.totalorder %s25, 1
    %p132 = scmp.ne.s32.totalorder %s127, %s129
    %p133 = scmp.eq.s32.totalorder %s25, 0
    %p134 = por %p132, %p133
    %p135 = scmp.ne.s32.totalorder %s127, %s129
    %p136 = scmp.eq.s32.totalorder %s30, 1
    %p137 = por %p135, %p136
    %p138 = scmp.ne.s32.totalorder %s129, %s130
    %p139 = scmp.eq.s32.totalorder %s30, 0
    %p140 = por %p138, %p139
    %p141 = scmp.ne.s32.totalorder %s129, %s130
    %p142 = scmp.eq.s32.totalorder %s31, 1
    %p143 = por %p141, %p142
    %p145 = scmp.ne.s32.totalorder %s130, %s144
    %p146 = scmp.eq.s32.totalorder %s31, 0
    %p147 = por %p145, %p146
    %s149 = sadd.s32 %s148, 1
    %p152 = scmp.eq.s32.totalorder %s25, 1
    %p153 = scmp.ne.s32.totalorder %s148, %s150
    %p154 = scmp.eq.s32.totalorder %s25, 0
    %p155 = por %p153, %p154
    %p156 = scmp.ne.s32.totalorder %s148, %s150
    %p157 = scmp.eq.s32.totalorder %s30, 1
    %p158 = por %p156, %p157
    %p159 = scmp.ne.s32.totalorder %s150, %s151
    %p160 = scmp.eq.s32.totalorder %s30, 0
    %p161 = por %p159, %p160
    %p162 = scmp.ne.s32.totalorder %s150, %s151
    %p163 = scmp.eq.s32.totalorder %s31, 1
    %p164 = por %p162, %p163
    %p166 = scmp.ne.s32.totalorder %s151, %s165
    %p167 = scmp.eq.s32.totalorder %s31, 0
    %p168 = por %p166, %p167
    %s170 = sadd.s32 %s169, 1
    %p173 = scmp.eq.s32.totalorder %s25, 1
    %p174 = scmp.ne.s32.totalorder %s169, %s171
    %p175 = scmp.eq.s32.totalorder %s25, 0
    %p176 = por %p174, %p175
    %p177 = scmp.ne.s32.totalorder %s169, %s171
    %p178 = scmp.eq.s32.totalorder %s30, 1
    %p179 = por %p177, %p178
    %p180 = scmp.ne.s32.totalorder %s171, %s172
    %p181 = scmp.eq.s32.totalorder %s30, 0
    %p182 = por %p180, %p181
    %p183 = scmp.ne.s32.totalorder %s171, %s172
    %p184 = scmp.eq.s32.totalorder %s31, 1
    %p185 = por %p183, %p184
    %p187 = scmp.ne.s32.totalorder %s172, %s186
    %p188 = scmp.eq.s32.totalorder %s31, 0
    %p189 = por %p187, %p188
    %s191 = sadd.s32 %s190, 1
    %p194 = scmp.eq.s32.totalorder %s25, 1
    %p195 = scmp.ne.s32.totalorder %s190, %s192
    %p196 = scmp.eq.s32.totalorder %s25, 0
    %p197 = por %p195, %p196
    %p198 = scmp.ne.s32.totalorder %s190, %s192
    %p199 = scmp.eq.s32.totalorder %s30, 1
    %p200 = por %p198, %p199
    %p201 = scmp.ne.s32.totalorder %s192, %s193
    %p202 = scmp.eq.s32.totalorder %s30, 0
    %p203 = por %p201, %p202
    %p204 = scmp.ne.s32.totalorder %s192, %s193
    %p205 = scmp.eq.s32.totalorder %s31, 1
    %p206 = por %p204, %p205
    %p208 = scmp.ne.s32.totalorder %s193, %s207
    %p209 = scmp.eq.s32.totalorder %s31, 0
    %p210 = por %p208, %p209
    %s212 = sadd.s32 %s211, 1
    %p215 = scmp.eq.s32.totalorder %s25, 1
    %p216 = scmp.ne.s32.totalorder %s211, %s213
    %p217 = scmp.eq.s32.totalorder %s25, 0
    %p218 = por %p216, %p217
    %p219 = scmp.ne.s32.totalorder %s211, %s213
    %p220 = scmp.eq.s32.totalorder %s30, 1
    %p221 = por %p219, %p220
    %p222 = scmp.ne.s32.totalorder %s213, %s214
    %p223 = scmp.eq.s32.totalorder %s30, 0
    %p224 = por %p222, %p223
    %p225 = scmp.ne.s32.totalorder %s213, %s214
    %p226 = scmp.eq.s32.totalorder %s31, 1
    %p227 = por %p225, %p226
    %p229 = scmp.ne.s32.totalorder %s214, %s228
    %p230 = scmp.eq.s32.totalorder %s31, 0
    %p231 = por %p229, %p230
    %s233 = sadd.s32 %s232, 1
    %p236 = scmp.eq.s32.totalorder %s25, 1
    %p237 = scmp.ne.s32.totalorder %s232, %s234
    %p238 = scmp.eq.s32.totalorder %s25, 0
    %p239 = por %p237, %p238
    %p240 = scmp.ne.s32.totalorder %s232, %s234
    %p241 = scmp.eq.s32.totalorder %s30, 1
    %p242 = por %p240, %p241
    %p243 = scmp.ne.s32.totalorder %s234, %s235
    %p244 = scmp.eq.s32.totalorder %s30, 0
    %p245 = por %p243, %p244
    %p246 = scmp.ne.s32.totalorder %s234, %s235
    %p247 = scmp.eq.s32.totalorder %s31, 1
    %p248 = por %p246, %p247
    %p250 = scmp.ne.s32.totalorder %s235, %s249
    %p251 = scmp.eq.s32.totalorder %s31, 0
    %p252 = por %p250, %p251
    %s254 = sadd.s32 %s253, 1
    %p257 = scmp.eq.s32.totalorder %s25, 1
    %p258 = scmp.ne.s32.totalorder %s253, %s255
    %p259 = scmp.eq.s32.totalorder %s25, 0
    %p260 = por %p258, %p259
    %p261 = scmp.ne.s32.totalorder %s253, %s255
    %p262 = scmp.eq.s32.totalorder %s30, 1
    %p263 = por %p261, %p262
    %p264 = scmp.ne.s32.totalorder %s255, %s256
    %p265 = scmp.eq.s32.totalorder %s30, 0
    %p266 = por %p264, %p265
    %p267 = scmp.ne.s32.totalorder %s255, %s256
    %p268 = scmp.eq.s32.totalorder %s31, 1
    %p269 = por %p267, %p268
    %p271 = scmp.ne.s32.totalorder %s256, %s270
    %p272 = scmp.eq.s32.totalorder %s31, 0
    %p273 = por %p271, %p272
    %s275 = sadd.s32 %s274, 1
    %p278 = scmp.eq.s32.totalorder %s25, 1
    %p279 = scmp.ne.s32.totalorder %s274, %s276
    %p280 = scmp.eq.s32.totalorder %s25, 0
    %p281 = por %p279, %p280
    %p282 = scmp.ne.s32.totalorder %s274, %s276
    %p283 = scmp.eq.s32.totalorder %s30, 1
    %p284 = por %p282, %p283
    %p285 = scmp.ne.s32.totalorder %s276, %s277
    %p286 = scmp.eq.s32.totalorder %s30, 0
    %p287 = por %p285, %p286
    %p288 = scmp.ne.s32.totalorder %s276, %s277
    %p289 = scmp.eq.s32.totalorder %s31, 1
    %p290 = por %p288, %p289
    %p292 = scmp.ne.s32.totalorder %s277, %s291
    %p293 = scmp.eq.s32.totalorder %s31, 0
    %p294 = por %p292, %p293
    %s296 = sadd.s32 %s295, 1
    %p299 = scmp.eq.s32.totalorder %s25, 1
    %p300 = scmp.ne.s32.totalorder %s295, %s297
    %p301 = scmp.eq.s32.totalorder %s25, 0
    %p302 = por %p300, %p301
    %p303 = scmp.ne.s32.totalorder %s295, %s297
    %p304 = scmp.eq.s32.totalorder %s30, 1
    %p305 = por %p303, %p304
    %p306 = scmp.ne.s32.totalorder %s297, %s298
    %p307 = scmp.eq.s32.totalorder %s30, 0
    %p308 = por %p306, %p307
    %p309 = scmp.ne.s32.totalorder %s297, %s298
    %p310 = scmp.eq.s32.totalorder %s31, 1
    %p311 = por %p309, %p310
    %p313 = scmp.ne.s32.totalorder %s298, %s312
    %p314 = scmp.eq.s32.totalorder %s31, 0
    %p315 = por %p313, %p314
    %s317 = sadd.s32 %s316, 1
    %p320 = scmp.eq.s32.totalorder %s25, 1
    %p321 = scmp.ne.s32.totalorder %s316, %s318
    %p322 = scmp.eq.s32.totalorder %s25, 0
    %p323 = por %p321, %p322
    %p324 = scmp.ne.s32.totalorder %s316, %s318
    %p325 = scmp.eq.s32.totalorder %s30, 1
    %p326 = por %p324, %p325
    %p327 = scmp.ne.s32.totalorder %s318, %s319
    %p328 = scmp.eq.s32.totalorder %s30, 0
    %p329 = por %p327, %p328
    %p330 = scmp.ne.s32.totalorder %s318, %s319
    %p331 = scmp.eq.s32.totalorder %s31, 1
    %p332 = por %p330, %p331
    %p334 = scmp.ne.s32.totalorder %s319, %s333
    %p335 = scmp.eq.s32.totalorder %s31, 0
    %p336 = por %p334, %p335
    %s338 = sadd.s32 %s337, 1
    %p341 = scmp.eq.s32.totalorder %s25, 1
    %p342 = scmp.ne.s32.totalorder %s337, %s339
    %p343 = scmp.eq.s32.totalorder %s25, 0
    %p344 = por %p342, %p343
    %p345 = scmp.ne.s32.totalorder %s337, %s339
    %p346 = scmp.eq.s32.totalorder %s30, 1
    %p347 = por %p345, %p346
    %p348 = scmp.ne.s32.totalorder %s339, %s340
    %p349 = scmp.eq.s32.totalorder %s30, 0
    %p350 = por %p348, %p349
    %p351 = scmp.ne.s32.totalorder %s339, %s340
    %p352 = scmp.eq.s32.totalorder %s31, 1
    %p353 = por %p351, %p352
    %p355 = scmp.ne.s32.totalorder %s340, %s354
    %p356 = scmp.eq.s32.totalorder %s31, 0
    %p357 = por %p355, %p356
    %s359 = sadd.s32 %s358, 1
    %p362 = scmp.eq.s32.totalorder %s25, 1
    %p363 = scmp.ne.s32.totalorder %s358, %s360
    %p364 = scmp.eq.s32.totalorder %s25, 0
    %p365 = por %p363, %p364
    %p366 = scmp.ne.s32.totalorder %s358, %s360
    %p367 = scmp.eq.s32.totalorder %s30, 1
    %p368 = por %p366, %p367
    %p369 = scmp.ne.s32.totalorder %s360, %s361
    %p370 = scmp.eq.s32.totalorder %s30, 0
    %p371 = por %p369, %p370
    %p372 = scmp.ne.s32.totalorder %s360, %s361
    %p373 = scmp.eq.s32.totalorder %s31, 1
    %p374 = por %p372, %p373
    %p376 = scmp.ne.s32.totalorder %s361, %s375
    %p377 = scmp.eq.s32.totalorder %s31, 0
    %p378 = por %p376, %p377
    %s380 = sadd.s32 %s379, 1
    %p383 = scmp.eq.s32.totalorder %s25, 1
    %p384 = scmp.ne.s32.totalorder %s379, %s381
    %p385 = scmp.eq.s32.totalorder %s25, 0
    %p386 = por %p384, %p385
    %p387 = scmp.ne.s32.totalorder %s379, %s381
    %p388 = scmp.eq.s32.totalorder %s30, 1
    %p389 = por %p387, %p388
    %p390 = scmp.ne.s32.totalorder %s381, %s382
    %p391 = scmp.eq.s32.totalorder %s30, 0
    %p392 = por %p390, %p391
    %p393 = scmp.ne.s32.totalorder %s381, %s382
    %p394 = scmp.eq.s32.totalorder %s31, 1
    %p395 = por %p393, %p394
    %p397 = scmp.ne.s32.totalorder %s382, %s396
    %p398 = scmp.eq.s32.totalorder %s31, 0
    %p399 = por %p397, %p398
    %s401 = sadd.s32 %s400, 1
    %p404 = scmp.eq.s32.totalorder %s25, 1
    %p405 = scmp.ne.s32.totalorder %s400, %s402
    %p406 = scmp.eq.s32.totalorder %s25, 0
    %p407 = por %p405, %p406
    %p408 = scmp.ne.s32.totalorder %s400, %s402
    %p409 = scmp.eq.s32.totalorder %s30, 1
    %p410 = por %p408, %p409
    %p411 = scmp.ne.s32.totalorder %s402, %s403
    %p412 = scmp.eq.s32.totalorder %s30, 0
    %p413 = por %p411, %p412
    %p414 = scmp.ne.s32.totalorder %s402, %s403
    %p415 = scmp.eq.s32.totalorder %s31, 1
    %p416 = por %p414, %p415
    %p418 = scmp.ne.s32.totalorder %s403, %s417
    %p419 = scmp.eq.s32.totalorder %s31, 0
    %p420 = por %p418, %p419
    %s422 = sadd.s32 %s421, 1
    %p425 = scmp.eq.s32.totalorder %s25, 1
    %p426 = scmp.ne.s32.totalorder %s421, %s423
    %p427 = scmp.eq.s32.totalorder %s25, 0
    %p428 = por %p426, %p427
    %p429 = scmp.ne.s32.totalorder %s421, %s423
    %p430 = scmp.eq.s32.totalorder %s30, 1
    %p431 = por %p429, %p430
    %p432 = scmp.ne.s32.totalorder %s423, %s424
    %p433 = scmp.eq.s32.totalorder %s30, 0
    %p434 = por %p432, %p433
    %p435 = scmp.ne.s32.totalorder %s423, %s424
    %p436 = scmp.eq.s32.totalorder %s31, 1
    %p437 = por %p435, %p436
    %p439 = scmp.ne.s32.totalorder %s424, %s438
    %p440 = scmp.eq.s32.totalorder %s31, 0
    %p441 = por %p439, %p440
    %s442 = ssub.s32 %s25, %s32
    %p443 = scmp.eq.s32.totalorder %s442, 0
    %s445 = sadd.s32 %s444, 1
    %s446 = scalar_select %p443, %s444, %s445
    %p449 = pneg %p443
    %p450 = scmp.eq.s32.totalorder %s25, 1
    %p451 = por %p449, %p450
    %p452 = scmp.ne.s32.totalorder %s444, %s447
    %p453 = scmp.eq.s32.totalorder %s25, 0
    %p454 = por %p452, %p453
    %p455 = scmp.ne.s32.totalorder %s444, %s447
    %p456 = scmp.eq.s32.totalorder %s30, 1
    %p457 = por %p455, %p456
    %p458 = scmp.ne.s32.totalorder %s447, %s448
    %p459 = scmp.eq.s32.totalorder %s30, 0
    %p460 = por %p458, %p459
    %p461 = scmp.ne.s32.totalorder %s447, %s448
    %p462 = scmp.eq.s32.totalorder %s31, 1
    %p463 = por %p461, %p462
    %p465 = scmp.ne.s32.totalorder %s448, %s464
    %p466 = scmp.eq.s32.totalorder %s31, 0
    %p467 = por %p465, %p466
    %p468 = scmp.le.s32.totalorder 1, %s25
    %p469 = scmp.lt.s32.totalorder %s25, 3
    %p470 = pnand %p468, %p469
    %p471 = pneg %p470
    // Predicated region
    $region9: #{transformer_forward.7} parent=5 // pred_check
      _
    $region10: #{transformer_forward.7} parent=5 // pred_check_branch
      %473 = sbr.rel (%p470) target = $region12
    $region11: #{transformer_forward.7} parent=5 // pred_region
      %s474 = ssub.s32 %s25, 1
      // Predicated region
      $region13: #{transformer_forward.7} parent=11 // pred_check
        %p475 = pneg %p98
      $region14: #{transformer_forward.7} parent=11 // pred_check_branch
        %477 = sbr.rel (%p475) target = $region16
      $region15: #{transformer_forward.7} parent=11 // pred_region
        _
      $region16: #{transformer_forward.7} parent=11 // pred_fallthru
        _
      // Predicated region
      $region17: #{transformer_forward.7} parent=11 // pred_check
        %p478 = pneg %p119
      $region18: #{transformer_forward.7} parent=11 // pred_check_branch
        %480 = sbr.rel (%p478) target = $region20
      $region19: #{transformer_forward.7} parent=11 // pred_region
        _
      $region20: #{transformer_forward.7} parent=11 // pred_fallthru
        _
      // Predicated region
      $region21: #{transformer_forward.7} parent=11 // pred_check
        %p481 = pneg %p140
      $region22: #{transformer_forward.7} parent=11 // pred_check_branch
        %483 = sbr.rel (%p481) target = $region24
      $region23: #{transformer_forward.7} parent=11 // pred_region
        _
      $region24: #{transformer_forward.7} parent=11 // pred_fallthru
        _
      // Predicated region
      $region25: #{transformer_forward.7} parent=11 // pred_check
        %p484 = pneg %p161
      $region26: #{transformer_forward.7} parent=11 // pred_check_branch
        %486 = sbr.rel (%p484) target = $region28
      $region27: #{transformer_forward.7} parent=11 // pred_region
        _
      $region28: #{transformer_forward.7} parent=11 // pred_fallthru
        _
      // Predicated region
      $region29: #{transformer_forward.7} parent=11 // pred_check
        %p487 = pneg %p182
      $region30: #{transformer_forward.7} parent=11 // pred_check_branch
        %489 = sbr.rel (%p487) target = $region32
      $region31: #{transformer_forward.7} parent=11 // pred_region
        _
      $region32: #{transformer_forward.7} parent=11 // pred_fallthru
        _
      // Predicated region
      $region33: #{transformer_forward.7} parent=11 // pred_check
        %p490 = pneg %p203
      $region34: #{transformer_forward.7} parent=11 // pred_check_branch
        %492 = sbr.rel (%p490) target = $region36
      $region35: #{transformer_forward.7} parent=11 // pred_region
        _
      $region36: #{transformer_forward.7} parent=11 // pred_fallthru
        _
      // Predicated region
      $region37: #{transformer_forward.7} parent=11 // pred_check
        %p493 = pneg %p224
      $region38: #{transformer_forward.7} parent=11 // pred_check_branch
        %495 = sbr.rel (%p493) target = $region40
      $region39: #{transformer_forward.7} parent=11 // pred_region
        _
      $region40: #{transformer_forward.7} parent=11 // pred_fallthru
        _
      // Predicated region
      $region41: #{transformer_forward.7} parent=11 // pred_check
        %p496 = pneg %p245
      $region42: #{transformer_forward.7} parent=11 // pred_check_branch
        %498 = sbr.rel (%p496) target = $region44
      $region43: #{transformer_forward.7} parent=11 // pred_region
        _
      $region44: #{transformer_forward.7} parent=11 // pred_fallthru
        _
      // Predicated region
      $region45: #{transformer_forward.7} parent=11 // pred_check
        %p499 = pneg %p266
      $region46: #{transformer_forward.7} parent=11 // pred_check_branch
        %501 = sbr.rel (%p499) target = $region48
      $region47: #{transformer_forward.7} parent=11 // pred_region
        _
      $region48: #{transformer_forward.7} parent=11 // pred_fallthru
        _
      // Predicated region
      $region49: #{transformer_forward.7} parent=11 // pred_check
        %p502 = pneg %p287
      $region50: #{transformer_forward.7} parent=11 // pred_check_branch
        %504 = sbr.rel (%p502) target = $region52
      $region51: #{transformer_forward.7} parent=11 // pred_region
        _
      $region52: #{transformer_forward.7} parent=11 // pred_fallthru
        _
      // Predicated region
      $region53: #{transformer_forward.7} parent=11 // pred_check
        %p505 = pneg %p308
      $region54: #{transformer_forward.7} parent=11 // pred_check_branch
        %507 = sbr.rel (%p505) target = $region56
      $region55: #{transformer_forward.7} parent=11 // pred_region
        _
      $region56: #{transformer_forward.7} parent=11 // pred_fallthru
        _
      // Predicated region
      $region57: #{transformer_forward.7} parent=11 // pred_check
        %p508 = pneg %p329
      $region58: #{transformer_forward.7} parent=11 // pred_check_branch
        %510 = sbr.rel (%p508) target = $region60
      $region59: #{transformer_forward.7} parent=11 // pred_region
        _
      $region60: #{transformer_forward.7} parent=11 // pred_fallthru
        _
      // Predicated region
      $region61: #{transformer_forward.7} parent=11 // pred_check
        %p511 = pneg %p350
      $region62: #{transformer_forward.7} parent=11 // pred_check_branch
        %513 = sbr.rel (%p511) target = $region64
      $region63: #{transformer_forward.7} parent=11 // pred_region
        _
      $region64: #{transformer_forward.7} parent=11 // pred_fallthru
        _
      // Predicated region
      $region65: #{transformer_forward.7} parent=11 // pred_check
        %p514 = pneg %p371
      $region66: #{transformer_forward.7} parent=11 // pred_check_branch
        %516 = sbr.rel (%p514) target = $region68
      $region67: #{transformer_forward.7} parent=11 // pred_region
        _
      $region68: #{transformer_forward.7} parent=11 // pred_fallthru
        _
      // Predicated region
      $region69: #{transformer_forward.7} parent=11 // pred_check
        %p517 = pneg %p392
      $region70: #{transformer_forward.7} parent=11 // pred_check_branch
        %519 = sbr.rel (%p517) target = $region72
      $region71: #{transformer_forward.7} parent=11 // pred_region
        _
      $region72: #{transformer_forward.7} parent=11 // pred_fallthru
        _
      // Predicated region
      $region73: #{transformer_forward.7} parent=11 // pred_check
        %p520 = pneg %p413
      $region74: #{transformer_forward.7} parent=11 // pred_check_branch
        %522 = sbr.rel (%p520) target = $region76
      $region75: #{transformer_forward.7} parent=11 // pred_region
        _
      $region76: #{transformer_forward.7} parent=11 // pred_fallthru
        _
      // Predicated region
      $region77: #{transformer_forward.7} parent=11 // pred_check
        %p523 = pneg %p434
      $region78: #{transformer_forward.7} parent=11 // pred_check_branch
        %525 = sbr.rel (%p523) target = $region80
      $region79: #{transformer_forward.7} parent=11 // pred_region
        _
      $region80: #{transformer_forward.7} parent=11 // pred_fallthru
        _
    $region12: #{transformer_forward.7} parent=5 // pred_fallthru
      _
    %p526 = scmp.lt.s32.totalorder %s25, 2
    // Predicated region
    $region81: #{transformer_forward.7} parent=5 // pred_check
      %p527 = pneg %p526
    $region82: #{transformer_forward.7} parent=5 // pred_check_branch
      %529 = sbr.rel (%p527) target = $region84
    $region83: #{transformer_forward.7} parent=5 // pred_region
      // Predicated region
      $region85: #{transformer_forward.7} parent=83 // pred_check
        %p530 = pneg %p45
      $region86: #{transformer_forward.7} parent=83 // pred_check_branch
        %532 = sbr.rel (%p530) target = $region88
      $region87: #{transformer_forward.7} parent=83 // pred_region
        %p533 = scmp.lt.s32.totalorder %s25, 1
        %s534 = scalar_select %p533, %s25, 1
        %s535 = smul.addr %s534, 8
        %s536 = scalar_lea.vmem %s0, %s535
      $region88: #{transformer_forward.7} parent=83 // pred_fallthru
        _
      // Predicated region
      $region89: #{transformer_forward.7} parent=83 // pred_check
        %p537 = pneg %p71
      $region90: #{transformer_forward.7} parent=83 // pred_check_branch
        %539 = sbr.rel (%p537) target = $region92
      $region91: #{transformer_forward.7} parent=83 // pred_region
        %p540 = scmp.lt.s32.totalorder %s25, 1
        %s541 = scalar_select %p540, %s25, 1
        %s542 = smul.addr %s541, 8
        %s543 = scalar_lea.vmem %s1, %s542
      $region92: #{transformer_forward.7} parent=83 // pred_fallthru
        _
    $region84: #{transformer_forward.7} parent=5 // pred_fallthru
      _
    %p544 = scmp.le.s32.totalorder 1, %s25
    %p545 = scmp.lt.s32.totalorder %s25, 3
    %p546 = pnand %p544, %p545
    %p547 = pneg %p546
    // Predicated region
    $region93: #{transformer_forward.7} parent=5 // pred_check
      _
    $region94: #{transformer_forward.7} parent=5 // pred_check_branch
      %549 = sbr.rel (%p546) target = $region96
    $region95: #{transformer_forward.7} parent=5 // pred_region
      %s550 = ssub.s32 %s25, 1
      %p551 = scmp.lt.s32.totalorder %s30, 1
      %s552 = scalar_select %p551, %s30, 1
      %s553 = smul.addr %s552, 8
      %s554 = scalar_lea.vmem %s0, %s553
      %p555 = pneg %p51
      %p556 = pneg %p48
      %p557 = scmp.lt.s32.totalorder %s30, 1
      %s558 = scalar_select %p557, %s30, 1
      %s559 = smul.addr %s558, 8
      %s560 = scalar_lea.vmem %s1, %s559
      %p561 = pneg %p77
      %p562 = pneg %p74
      %p563 = pneg %p98
      %p564 = pneg %p95
      %p565 = pneg %p119
      %p566 = pneg %p116
      %p567 = pneg %p140
      %p568 = pneg %p137
      %p569 = pneg %p161
      %p570 = pneg %p158
      %p571 = pneg %p182
      %p572 = pneg %p179
      %p573 = pneg %p203
      %p574 = pneg %p200
      %p575 = pneg %p224
      %p576 = pneg %p221
      %p577 = pneg %p245
      %p578 = pneg %p242
      %p579 = pneg %p266
      %p580 = pneg %p263
      %p581 = pneg %p287
      %p582 = pneg %p284
      %p583 = pneg %p308
      %p584 = pneg %p305
      %p585 = pneg %p329
      %p586 = pneg %p326
      %p587 = pneg %p350
      %p588 = pneg %p347
      %p589 = pneg %p371
      %p590 = pneg %p368
      %p591 = pneg %p392
      %p592 = pneg %p389
      %p593 = pneg %p413
      %p594 = pneg %p410
      %p595 = pneg %p434
      %p596 = pneg %p431
      %p597 = pneg %p460
      %p598 = pneg %p457
      %p599 = scmp.lt.s32.totalorder %s30, 1
      %s600 = scalar_select %p599, %s30, 1
      %s601 = smul.addr %s600, 8
      %s602 = scalar_lea.vmem %s19, %s601
      %p603 = scmp.lt.s32.totalorder %s30, 1
      %s604 = scalar_select %p603, %s30, 1
      %s605 = smul.addr %s604, 8
      %s606 = scalar_lea.vmem %s0, %s605
      %p607 = scmp.lt.s32.totalorder %s30, 1
      %s608 = scalar_select %p607, %s30, 1
      %s609 = smul.addr %s608, 8
      %s610 = scalar_lea.vmem %s1, %s609
      %p611 = scmp.lt.s32.totalorder %s30, 1
      %s612 = scalar_select %p611, %s30, 1
      %s613 = smul.addr %s612, 8
      %s614 = scalar_lea.vmem %s19, %s613
      %v615 = vld [vmem:[%s606] sm:$0xff]
      %v616 = vld [vmem:[%s610] sm:$0xff]
      %v617 = vlaneseq
      %v618 = vshrl.u32 %v617, 7
      %v619 = vlaneseq
      %v620 = vand.u32 %v619, 127
      %vm621 = vcmp.ge.s32.totalorder %v620, %v618
      %v622 = vld [vmem:[%s2] sm:$0xff]
      %v623 = vld [vmem:[%s2 + $0x8] sm:$0xff]
      %v624 = vld [vmem:[%s2 + $0x10] sm:$0xff]
      %v625 = vld [vmem:[%s2 + $0x18] sm:$0xff]
      %vm626 = vcmask 261120
      %v628 = vsel %vm626, %v615, 0
      %630 = vmatprep.subr.mxu0 0.0
      %631 = vmatpush1.msra.mxu0 0.0
      %632 = vmatprep.subr.mxu0 0.0
      %633 = vmatpush1.msra.mxu0 0.0
      %634 = vmatprep.subr.mxu0 0.0
      %635 = vmatpush1.msra.mxu0 0.0
      %636 = vmatprep.subr.mxu0 0.0
      %637 = vmatpush1.msra.mxu0 0.0
      %638 = vmatprep.subr.mxu0 0.0
      %639 = vmatpush1.msra.mxu0 0.0
      %640 = vmatprep.subr.mxu0 0.0
      %641 = vmatpush1.msra.mxu0 0.0
      %642 = vmatprep.subr.mxu0 0.0
      %643 = vmatpush1.msra.mxu0 0.0
      %644 = vmatprep.subr.mxu0 0.0
      %645 = vmatpush1.msra.mxu0 0.0
      %646 = vmatprep.subr.mxu0 0.0
      %647 = vmatpush1.msra.mxu0 0.0
      %648 = vmatprep.subr.mxu0 0.0
      %649 = vmatpush1.msra.mxu0 0.0
      %650 = vmatprep.subr.mxu0 0.0
      %651 = vmatpush1.msra.mxu0 0.0
      %652 = vmatprep.subr.mxu0 0.0
      %653 = vmatpush1.msra.mxu0 0.0
      %654 = vmatprep.subr.mxu0 0.0
      %655 = vmatpush1.msra.mxu0 %v625
      %656 = vmatprep.subr.mxu0 0.0
      %657 = vmatpush1.msra.mxu0 %v624
      %658 = vmatprep.subr.mxu0 0.0
      %659 = vmatpush1.msra.mxu0 %v623
      %660 = vmatprep.subr.mxu0 0.0
      %661 = vmatpush1.msra.mxu0 %v622
      %662 = vmatprep.subr.mxu0 0.0
      %663 = vmatpush2.msra.mxu0 0.0
      %664 = vmatprep.subr.mxu0 0.0
      %665 = vmatpush2.msra.mxu0 0.0
      %666 = vmatprep.subr.mxu0 0.0
      %667 = vmatpush2.msra.mxu0 0.0
      %668 = vmatprep.subr.mxu0 0.0
      %669 = vmatpush2.msra.mxu0 0.0
      %670 = vmatprep.subr.mxu0 0.0
      %671 = vmatpush2.msra.mxu0 0.0
      %672 = vmatprep.subr.mxu0 0.0
      %673 = vmatpush2.msra.mxu0 0.0
      %674 = vmatprep.subr.mxu0 0.0
      %675 = vmatpush2.msra.mxu0 0.0
      %676 = vmatprep.subr.mxu0 0.0
      %677 = vmatpush2.msra.mxu0 0.0
      %678 = vmatprep.subr.mxu0 0.0
      %679 = vmatpush2.msra.mxu0 0.0
      %680 = vmatprep.subr.mxu0 0.0
      %681 = vmatpush2.msra.mxu0 0.0
      %682 = vmatprep.subr.mxu0 0.0
      %683 = vmatpush2.msra.mxu0 0.0
      %684 = vmatprep.subr.mxu0 0.0
      %685 = vmatpush2.msra.mxu0 0.0
      %686 = vmatprep.subr.mxu0 0.0
      %687 = vmatpush2.msra.mxu0 0.0
      %688 = vmatprep.subr.mxu0 0.0
      %689 = vmatpush2.msra.mxu0 0.0
      %690 = vmatprep.subr.mxu0 0.0
      %691 = vmatpush2.msra.mxu0 0.0
      %692 = vmatprep.subr.mxu0 0.0
      %693 = vmatpush2.msra.mxu0 0.0
      %694 = vmatprep.mubr.f32.mxu0 0.0
      %695 = vmatmul.mubr.f32.gmra.mxu0 %v628
      %v696 = vpop.f32.mrf.mxu0
      %v697 = vadd.f32 0.0, %v696
      %v698 = vpop.f32.mrf.mxu0
      %699 = vdwg.mxu0
      %v700 = vld [vmem:[%s3] sm:$0xff]
      %v701 = vld [vmem:[%s3 + $0x8] sm:$0xff]
      %v702 = vld [vmem:[%s3 + $0x10] sm:$0xff]
      %v703 = vld [vmem:[%s3 + $0x18] sm:$0xff]
      %v704 = vld [vmem:[%s4] sm:$0x1]
      %706 = vrot.lane.b32.xlu0 %v697, 96
      %v707 = vpop.permute.xlu0 %706
      %vm708 = vcmask 64512
      %v709 = vsel %vm708, %v697, 0
      %v711 = vsel %vm708, %v707, 0
      %713 = vmatprep.subr.mxu0 0.0
      %714 = vmatpush1.xpose.msra.mxu0 0.0
      %715 = vmatprep.subr.mxu0 0.0
      %716 = vmatpush1.xpose.msra.mxu0 0.0
      %717 = vmatprep.subr.mxu0 0.0
      %718 = vmatpush1.xpose.msra.mxu0 0.0
      %719 = vmatprep.subr.mxu0 0.0
      %720 = vmatpush1.xpose.msra.mxu0 0.0
      %721 = vmatprep.subr.mxu0 0.0
      %722 = vmatpush1.xpose.msra.mxu0 0.0
      %723 = vmatprep.subr.mxu0 0.0
      %724 = vmatpush1.xpose.msra.mxu0 0.0
      %725 = vmatprep.subr.mxu0 0.0
      %726 = vmatpush1.xpose.msra.mxu0 0.0
      %727 = vmatprep.subr.mxu0 0.0
      %728 = vmatpush1.xpose.msra.mxu0 0.0
      %729 = vmatprep.subr.mxu0 0.0
      %730 = vmatpush1.xpose.msra.mxu0 0.0
      %731 = vmatprep.subr.mxu0 0.0
      %732 = vmatpush1.xpose.msra.mxu0 0.0
      %733 = vmatprep.subr.mxu0 0.0
      %734 = vmatpush1.xpose.msra.mxu0 0.0
      %735 = vmatprep.subr.mxu0 0.0
      %736 = vmatpush1.xpose.msra.mxu0 0.0
      %737 = vmatprep.subr.mxu0 0.0
      %738 = vmatpush1.xpose.msra.mxu0 0.0
      %739 = vmatprep.subr.mxu0 0.0
      %740 = vmatpush1.xpose.msra.mxu0 0.0
      %741 = vmatprep.subr.mxu0 0.0
      %742 = vmatpush1.xpose.msra.mxu0 0.0
      %743 = vmatprep.subr.mxu0 0.0
      %744 = vmatpush1.xpose.msra.mxu0 %v711
      %745 = vmatprep.subr.mxu0 0.0
      %746 = vmatpush2.xpose.msra.mxu0 0.0
      %747 = vmatprep.subr.mxu0 0.0
      %748 = vmatpush2.xpose.msra.mxu0 0.0
      %749 = vmatprep.subr.mxu0 0.0
      %750 = vmatpush2.xpose.msra.mxu0 0.0
      %751 = vmatprep.subr.mxu0 0.0
      %752 = vmatpush2.xpose.msra.mxu0 0.0
      %753 = vmatprep.subr.mxu0 0.0
      %754 = vmatpush2.xpose.msra.mxu0 0.0
      %755 = vmatprep.subr.mxu0 0.0
      %756 = vmatpush2.xpose.msra.mxu0 0.0
      %757 = vmatprep.subr.mxu0 0.0
      %758 = vmatpush2.xpose.msra.mxu0 0.0
      %759 = vmatprep.subr.mxu0 0.0
      %760 = vmatpush2.xpose.msra.mxu0 0.0
      %761 = vmatprep.subr.mxu0 0.0
      %762 = vmatpush2.xpose.msra.mxu0 0.0
      %763 = vmatprep.subr.mxu0 0.0
      %764 = vmatpush2.xpose.msra.mxu0 0.0
      %765 = vmatprep.subr.mxu0 0.0
      %766 = vmatpush2.xpose.msra.mxu0 0.0
      %767 = vmatprep.subr.mxu0 0.0
      %768 = vmatpush2.xpose.msra.mxu0 0.0
      %769 = vmatprep.subr.mxu0 0.0
      %770 = vmatpush2.xpose.msra.mxu0 0.0
      %771 = vmatprep.subr.mxu0 0.0
      %772 = vmatpush2.xpose.msra.mxu0 0.0
      %773 = vmatprep.subr.mxu0 0.0
      %774 = vmatpush2.xpose.msra.mxu0 0.0
      %775 = vmatprep.subr.mxu0 0.0
      %776 = vmatpush2.xpose.msra.mxu0 0.0
      %777 = vmatprep.mubr.f32.mxu0 0.0
      %778 = vmatmul.mubr.f32.gmra.mxu0 %v709
      %v779 = vpop.f32.mrf.mxu0
      %v780 = vadd.f32 0.0, %v779
      %v781 = vpop.f32.mrf.mxu0
      %782 = vdwg.mxu0
      %v783 = vmul.f32 %v780, 0.35355338
      %v784 = vsel %vm621, %v783, -1e+30
      %v785 = vsel %vm708, %v784, -inf
      %786 = vmax.xlane.f32.xlu0 %v785
      %v787 = vpop.xlane.xlu0 %786
      %v788 = vsub.f32 %v784, %v787
      %v789 = vmul.f32 %v788, 1.442695
      %v790 = vpow.pop %v789
      %v791 = vsel %vm708, %v790, 0.0
      %792 = vadd.xlane.f32.xlu0 %v791
      %v793 = vpop.xlane.xlu0 %792
      %v794 = vrcp.pop %v793
      %v795 = vmul.f32 %v790, %v794
      %796 = vrot.lane.b32.xlu0 %v697, 64
      %v797 = vpop.permute.xlu0 %796
      %v800 = vsel %vm708, %v795, 0
      %802 = vmatprep.subr.mxu0 0.0
      %803 = vmatpush1.msra.mxu0 0.0
      %804 = vmatprep.subr.mxu0 0.0
      %805 = vmatpush1.msra.mxu0 0.0
      %806 = vmatprep.subr.mxu0 0.0
      %807 = vmatpush1.msra.mxu0 0.0
      %808 = vmatprep.subr.mxu0 0.0
      %809 = vmatpush1.msra.mxu0 0.0
      %810 = vmatprep.subr.mxu0 0.0
      %811 = vmatpush1.msra.mxu0 0.0
      %812 = vmatprep.subr.mxu0 0.0
      %813 = vmatpush1.msra.mxu0 0.0
      %814 = vmatprep.subr.mxu0 0.0
      %815 = vmatpush1.msra.mxu0 0.0
      %816 = vmatprep.subr.mxu0 0.0
      %817 = vmatpush1.msra.mxu0 0.0
      %818 = vmatprep.subr.mxu0 0.0
      %819 = vmatpush1.msra.mxu0 0.0
      %820 = vmatprep.subr.mxu0 0.0
      %821 = vmatpush1.msra.mxu0 0.0
      %822 = vmatprep.subr.mxu0 0.0
      %823 = vmatpush1.msra.mxu0 0.0
      %824 = vmatprep.subr.mxu0 0.0
      %825 = vmatpush1.msra.mxu0 0.0
      %826 = vmatprep.subr.mxu0 0.0
      %827 = vmatpush1.msra.mxu0 0.0
      %828 = vmatprep.subr.mxu0 0.0
      %829 = vmatpush1.msra.mxu0 0.0
      %830 = vmatprep.subr.mxu0 0.0
      %831 = vmatpush1.msra.mxu0 0.0
      %832 = vmatprep.subr.mxu0 0.0
      %833 = vmatpush1.msra.mxu0 %v797
      %834 = vmatprep.subr.mxu0 0.0
      %835 = vmatpush2.msra.mxu0 0.0
      %836 = vmatprep.subr.mxu0 0.0
      %837 = vmatpush2.msra.mxu0 0.0
      %838 = vmatprep.subr.mxu0 0.0
      %839 = vmatpush2.msra.mxu0 0.0
      %840 = vmatprep.subr.mxu0 0.0
      %841 = vmatpush2.msra.mxu0 0.0
      %842 = vmatprep.subr.mxu0 0.0
      %843 = vmatpush2.msra.mxu0 0.0
      %844 = vmatprep.subr.mxu0 0.0
      %845 = vmatpush2.msra.mxu0 0.0
      %846 = vmatprep.subr.mxu0 0.0
      %847 = vmatpush2.msra.mxu0 0.0
      %848 = vmatprep.subr.mxu0 0.0
      %849 = vmatpush2.msra.mxu0 0.0
      %850 = vmatprep.subr.mxu0 0.0
      %851 = vmatpush2.msra.mxu0 0.0
      %852 = vmatprep.subr.mxu0 0.0
      %853 = vmatpush2.msra.mxu0 0.0
      %854 = vmatprep.subr.mxu0 0.0
      %855 = vmatpush2.msra.mxu0 0.0
      %856 = vmatprep.subr.mxu0 0.0
      %857 = vmatpush2.msra.mxu0 0.0
      %858 = vmatprep.subr.mxu0 0.0
      %859 = vmatpush2.msra.mxu0 0.0
      %860 = vmatprep.subr.mxu0 0.0
      %861 = vmatpush2.msra.mxu0 0.0
      %862 = vmatprep.subr.mxu0 0.0
      %863 = vmatpush2.msra.mxu0 0.0
      %864 = vmatprep.subr.mxu0 0.0
      %865 = vmatpush2.msra.mxu0 0.0
      %866 = vmatprep.mubr.f32.mxu0 0.0
      %867 = vmatmul.mubr.f32.gmra.mxu0 %v800
      %v868 = vpop.f32.mrf.mxu0
      %v869 = vadd.f32 0.0, %v868
      %v870 = vpop.f32.mrf.mxu0
      %871 = vdwg.mxu0
      %872 = vrot.lane.b32.xlu0 %v697, 120
      %v873 = vpop.permute.xlu0 %872
      %874 = vrot.lane.b32.xlu0 %v697, 88
      %v875 = vpop.permute.xlu0 %874
      %v876 = vsel %vm708, %v873, 0
      %v878 = vsel %vm708, %v875, 0
      %880 = vmatprep.subr.mxu0 0.0
      %881 = vmatpush1.xpose.msra.mxu0 0.0
      %882 = vmatprep.subr.mxu0 0.0
      %883 = vmatpush1.xpose.msra.mxu0 0.0
      %884 = vmatprep.subr.mxu0 0.0
      %885 = vmatpush1.xpose.msra.mxu0 0.0
      %886 = vmatprep.subr.mxu0 0.0
      %887 = vmatpush1.xpose.msra.mxu0 0.0
      %888 = vmatprep.subr.mxu0 0.0
      %889 = vmatpush1.xpose.msra.mxu0 0.0
      %890 = vmatprep.subr.mxu0 0.0
      %891 = vmatpush1.xpose.msra.mxu0 0.0
      %892 = vmatprep.subr.mxu0 0.0
      %893 = vmatpush1.xpose.msra.mxu0 0.0
      %894 = vmatprep.subr.mxu0 0.0
      %895 = vmatpush1.xpose.msra.mxu0 0.0
      %896 = vmatprep.subr.mxu0 0.0
      %897 = vmatpush1.xpose.msra.mxu0 0.0
      %898 = vmatprep.subr.mxu0 0.0
      %899 = vmatpush1.xpose.msra.mxu0 0.0
      %900 = vmatprep.subr.mxu0 0.0
      %901 = vmatpush1.xpose.msra.mxu0 0.0
      %902 = vmatprep.subr.mxu0 0.0
      %903 = vmatpush1.xpose.msra.mxu0 0.0
      %904 = vmatprep.subr.mxu0 0.0
      %905 = vmatpush1.xpose.msra.mxu0 0.0
      %906 = vmatprep.subr.mxu0 0.0
      %907 = vmatpush1.xpose.msra.mxu0 0.0
      %908 = vmatprep.subr.mxu0 0.0
      %909 = vmatpush1.xpose.msra.mxu0 0.0
      %910 = vmatprep.subr.mxu0 0.0
      %911 = vmatpush1.xpose.msra.mxu0 %v878
      %912 = vmatprep.subr.mxu0 0.0
      %913 = vmatpush2.xpose.msra.mxu0 0.0
      %914 = vmatprep.subr.mxu0 0.0
      %915 = vmatpush2.xpose.msra.mxu0 0.0
      %916 = vmatprep.subr.mxu0 0.0
      %917 = vmatpush2.xpose.msra.mxu0 0.0
      %918 = vmatprep.subr.mxu0 0.0
      %919 = vmatpush2.xpose.msra.mxu0 0.0
      %920 = vmatprep.subr.mxu0 0.0
      %921 = vmatpush2.xpose.msra.mxu0 0.0
      %922 = vmatprep.subr.mxu0 0.0
      %923 = vmatpush2.xpose.msra.mxu0 0.0
      %924 = vmatprep.subr.mxu0 0.0
      %925 = vmatpush2.xpose.msra.mxu0 0.0
      %926 = vmatprep.subr.mxu0 0.0
      %927 = vmatpush2.xpose.msra.mxu0 0.0
      %928 = vmatprep.subr.mxu0 0.0
      %929 = vmatpush2.xpose.msra.mxu0 0.0
      %930 = vmatprep.subr.mxu0 0.0
      %931 = vmatpush2.xpose.msra.mxu0 0.0
      %932 = vmatprep.subr.mxu0 0.0
      %933 = vmatpush2.xpose.msra.mxu0 0.0
      %934 = vmatprep.subr.mxu0 0.0
      %935 = vmatpush2.xpose.msra.mxu0 0.0
      %936 = vmatprep.subr.mxu0 0.0
      %937 = vmatpush2.xpose.msra.mxu0 0.0
      %938 = vmatprep.subr.mxu0 0.0
      %939 = vmatpush2.xpose.msra.mxu0 0.0
      %940 = vmatprep.subr.mxu0 0.0
      %941 = vmatpush2.xpose.msra.mxu0 0.0
      %942 = vmatprep.subr.mxu0 0.0
      %943 = vmatpush2.xpose.msra.mxu0 0.0
      %944 = vmatprep.mubr.f32.mxu0 0.0
      %945 = vmatmul.mubr.f32.gmra.mxu0 %v876
      %v946 = vpop.f32.mrf.mxu0
      %v947 = vadd.f32 0.0, %v946
      %v948 = vpop.f32.mrf.mxu0
      %949 = vdwg.mxu0
      %v950 = vmul.f32 %v947, 0.35355338
      %v951 = vsel %vm621, %v950, -1e+30
      %v952 = vsel %vm708, %v951, -inf
      %953 = vmax.xlane.f32.xlu0 %v952
      %v954 = vpop.xlane.xlu0 %953
      %v955 = vsub.f32 %v951, %v954
      %v956 = vmul.f32 %v955, 1.442695
      %v957 = vpow.pop %v956
      %v958 = vsel %vm708, %v957, 0.0
      %959 = vadd.xlane.f32.xlu0 %v958
      %v960 = vpop.xlane.xlu0 %959
      %v961 = vrcp.pop %v960
      %v962 = vmul.f32 %v957, %v961
      %963 = vrot.lane.b32.xlu0 %v697, 56
      %v964 = vpop.permute.xlu0 %963
      %v967 = vsel %vm708, %v962, 0
      %969 = vmatprep.subr.mxu0 0.0
      %970 = vmatpush1.msra.mxu0 0.0
      %971 = vmatprep.subr.mxu0 0.0
      %972 = vmatpush1.msra.mxu0 0.0
      %973 = vmatprep.subr.mxu0 0.0
      %974 = vmatpush1.msra.mxu0 0.0
      %975 = vmatprep.subr.mxu0 0.0
      %976 = vmatpush1.msra.mxu0 0.0
      %977 = vmatprep.subr.mxu0 0.0
      %978 = vmatpush1.msra.mxu0 0.0
      %979 = vmatprep.subr.mxu0 0.0
      %980 = vmatpush1.msra.mxu0 0.0
      %981 = vmatprep.subr.mxu0 0.0
      %982 = vmatpush1.msra.mxu0 0.0
      %983 = vmatprep.subr.mxu0 0.0
      %984 = vmatpush1.msra.mxu0 0.0
      %985 = vmatprep.subr.mxu0 0.0
      %986 = vmatpush1.msra.mxu0 0.0
      %987 = vmatprep.subr.mxu0 0.0
      %988 = vmatpush1.msra.mxu0 0.0
      %989 = vmatprep.subr.mxu0 0.0
      %990 = vmatpush1.msra.mxu0 0.0
      %991 = vmatprep.subr.mxu0 0.0
      %992 = vmatpush1.msra.mxu0 0.0
      %993 = vmatprep.subr.mxu0 0.0
      %994 = vmatpush1.msra.mxu0 0.0
      %995 = vmatprep.subr.mxu0 0.0
      %996 = vmatpush1.msra.mxu0 0.0
      %997 = vmatprep.subr.mxu0 0.0
      %998 = vmatpush1.msra.mxu0 0.0
      %999 = vmatprep.subr.mxu0 0.0
      %1000 = vmatpush1.msra.mxu0 %v964
      %1001 = vmatprep.subr.mxu0 0.0
      %1002 = vmatpush2.msra.mxu0 0.0
      %1003 = vmatprep.subr.mxu0 0.0
      %1004 = vmatpush2.msra.mxu0 0.0
      %1005 = vmatprep.subr.mxu0 0.0
      %1006 = vmatpush2.msra.mxu0 0.0
      %1007 = vmatprep.subr.mxu0 0.0
      %1008 = vmatpush2.msra.mxu0 0.0
      %1009 = vmatprep.subr.mxu0 0.0
      %1010 = vmatpush2.msra.mxu0 0.0
      %1011 = vmatprep.subr.mxu0 0.0
      %1012 = vmatpush2.msra.mxu0 0.0
      %1013 = vmatprep.subr.mxu0 0.0
      %1014 = vmatpush2.msra.mxu0 0.0
      %1015 = vmatprep.subr.mxu0 0.0
      %1016 = vmatpush2.msra.mxu0 0.0
      %1017 = vmatprep.subr.mxu0 0.0
      %1018 = vmatpush2.msra.mxu0 0.0
      %1019 = vmatprep.subr.mxu0 0.0
      %1020 = vmatpush2.msra.mxu0 0.0
      %1021 = vmatprep.subr.mxu0 0.0
      %1022 = vmatpush2.msra.mxu0 0.0
      %1023 = vmatprep.subr.mxu0 0.0
      %1024 = vmatpush2.msra.mxu0 0.0
      %1025 = vmatprep.subr.mxu0 0.0
      %1026 = vmatpush2.msra.mxu0 0.0
      %1027 = vmatprep.subr.mxu0 0.0
      %1028 = vmatpush2.msra.mxu0 0.0
      %1029 = vmatprep.subr.mxu0 0.0
      %1030 = vmatpush2.msra.mxu0 0.0
      %1031 = vmatprep.subr.mxu0 0.0
      %1032 = vmatpush2.msra.mxu0 0.0
      %1033 = vmatprep.mubr.f32.mxu0 0.0
      %1034 = vmatmul.mubr.f32.gmra.mxu0 %v967
      %v1035 = vpop.f32.mrf.mxu0
      %v1036 = vadd.f32 0.0, %v1035
      %v1037 = vpop.f32.mrf.mxu0
      %1038 = vdwg.mxu0
      %v1040 = vsel %vm708, %v1036, 0
      %1042 = vmatprep.subr.mxu0 0.0
      %1043 = vmatpush1.msra.mxu0 0.0
      %1044 = vmatprep.subr.mxu0 0.0
      %1045 = vmatpush1.msra.mxu0 0.0
      %1046 = vmatprep.subr.mxu0 0.0
      %1047 = vmatpush1.msra.mxu0 0.0
      %1048 = vmatprep.subr.mxu0 0.0
      %1049 = vmatpush1.msra.mxu0 0.0
      %1050 = vmatprep.subr.mxu0 0.0
      %1051 = vmatpush1.msra.mxu0 0.0
      %1052 = vmatprep.subr.mxu0 0.0
      %1053 = vmatpush1.msra.mxu0 0.0
      %1054 = vmatprep.subr.mxu0 0.0
      %1055 = vmatpush1.msra.mxu0 0.0
      %1056 = vmatprep.subr.mxu0 0.0
      %1057 = vmatpush1.msra.mxu0 0.0
      %1058 = vmatprep.subr.mxu0 0.0
      %1059 = vmatpush1.msra.mxu0 0.0
      %1060 = vmatprep.subr.mxu0 0.0
      %1061 = vmatpush1.msra.mxu0 0.0
      %1062 = vmatprep.subr.mxu0 0.0
      %1063 = vmatpush1.msra.mxu0 0.0
      %1064 = vmatprep.subr.mxu0 0.0
      %1065 = vmatpush1.msra.mxu0 0.0
      %1066 = vmatprep.subr.mxu0 0.0
      %1067 = vmatpush1.msra.mxu0 0.0
      %1068 = vmatprep.subr.mxu0 0.0
      %1069 = vmatpush1.msra.mxu0 0.0
      %1070 = vmatprep.subr.mxu0 0.0
      %1071 = vmatpush1.msra.mxu0 0.0
      %1072 = vmatprep.subr.mxu0 0.0
      %1073 = vmatpush1.msra.mxu0 %v701
      %1074 = vmatprep.subr.mxu0 0.0
      %1075 = vmatpush2.msra.mxu0 0.0
      %1076 = vmatprep.subr.mxu0 0.0
      %1077 = vmatpush2.msra.mxu0 0.0
      %1078 = vmatprep.subr.mxu0 0.0
      %1079 = vmatpush2.msra.mxu0 0.0
      %1080 = vmatprep.subr.mxu0 0.0
      %1081 = vmatpush2.msra.mxu0 0.0
      %1082 = vmatprep.subr.mxu0 0.0
      %1083 = vmatpush2.msra.mxu0 0.0
      %1084 = vmatprep.subr.mxu0 0.0
      %1085 = vmatpush2.msra.mxu0 0.0
      %1086 = vmatprep.subr.mxu0 0.0
      %1087 = vmatpush2.msra.mxu0 0.0
      %1088 = vmatprep.subr.mxu0 0.0
      %1089 = vmatpush2.msra.mxu0 0.0
      %1090 = vmatprep.subr.mxu0 0.0
      %1091 = vmatpush2.msra.mxu0 0.0
      %1092 = vmatprep.subr.mxu0 0.0
      %1093 = vmatpush2.msra.mxu0 0.0
      %1094 = vmatprep.subr.mxu0 0.0
      %1095 = vmatpush2.msra.mxu0 0.0
      %1096 = vmatprep.subr.mxu0 0.0
      %1097 = vmatpush2.msra.mxu0 0.0
      %1098 = vmatprep.subr.mxu0 0.0
      %1099 = vmatpush2.msra.mxu0 0.0
      %1100 = vmatprep.subr.mxu0 0.0
      %1101 = vmatpush2.msra.mxu0 0.0
      %1102 = vmatprep.subr.mxu0 0.0
      %1103 = vmatpush2.msra.mxu0 0.0
      %1104 = vmatprep.subr.mxu0 0.0
      %1105 = vmatpush2.msra.mxu0 0.0
      %1106 = vmatprep.mubr.f32.mxu0 0.0
      %1107 = vmatmul.mubr.f32.gmra.mxu0 %v1040
      %v1108 = vpop.f32.mrf.mxu0
      %v1109 = vadd.f32 0.0, %v1108
      %v1110 = vpop.f32.mrf.mxu0
      %1111 = vdwg.mxu0
      %v1113 = vsel %vm708, %v869, 0
      %1115 = vmatprep.subr.mxu0 0.0
      %1116 = vmatpush1.msra.mxu0 0.0
      %1117 = vmatprep.subr.mxu0 0.0
      %1118 = vmatpush1.msra.mxu0 0.0
      %1119 = vmatprep.subr.mxu0 0.0
      %1120 = vmatpush1.msra.mxu0 0.0
      %1121 = vmatprep.subr.mxu0 0.0
      %1122 = vmatpush1.msra.mxu0 0.0
      %1123 = vmatprep.subr.mxu0 0.0
      %1124 = vmatpush1.msra.mxu0 0.0
      %1125 = vmatprep.subr.mxu0 0.0
      %1126 = vmatpush1.msra.mxu0 0.0
      %1127 = vmatprep.subr.mxu0 0.0
      %1128 = vmatpush1.msra.mxu0 0.0
      %1129 = vmatprep.subr.mxu0 0.0
      %1130 = vmatpush1.msra.mxu0 0.0
      %1131 = vmatprep.subr.mxu0 0.0
      %1132 = vmatpush1.msra.mxu0 0.0
      %1133 = vmatprep.subr.mxu0 0.0
      %1134 = vmatpush1.msra.mxu0 0.0
      %1135 = vmatprep.subr.mxu0 0.0
      %1136 = vmatpush1.msra.mxu0 0.0
      %1137 = vmatprep.subr.mxu0 0.0
      %1138 = vmatpush1.msra.mxu0 0.0
      %1139 = vmatprep.subr.mxu0 0.0
      %1140 = vmatpush1.msra.mxu0 0.0
      %1141 = vmatprep.subr.mxu0 0.0
      %1142 = vmatpush1.msra.mxu0 0.0
      %1143 = vmatprep.subr.mxu0 0.0
      %1144 = vmatpush1.msra.mxu0 0.0
      %1145 = vmatprep.subr.mxu0 0.0
      %1146 = vmatpush1.msra.mxu0 %v700
      %1147 = vmatprep.subr.mxu0 0.0
      %1148 = vmatpush2.msra.mxu0 0.0
      %1149 = vmatprep.subr.mxu0 0.0
      %1150 = vmatpush2.msra.mxu0 0.0
      %1151 = vmatprep.subr.mxu0 0.0
      %1152 = vmatpush2.msra.mxu0 0.0
      %1153 = vmatprep.subr.mxu0 0.0
      %1154 = vmatpush2.msra.mxu0 0.0
      %1155 = vmatprep.subr.mxu0 0.0
      %1156 = vmatpush2.msra.mxu0 0.0
      %1157 = vmatprep.subr.mxu0 0.0
      %1158 = vmatpush2.msra.mxu0 0.0
      %1159 = vmatprep.subr.mxu0 0.0
      %1160 = vmatpush2.msra.mxu0 0.0
      %1161 = vmatprep.subr.mxu0 0.0
      %1162 = vmatpush2.msra.mxu0 0.0
      %1163 = vmatprep.subr.mxu0 0.0
      %1164 = vmatpush2.msra.mxu0 0.0
      %1165 = vmatprep.subr.mxu0 0.0
      %1166 = vmatpush2.msra.mxu0 0.0
      %1167 = vmatprep.subr.mxu0 0.0
      %1168 = vmatpush2.msra.mxu0 0.0
      %1169 = vmatprep.subr.mxu0 0.0
      %1170 = vmatpush2.msra.mxu0 0.0
      %1171 = vmatprep.subr.mxu0 0.0
      %1172 = vmatpush2.msra.mxu0 0.0
      %1173 = vmatprep.subr.mxu0 0.0
      %1174 = vmatpush2.msra.mxu0 0.0
      %1175 = vmatprep.subr.mxu0 0.0
      %1176 = vmatpush2.msra.mxu0 0.0
      %1177 = vmatprep.subr.mxu0 0.0
      %1178 = vmatpush2.msra.mxu0 0.0
      %1179 = vmatprep.mubr.f32.mxu0 0.0
      %1180 = vmatmul.mubr.f32.gmra.mxu0 %v1113
      %v1181 = vpop.f32.mrf.mxu0
      %v1182 = vadd.f32 %v1109, %v1181
      %v1183 = vpop.f32.mrf.mxu0
      %1184 = vdwg.mxu0
      %1185 = vrot.lane.b32.xlu0 %v697, 112
      %v1186 = vpop.permute.xlu0 %1185
      %1187 = vrot.lane.b32.xlu0 %v697, 80
      %v1188 = vpop.permute.xlu0 %1187
      %v1189 = vsel %vm708, %v1186, 0
      %v1191 = vsel %vm708, %v1188, 0
      %1193 = vmatprep.subr.mxu0 0.0
      %1194 = vmatpush1.xpose.msra.mxu0 0.0
      %1195 = vmatprep.subr.mxu0 0.0
      %1196 = vmatpush1.xpose.msra.mxu0 0.0
      %1197 = vmatprep.subr.mxu0 0.0
      %1198 = vmatpush1.xpose.msra.mxu0 0.0
      %1199 = vmatprep.subr.mxu0 0.0
      %1200 = vmatpush1.xpose.msra.mxu0 0.0
      %1201 = vmatprep.subr.mxu0 0.0
      %1202 = vmatpush1.xpose.msra.mxu0 0.0
      %1203 = vmatprep.subr.mxu0 0.0
      %1204 = vmatpush1.xpose.msra.mxu0 0.0
      %1205 = vmatprep.subr.mxu0 0.0
      %1206 = vmatpush1.xpose.msra.mxu0 0.0
      %1207 = vmatprep.subr.mxu0 0.0
      %1208 = vmatpush1.xpose.msra.mxu0 0.0
      %1209 = vmatprep.subr.mxu0 0.0
      %1210 = vmatpush1.xpose.msra.mxu0 0.0
      %1211 = vmatprep.subr.mxu0 0.0
      %1212 = vmatpush1.xpose.msra.mxu0 0.0
      %1213 = vmatprep.subr.mxu0 0.0
      %1214 = vmatpush1.xpose.msra.mxu0 0.0
      %1215 = vmatprep.subr.mxu0 0.0
      %1216 = vmatpush1.xpose.msra.mxu0 0.0
      %1217 = vmatprep.subr.mxu0 0.0
      %1218 = vmatpush1.xpose.msra.mxu0 0.0
      %1219 = vmatprep.subr.mxu0 0.0
      %1220 = vmatpush1.xpose.msra.mxu0 0.0
      %1221 = vmatprep.subr.mxu0 0.0
      %1222 = vmatpush1.xpose.msra.mxu0 0.0
      %1223 = vmatprep.subr.mxu0 0.0
      %1224 = vmatpush1.xpose.msra.mxu0 %v1191
      %1225 = vmatprep.subr.mxu0 0.0
      %1226 = vmatpush2.xpose.msra.mxu0 0.0
      %1227 = vmatprep.subr.mxu0 0.0
      %1228 = vmatpush2.xpose.msra.mxu0 0.0
      %1229 = vmatprep.subr.mxu0 0.0
      %1230 = vmatpush2.xpose.msra.mxu0 0.0
      %1231 = vmatprep.subr.mxu0 0.0
      %1232 = vmatpush2.xpose.msra.mxu0 0.0
      %1233 = vmatprep.subr.mxu0 0.0
      %1234 = vmatpush2.xpose.msra.mxu0 0.0
      %1235 = vmatprep.subr.mxu0 0.0
      %1236 = vmatpush2.xpose.msra.mxu0 0.0
      %1237 = vmatprep.subr.mxu0 0.0
      %1238 = vmatpush2.xpose.msra.mxu0 0.0
      %1239 = vmatprep.subr.mxu0 0.0
      %1240 = vmatpush2.xpose.msra.mxu0 0.0
      %1241 = vmatprep.subr.mxu0 0.0
      %1242 = vmatpush2.xpose.msra.mxu0 0.0
      %1243 = vmatprep.subr.mxu0 0.0
      %1244 = vmatpush2.xpose.msra.mxu0 0.0
      %1245 = vmatprep.subr.mxu0 0.0
      %1246 = vmatpush2.xpose.msra.mxu0 0.0
      %1247 = vmatprep.subr.mxu0 0.0
      %1248 = vmatpush2.xpose.msra.mxu0 0.0
      %1249 = vmatprep.subr.mxu0 0.0
      %1250 = vmatpush2.xpose.msra.mxu0 0.0
      %1251 = vmatprep.subr.mxu0 0.0
      %1252 = vmatpush2.xpose.msra.mxu0 0.0
      %1253 = vmatprep.subr.mxu0 0.0
      %1254 = vmatpush2.xpose.msra.mxu0 0.0
      %1255 = vmatprep.subr.mxu0 0.0
      %1256 = vmatpush2.xpose.msra.mxu0 0.0
      %1257 = vmatprep.mubr.f32.mxu0 0.0
      %1258 = vmatmul.mubr.f32.gmra.mxu0 %v1189
      %v1259 = vpop.f32.mrf.mxu0
      %v1260 = vadd.f32 0.0, %v1259
      %v1261 = vpop.f32.mrf.mxu0
      %1262 = vdwg.mxu0
      %v1263 = vmul.f32 %v1260, 0.35355338
      %v1264 = vsel %vm621, %v1263, -1e+30
      %v1265 = vsel %vm708, %v1264, -inf
      %1266 = vmax.xlane.f32.xlu0 %v1265
      %v1267 = vpop.xlane.xlu0 %1266
      %v1268 = vsub.f32 %v1264, %v1267
      %v1269 = vmul.f32 %v1268, 1.442695
      %v1270 = vpow.pop %v1269
      %v1271 = vsel %vm708, %v1270, 0.0
      %1272 = vadd.xlane.f32.xlu0 %v1271
      %v1273 = vpop.xlane.xlu0 %1272
      %v1274 = vrcp.pop %v1273
      %v1275 = vmul.f32 %v1270, %v1274
      %1276 = vrot.lane.b32.xlu0 %v697, 48
      %v1277 = vpop.permute.xlu0 %1276
      %v1280 = vsel %vm708, %v1275, 0
      %1282 = vmatprep.subr.mxu0 0.0
      %1283 = vmatpush1.msra.mxu0 0.0
      %1284 = vmatprep.subr.mxu0 0.0
      %1285 = vmatpush1.msra.mxu0 0.0
      %1286 = vmatprep.subr.mxu0 0.0
      %1287 = vmatpush1.msra.mxu0 0.0
      %1288 = vmatprep.subr.mxu0 0.0
      %1289 = vmatpush1.msra.mxu0 0.0
      %1290 = vmatprep.subr.mxu0 0.0
      %1291 = vmatpush1.msra.mxu0 0.0
      %1292 = vmatprep.subr.mxu0 0.0
      %1293 = vmatpush1.msra.mxu0 0.0
      %1294 = vmatprep.subr.mxu0 0.0
      %1295 = vmatpush1.msra.mxu0 0.0
      %1296 = vmatprep.subr.mxu0 0.0
      %1297 = vmatpush1.msra.mxu0 0.0
      %1298 = vmatprep.subr.mxu0 0.0
      %1299 = vmatpush1.msra.mxu0 0.0
      %1300 = vmatprep.subr.mxu0 0.0
      %1301 = vmatpush1.msra.mxu0 0.0
      %1302 = vmatprep.subr.mxu0 0.0
      %1303 = vmatpush1.msra.mxu0 0.0
      %1304 = vmatprep.subr.mxu0 0.0
      %1305 = vmatpush1.msra.mxu0 0.0
      %1306 = vmatprep.subr.mxu0 0.0
      %1307 = vmatpush1.msra.mxu0 0.0
      %1308 = vmatprep.subr.mxu0 0.0
      %1309 = vmatpush1.msra.mxu0 0.0
      %1310 = vmatprep.subr.mxu0 0.0
      %1311 = vmatpush1.msra.mxu0 0.0
      %1312 = vmatprep.subr.mxu0 0.0
      %1313 = vmatpush1.msra.mxu0 %v1277
      %1314 = vmatprep.subr.mxu0 0.0
      %1315 = vmatpush2.msra.mxu0 0.0
      %1316 = vmatprep.subr.mxu0 0.0
      %1317 = vmatpush2.msra.mxu0 0.0
      %1318 = vmatprep.subr.mxu0 0.0
      %1319 = vmatpush2.msra.mxu0 0.0
      %1320 = vmatprep.subr.mxu0 0.0
      %1321 = vmatpush2.msra.mxu0 0.0
      %1322 = vmatprep.subr.mxu0 0.0
      %1323 = vmatpush2.msra.mxu0 0.0
      %1324 = vmatprep.subr.mxu0 0.0
      %1325 = vmatpush2.msra.mxu0 0.0
      %1326 = vmatprep.subr.mxu0 0.0
      %1327 = vmatpush2.msra.mxu0 0.0
      %1328 = vmatprep.subr.mxu0 0.0
      %1329 = vmatpush2.msra.mxu0 0.0
      %1330 = vmatprep.subr.mxu0 0.0
      %1331 = vmatpush2.msra.mxu0 0.0
      %1332 = vmatprep.subr.mxu0 0.0
      %1333 = vmatpush2.msra.mxu0 0.0
      %1334 = vmatprep.subr.mxu0 0.0
      %1335 = vmatpush2.msra.mxu0 0.0
      %1336 = vmatprep.subr.mxu0 0.0
      %1337 = vmatpush2.msra.mxu0 0.0
      %1338 = vmatprep.subr.mxu0 0.0
      %1339 = vmatpush2.msra.mxu0 0.0
      %1340 = vmatprep.subr.mxu0 0.0
      %1341 = vmatpush2.msra.mxu0 0.0
      %1342 = vmatprep.subr.mxu0 0.0
      %1343 = vmatpush2.msra.mxu0 0.0
      %1344 = vmatprep.subr.mxu0 0.0
      %1345 = vmatpush2.msra.mxu0 0.0
      %1346 = vmatprep.mubr.f32.mxu0 0.0
      %1347 = vmatmul.mubr.f32.gmra.mxu0 %v1280
      %v1348 = vpop.f32.mrf.mxu0
      %v1349 = vadd.f32 0.0, %v1348
      %v1350 = vpop.f32.mrf.mxu0
      %1351 = vdwg.mxu0
      %v1353 = vsel %vm708, %v1349, 0
      %1355 = vmatprep.subr.mxu0 0.0
      %1356 = vmatpush1.msra.mxu0 0.0
      %1357 = vmatprep.subr.mxu0 0.0
      %1358 = vmatpush1.msra.mxu0 0.0
      %1359 = vmatprep.subr.mxu0 0.0
      %1360 = vmatpush1.msra.mxu0 0.0
      %1361 = vmatprep.subr.mxu0 0.0
      %1362 = vmatpush1.msra.mxu0 0.0
      %1363 = vmatprep.subr.mxu0 0.0
      %1364 = vmatpush1.msra.mxu0 0.0
      %1365 = vmatprep.subr.mxu0 0.0
      %1366 = vmatpush1.msra.mxu0 0.0
      %1367 = vmatprep.subr.mxu0 0.0
      %1368 = vmatpush1.msra.mxu0 0.0
      %1369 = vmatprep.subr.mxu0 0.0
      %1370 = vmatpush1.msra.mxu0 0.0
      %1371 = vmatprep.subr.mxu0 0.0
      %1372 = vmatpush1.msra.mxu0 0.0
      %1373 = vmatprep.subr.mxu0 0.0
      %1374 = vmatpush1.msra.mxu0 0.0
      %1375 = vmatprep.subr.mxu0 0.0
      %1376 = vmatpush1.msra.mxu0 0.0
      %1377 = vmatprep.subr.mxu0 0.0
      %1378 = vmatpush1.msra.mxu0 0.0
      %1379 = vmatprep.subr.mxu0 0.0
      %1380 = vmatpush1.msra.mxu0 0.0
      %1381 = vmatprep.subr.mxu0 0.0
      %1382 = vmatpush1.msra.mxu0 0.0
      %1383 = vmatprep.subr.mxu0 0.0
      %1384 = vmatpush1.msra.mxu0 0.0
      %1385 = vmatprep.subr.mxu0 0.0
      %1386 = vmatpush1.msra.mxu0 %v702
      %1387 = vmatprep.subr.mxu0 0.0
      %1388 = vmatpush2.msra.mxu0 0.0
      %1389 = vmatprep.subr.mxu0 0.0
      %1390 = vmatpush2.msra.mxu0 0.0
      %1391 = vmatprep.subr.mxu0 0.0
      %1392 = vmatpush2.msra.mxu0 0.0
      %1393 = vmatprep.subr.mxu0 0.0
      %1394 = vmatpush2.msra.mxu0 0.0
      %1395 = vmatprep.subr.mxu0 0.0
      %1396 = vmatpush2.msra.mxu0 0.0
      %1397 = vmatprep.subr.mxu0 0.0
      %1398 = vmatpush2.msra.mxu0 0.0
      %1399 = vmatprep.subr.mxu0 0.0
      %1400 = vmatpush2.msra.mxu0 0.0
      %1401 = vmatprep.subr.mxu0 0.0
      %1402 = vmatpush2.msra.mxu0 0.0
      %1403 = vmatprep.subr.mxu0 0.0
      %1404 = vmatpush2.msra.mxu0 0.0
      %1405 = vmatprep.subr.mxu0 0.0
      %1406 = vmatpush2.msra.mxu0 0.0
      %1407 = vmatprep.subr.mxu0 0.0
      %1408 = vmatpush2.msra.mxu0 0.0
      %1409 = vmatprep.subr.mxu0 0.0
      %1410 = vmatpush2.msra.mxu0 0.0
      %1411 = vmatprep.subr.mxu0 0.0
      %1412 = vmatpush2.msra.mxu0 0.0
      %1413 = vmatprep.subr.mxu0 0.0
      %1414 = vmatpush2.msra.mxu0 0.0
      %1415 = vmatprep.subr.mxu0 0.0
      %1416 = vmatpush2.msra.mxu0 0.0
      %1417 = vmatprep.subr.mxu0 0.0
      %1418 = vmatpush2.msra.mxu0 0.0
      %1419 = vmatprep.mubr.f32.mxu0 0.0
      %1420 = vmatmul.mubr.f32.gmra.mxu0 %v1353
      %v1421 = vpop.f32.mrf.mxu0
      %v1422 = vadd.f32 0.0, %v1421
      %v1423 = vpop.f32.mrf.mxu0
      %1424 = vdwg.mxu0
      %v1425 = vadd.f32 %v1182, %v1422
      %1426 = vrot.lane.b32.xlu0 %v697, 104
      %v1427 = vpop.permute.xlu0 %1426
      %1428 = vrot.lane.b32.xlu0 %v697, 72
      %v1429 = vpop.permute.xlu0 %1428
      %v1430 = vsel %vm708, %v1427, 0
      %v1432 = vsel %vm708, %v1429, 0
      %1434 = vmatprep.subr.mxu0 0.0
      %1435 = vmatpush1.xpose.msra.mxu0 0.0
      %1436 = vmatprep.subr.mxu0 0.0
      %1437 = vmatpush1.xpose.msra.mxu0 0.0
      %1438 = vmatprep.subr.mxu0 0.0
      %1439 = vmatpush1.xpose.msra.mxu0 0.0
      %1440 = vmatprep.subr.mxu0 0.0
      %1441 = vmatpush1.xpose.msra.mxu0 0.0
      %1442 = vmatprep.subr.mxu0 0.0
      %1443 = vmatpush1.xpose.msra.mxu0 0.0
      %1444 = vmatprep.subr.mxu0 0.0
      %1445 = vmatpush1.xpose.msra.mxu0 0.0
      %1446 = vmatprep.subr.mxu0 0.0
      %1447 = vmatpush1.xpose.msra.mxu0 0.0
      %1448 = vmatprep.subr.mxu0 0.0
      %1449 = vmatpush1.xpose.msra.mxu0 0.0
      %1450 = vmatprep.subr.mxu0 0.0
      %1451 = vmatpush1.xpose.msra.mxu0 0.0
      %1452 = vmatprep.subr.mxu0 0.0
      %1453 = vmatpush1.xpose.msra.mxu0 0.0
      %1454 = vmatprep.subr.mxu0 0.0
      %1455 = vmatpush1.xpose.msra.mxu0 0.0
      %1456 = vmatprep.subr.mxu0 0.0
      %1457 = vmatpush1.xpose.msra.mxu0 0.0
      %1458 = vmatprep.subr.mxu0 0.0
      %1459 = vmatpush1.xpose.msra.mxu0 0.0
      %1460 = vmatprep.subr.mxu0 0.0
      %1461 = vmatpush1.xpose.msra.mxu0 0.0
      %1462 = vmatprep.subr.mxu0 0.0
      %1463 = vmatpush1.xpose.msra.mxu0 0.0
      %1464 = vmatprep.subr.mxu0 0.0
      %1465 = vmatpush1.xpose.msra.mxu0 %v1432
      %1466 = vmatprep.subr.mxu0 0.0
      %1467 = vmatpush2.xpose.msra.mxu0 0.0
      %1468 = vmatprep.subr.mxu0 0.0
      %1469 = vmatpush2.xpose.msra.mxu0 0.0
      %1470 = vmatprep.subr.mxu0 0.0
      %1471 = vmatpush2.xpose.msra.mxu0 0.0
      %1472 = vmatprep.subr.mxu0 0.0
      %1473 = vmatpush2.xpose.msra.mxu0 0.0
      %1474 = vmatprep.subr.mxu0 0.0
      %1475 = vmatpush2.xpose.msra.mxu0 0.0
      %1476 = vmatprep.subr.mxu0 0.0
      %1477 = vmatpush2.xpose.msra.mxu0 0.0
      %1478 = vmatprep.subr.mxu0 0.0
      %1479 = vmatpush2.xpose.msra.mxu0 0.0
      %1480 = vmatprep.subr.mxu0 0.0
      %1481 = vmatpush2.xpose.msra.mxu0 0.0
      %1482 = vmatprep.subr.mxu0 0.0
      %1483 = vmatpush2.xpose.msra.mxu0 0.0
      %1484 = vmatprep.subr.mxu0 0.0
      %1485 = vmatpush2.xpose.msra.mxu0 0.0
      %1486 = vmatprep.subr.mxu0 0.0
      %1487 = vmatpush2.xpose.msra.mxu0 0.0
      %1488 = vmatprep.subr.mxu0 0.0
      %1489 = vmatpush2.xpose.msra.mxu0 0.0
      %1490 = vmatprep.subr.mxu0 0.0
      %1491 = vmatpush2.xpose.msra.mxu0 0.0
      %1492 = vmatprep.subr.mxu0 0.0
      %1493 = vmatpush2.xpose.msra.mxu0 0.0
      %1494 = vmatprep.subr.mxu0 0.0
      %1495 = vmatpush2.xpose.msra.mxu0 0.0
      %1496 = vmatprep.subr.mxu0 0.0
      %1497 = vmatpush2.xpose.msra.mxu0 0.0
      %1498 = vmatprep.mubr.f32.mxu0 0.0
      %1499 = vmatmul.mubr.f32.gmra.mxu0 %v1430
      %v1500 = vpop.f32.mrf.mxu0
      %v1501 = vadd.f32 0.0, %v1500
      %v1502 = vpop.f32.mrf.mxu0
      %1503 = vdwg.mxu0
      %v1504 = vmul.f32 %v1501, 0.35355338
      %v1505 = vsel %vm621, %v1504, -1e+30
      %v1506 = vsel %vm708, %v1505, -inf
      %1507 = vmax.xlane.f32.xlu0 %v1506
      %v1508 = vpop.xlane.xlu0 %1507
      %v1509 = vsub.f32 %v1505, %v1508
      %v1510 = vmul.f32 %v1509, 1.442695
      %v1511 = vpow.pop %v1510
      %v1512 = vsel %vm708, %v1511, 0.0
      %1513 = vadd.xlane.f32.xlu0 %v1512
      %v1514 = vpop.xlane.xlu0 %1513
      %v1515 = vrcp.pop %v1514
      %v1516 = vmul.f32 %v1511, %v1515
      %1517 = vrot.lane.b32.xlu0 %v697, 40
      %v1518 = vpop.permute.xlu0 %1517
      %v1521 = vsel %vm708, %v1516, 0
      %1523 = vmatprep.subr.mxu0 0.0
      %1524 = vmatpush1.msra.mxu0 0.0
      %1525 = vmatprep.subr.mxu0 0.0
      %1526 = vmatpush1.msra.mxu0 0.0
      %1527 = vmatprep.subr.mxu0 0.0
      %1528 = vmatpush1.msra.mxu0 0.0
      %1529 = vmatprep.subr.mxu0 0.0
      %1530 = vmatpush1.msra.mxu0 0.0
      %1531 = vmatprep.subr.mxu0 0.0
      %1532 = vmatpush1.msra.mxu0 0.0
      %1533 = vmatprep.subr.mxu0 0.0
      %1534 = vmatpush1.msra.mxu0 0.0
      %1535 = vmatprep.subr.mxu0 0.0
      %1536 = vmatpush1.msra.mxu0 0.0
      %1537 = vmatprep.subr.mxu0 0.0
      %1538 = vmatpush1.msra.mxu0 0.0
      %1539 = vmatprep.subr.mxu0 0.0
      %1540 = vmatpush1.msra.mxu0 0.0
      %1541 = vmatprep.subr.mxu0 0.0
      %1542 = vmatpush1.msra.mxu0 0.0
      %1543 = vmatprep.subr.mxu0 0.0
      %1544 = vmatpush1.msra.mxu0 0.0
      %1545 = vmatprep.subr.mxu0 0.0
      %1546 = vmatpush1.msra.mxu0 0.0
      %1547 = vmatprep.subr.mxu0 0.0
      %1548 = vmatpush1.msra.mxu0 0.0
      %1549 = vmatprep.subr.mxu0 0.0
      %1550 = vmatpush1.msra.mxu0 0.0
      %1551 = vmatprep.subr.mxu0 0.0
      %1552 = vmatpush1.msra.mxu0 0.0
      %1553 = vmatprep.subr.mxu0 0.0
      %1554 = vmatpush1.msra.mxu0 %v1518
      %1555 = vmatprep.subr.mxu0 0.0
      %1556 = vmatpush2.msra.mxu0 0.0
      %1557 = vmatprep.subr.mxu0 0.0
      %1558 = vmatpush2.msra.mxu0 0.0
      %1559 = vmatprep.subr.mxu0 0.0
      %1560 = vmatpush2.msra.mxu0 0.0
      %1561 = vmatprep.subr.mxu0 0.0
      %1562 = vmatpush2.msra.mxu0 0.0
      %1563 = vmatprep.subr.mxu0 0.0
      %1564 = vmatpush2.msra.mxu0 0.0
      %1565 = vmatprep.subr.mxu0 0.0
      %1566 = vmatpush2.msra.mxu0 0.0
      %1567 = vmatprep.subr.mxu0 0.0
      %1568 = vmatpush2.msra.mxu0 0.0
      %1569 = vmatprep.subr.mxu0 0.0
      %1570 = vmatpush2.msra.mxu0 0.0
      %1571 = vmatprep.subr.mxu0 0.0
      %1572 = vmatpush2.msra.mxu0 0.0
      %1573 = vmatprep.subr.mxu0 0.0
      %1574 = vmatpush2.msra.mxu0 0.0
      %1575 = vmatprep.subr.mxu0 0.0
      %1576 = vmatpush2.msra.mxu0 0.0
      %1577 = vmatprep.subr.mxu0 0.0
      %1578 = vmatpush2.msra.mxu0 0.0
      %1579 = vmatprep.subr.mxu0 0.0
      %1580 = vmatpush2.msra.mxu0 0.0
      %1581 = vmatprep.subr.mxu0 0.0
      %1582 = vmatpush2.msra.mxu0 0.0
      %1583 = vmatprep.subr.mxu0 0.0
      %1584 = vmatpush2.msra.mxu0 0.0
      %1585 = vmatprep.subr.mxu0 0.0
      %1586 = vmatpush2.msra.mxu0 0.0
      %1587 = vmatprep.mubr.f32.mxu0 0.0
      %1588 = vmatmul.mubr.f32.gmra.mxu0 %v1521
      %v1589 = vpop.f32.mrf.mxu0
      %v1590 = vadd.f32 0.0, %v1589
      %v1591 = vpop.f32.mrf.mxu0
      %1592 = vdwg.mxu0
      %v1594 = vsel %vm708, %v1590, 0
      %1596 = vmatprep.subr.mxu0 0.0
      %1597 = vmatpush1.msra.mxu0 0.0
      %1598 = vmatprep.subr.mxu0 0.0
      %1599 = vmatpush1.msra.mxu0 0.0
      %1600 = vmatprep.subr.mxu0 0.0
      %1601 = vmatpush1.msra.mxu0 0.0
      %1602 = vmatprep.subr.mxu0 0.0
      %1603 = vmatpush1.msra.mxu0 0.0
      %1604 = vmatprep.subr.mxu0 0.0
      %1605 = vmatpush1.msra.mxu0 0.0
      %1606 = vmatprep.subr.mxu0 0.0
      %1607 = vmatpush1.msra.mxu0 0.0
      %1608 = vmatprep.subr.mxu0 0.0
      %1609 = vmatpush1.msra.mxu0 0.0
      %1610 = vmatprep.subr.mxu0 0.0
      %1611 = vmatpush1.msra.mxu0 0.0
      %1612 = vmatprep.subr.mxu0 0.0
      %1613 = vmatpush1.msra.mxu0 0.0
      %1614 = vmatprep.subr.mxu0 0.0
      %1615 = vmatpush1.msra.mxu0 0.0
      %1616 = vmatprep.subr.mxu0 0.0
      %1617 = vmatpush1.msra.mxu0 0.0
      %1618 = vmatprep.subr.mxu0 0.0
      %1619 = vmatpush1.msra.mxu0 0.0
      %1620 = vmatprep.subr.mxu0 0.0
      %1621 = vmatpush1.msra.mxu0 0.0
      %1622 = vmatprep.subr.mxu0 0.0
      %1623 = vmatpush1.msra.mxu0 0.0
      %1624 = vmatprep.subr.mxu0 0.0
      %1625 = vmatpush1.msra.mxu0 0.0
      %1626 = vmatprep.subr.mxu0 0.0
      %1627 = vmatpush1.msra.mxu0 %v703
      %1628 = vmatprep.subr.mxu0 0.0
      %1629 = vmatpush2.msra.mxu0 0.0
      %1630 = vmatprep.subr.mxu0 0.0
      %1631 = vmatpush2.msra.mxu0 0.0
      %1632 = vmatprep.subr.mxu0 0.0
      %1633 = vmatpush2.msra.mxu0 0.0
      %1634 = vmatprep.subr.mxu0 0.0
      %1635 = vmatpush2.msra.mxu0 0.0
      %1636 = vmatprep.subr.mxu0 0.0
      %1637 = vmatpush2.msra.mxu0 0.0
      %1638 = vmatprep.subr.mxu0 0.0
      %1639 = vmatpush2.msra.mxu0 0.0
      %1640 = vmatprep.subr.mxu0 0.0
      %1641 = vmatpush2.msra.mxu0 0.0
      %1642 = vmatprep.subr.mxu0 0.0
      %1643 = vmatpush2.msra.mxu0 0.0
      %1644 = vmatprep.subr.mxu0 0.0
      %1645 = vmatpush2.msra.mxu0 0.0
      %1646 = vmatprep.subr.mxu0 0.0
      %1647 = vmatpush2.msra.mxu0 0.0
      %1648 = vmatprep.subr.mxu0 0.0
      %1649 = vmatpush2.msra.mxu0 0.0
      %1650 = vmatprep.subr.mxu0 0.0
      %1651 = vmatpush2.msra.mxu0 0.0
      %1652 = vmatprep.subr.mxu0 0.0
      %1653 = vmatpush2.msra.mxu0 0.0
      %1654 = vmatprep.subr.mxu0 0.0
      %1655 = vmatpush2.msra.mxu0 0.0
      %1656 = vmatprep.subr.mxu0 0.0
      %1657 = vmatpush2.msra.mxu0 0.0
      %1658 = vmatprep.subr.mxu0 0.0
      %1659 = vmatpush2.msra.mxu0 0.0
      %1660 = vmatprep.mubr.f32.mxu0 0.0
      %1661 = vmatmul.mubr.f32.gmra.mxu0 %v1594
      %v1662 = vpop.f32.mrf.mxu0
      %v1663 = vadd.f32 0.0, %v1662
      %v1664 = vpop.f32.mrf.mxu0
      %1665 = vdwg.mxu0
      %v1666 = vadd.f32 %v1425, %v1663
      %v1668 = vlaneseq
      %v1669 = vshrl.u32 %v1668, 7
      %v1670 = vsub.s32 0, %v1669
      %v1671 = vrot.slane %v704, %v1670
      %v1673 = vadd.f32 %v1666, %v1671
      %v1674 = vadd.f32 %v1673, %v615
      %v1675 = vld [vmem:[%s5] sm:$0x1]
      %v1676 = vld [vmem:[%s6] sm:$0x1]
      %v1677 = vsel %vm626, %v1674, 0.0
      %1678 = vadd.xlane.f32.xlu0 %v1677
      %v1679 = vpop.xlane.xlu0 %1678
      %v1680 = vrcp.pop 32.0
      %v1681 = vmul.f32 %v1679, %v1680
      %v1682 = vsub.f32 %v1674, %v1681
      %v1683 = vmul.f32 %v1682, %v1682
      %v1684 = vsel %vm626, %v1683, 0.0
      %1685 = vadd.xlane.f32.xlu0 %v1684
      %v1686 = vpop.xlane.xlu0 %1685
      %v1687 = vmul.f32 %v1686, %v1680
      %v1688 = vadd.f32 %v1687, 1e-05
      %v1689 = vrsqrt.pop %v1688
      %v1690 = vmul.f32 %v1682, %v1689
      %v1692 = vlaneseq
      %v1693 = vshrl.u32 %v1692, 7
      %v1694 = vsub.s32 0, %v1693
      %v1695 = vrot.slane %v1675, %v1694
      %v1697 = vmul.f32 %v1690, %v1695
      %v1699 = vlaneseq
      %v1700 = vshrl.u32 %v1699, 7
      %v1701 = vsub.s32 0, %v1700
      %v1702 = vrot.slane %v1676, %v1701
      %v1704 = vadd.f32 %v1697, %v1702
      %v1705 = vld [vmem:[%s7] sm:$0xff]
      %v1706 = vld [vmem:[%s7 + $0x8] sm:$0xff]
      %v1707 = vld [vmem:[%s7 + $0x10] sm:$0xff]
      %v1708 = vld [vmem:[%s7 + $0x18] sm:$0xff]
      %v1710 = vsel %vm626, %v1704, 0
      %1712 = vmatprep.subr.mxu0 0.0
      %1713 = vmatpush1.msra.mxu0 0.0
      %1714 = vmatprep.subr.mxu0 0.0
      %1715 = vmatpush1.msra.mxu0 0.0
      %1716 = vmatprep.subr.mxu0 0.0
      %1717 = vmatpush1.msra.mxu0 0.0
      %1718 = vmatprep.subr.mxu0 0.0
      %1719 = vmatpush1.msra.mxu0 0.0
      %1720 = vmatprep.subr.mxu0 0.0
      %1721 = vmatpush1.msra.mxu0 0.0
      %1722 = vmatprep.subr.mxu0 0.0
      %1723 = vmatpush1.msra.mxu0 0.0
      %1724 = vmatprep.subr.mxu0 0.0
      %1725 = vmatpush1.msra.mxu0 0.0
      %1726 = vmatprep.subr.mxu0 0.0
      %1727 = vmatpush1.msra.mxu0 0.0
      %1728 = vmatprep.subr.mxu0 0.0
      %1729 = vmatpush1.msra.mxu0 0.0
      %1730 = vmatprep.subr.mxu0 0.0
      %1731 = vmatpush1.msra.mxu0 0.0
      %1732 = vmatprep.subr.mxu0 0.0
      %1733 = vmatpush1.msra.mxu0 0.0
      %1734 = vmatprep.subr.mxu0 0.0
      %1735 = vmatpush1.msra.mxu0 0.0
      %1736 = vmatprep.subr.mxu0 0.0
      %1737 = vmatpush1.msra.mxu0 %v1708
      %1738 = vmatprep.subr.mxu0 0.0
      %1739 = vmatpush1.msra.mxu0 %v1707
      %1740 = vmatprep.subr.mxu0 0.0
      %1741 = vmatpush1.msra.mxu0 %v1706
      %1742 = vmatprep.subr.mxu0 0.0
      %1743 = vmatpush1.msra.mxu0 %v1705
      %1744 = vmatprep.subr.mxu0 0.0
      %1745 = vmatpush2.msra.mxu0 0.0
      %1746 = vmatprep.subr.mxu0 0.0
      %1747 = vmatpush2.msra.mxu0 0.0
      %1748 = vmatprep.subr.mxu0 0.0
      %1749 = vmatpush2.msra.mxu0 0.0
      %1750 = vmatprep.subr.mxu0 0.0
      %1751 = vmatpush2.msra.mxu0 0.0
      %1752 = vmatprep.subr.mxu0 0.0
      %1753 = vmatpush2.msra.mxu0 0.0
      %1754 = vmatprep.subr.mxu0 0.0
      %1755 = vmatpush2.msra.mxu0 0.0
      %1756 = vmatprep.subr.mxu0 0.0
      %1757 = vmatpush2.msra.mxu0 0.0
      %1758 = vmatprep.subr.mxu0 0.0
      %1759 = vmatpush2.msra.mxu0 0.0
      %1760 = vmatprep.subr.mxu0 0.0
      %1761 = vmatpush2.msra.mxu0 0.0
      %1762 = vmatprep.subr.mxu0 0.0
      %1763 = vmatpush2.msra.mxu0 0.0
      %1764 = vmatprep.subr.mxu0 0.0
      %1765 = vmatpush2.msra.mxu0 0.0
      %1766 = vmatprep.subr.mxu0 0.0
      %1767 = vmatpush2.msra.mxu0 0.0
      %1768 = vmatprep.subr.mxu0 0.0
      %1769 = vmatpush2.msra.mxu0 0.0
      %1770 = vmatprep.subr.mxu0 0.0
      %1771 = vmatpush2.msra.mxu0 0.0
      %1772 = vmatprep.subr.mxu0 0.0
      %1773 = vmatpush2.msra.mxu0 0.0
      %1774 = vmatprep.subr.mxu0 0.0
      %1775 = vmatpush2.msra.mxu0 0.0
      %1776 = vmatprep.mubr.f32.mxu0 0.0
      %1777 = vmatmul.mubr.f32.gmra.mxu0 %v1710
      %v1778 = vpop.f32.mrf.mxu0
      %v1779 = vadd.f32 0.0, %v1778
      %v1780 = vpop.f32.mrf.mxu0
      %1781 = vdwg.mxu0
      %v1782 = vld [vmem:[%s8] sm:$0xff]
      %v1783 = vld [vmem:[%s8 + $0x8] sm:$0xff]
      %v1784 = vld [vmem:[%s8 + $0x10] sm:$0xff]
      %v1785 = vld [vmem:[%s8 + $0x18] sm:$0xff]
      %v1787 = vsel %vm626, %v616, 0
      %1789 = vmatprep.subr.mxu0 0.0
      %1790 = vmatpush1.msra.mxu0 0.0
      %1791 = vmatprep.subr.mxu0 0.0
      %1792 = vmatpush1.msra.mxu0 0.0
      %1793 = vmatprep.subr.mxu0 0.0
      %1794 = vmatpush1.msra.mxu0 0.0
      %1795 = vmatprep.subr.mxu0 0.0
      %1796 = vmatpush1.msra.mxu0 0.0
      %1797 = vmatprep.subr.mxu0 0.0
      %1798 = vmatpush1.msra.mxu0 0.0
      %1799 = vmatprep.subr.mxu0 0.0
      %1800 = vmatpush1.msra.mxu0 0.0
      %1801 = vmatprep.subr.mxu0 0.0
      %1802 = vmatpush1.msra.mxu0 0.0
      %1803 = vmatprep.subr.mxu0 0.0
      %1804 = vmatpush1.msra.mxu0 0.0
      %1805 = vmatprep.subr.mxu0 0.0
      %1806 = vmatpush1.msra.mxu0 0.0
      %1807 = vmatprep.subr.mxu0 0.0
      %1808 = vmatpush1.msra.mxu0 0.0
      %1809 = vmatprep.subr.mxu0 0.0
      %1810 = vmatpush1.msra.mxu0 0.0
      %1811 = vmatprep.subr.mxu0 0.0
      %1812 = vmatpush1.msra.mxu0 0.0
      %1813 = vmatprep.subr.mxu0 0.0
      %1814 = vmatpush1.msra.mxu0 %v1785
      %1815 = vmatprep.subr.mxu0 0.0
      %1816 = vmatpush1.msra.mxu0 %v1784
      %1817 = vmatprep.subr.mxu0 0.0
      %1818 = vmatpush1.msra.mxu0 %v1783
      %1819 = vmatprep.subr.mxu0 0.0
      %1820 = vmatpush1.msra.mxu0 %v1782
      %1821 = vmatprep.subr.mxu0 0.0
      %1822 = vmatpush2.msra.mxu0 0.0
      %1823 = vmatprep.subr.mxu0 0.0
      %1824 = vmatpush2.msra.mxu0 0.0
      %1825 = vmatprep.subr.mxu0 0.0
      %1826 = vmatpush2.msra.mxu0 0.0
      %1827 = vmatprep.subr.mxu0 0.0
      %1828 = vmatpush2.msra.mxu0 0.0
      %1829 = vmatprep.subr.mxu0 0.0
      %1830 = vmatpush2.msra.mxu0 0.0
      %1831 = vmatprep.subr.mxu0 0.0
      %1832 = vmatpush2.msra.mxu0 0.0
      %1833 = vmatprep.subr.mxu0 0.0
      %1834 = vmatpush2.msra.mxu0 0.0
      %1835 = vmatprep.subr.mxu0 0.0
      %1836 = vmatpush2.msra.mxu0 0.0
      %1837 = vmatprep.subr.mxu0 0.0
      %1838 = vmatpush2.msra.mxu0 0.0
      %1839 = vmatprep.subr.mxu0 0.0
      %1840 = vmatpush2.msra.mxu0 0.0
      %1841 = vmatprep.subr.mxu0 0.0
      %1842 = vmatpush2.msra.mxu0 0.0
      %1843 = vmatprep.subr.mxu0 0.0
      %1844 = vmatpush2.msra.mxu0 0.0
      %1845 = vmatprep.subr.mxu0 0.0
      %1846 = vmatpush2.msra.mxu0 0.0
      %1847 = vmatprep.subr.mxu0 0.0
      %1848 = vmatpush2.msra.mxu0 0.0
      %1849 = vmatprep.subr.mxu0 0.0
      %1850 = vmatpush2.msra.mxu0 0.0
      %1851 = vmatprep.subr.mxu0 0.0
      %1852 = vmatpush2.msra.mxu0 0.0
      %1853 = vmatprep.mubr.f32.mxu0 0.0
      %1854 = vmatmul.mubr.f32.gmra.mxu0 %v1787
      %v1855 = vpop.f32.mrf.mxu0
      %v1856 = vadd.f32 0.0, %v1855
      %v1857 = vpop.f32.mrf.mxu0
      %1858 = vdwg.mxu0
      %v1859 = vld [vmem:[%s9] sm:$0xff]
      %v1860 = vld [vmem:[%s9 + $0x8] sm:$0xff]
      %v1861 = vld [vmem:[%s9 + $0x10] sm:$0xff]
      %v1862 = vld [vmem:[%s9 + $0x18] sm:$0xff]
      %v1863 = vld [vmem:[%s10] sm:$0x1]
      %v1865 = vsel %vm708, %v1779, 0
      %v1868 = vsel %vm708, %v1856, 0
      %1870 = vmatprep.subr.mxu0 0.0
      %1871 = vmatpush1.xpose.msra.mxu0 0.0
      %1872 = vmatprep.subr.mxu0 0.0
      %1873 = vmatpush1.xpose.msra.mxu0 0.0
      %1874 = vmatprep.subr.mxu0 0.0
      %1875 = vmatpush1.xpose.msra.mxu0 0.0
      %1876 = vmatprep.subr.mxu0 0.0
      %1877 = vmatpush1.xpose.msra.mxu0 0.0
      %1878 = vmatprep.subr.mxu0 0.0
      %1879 = vmatpush1.xpose.msra.mxu0 0.0
      %1880 = vmatprep.subr.mxu0 0.0
      %1881 = vmatpush1.xpose.msra.mxu0 0.0
      %1882 = vmatprep.subr.mxu0 0.0
      %1883 = vmatpush1.xpose.msra.mxu0 0.0
      %1884 = vmatprep.subr.mxu0 0.0
      %1885 = vmatpush1.xpose.msra.mxu0 0.0
      %1886 = vmatprep.subr.mxu0 0.0
      %1887 = vmatpush1.xpose.msra.mxu0 0.0
      %1888 = vmatprep.subr.mxu0 0.0
      %1889 = vmatpush1.xpose.msra.mxu0 0.0
      %1890 = vmatprep.subr.mxu0 0.0
      %1891 = vmatpush1.xpose.msra.mxu0 0.0
      %1892 = vmatprep.subr.mxu0 0.0
      %1893 = vmatpush1.xpose.msra.mxu0 0.0
      %1894 = vmatprep.subr.mxu0 0.0
      %1895 = vmatpush1.xpose.msra.mxu0 0.0
      %1896 = vmatprep.subr.mxu0 0.0
      %1897 = vmatpush1.xpose.msra.mxu0 0.0
      %1898 = vmatprep.subr.mxu0 0.0
      %1899 = vmatpush1.xpose.msra.mxu0 0.0
      %1900 = vmatprep.subr.mxu0 0.0
      %1901 = vmatpush1.xpose.msra.mxu0 %v1868
      %1902 = vmatprep.subr.mxu0 0.0
      %1903 = vmatpush2.xpose.msra.mxu0 0.0
      %1904 = vmatprep.subr.mxu0 0.0
      %1905 = vmatpush2.xpose.msra.mxu0 0.0
      %1906 = vmatprep.subr.mxu0 0.0
      %1907 = vmatpush2.xpose.msra.mxu0 0.0
      %1908 = vmatprep.subr.mxu0 0.0
      %1909 = vmatpush2.xpose.msra.mxu0 0.0
      %1910 = vmatprep.subr.mxu0 0.0
      %1911 = vmatpush2.xpose.msra.mxu0 0.0
      %1912 = vmatprep.subr.mxu0 0.0
      %1913 = vmatpush2.xpose.msra.mxu0 0.0
      %1914 = vmatprep.subr.mxu0 0.0
      %1915 = vmatpush2.xpose.msra.mxu0 0.0
      %1916 = vmatprep.subr.mxu0 0.0
      %1917 = vmatpush2.xpose.msra.mxu0 0.0
      %1918 = vmatprep.subr.mxu0 0.0
      %1919 = vmatpush2.xpose.msra.mxu0 0.0
      %1920 = vmatprep.subr.mxu0 0.0
      %1921 = vmatpush2.xpose.msra.mxu0 0.0
      %1922 = vmatprep.subr.mxu0 0.0
      %1923 = vmatpush2.xpose.msra.mxu0 0.0
      %1924 = vmatprep.subr.mxu0 0.0
      %1925 = vmatpush2.xpose.msra.mxu0 0.0
      %1926 = vmatprep.subr.mxu0 0.0
      %1927 = vmatpush2.xpose.msra.mxu0 0.0
      %1928 = vmatprep.subr.mxu0 0.0
      %1929 = vmatpush2.xpose.msra.mxu0 0.0
      %1930 = vmatprep.subr.mxu0 0.0
      %1931 = vmatpush2.xpose.msra.mxu0 0.0
      %1932 = vmatprep.subr.mxu0 0.0
      %1933 = vmatpush2.xpose.msra.mxu0 0.0
      %1934 = vmatprep.mubr.f32.mxu0 0.0
      %1935 = vmatmul.mubr.f32.gmra.mxu0 %v1865
      %v1936 = vpop.f32.mrf.mxu0
      %v1937 = vadd.f32 0.0, %v1936
      %v1938 = vpop.f32.mrf.mxu0
      %1939 = vdwg.mxu0
      %v1940 = vmul.f32 %v1937, 0.35355338
      %v1941 = vsel %vm621, %v1940, -1e+30
      %v1942 = vsel %vm708, %v1941, -inf
      %1943 = vmax.xlane.f32.xlu0 %v1942
      %v1944 = vpop.xlane.xlu0 %1943
      %v1945 = vsub.f32 %v1941, %v1944
      %v1946 = vmul.f32 %v1945, 1.442695
      %v1947 = vpow.pop %v1946
      %v1948 = vsel %vm708, %v1947, 0.0
      %1949 = vadd.xlane.f32.xlu0 %v1948
      %v1950 = vpop.xlane.xlu0 %1949
      %v1951 = vrcp.pop %v1950
      %v1952 = vmul.f32 %v1947, %v1951
      %1953 = vrot.lane.b32.xlu0 %v1856, 96
      %v1954 = vpop.permute.xlu0 %1953
      %v1957 = vsel %vm708, %v1952, 0
      %1959 = vmatprep.subr.mxu0 0.0
      %1960 = vmatpush1.msra.mxu0 0.0
      %1961 = vmatprep.subr.mxu0 0.0
      %1962 = vmatpush1.msra.mxu0 0.0
      %1963 = vmatprep.subr.mxu0 0.0
      %1964 = vmatpush1.msra.mxu0 0.0
      %1965 = vmatprep.subr.mxu0 0.0
      %1966 = vmatpush1.msra.mxu0 0.0
      %1967 = vmatprep.subr.mxu0 0.0
      %1968 = vmatpush1.msra.mxu0 0.0
      %1969 = vmatprep.subr.mxu0 0.0
      %1970 = vmatpush1.msra.mxu0 0.0
      %1971 = vmatprep.subr.mxu0 0.0
      %1972 = vmatpush1.msra.mxu0 0.0
      %1973 = vmatprep.subr.mxu0 0.0
      %1974 = vmatpush1.msra.mxu0 0.0
      %1975 = vmatprep.subr.mxu0 0.0
      %1976 = vmatpush1.msra.mxu0 0.0
      %1977 = vmatprep.subr.mxu0 0.0
      %1978 = vmatpush1.msra.mxu0 0.0
      %1979 = vmatprep.subr.mxu0 0.0
      %1980 = vmatpush1.msra.mxu0 0.0
      %1981 = vmatprep.subr.mxu0 0.0
      %1982 = vmatpush1.msra.mxu0 0.0
      %1983 = vmatprep.subr.mxu0 0.0
      %1984 = vmatpush1.msra.mxu0 0.0
      %1985 = vmatprep.subr.mxu0 0.0
      %1986 = vmatpush1.msra.mxu0 0.0
      %1987 = vmatprep.subr.mxu0 0.0
      %1988 = vmatpush1.msra.mxu0 0.0
      %1989 = vmatprep.subr.mxu0 0.0
      %1990 = vmatpush1.msra.mxu0 %v1954
      %1991 = vmatprep.subr.mxu0 0.0
      %1992 = vmatpush2.msra.mxu0 0.0
      %1993 = vmatprep.subr.mxu0 0.0
      %1994 = vmatpush2.msra.mxu0 0.0
      %1995 = vmatprep.subr.mxu0 0.0
      %1996 = vmatpush2.msra.mxu0 0.0
      %1997 = vmatprep.subr.mxu0 0.0
      %1998 = vmatpush2.msra.mxu0 0.0
      %1999 = vmatprep.subr.mxu0 0.0
      %2000 = vmatpush2.msra.mxu0 0.0
      %2001 = vmatprep.subr.mxu0 0.0
      %2002 = vmatpush2.msra.mxu0 0.0
      %2003 = vmatprep.subr.mxu0 0.0
      %2004 = vmatpush2.msra.mxu0 0.0
      %2005 = vmatprep.subr.mxu0 0.0
      %2006 = vmatpush2.msra.mxu0 0.0
      %2007 = vmatprep.subr.mxu0 0.0
      %2008 = vmatpush2.msra.mxu0 0.0
      %2009 = vmatprep.subr.mxu0 0.0
      %2010 = vmatpush2.msra.mxu0 0.0
      %2011 = vmatprep.subr.mxu0 0.0
      %2012 = vmatpush2.msra.mxu0 0.0
      %2013 = vmatprep.subr.mxu0 0.0
      %2014 = vmatpush2.msra.mxu0 0.0
      %2015 = vmatprep.subr.mxu0 0.0
      %2016 = vmatpush2.msra.mxu0 0.0
      %2017 = vmatprep.subr.mxu0 0.0
      %2018 = vmatpush2.msra.mxu0 0.0
      %2019 = vmatprep.subr.mxu0 0.0
      %2020 = vmatpush2.msra.mxu0 0.0
      %2021 = vmatprep.subr.mxu0 0.0
      %2022 = vmatpush2.msra.mxu0 0.0
      %2023 = vmatprep.mubr.f32.mxu0 0.0
      %2024 = vmatmul.mubr.f32.gmra.mxu0 %v1957
      %v2025 = vpop.f32.mrf.mxu0
      %v2026 = vadd.f32 0.0, %v2025
      %v2027 = vpop.f32.mrf.mxu0
      %2028 = vdwg.mxu0
      %2029 = vrot.lane.b32.xlu0 %v1779, 120
      %v2030 = vpop.permute.xlu0 %2029
      %2031 = vrot.lane.b32.xlu0 %v1856, 120
      %v2032 = vpop.permute.xlu0 %2031
      %v2033 = vsel %vm708, %v2030, 0
      %v2035 = vsel %vm708, %v2032, 0
      %2037 = vmatprep.subr.mxu0 0.0
      %2038 = vmatpush1.xpose.msra.mxu0 0.0
      %2039 = vmatprep.subr.mxu0 0.0
      %2040 = vmatpush1.xpose.msra.mxu0 0.0
      %2041 = vmatprep.subr.mxu0 0.0
      %2042 = vmatpush1.xpose.msra.mxu0 0.0
      %2043 = vmatprep.subr.mxu0 0.0
      %2044 = vmatpush1.xpose.msra.mxu0 0.0
      %2045 = vmatprep.subr.mxu0 0.0
      %2046 = vmatpush1.xpose.msra.mxu0 0.0
      %2047 = vmatprep.subr.mxu0 0.0
      %2048 = vmatpush1.xpose.msra.mxu0 0.0
      %2049 = vmatprep.subr.mxu0 0.0
      %2050 = vmatpush1.xpose.msra.mxu0 0.0
      %2051 = vmatprep.subr.mxu0 0.0
      %2052 = vmatpush1.xpose.msra.mxu0 0.0
      %2053 = vmatprep.subr.mxu0 0.0
      %2054 = vmatpush1.xpose.msra.mxu0 0.0
      %2055 = vmatprep.subr.mxu0 0.0
      %2056 = vmatpush1.xpose.msra.mxu0 0.0
      %2057 = vmatprep.subr.mxu0 0.0
      %2058 = vmatpush1.xpose.msra.mxu0 0.0
      %2059 = vmatprep.subr.mxu0 0.0
      %2060 = vmatpush1.xpose.msra.mxu0 0.0
      %2061 = vmatprep.subr.mxu0 0.0
      %2062 = vmatpush1.xpose.msra.mxu0 0.0
      %2063 = vmatprep.subr.mxu0 0.0
      %2064 = vmatpush1.xpose.msra.mxu0 0.0
      %2065 = vmatprep.subr.mxu0 0.0
      %2066 = vmatpush1.xpose.msra.mxu0 0.0
      %2067 = vmatprep.subr.mxu0 0.0
      %2068 = vmatpush1.xpose.msra.mxu0 %v2035
      %2069 = vmatprep.subr.mxu0 0.0
      %2070 = vmatpush2.xpose.msra.mxu0 0.0
      %2071 = vmatprep.subr.mxu0 0.0
      %2072 = vmatpush2.xpose.msra.mxu0 0.0
      %2073 = vmatprep.subr.mxu0 0.0
      %2074 = vmatpush2.xpose.msra.mxu0 0.0
      %2075 = vmatprep.subr.mxu0 0.0
      %2076 = vmatpush2.xpose.msra.mxu0 0.0
      %2077 = vmatprep.subr.mxu0 0.0
      %2078 = vmatpush2.xpose.msra.mxu0 0.0
      %2079 = vmatprep.subr.mxu0 0.0
      %2080 = vmatpush2.xpose.msra.mxu0 0.0
      %2081 = vmatprep.subr.mxu0 0.0
      %2082 = vmatpush2.xpose.msra.mxu0 0.0
      %2083 = vmatprep.subr.mxu0 0.0
      %2084 = vmatpush2.xpose.msra.mxu0 0.0
      %2085 = vmatprep.subr.mxu0 0.0
      %2086 = vmatpush2.xpose.msra.mxu0 0.0
      %2087 = vmatprep.subr.mxu0 0.0
      %2088 = vmatpush2.xpose.msra.mxu0 0.0
      %2089 = vmatprep.subr.mxu0 0.0
      %2090 = vmatpush2.xpose.msra.mxu0 0.0
      %2091 = vmatprep.subr.mxu0 0.0
      %2092 = vmatpush2.xpose.msra.mxu0 0.0
      %2093 = vmatprep.subr.mxu0 0.0
      %2094 = vmatpush2.xpose.msra.mxu0 0.0
      %2095 = vmatprep.subr.mxu0 0.0
      %2096 = vmatpush2.xpose.msra.mxu0 0.0
      %2097 = vmatprep.subr.mxu0 0.0
      %2098 = vmatpush2.xpose.msra.mxu0 0.0
      %2099 = vmatprep.subr.mxu0 0.0
      %2100 = vmatpush2.xpose.msra.mxu0 0.0
      %2101 = vmatprep.mubr.f32.mxu0 0.0
      %2102 = vmatmul.mubr.f32.gmra.mxu0 %v2033
      %v2103 = vpop.f32.mrf.mxu0
      %v2104 = vadd.f32 0.0, %v2103
      %v2105 = vpop.f32.mrf.mxu0
      %2106 = vdwg.mxu0
      %v2107 = vmul.f32 %v2104, 0.35355338
      %v2108 = vsel %vm621, %v2107, -1e+30
      %v2109 = vsel %vm708, %v2108, -inf
      %2110 = vmax.xlane.f32.xlu0 %v2109
      %v2111 = vpop.xlane.xlu0 %2110
      %v2112 = vsub.f32 %v2108, %v2111
      %v2113 = vmul.f32 %v2112, 1.442695
      %v2114 = vpow.pop %v2113
      %v2115 = vsel %vm708, %v2114, 0.0
      %2116 = vadd.xlane.f32.xlu0 %v2115
      %v2117 = vpop.xlane.xlu0 %2116
      %v2118 = vrcp.pop %v2117
      %v2119 = vmul.f32 %v2114, %v2118
      %2120 = vrot.lane.b32.xlu0 %v1856, 88
      %v2121 = vpop.permute.xlu0 %2120
      %v2124 = vsel %vm708, %v2119, 0
      %2126 = vmatprep.subr.mxu0 0.0
      %2127 = vmatpush1.msra.mxu0 0.0
      %2128 = vmatprep.subr.mxu0 0.0
      %2129 = vmatpush1.msra.mxu0 0.0
      %2130 = vmatprep.subr.mxu0 0.0
      %2131 = vmatpush1.msra.mxu0 0.0
      %2132 = vmatprep.subr.mxu0 0.0
      %2133 = vmatpush1.msra.mxu0 0.0
      %2134 = vmatprep.subr.mxu0 0.0
      %2135 = vmatpush1.msra.mxu0 0.0
      %2136 = vmatprep.subr.mxu0 0.0
      %2137 = vmatpush1.msra.mxu0 0.0
      %2138 = vmatprep.subr.mxu0 0.0
      %2139 = vmatpush1.msra.mxu0 0.0
      %2140 = vmatprep.subr.mxu0 0.0
      %2141 = vmatpush1.msra.mxu0 0.0
      %2142 = vmatprep.subr.mxu0 0.0
      %2143 = vmatpush1.msra.mxu0 0.0
      %2144 = vmatprep.subr.mxu0 0.0
      %2145 = vmatpush1.msra.mxu0 0.0
      %2146 = vmatprep.subr.mxu0 0.0
      %2147 = vmatpush1.msra.mxu0 0.0
      %2148 = vmatprep.subr.mxu0 0.0
      %2149 = vmatpush1.msra.mxu0 0.0
      %2150 = vmatprep.subr.mxu0 0.0
      %2151 = vmatpush1.msra.mxu0 0.0
      %2152 = vmatprep.subr.mxu0 0.0
      %2153 = vmatpush1.msra.mxu0 0.0
      %2154 = vmatprep.subr.mxu0 0.0
      %2155 = vmatpush1.msra.mxu0 0.0
      %2156 = vmatprep.subr.mxu0 0.0
      %2157 = vmatpush1.msra.mxu0 %v2121
      %2158 = vmatprep.subr.mxu0 0.0
      %2159 = vmatpush2.msra.mxu0 0.0
      %2160 = vmatprep.subr.mxu0 0.0
      %2161 = vmatpush2.msra.mxu0 0.0
      %2162 = vmatprep.subr.mxu0 0.0
      %2163 = vmatpush2.msra.mxu0 0.0
      %2164 = vmatprep.subr.mxu0 0.0
      %2165 = vmatpush2.msra.mxu0 0.0
      %2166 = vmatprep.subr.mxu0 0.0
      %2167 = vmatpush2.msra.mxu0 0.0
      %2168 = vmatprep.subr.mxu0 0.0
      %2169 = vmatpush2.msra.mxu0 0.0
      %2170 = vmatprep.subr.mxu0 0.0
      %2171 = vmatpush2.msra.mxu0 0.0
      %2172 = vmatprep.subr.mxu0 0.0
      %2173 = vmatpush2.msra.mxu0 0.0
      %2174 = vmatprep.subr.mxu0 0.0
      %2175 = vmatpush2.msra.mxu0 0.0
      %2176 = vmatprep.subr.mxu0 0.0
      %2177 = vmatpush2.msra.mxu0 0.0
      %2178 = vmatprep.subr.mxu0 0.0
      %2179 = vmatpush2.msra.mxu0 0.0
      %2180 = vmatprep.subr.mxu0 0.0
      %2181 = vmatpush2.msra.mxu0 0.0
      %2182 = vmatprep.subr.mxu0 0.0
      %2183 = vmatpush2.msra.mxu0 0.0
      %2184 = vmatprep.subr.mxu0 0.0
      %2185 = vmatpush2.msra.mxu0 0.0
      %2186 = vmatprep.subr.mxu0 0.0
      %2187 = vmatpush2.msra.mxu0 0.0
      %2188 = vmatprep.subr.mxu0 0.0
      %2189 = vmatpush2.msra.mxu0 0.0
      %2190 = vmatprep.mubr.f32.mxu0 0.0
      %2191 = vmatmul.mubr.f32.gmra.mxu0 %v2124
      %v2192 = vpop.f32.mrf.mxu0
      %v2193 = vadd.f32 0.0, %v2192
      %v2194 = vpop.f32.mrf.mxu0
      %2195 = vdwg.mxu0
      %v2197 = vsel %vm708, %v2193, 0
      %2199 = vmatprep.subr.mxu0 0.0
      %2200 = vmatpush1.msra.mxu0 0.0
      %2201 = vmatprep.subr.mxu0 0.0
      %2202 = vmatpush1.msra.mxu0 0.0
      %2203 = vmatprep.subr.mxu0 0.0
      %2204 = vmatpush1.msra.mxu0 0.0
      %2205 = vmatprep.subr.mxu0 0.0
      %2206 = vmatpush1.msra.mxu0 0.0
      %2207 = vmatprep.subr.mxu0 0.0
      %2208 = vmatpush1.msra.mxu0 0.0
      %2209 = vmatprep.subr.mxu0 0.0
      %2210 = vmatpush1.msra.mxu0 0.0
      %2211 = vmatprep.subr.mxu0 0.0
      %2212 = vmatpush1.msra.mxu0 0.0
      %2213 = vmatprep.subr.mxu0 0.0
      %2214 = vmatpush1.msra.mxu0 0.0
      %2215 = vmatprep.subr.mxu0 0.0
      %2216 = vmatpush1.msra.mxu0 0.0
      %2217 = vmatprep.subr.mxu0 0.0
      %2218 = vmatpush1.msra.mxu0 0.0
      %2219 = vmatprep.subr.mxu0 0.0
      %2220 = vmatpush1.msra.mxu0 0.0
      %2221 = vmatprep.subr.mxu0 0.0
      %2222 = vmatpush1.msra.mxu0 0.0
      %2223 = vmatprep.subr.mxu0 0.0
      %2224 = vmatpush1.msra.mxu0 0.0
      %2225 = vmatprep.subr.mxu0 0.0
      %2226 = vmatpush1.msra.mxu0 0.0
      %2227 = vmatprep.subr.mxu0 0.0
      %2228 = vmatpush1.msra.mxu0 0.0
      %2229 = vmatprep.subr.mxu0 0.0
      %2230 = vmatpush1.msra.mxu0 %v1860
      %2231 = vmatprep.subr.mxu0 0.0
      %2232 = vmatpush2.msra.mxu0 0.0
      %2233 = vmatprep.subr.mxu0 0.0
      %2234 = vmatpush2.msra.mxu0 0.0
      %2235 = vmatprep.subr.mxu0 0.0
      %2236 = vmatpush2.msra.mxu0 0.0
      %2237 = vmatprep.subr.mxu0 0.0
      %2238 = vmatpush2.msra.mxu0 0.0
      %2239 = vmatprep.subr.mxu0 0.0
      %2240 = vmatpush2.msra.mxu0 0.0
      %2241 = vmatprep.subr.mxu0 0.0
      %2242 = vmatpush2.msra.mxu0 0.0
      %2243 = vmatprep.subr.mxu0 0.0
      %2244 = vmatpush2.msra.mxu0 0.0
      %2245 = vmatprep.subr.mxu0 0.0
      %2246 = vmatpush2.msra.mxu0 0.0
      %2247 = vmatprep.subr.mxu0 0.0
      %2248 = vmatpush2.msra.mxu0 0.0
      %2249 = vmatprep.subr.mxu0 0.0
      %2250 = vmatpush2.msra.mxu0 0.0
      %2251 = vmatprep.subr.mxu0 0.0
      %2252 = vmatpush2.msra.mxu0 0.0
      %2253 = vmatprep.subr.mxu0 0.0
      %2254 = vmatpush2.msra.mxu0 0.0
      %2255 = vmatprep.subr.mxu0 0.0
      %2256 = vmatpush2.msra.mxu0 0.0
      %2257 = vmatprep.subr.mxu0 0.0
      %2258 = vmatpush2.msra.mxu0 0.0
      %2259 = vmatprep.subr.mxu0 0.0
      %2260 = vmatpush2.msra.mxu0 0.0
      %2261 = vmatprep.subr.mxu0 0.0
      %2262 = vmatpush2.msra.mxu0 0.0
      %2263 = vmatprep.mubr.f32.mxu0 0.0
      %2264 = vmatmul.mubr.f32.gmra.mxu0 %v2197
      %v2265 = vpop.f32.mrf.mxu0
      %v2266 = vadd.f32 0.0, %v2265
      %v2267 = vpop.f32.mrf.mxu0
      %2268 = vdwg.mxu0
      %v2270 = vsel %vm708, %v2026, 0
      %2272 = vmatprep.subr.mxu0 0.0
      %2273 = vmatpush1.msra.mxu0 0.0
      %2274 = vmatprep.subr.mxu0 0.0
      %2275 = vmatpush1.msra.mxu0 0.0
      %2276 = vmatprep.subr.mxu0 0.0
      %2277 = vmatpush1.msra.mxu0 0.0
      %2278 = vmatprep.subr.mxu0 0.0
      %2279 = vmatpush1.msra.mxu0 0.0
      %2280 = vmatprep.subr.mxu0 0.0
      %2281 = vmatpush1.msra.mxu0 0.0
      %2282 = vmatprep.subr.mxu0 0.0
      %2283 = vmatpush1.msra.mxu0 0.0
      %2284 = vmatprep.subr.mxu0 0.0
      %2285 = vmatpush1.msra.mxu0 0.0
      %2286 = vmatprep.subr.mxu0 0.0
      %2287 = vmatpush1.msra.mxu0 0.0
      %2288 = vmatprep.subr.mxu0 0.0
      %2289 = vmatpush1.msra.mxu0 0.0
      %2290 = vmatprep.subr.mxu0 0.0
      %2291 = vmatpush1.msra.mxu0 0.0
      %2292 = vmatprep.subr.mxu0 0.0
      %2293 = vmatpush1.msra.mxu0 0.0
      %2294 = vmatprep.subr.mxu0 0.0
      %2295 = vmatpush1.msra.mxu0 0.0
      %2296 = vmatprep.subr.mxu0 0.0
      %2297 = vmatpush1.msra.mxu0 0.0
      %2298 = vmatprep.subr.mxu0 0.0
      %2299 = vmatpush1.msra.mxu0 0.0
      %2300 = vmatprep.subr.mxu0 0.0
      %2301 = vmatpush1.msra.mxu0 0.0
      %2302 = vmatprep.subr.mxu0 0.0
      %2303 = vmatpush1.msra.mxu0 %v1859
      %2304 = vmatprep.subr.mxu0 0.0
      %2305 = vmatpush2.msra.mxu0 0.0
      %2306 = vmatprep.subr.mxu0 0.0
      %2307 = vmatpush2.msra.mxu0 0.0
      %2308 = vmatprep.subr.mxu0 0.0
      %2309 = vmatpush2.msra.mxu0 0.0
      %2310 = vmatprep.subr.mxu0 0.0
      %2311 = vmatpush2.msra.mxu0 0.0
      %2312 = vmatprep.subr.mxu0 0.0
      %2313 = vmatpush2.msra.mxu0 0.0
      %2314 = vmatprep.subr.mxu0 0.0
      %2315 = vmatpush2.msra.mxu0 0.0
      %2316 = vmatprep.subr.mxu0 0.0
      %2317 = vmatpush2.msra.mxu0 0.0
      %2318 = vmatprep.subr.mxu0 0.0
      %2319 = vmatpush2.msra.mxu0 0.0
      %2320 = vmatprep.subr.mxu0 0.0
      %2321 = vmatpush2.msra.mxu0 0.0
      %2322 = vmatprep.subr.mxu0 0.0
      %2323 = vmatpush2.msra.mxu0 0.0
      %2324 = vmatprep.subr.mxu0 0.0
      %2325 = vmatpush2.msra.mxu0 0.0
      %2326 = vmatprep.subr.mxu0 0.0
      %2327 = vmatpush2.msra.mxu0 0.0
      %2328 = vmatprep.subr.mxu0 0.0
      %2329 = vmatpush2.msra.mxu0 0.0
      %2330 = vmatprep.subr.mxu0 0.0
      %2331 = vmatpush2.msra.mxu0 0.0
      %2332 = vmatprep.subr.mxu0 0.0
      %2333 = vmatpush2.msra.mxu0 0.0
      %2334 = vmatprep.subr.mxu0 0.0
      %2335 = vmatpush2.msra.mxu0 0.0
      %2336 = vmatprep.mubr.f32.mxu0 0.0
      %2337 = vmatmul.mubr.f32.gmra.mxu0 %v2270
      %v2338 = vpop.f32.mrf.mxu0
      %v2339 = vadd.f32 %v2266, %v2338
      %v2340 = vpop.f32.mrf.mxu0
      %2341 = vdwg.mxu0
      %2342 = vrot.lane.b32.xlu0 %v1779, 112
      %v2343 = vpop.permute.xlu0 %2342
      %2344 = vrot.lane.b32.xlu0 %v1856, 112
      %v2345 = vpop.permute.xlu0 %2344
      %v2346 = vsel %vm708, %v2343, 0
      %v2348 = vsel %vm708, %v2345, 0
      %2350 = vmatprep.subr.mxu0 0.0
      %2351 = vmatpush1.xpose.msra.mxu0 0.0
      %2352 = vmatprep.subr.mxu0 0.0
      %2353 = vmatpush1.xpose.msra.mxu0 0.0
      %2354 = vmatprep.subr.mxu0 0.0
      %2355 = vmatpush1.xpose.msra.mxu0 0.0
      %2356 = vmatprep.subr.mxu0 0.0
      %2357 = vmatpush1.xpose.msra.mxu0 0.0
      %2358 = vmatprep.subr.mxu0 0.0
      %2359 = vmatpush1.xpose.msra.mxu0 0.0
      %2360 = vmatprep.subr.mxu0 0.0
      %2361 = vmatpush1.xpose.msra.mxu0 0.0
      %2362 = vmatprep.subr.mxu0 0.0
      %2363 = vmatpush1.xpose.msra.mxu0 0.0
      %2364 = vmatprep.subr.mxu0 0.0
      %2365 = vmatpush1.xpose.msra.mxu0 0.0
      %2366 = vmatprep.subr.mxu0 0.0
      %2367 = vmatpush1.xpose.msra.mxu0 0.0
      %2368 = vmatprep.subr.mxu0 0.0
      %2369 = vmatpush1.xpose.msra.mxu0 0.0
      %2370 = vmatprep.subr.mxu0 0.0
      %2371 = vmatpush1.xpose.msra.mxu0 0.0
      %2372 = vmatprep.subr.mxu0 0.0
      %2373 = vmatpush1.xpose.msra.mxu0 0.0
      %2374 = vmatprep.subr.mxu0 0.0
      %2375 = vmatpush1.xpose.msra.mxu0 0.0
      %2376 = vmatprep.subr.mxu0 0.0
      %2377 = vmatpush1.xpose.msra.mxu0 0.0
      %2378 = vmatprep.subr.mxu0 0.0
      %2379 = vmatpush1.xpose.msra.mxu0 0.0
      %2380 = vmatprep.subr.mxu0 0.0
      %2381 = vmatpush1.xpose.msra.mxu0 %v2348
      %2382 = vmatprep.subr.mxu0 0.0
      %2383 = vmatpush2.xpose.msra.mxu0 0.0
      %2384 = vmatprep.subr.mxu0 0.0
      %2385 = vmatpush2.xpose.msra.mxu0 0.0
      %2386 = vmatprep.subr.mxu0 0.0
      %2387 = vmatpush2.xpose.msra.mxu0 0.0
      %2388 = vmatprep.subr.mxu0 0.0
      %2389 = vmatpush2.xpose.msra.mxu0 0.0
      %2390 = vmatprep.subr.mxu0 0.0
      %2391 = vmatpush2.xpose.msra.mxu0 0.0
      %2392 = vmatprep.subr.mxu0 0.0
      %2393 = vmatpush2.xpose.msra.mxu0 0.0
      %2394 = vmatprep.subr.mxu0 0.0
      %2395 = vmatpush2.xpose.msra.mxu0 0.0
      %2396 = vmatprep.subr.mxu0 0.0
      %2397 = vmatpush2.xpose.msra.mxu0 0.0
      %2398 = vmatprep.subr.mxu0 0.0
      %2399 = vmatpush2.xpose.msra.mxu0 0.0
      %2400 = vmatprep.subr.mxu0 0.0
      %2401 = vmatpush2.xpose.msra.mxu0 0.0
      %2402 = vmatprep.subr.mxu0 0.0
      %2403 = vmatpush2.xpose.msra.mxu0 0.0
      %2404 = vmatprep.subr.mxu0 0.0
      %2405 = vmatpush2.xpose.msra.mxu0 0.0
      %2406 = vmatprep.subr.mxu0 0.0
      %2407 = vmatpush2.xpose.msra.mxu0 0.0
      %2408 = vmatprep.subr.mxu0 0.0
      %2409 = vmatpush2.xpose.msra.mxu0 0.0
      %2410 = vmatprep.subr.mxu0 0.0
      %2411 = vmatpush2.xpose.msra.mxu0 0.0
      %2412 = vmatprep.subr.mxu0 0.0
      %2413 = vmatpush2.xpose.msra.mxu0 0.0
      %2414 = vmatprep.mubr.f32.mxu0 0.0
      %2415 = vmatmul.mubr.f32.gmra.mxu0 %v2346
      %v2416 = vpop.f32.mrf.mxu0
      %v2417 = vadd.f32 0.0, %v2416
      %v2418 = vpop.f32.mrf.mxu0
      %2419 = vdwg.mxu0
      %v2420 = vmul.f32 %v2417, 0.35355338
      %v2421 = vsel %vm621, %v2420, -1e+30
      %v2422 = vsel %vm708, %v2421, -inf
      %2423 = vmax.xlane.f32.xlu0 %v2422
      %v2424 = vpop.xlane.xlu0 %2423
      %v2425 = vsub.f32 %v2421, %v2424
      %v2426 = vmul.f32 %v2425, 1.442695
      %v2427 = vpow.pop %v2426
      %v2428 = vsel %vm708, %v2427, 0.0
      %2429 = vadd.xlane.f32.xlu0 %v2428
      %v2430 = vpop.xlane.xlu0 %2429
      %v2431 = vrcp.pop %v2430
      %v2432 = vmul.f32 %v2427, %v2431
      %2433 = vrot.lane.b32.xlu0 %v1856, 80
      %v2434 = vpop.permute.xlu0 %2433
      %v2437 = vsel %vm708, %v2432, 0
      %2439 = vmatprep.subr.mxu0 0.0
      %2440 = vmatpush1.msra.mxu0 0.0
      %2441 = vmatprep.subr.mxu0 0.0
      %2442 = vmatpush1.msra.mxu0 0.0
      %2443 = vmatprep.subr.mxu0 0.0
      %2444 = vmatpush1.msra.mxu0 0.0
      %2445 = vmatprep.subr.mxu0 0.0
      %2446 = vmatpush1.msra.mxu0 0.0
      %2447 = vmatprep.subr.mxu0 0.0
      %2448 = vmatpush1.msra.mxu0 0.0
      %2449 = vmatprep.subr.mxu0 0.0
      %2450 = vmatpush1.msra.mxu0 0.0
      %2451 = vmatprep.subr.mxu0 0.0
      %2452 = vmatpush1.msra.mxu0 0.0
      %2453 = vmatprep.subr.mxu0 0.0
      %2454 = vmatpush1.msra.mxu0 0.0
      %2455 = vmatprep.subr.mxu0 0.0
      %2456 = vmatpush1.msra.mxu0 0.0
      %2457 = vmatprep.subr.mxu0 0.0
      %2458 = vmatpush1.msra.mxu0 0.0
      %2459 = vmatprep.subr.mxu0 0.0
      %2460 = vmatpush1.msra.mxu0 0.0
      %2461 = vmatprep.subr.mxu0 0.0
      %2462 = vmatpush1.msra.mxu0 0.0
      %2463 = vmatprep.subr.mxu0 0.0
      %2464 = vmatpush1.msra.mxu0 0.0
      %2465 = vmatprep.subr.mxu0 0.0
      %2466 = vmatpush1.msra.mxu0 0.0
      %2467 = vmatprep.subr.mxu0 0.0
      %2468 = vmatpush1.msra.mxu0 0.0
      %2469 = vmatprep.subr.mxu0 0.0
      %2470 = vmatpush1.msra.mxu0 %v2434
      %2471 = vmatprep.subr.mxu0 0.0
      %2472 = vmatpush2.msra.mxu0 0.0
      %2473 = vmatprep.subr.mxu0 0.0
      %2474 = vmatpush2.msra.mxu0 0.0
      %2475 = vmatprep.subr.mxu0 0.0
      %2476 = vmatpush2.msra.mxu0 0.0
      %2477 = vmatprep.subr.mxu0 0.0
      %2478 = vmatpush2.msra.mxu0 0.0
      %2479 = vmatprep.subr.mxu0 0.0
      %2480 = vmatpush2.msra.mxu0 0.0
      %2481 = vmatprep.subr.mxu0 0.0
      %2482 = vmatpush2.msra.mxu0 0.0
      %2483 = vmatprep.subr.mxu0 0.0
      %2484 = vmatpush2.msra.mxu0 0.0
      %2485 = vmatprep.subr.mxu0 0.0
      %2486 = vmatpush2.msra.mxu0 0.0
      %2487 = vmatprep.subr.mxu0 0.0
      %2488 = vmatpush2.msra.mxu0 0.0
      %2489 = vmatprep.subr.mxu0 0.0
      %2490 = vmatpush2.msra.mxu0 0.0
      %2491 = vmatprep.subr.mxu0 0.0
      %2492 = vmatpush2.msra.mxu0 0.0
      %2493 = vmatprep.subr.mxu0 0.0
      %2494 = vmatpush2.msra.mxu0 0.0
      %2495 = vmatprep.subr.mxu0 0.0
      %2496 = vmatpush2.msra.mxu0 0.0
      %2497 = vmatprep.subr.mxu0 0.0
      %2498 = vmatpush2.msra.mxu0 0.0
      %2499 = vmatprep.subr.mxu0 0.0
      %2500 = vmatpush2.msra.mxu0 0.0
      %2501 = vmatprep.subr.mxu0 0.0
      %2502 = vmatpush2.msra.mxu0 0.0
      %2503 = vmatprep.mubr.f32.mxu0 0.0
      %2504 = vmatmul.mubr.f32.gmra.mxu0 %v2437
      %v2505 = vpop.f32.mrf.mxu0
      %v2506 = vadd.f32 0.0, %v2505
      %v2507 = vpop.f32.mrf.mxu0
      %2508 = vdwg.mxu0
      %v2510 = vsel %vm708, %v2506, 0
      %2512 = vmatprep.subr.mxu0 0.0
      %2513 = vmatpush1.msra.mxu0 0.0
      %2514 = vmatprep.subr.mxu0 0.0
      %2515 = vmatpush1.msra.mxu0 0.0
      %2516 = vmatprep.subr.mxu0 0.0
      %2517 = vmatpush1.msra.mxu0 0.0
      %2518 = vmatprep.subr.mxu0 0.0
      %2519 = vmatpush1.msra.mxu0 0.0
      %2520 = vmatprep.subr.mxu0 0.0
      %2521 = vmatpush1.msra.mxu0 0.0
      %2522 = vmatprep.subr.mxu0 0.0
      %2523 = vmatpush1.msra.mxu0 0.0
      %2524 = vmatprep.subr.mxu0 0.0
      %2525 = vmatpush1.msra.mxu0 0.0
      %2526 = vmatprep.subr.mxu0 0.0
      %2527 = vmatpush1.msra.mxu0 0.0
      %2528 = vmatprep.subr.mxu0 0.0
      %2529 = vmatpush1.msra.mxu0 0.0
      %2530 = vmatprep.subr.mxu0 0.0
      %2531 = vmatpush1.msra.mxu0 0.0
      %2532 = vmatprep.subr.mxu0 0.0
      %2533 = vmatpush1.msra.mxu0 0.0
      %2534 = vmatprep.subr.mxu0 0.0
      %2535 = vmatpush1.msra.mxu0 0.0
      %2536 = vmatprep.subr.mxu0 0.0
      %2537 = vmatpush1.msra.mxu0 0.0
      %2538 = vmatprep.subr.mxu0 0.0
      %2539 = vmatpush1.msra.mxu0 0.0
      %2540 = vmatprep.subr.mxu0 0.0
      %2541 = vmatpush1.msra.mxu0 0.0
      %2542 = vmatprep.subr.mxu0 0.0
      %2543 = vmatpush1.msra.mxu0 %v1861
      %2544 = vmatprep.subr.mxu0 0.0
      %2545 = vmatpush2.msra.mxu0 0.0
      %2546 = vmatprep.subr.mxu0 0.0
      %2547 = vmatpush2.msra.mxu0 0.0
      %2548 = vmatprep.subr.mxu0 0.0
      %2549 = vmatpush2.msra.mxu0 0.0
      %2550 = vmatprep.subr.mxu0 0.0
      %2551 = vmatpush2.msra.mxu0 0.0
      %2552 = vmatprep.subr.mxu0 0.0
      %2553 = vmatpush2.msra.mxu0 0.0
      %2554 = vmatprep.subr.mxu0 0.0
      %2555 = vmatpush2.msra.mxu0 0.0
      %2556 = vmatprep.subr.mxu0 0.0
      %2557 = vmatpush2.msra.mxu0 0.0
      %2558 = vmatprep.subr.mxu0 0.0
      %2559 = vmatpush2.msra.mxu0 0.0
      %2560 = vmatprep.subr.mxu0 0.0
      %2561 = vmatpush2.msra.mxu0 0.0
      %2562 = vmatprep.subr.mxu0 0.0
      %2563 = vmatpush2.msra.mxu0 0.0
      %2564 = vmatprep.subr.mxu0 0.0
      %2565 = vmatpush2.msra.mxu0 0.0
      %2566 = vmatprep.subr.mxu0 0.0
      %2567 = vmatpush2.msra.mxu0 0.0
      %2568 = vmatprep.subr.mxu0 0.0
      %2569 = vmatpush2.msra.mxu0 0.0
      %2570 = vmatprep.subr.mxu0 0.0
      %2571 = vmatpush2.msra.mxu0 0.0
      %2572 = vmatprep.subr.mxu0 0.0
      %2573 = vmatpush2.msra.mxu0 0.0
      %2574 = vmatprep.subr.mxu0 0.0
      %2575 = vmatpush2.msra.mxu0 0.0
      %2576 = vmatprep.mubr.f32.mxu0 0.0
      %2577 = vmatmul.mubr.f32.gmra.mxu0 %v2510
      %v2578 = vpop.f32.mrf.mxu0
      %v2579 = vadd.f32 0.0, %v2578
      %v2580 = vpop.f32.mrf.mxu0
      %2581 = vdwg.mxu0
      %v2582 = vadd.f32 %v2339, %v2579
      %2583 = vrot.lane.b32.xlu0 %v1779, 104
      %v2584 = vpop.permute.xlu0 %2583
      %2585 = vrot.lane.b32.xlu0 %v1856, 104
      %v2586 = vpop.permute.xlu0 %2585
      %v2587 = vsel %vm708, %v2584, 0
      %v2589 = vsel %vm708, %v2586, 0
      %2591 = vmatprep.subr.mxu0 0.0
      %2592 = vmatpush1.xpose.msra.mxu0 0.0
      %2593 = vmatprep.subr.mxu0 0.0
      %2594 = vmatpush1.xpose.msra.mxu0 0.0
      %2595 = vmatprep.subr.mxu0 0.0
      %2596 = vmatpush1.xpose.msra.mxu0 0.0
      %2597 = vmatprep.subr.mxu0 0.0
      %2598 = vmatpush1.xpose.msra.mxu0 0.0
      %2599 = vmatprep.subr.mxu0 0.0
      %2600 = vmatpush1.xpose.msra.mxu0 0.0
      %2601 = vmatprep.subr.mxu0 0.0
      %2602 = vmatpush1.xpose.msra.mxu0 0.0
      %2603 = vmatprep.subr.mxu0 0.0
      %2604 = vmatpush1.xpose.msra.mxu0 0.0
      %2605 = vmatprep.subr.mxu0 0.0
      %2606 = vmatpush1.xpose.msra.mxu0 0.0
      %2607 = vmatprep.subr.mxu0 0.0
      %2608 = vmatpush1.xpose.msra.mxu0 0.0
      %2609 = vmatprep.subr.mxu0 0.0
      %2610 = vmatpush1.xpose.msra.mxu0 0.0
      %2611 = vmatprep.subr.mxu0 0.0
      %2612 = vmatpush1.xpose.msra.mxu0 0.0
      %2613 = vmatprep.subr.mxu0 0.0
      %2614 = vmatpush1.xpose.msra.mxu0 0.0
      %2615 = vmatprep.subr.mxu0 0.0
      %2616 = vmatpush1.xpose.msra.mxu0 0.0
      %2617 = vmatprep.subr.mxu0 0.0
      %2618 = vmatpush1.xpose.msra.mxu0 0.0
      %2619 = vmatprep.subr.mxu0 0.0
      %2620 = vmatpush1.xpose.msra.mxu0 0.0
      %2621 = vmatprep.subr.mxu0 0.0
      %2622 = vmatpush1.xpose.msra.mxu0 %v2589
      %2623 = vmatprep.subr.mxu0 0.0
      %2624 = vmatpush2.xpose.msra.mxu0 0.0
      %2625 = vmatprep.subr.mxu0 0.0
      %2626 = vmatpush2.xpose.msra.mxu0 0.0
      %2627 = vmatprep.subr.mxu0 0.0
      %2628 = vmatpush2.xpose.msra.mxu0 0.0
      %2629 = vmatprep.subr.mxu0 0.0
      %2630 = vmatpush2.xpose.msra.mxu0 0.0
      %2631 = vmatprep.subr.mxu0 0.0
      %2632 = vmatpush2.xpose.msra.mxu0 0.0
      %2633 = vmatprep.subr.mxu0 0.0
      %2634 = vmatpush2.xpose.msra.mxu0 0.0
      %2635 = vmatprep.subr.mxu0 0.0
      %2636 = vmatpush2.xpose.msra.mxu0 0.0
      %2637 = vmatprep.subr.mxu0 0.0
      %2638 = vmatpush2.xpose.msra.mxu0 0.0
      %2639 = vmatprep.subr.mxu0 0.0
      %2640 = vmatpush2.xpose.msra.mxu0 0.0
      %2641 = vmatprep.subr.mxu0 0.0
      %2642 = vmatpush2.xpose.msra.mxu0 0.0
      %2643 = vmatprep.subr.mxu0 0.0
      %2644 = vmatpush2.xpose.msra.mxu0 0.0
      %2645 = vmatprep.subr.mxu0 0.0
      %2646 = vmatpush2.xpose.msra.mxu0 0.0
      %2647 = vmatprep.subr.mxu0 0.0
      %2648 = vmatpush2.xpose.msra.mxu0 0.0
      %2649 = vmatprep.subr.mxu0 0.0
      %2650 = vmatpush2.xpose.msra.mxu0 0.0
      %2651 = vmatprep.subr.mxu0 0.0
      %2652 = vmatpush2.xpose.msra.mxu0 0.0
      %2653 = vmatprep.subr.mxu0 0.0
      %2654 = vmatpush2.xpose.msra.mxu0 0.0
      %2655 = vmatprep.mubr.f32.mxu0 0.0
      %2656 = vmatmul.mubr.f32.gmra.mxu0 %v2587
      %v2657 = vpop.f32.mrf.mxu0
      %v2658 = vadd.f32 0.0, %v2657
      %v2659 = vpop.f32.mrf.mxu0
      %2660 = vdwg.mxu0
      %v2661 = vmul.f32 %v2658, 0.35355338
      %v2662 = vsel %vm621, %v2661, -1e+30
      %v2663 = vsel %vm708, %v2662, -inf
      %2664 = vmax.xlane.f32.xlu0 %v2663
      %v2665 = vpop.xlane.xlu0 %2664
      %v2666 = vsub.f32 %v2662, %v2665
      %v2667 = vmul.f32 %v2666, 1.442695
      %v2668 = vpow.pop %v2667
      %v2669 = vsel %vm708, %v2668, 0.0
      %2670 = vadd.xlane.f32.xlu0 %v2669
      %v2671 = vpop.xlane.xlu0 %2670
      %v2672 = vrcp.pop %v2671
      %v2673 = vmul.f32 %v2668, %v2672
      %2674 = vrot.lane.b32.xlu0 %v1856, 72
      %v2675 = vpop.permute.xlu0 %2674
      %v2678 = vsel %vm708, %v2673, 0
      %2680 = vmatprep.subr.mxu0 0.0
      %2681 = vmatpush1.msra.mxu0 0.0
      %2682 = vmatprep.subr.mxu0 0.0
      %2683 = vmatpush1.msra.mxu0 0.0
      %2684 = vmatprep.subr.mxu0 0.0
      %2685 = vmatpush1.msra.mxu0 0.0
      %2686 = vmatprep.subr.mxu0 0.0
      %2687 = vmatpush1.msra.mxu0 0.0
      %2688 = vmatprep.subr.mxu0 0.0
      %2689 = vmatpush1.msra.mxu0 0.0
      %2690 = vmatprep.subr.mxu0 0.0
      %2691 = vmatpush1.msra.mxu0 0.0
      %2692 = vmatprep.subr.mxu0 0.0
      %2693 = vmatpush1.msra.mxu0 0.0
      %2694 = vmatprep.subr.mxu0 0.0
      %2695 = vmatpush1.msra.mxu0 0.0
      %2696 = vmatprep.subr.mxu0 0.0
      %2697 = vmatpush1.msra.mxu0 0.0
      %2698 = vmatprep.subr.mxu0 0.0
      %2699 = vmatpush1.msra.mxu0 0.0
      %2700 = vmatprep.subr.mxu0 0.0
      %2701 = vmatpush1.msra.mxu0 0.0
      %2702 = vmatprep.subr.mxu0 0.0
      %2703 = vmatpush1.msra.mxu0 0.0
      %2704 = vmatprep.subr.mxu0 0.0
      %2705 = vmatpush1.msra.mxu0 0.0
      %2706 = vmatprep.subr.mxu0 0.0
      %2707 = vmatpush1.msra.mxu0 0.0
      %2708 = vmatprep.subr.mxu0 0.0
      %2709 = vmatpush1.msra.mxu0 0.0
      %2710 = vmatprep.subr.mxu0 0.0
      %2711 = vmatpush1.msra.mxu0 %v2675
      %2712 = vmatprep.subr.mxu0 0.0
      %2713 = vmatpush2.msra.mxu0 0.0
      %2714 = vmatprep.subr.mxu0 0.0
      %2715 = vmatpush2.msra.mxu0 0.0
      %2716 = vmatprep.subr.mxu0 0.0
      %2717 = vmatpush2.msra.mxu0 0.0
      %2718 = vmatprep.subr.mxu0 0.0
      %2719 = vmatpush2.msra.mxu0 0.0
      %2720 = vmatprep.subr.mxu0 0.0
      %2721 = vmatpush2.msra.mxu0 0.0
      %2722 = vmatprep.subr.mxu0 0.0
      %2723 = vmatpush2.msra.mxu0 0.0
      %2724 = vmatprep.subr.mxu0 0.0
      %2725 = vmatpush2.msra.mxu0 0.0
      %2726 = vmatprep.subr.mxu0 0.0
      %2727 = vmatpush2.msra.mxu0 0.0
      %2728 = vmatprep.subr.mxu0 0.0
      %2729 = vmatpush2.msra.mxu0 0.0
      %2730 = vmatprep.subr.mxu0 0.0
      %2731 = vmatpush2.msra.mxu0 0.0
      %2732 = vmatprep.subr.mxu0 0.0
      %2733 = vmatpush2.msra.mxu0 0.0
      %2734 = vmatprep.subr.mxu0 0.0
      %2735 = vmatpush2.msra.mxu0 0.0
      %2736 = vmatprep.subr.mxu0 0.0
      %2737 = vmatpush2.msra.mxu0 0.0
      %2738 = vmatprep.subr.mxu0 0.0
      %2739 = vmatpush2.msra.mxu0 0.0
      %2740 = vmatprep.subr.mxu0 0.0
      %2741 = vmatpush2.msra.mxu0 0.0
      %2742 = vmatprep.subr.mxu0 0.0
      %2743 = vmatpush2.msra.mxu0 0.0
      %2744 = vmatprep.mubr.f32.mxu0 0.0
      %2745 = vmatmul.mubr.f32.gmra.mxu0 %v2678
      %v2746 = vpop.f32.mrf.mxu0
      %v2747 = vadd.f32 0.0, %v2746
      %v2748 = vpop.f32.mrf.mxu0
      %2749 = vdwg.mxu0
      %v2751 = vsel %vm708, %v2747, 0
      %2753 = vmatprep.subr.mxu0 0.0
      %2754 = vmatpush1.msra.mxu0 0.0
      %2755 = vmatprep.subr.mxu0 0.0
      %2756 = vmatpush1.msra.mxu0 0.0
      %2757 = vmatprep.subr.mxu0 0.0
      %2758 = vmatpush1.msra.mxu0 0.0
      %2759 = vmatprep.subr.mxu0 0.0
      %2760 = vmatpush1.msra.mxu0 0.0
      %2761 = vmatprep.subr.mxu0 0.0
      %2762 = vmatpush1.msra.mxu0 0.0
      %2763 = vmatprep.subr.mxu0 0.0
      %2764 = vmatpush1.msra.mxu0 0.0
      %2765 = vmatprep.subr.mxu0 0.0
      %2766 = vmatpush1.msra.mxu0 0.0
      %2767 = vmatprep.subr.mxu0 0.0
      %2768 = vmatpush1.msra.mxu0 0.0
      %2769 = vmatprep.subr.mxu0 0.0
      %2770 = vmatpush1.msra.mxu0 0.0
      %2771 = vmatprep.subr.mxu0 0.0
      %2772 = vmatpush1.msra.mxu0 0.0
      %2773 = vmatprep.subr.mxu0 0.0
      %2774 = vmatpush1.msra.mxu0 0.0
      %2775 = vmatprep.subr.mxu0 0.0
      %2776 = vmatpush1.msra.mxu0 0.0
      %2777 = vmatprep.subr.mxu0 0.0
      %2778 = vmatpush1.msra.mxu0 0.0
      %2779 = vmatprep.subr.mxu0 0.0
      %2780 = vmatpush1.msra.mxu0 0.0
      %2781 = vmatprep.subr.mxu0 0.0
      %2782 = vmatpush1.msra.mxu0 0.0
      %2783 = vmatprep.subr.mxu0 0.0
      %2784 = vmatpush1.msra.mxu0 %v1862
      %2785 = vmatprep.subr.mxu0 0.0
      %2786 = vmatpush2.msra.mxu0 0.0
      %2787 = vmatprep.subr.mxu0 0.0
      %2788 = vmatpush2.msra.mxu0 0.0
      %2789 = vmatprep.subr.mxu0 0.0
      %2790 = vmatpush2.msra.mxu0 0.0
      %2791 = vmatprep.subr.mxu0 0.0
      %2792 = vmatpush2.msra.mxu0 0.0
      %2793 = vmatprep.subr.mxu0 0.0
      %2794 = vmatpush2.msra.mxu0 0.0
      %2795 = vmatprep.subr.mxu0 0.0
      %2796 = vmatpush2.msra.mxu0 0.0
      %2797 = vmatprep.subr.mxu0 0.0
      %2798 = vmatpush2.msra.mxu0 0.0
      %2799 = vmatprep.subr.mxu0 0.0
      %2800 = vmatpush2.msra.mxu0 0.0
      %2801 = vmatprep.subr.mxu0 0.0
      %2802 = vmatpush2.msra.mxu0 0.0
      %2803 = vmatprep.subr.mxu0 0.0
      %2804 = vmatpush2.msra.mxu0 0.0
      %2805 = vmatprep.subr.mxu0 0.0
      %2806 = vmatpush2.msra.mxu0 0.0
      %2807 = vmatprep.subr.mxu0 0.0
      %2808 = vmatpush2.msra.mxu0 0.0
      %2809 = vmatprep.subr.mxu0 0.0
      %2810 = vmatpush2.msra.mxu0 0.0
      %2811 = vmatprep.subr.mxu0 0.0
      %2812 = vmatpush2.msra.mxu0 0.0
      %2813 = vmatprep.subr.mxu0 0.0
      %2814 = vmatpush2.msra.mxu0 0.0
      %2815 = vmatprep.subr.mxu0 0.0
      %2816 = vmatpush2.msra.mxu0 0.0
      %2817 = vmatprep.mubr.f32.mxu0 0.0
      %2818 = vmatmul.mubr.f32.gmra.mxu0 %v2751
      %v2819 = vpop.f32.mrf.mxu0
      %v2820 = vadd.f32 0.0, %v2819
      %v2821 = vpop.f32.mrf.mxu0
      %2822 = vdwg.mxu0
      %v2823 = vadd.f32 %v2582, %v2820
      %v2825 = vlaneseq
      %v2826 = vshrl.u32 %v2825, 7
      %v2827 = vsub.s32 0, %v2826
      %v2828 = vrot.slane %v1863, %v2827
      %v2830 = vadd.f32 %v2823, %v2828
      %v2831 = vadd.f32 %v2830, %v1704
      %v2832 = vld [vmem:[%s11] sm:$0x1]
      %v2833 = vld [vmem:[%s12] sm:$0x1]
      %v2834 = vsel %vm626, %v2831, 0.0
      %2835 = vadd.xlane.f32.xlu0 %v2834
      %v2836 = vpop.xlane.xlu0 %2835
      %v2837 = vmul.f32 %v2836, %v1680
      %v2838 = vsub.f32 %v2831, %v2837
      %v2839 = vmul.f32 %v2838, %v2838
      %v2840 = vsel %vm626, %v2839, 0.0
      %2841 = vadd.xlane.f32.xlu0 %v2840
      %v2842 = vpop.xlane.xlu0 %2841
      %v2843 = vmul.f32 %v2842, %v1680
      %v2844 = vadd.f32 %v2843, 1e-05
      %v2845 = vrsqrt.pop %v2844
      %v2846 = vmul.f32 %v2838, %v2845
      %v2848 = vlaneseq
      %v2849 = vshrl.u32 %v2848, 7
      %v2850 = vsub.s32 0, %v2849
      %v2851 = vrot.slane %v2832, %v2850
      %v2853 = vmul.f32 %v2846, %v2851
      %v2855 = vlaneseq
      %v2856 = vshrl.u32 %v2855, 7
      %v2857 = vsub.s32 0, %v2856
      %v2858 = vrot.slane %v2833, %v2857
      %v2860 = vadd.f32 %v2853, %v2858
      %v2861 = vld [vmem:[%s13] sm:$0xff]
      %v2862 = vld [vmem:[%s13 + $0x8] sm:$0xff]
      %v2863 = vld [vmem:[%s13 + $0x10] sm:$0xff]
      %v2864 = vld [vmem:[%s13 + $0x18] sm:$0xff]
      %v2865 = vld [vmem:[%s13 + $0x20] sm:$0xff]
      %v2866 = vld [vmem:[%s13 + $0x28] sm:$0xff]
      %v2867 = vld [vmem:[%s13 + $0x30] sm:$0xff]
      %v2868 = vld [vmem:[%s13 + $0x38] sm:$0xff]
      %v2869 = vld [vmem:[%s13 + $0x40] sm:$0xff]
      %v2870 = vld [vmem:[%s13 + $0x48] sm:$0xff]
      %v2871 = vld [vmem:[%s13 + $0x50] sm:$0xff]
      %v2872 = vld [vmem:[%s13 + $0x58] sm:$0xff]
      %v2873 = vld [vmem:[%s13 + $0x60] sm:$0xff]
      %v2874 = vld [vmem:[%s13 + $0x68] sm:$0xff]
      %v2875 = vld [vmem:[%s13 + $0x70] sm:$0xff]
      %v2876 = vld [vmem:[%s13 + $0x78] sm:$0xff]
      %v2877 = vld [vmem:[%s13 + $0x80] sm:$0xff]
      %v2878 = vld [vmem:[%s13 + $0x88] sm:$0xff]
      %v2879 = vld [vmem:[%s13 + $0x90] sm:$0xff]
      %v2880 = vld [vmem:[%s13 + $0x98] sm:$0xff]
      %v2881 = vld [vmem:[%s13 + $0xa0] sm:$0xff]
      %v2882 = vld [vmem:[%s13 + $0xa8] sm:$0xff]
      %v2883 = vld [vmem:[%s13 + $0xb0] sm:$0xff]
      %v2884 = vld [vmem:[%s13 + $0xb8] sm:$0xff]
      %v2885 = vld [vmem:[%s13 + $0xc0] sm:$0xff]
      %v2886 = vld [vmem:[%s13 + $0xc8] sm:$0xff]
      %v2887 = vld [vmem:[%s13 + $0xd0] sm:$0xff]
      %v2888 = vld [vmem:[%s13 + $0xd8] sm:$0xff]
      %v2889 = vld [vmem:[%s13 + $0xe0] sm:$0xff]
      %v2890 = vld [vmem:[%s13 + $0xe8] sm:$0xff]
      %v2891 = vld [vmem:[%s13 + $0xf0] sm:$0xff]
      %v2892 = vld [vmem:[%s13 + $0xf8] sm:$0xff]
      %v2893 = vld [vmem:[%s13 + $0x100] sm:$0xff]
      %v2894 = vld [vmem:[%s13 + $0x108] sm:$0xff]
      %v2895 = vld [vmem:[%s13 + $0x110] sm:$0xff]
      %v2896 = vld [vmem:[%s13 + $0x118] sm:$0xff]
      %v2897 = vld [vmem:[%s13 + $0x120] sm:$0xff]
      %v2898 = vld [vmem:[%s13 + $0x128] sm:$0xff]
      %v2899 = vld [vmem:[%s13 + $0x130] sm:$0xff]
      %v2900 = vld [vmem:[%s13 + $0x138] sm:$0xff]
      %v2901 = vld [vmem:[%s13 + $0x140] sm:$0xff]
      %v2902 = vld [vmem:[%s13 + $0x148] sm:$0xff]
      %v2903 = vld [vmem:[%s13 + $0x150] sm:$0xff]
      %v2904 = vld [vmem:[%s13 + $0x158] sm:$0xff]
      %v2905 = vld [vmem:[%s13 + $0x160] sm:$0xff]
      %v2906 = vld [vmem:[%s13 + $0x168] sm:$0xff]
      %v2907 = vld [vmem:[%s13 + $0x170] sm:$0xff]
      %v2908 = vld [vmem:[%s13 + $0x178] sm:$0xff]
      %v2909 = vld [vmem:[%s13 + $0x180] sm:$0xff]
      %v2910 = vld [vmem:[%s13 + $0x188] sm:$0xff]
      %v2911 = vld [vmem:[%s13 + $0x190] sm:$0xff]
      %v2912 = vld [vmem:[%s13 + $0x198] sm:$0xff]
      %v2913 = vld [vmem:[%s13 + $0x1a0] sm:$0xff]
      %v2914 = vld [vmem:[%s13 + $0x1a8] sm:$0xff]
      %v2915 = vld [vmem:[%s13 + $0x1b0] sm:$0xff]
      %v2916 = vld [vmem:[%s13 + $0x1b8] sm:$0xff]
      %v2917 = vld [vmem:[%s13 + $0x1c0] sm:$0xff]
      %v2918 = vld [vmem:[%s13 + $0x1c8] sm:$0xff]
      %v2919 = vld [vmem:[%s13 + $0x1d0] sm:$0xff]
      %v2920 = vld [vmem:[%s13 + $0x1d8] sm:$0xff]
      %v2921 = vld [vmem:[%s13 + $0x1e0] sm:$0xff]
      %v2922 = vld [vmem:[%s13 + $0x1e8] sm:$0xff]
      %v2923 = vld [vmem:[%s13 + $0x1f0] sm:$0xff]
      %v2924 = vld [vmem:[%s13 + $0x1f8] sm:$0xff]
      %v2925 = vld [vmem:[%s14] sm:$0xff]
      %v2926 = vld [vmem:[%s14 + $0x8] sm:$0xff]
      %v2929 = vlaneseq
      %v2930 = vshrl.u32 %v2929, 7
      %v2931 = vsub.s32 0, %v2930
      %v2932 = vrot.slane %v2925, %v2931
      %v2933 = vlaneseq
      %v2934 = vshrl.u32 %v2933, 7
      %v2935 = vsub.s32 1, %v2934
      %v2936 = vrot.slane %v2925, %v2935
      %v2937 = vlaneseq
      %v2938 = vshrl.u32 %v2937, 7
      %v2939 = vsub.s32 2, %v2938
      %v2940 = vrot.slane %v2925, %v2939
      %v2941 = vlaneseq
      %v2942 = vshrl.u32 %v2941, 7
      %v2943 = vsub.s32 3, %v2942
      %v2944 = vrot.slane %v2925, %v2943
      %v2945 = vlaneseq
      %v2946 = vshrl.u32 %v2945, 7
      %v2947 = vsub.s32 4, %v2946
      %v2948 = vrot.slane %v2925, %v2947
      %v2949 = vlaneseq
      %v2950 = vshrl.u32 %v2949, 7
      %v2951 = vsub.s32 5, %v2950
      %v2952 = vrot.slane %v2925, %v2951
      %v2953 = vlaneseq
      %v2954 = vshrl.u32 %v2953, 7
      %v2955 = vsub.s32 6, %v2954
      %v2956 = vrot.slane %v2925, %v2955
      %v2957 = vlaneseq
      %v2958 = vshrl.u32 %v2957, 7
      %v2959 = vsub.s32 7, %v2958
      %v2960 = vrot.slane %v2925, %v2959
      %v2961 = vlaneseq
      %v2962 = vshrl.u32 %v2961, 7
      %v2963 = vsub.s32 0, %v2962
      %v2964 = vrot.slane %v2926, %v2963
      %v2965 = vlaneseq
      %v2966 = vshrl.u32 %v2965, 7
      %v2967 = vsub.s32 1, %v2966
      %v2968 = vrot.slane %v2926, %v2967
      %v2969 = vlaneseq
      %v2970 = vshrl.u32 %v2969, 7
      %v2971 = vsub.s32 2, %v2970
      %v2972 = vrot.slane %v2926, %v2971
      %v2973 = vlaneseq
      %v2974 = vshrl.u32 %v2973, 7
      %v2975 = vsub.s32 3, %v2974
      %v2976 = vrot.slane %v2926, %v2975
      %v2977 = vlaneseq
      %v2978 = vshrl.u32 %v2977, 7
      %v2979 = vsub.s32 4, %v2978
      %v2980 = vrot.slane %v2926, %v2979
      %v2981 = vlaneseq
      %v2982 = vshrl.u32 %v2981, 7
      %v2983 = vsub.s32 5, %v2982
      %v2984 = vrot.slane %v2926, %v2983
      %v2985 = vlaneseq
      %v2986 = vshrl.u32 %v2985, 7
      %v2987 = vsub.s32 6, %v2986
      %v2988 = vrot.slane %v2926, %v2987
      %v2989 = vlaneseq
      %v2990 = vshrl.u32 %v2989, 7
      %v2991 = vsub.s32 7, %v2990
      %v2992 = vrot.slane %v2926, %v2991
      %v3010 = vsel %vm626, %v2860, 0
      %3012 = vmatprep.subr.mxu0 0.0
      %3013 = vmatpush1.msra.mxu0 0.0
      %3014 = vmatprep.subr.mxu0 0.0
      %3015 = vmatpush1.msra.mxu0 0.0
      %3016 = vmatprep.subr.mxu0 0.0
      %3017 = vmatpush1.msra.mxu0 0.0
      %3018 = vmatprep.subr.mxu0 0.0
      %3019 = vmatpush1.msra.mxu0 0.0
      %3020 = vmatprep.subr.mxu0 0.0
      %3021 = vmatpush1.msra.mxu0 0.0
      %3022 = vmatprep.subr.mxu0 0.0
      %3023 = vmatpush1.msra.mxu0 0.0
      %3024 = vmatprep.subr.mxu0 0.0
      %3025 = vmatpush1.msra.mxu0 0.0
      %3026 = vmatprep.subr.mxu0 0.0
      %3027 = vmatpush1.msra.mxu0 0.0
      %3028 = vmatprep.subr.mxu0 0.0
      %3029 = vmatpush1.msra.mxu0 0.0
      %3030 = vmatprep.subr.mxu0 0.0
      %3031 = vmatpush1.msra.mxu0 0.0
      %3032 = vmatprep.subr.mxu0 0.0
      %3033 = vmatpush1.msra.mxu0 0.0
      %3034 = vmatprep.subr.mxu0 0.0
      %3035 = vmatpush1.msra.mxu0 0.0
      %3036 = vmatprep.subr.mxu0 %v2910
      %3037 = vmatpush1.msra.mxu0 %v2909
      %3038 = vmatprep.subr.mxu0 %v2894
      %3039 = vmatpush1.msra.mxu0 %v2893
      %3040 = vmatprep.subr.mxu0 %v2878
      %3041 = vmatpush1.msra.mxu0 %v2877
      %3042 = vmatprep.subr.mxu0 %v2862
      %3043 = vmatpush1.msra.mxu0 %v2861
      %3044 = vmatprep.subr.mxu0 0.0
      %3045 = vmatpush2.msra.mxu0 0.0
      %3046 = vmatprep.subr.mxu0 0.0
      %3047 = vmatpush2.msra.mxu0 0.0
      %3048 = vmatprep.subr.mxu0 0.0
      %3049 = vmatpush2.msra.mxu0 0.0
      %3050 = vmatprep.subr.mxu0 0.0
      %3051 = vmatpush2.msra.mxu0 0.0
      %3052 = vmatprep.subr.mxu0 0.0
      %3053 = vmatpush2.msra.mxu0 0.0
      %3054 = vmatprep.subr.mxu0 0.0
      %3055 = vmatpush2.msra.mxu0 0.0
      %3056 = vmatprep.subr.mxu0 0.0
      %3057 = vmatpush2.msra.mxu0 0.0
      %3058 = vmatprep.subr.mxu0 0.0
      %3059 = vmatpush2.msra.mxu0 0.0
      %3060 = vmatprep.subr.mxu0 0.0
      %3061 = vmatpush2.msra.mxu0 0.0
      %3062 = vmatprep.subr.mxu0 0.0
      %3063 = vmatpush2.msra.mxu0 0.0
      %3064 = vmatprep.subr.mxu0 0.0
      %3065 = vmatpush2.msra.mxu0 0.0
      %3066 = vmatprep.subr.mxu0 0.0
      %3067 = vmatpush2.msra.mxu0 0.0
      %3068 = vmatprep.subr.mxu0 0.0
      %3069 = vmatpush2.msra.mxu0 0.0
      %3070 = vmatprep.subr.mxu0 0.0
      %3071 = vmatpush2.msra.mxu0 0.0
      %3072 = vmatprep.subr.mxu0 0.0
      %3073 = vmatpush2.msra.mxu0 0.0
      %3074 = vmatprep.subr.mxu0 0.0
      %3075 = vmatpush2.msra.mxu0 0.0
      %3076 = vmatprep.mubr.f32.mxu0 0.0
      %3077 = vmatmul.mubr.f32.gmra.mxu0 %v3010
      %v3078 = vpop.f32.mrf.mxu0
      %v3079 = vadd.f32 %v2932, %v3078
      %v3080 = vpop.f32.mrf.mxu0
      %v3081 = vadd.f32 %v2936, %v3080
      %3082 = vdwg.mxu0
      %3083 = vmatprep.subr.mxu0 0.0
      %3084 = vmatpush1.msra.mxu0 0.0
      %3085 = vmatprep.subr.mxu0 0.0
      %3086 = vmatpush1.msra.mxu0 0.0
      %3087 = vmatprep.subr.mxu0 0.0
      %3088 = vmatpush1.msra.mxu0 0.0
      %3089 = vmatprep.subr.mxu0 0.0
      %3090 = vmatpush1.msra.mxu0 0.0
      %3091 = vmatprep.subr.mxu0 0.0
      %3092 = vmatpush1.msra.mxu0 0.0
      %3093 = vmatprep.subr.mxu0 0.0
      %3094 = vmatpush1.msra.mxu0 0.0
      %3095 = vmatprep.subr.mxu0 0.0
      %3096 = vmatpush1.msra.mxu0 0.0
      %3097 = vmatprep.subr.mxu0 0.0
      %3098 = vmatpush1.msra.mxu0 0.0
      %3099 = vmatprep.subr.mxu0 0.0
      %3100 = vmatpush1.msra.mxu0 0.0
      %3101 = vmatprep.subr.mxu0 0.0
      %3102 = vmatpush1.msra.mxu0 0.0
      %3103 = vmatprep.subr.mxu0 0.0
      %3104 = vmatpush1.msra.mxu0 0.0
      %3105 = vmatprep.subr.mxu0 0.0
      %3106 = vmatpush1.msra.mxu0 0.0
      %3107 = vmatprep.subr.mxu0 %v2912
      %3108 = vmatpush1.msra.mxu0 %v2911
      %3109 = vmatprep.subr.mxu0 %v2896
      %3110 = vmatpush1.msra.mxu0 %v2895
      %3111 = vmatprep.subr.mxu0 %v2880
      %3112 = vmatpush1.msra.mxu0 %v2879
      %3113 = vmatprep.subr.mxu0 %v2864
      %3114 = vmatpush1.msra.mxu0 %v2863
      %3115 = vmatprep.subr.mxu0 0.0
      %3116 = vmatpush2.msra.mxu0 0.0
      %3117 = vmatprep.subr.mxu0 0.0
      %3118 = vmatpush2.msra.mxu0 0.0
      %3119 = vmatprep.subr.mxu0 0.0
      %3120 = vmatpush2.msra.mxu0 0.0
      %3121 = vmatprep.subr.mxu0 0.0
      %3122 = vmatpush2.msra.mxu0 0.0
      %3123 = vmatprep.subr.mxu0 0.0
      %3124 = vmatpush2.msra.mxu0 0.0
      %3125 = vmatprep.subr.mxu0 0.0
      %3126 = vmatpush2.msra.mxu0 0.0
      %3127 = vmatprep.subr.mxu0 0.0
      %3128 = vmatpush2.msra.mxu0 0.0
      %3129 = vmatprep.subr.mxu0 0.0
      %3130 = vmatpush2.msra.mxu0 0.0
      %3131 = vmatprep.subr.mxu0 0.0
      %3132 = vmatpush2.msra.mxu0 0.0
      %3133 = vmatprep.subr.mxu0 0.0
      %3134 = vmatpush2.msra.mxu0 0.0
      %3135 = vmatprep.subr.mxu0 0.0
      %3136 = vmatpush2.msra.mxu0 0.0
      %3137 = vmatprep.subr.mxu0 0.0
      %3138 = vmatpush2.msra.mxu0 0.0
      %3139 = vmatprep.subr.mxu0 0.0
      %3140 = vmatpush2.msra.mxu0 0.0
      %3141 = vmatprep.subr.mxu0 0.0
      %3142 = vmatpush2.msra.mxu0 0.0
      %3143 = vmatprep.subr.mxu0 0.0
      %3144 = vmatpush2.msra.mxu0 0.0
      %3145 = vmatprep.subr.mxu0 0.0
      %3146 = vmatpush2.msra.mxu0 0.0
      %3147 = vmatprep.mubr.f32.mxu0 0.0
      %3148 = vmatmul.mubr.f32.gmra.mxu0 %v3010
      %v3149 = vpop.f32.mrf.mxu0
      %v3150 = vadd.f32 %v2940, %v3149
      %v3151 = vpop.f32.mrf.mxu0
      %v3152 = vadd.f32 %v2944, %v3151
      %3153 = vdwg.mxu0
      %3154 = vmatprep.subr.mxu0 0.0
      %3155 = vmatpush1.msra.mxu0 0.0
      %3156 = vmatprep.subr.mxu0 0.0
      %3157 = vmatpush1.msra.mxu0 0.0
      %3158 = vmatprep.subr.mxu0 0.0
      %3159 = vmatpush1.msra.mxu0 0.0
      %3160 = vmatprep.subr.mxu0 0.0
      %3161 = vmatpush1.msra.mxu0 0.0
      %3162 = vmatprep.subr.mxu0 0.0
      %3163 = vmatpush1.msra.mxu0 0.0
      %3164 = vmatprep.subr.mxu0 0.0
      %3165 = vmatpush1.msra.mxu0 0.0
      %3166 = vmatprep.subr.mxu0 0.0
      %3167 = vmatpush1.msra.mxu0 0.0
      %3168 = vmatprep.subr.mxu0 0.0
      %3169 = vmatpush1.msra.mxu0 0.0
      %3170 = vmatprep.subr.mxu0 0.0
      %3171 = vmatpush1.msra.mxu0 0.0
      %3172 = vmatprep.subr.mxu0 0.0
      %3173 = vmatpush1.msra.mxu0 0.0
      %3174 = vmatprep.subr.mxu0 0.0
      %3175 = vmatpush1.msra.mxu0 0.0
      %3176 = vmatprep.subr.mxu0 0.0
      %3177 = vmatpush1.msra.mxu0 0.0
      %3178 = vmatprep.subr.mxu0 %v2914
      %3179 = vmatpush1.msra.mxu0 %v2913
      %3180 = vmatprep.subr.mxu0 %v2898
      %3181 = vmatpush1.msra.mxu0 %v2897
      %3182 = vmatprep.subr.mxu0 %v2882
      %3183 = vmatpush1.msra.mxu0 %v2881
      %3184 = vmatprep.subr.mxu0 %v2866
      %3185 = vmatpush1.msra.mxu0 %v2865
      %3186 = vmatprep.subr.mxu0 0.0
      %3187 = vmatpush2.msra.mxu0 0.0
      %3188 = vmatprep.subr.mxu0 0.0
      %3189 = vmatpush2.msra.mxu0 0.0
      %3190 = vmatprep.subr.mxu0 0.0
      %3191 = vmatpush2.msra.mxu0 0.0
      %3192 = vmatprep.subr.mxu0 0.0
      %3193 = vmatpush2.msra.mxu0 0.0
      %3194 = vmatprep.subr.mxu0 0.0
      %3195 = vmatpush2.msra.mxu0 0.0
      %3196 = vmatprep.subr.mxu0 0.0
      %3197 = vmatpush2.msra.mxu0 0.0
      %3198 = vmatprep.subr.mxu0 0.0
      %3199 = vmatpush2.msra.mxu0 0.0
      %3200 = vmatprep.subr.mxu0 0.0
      %3201 = vmatpush2.msra.mxu0 0.0
      %3202 = vmatprep.subr.mxu0 0.0
      %3203 = vmatpush2.msra.mxu0 0.0
      %3204 = vmatprep.subr.mxu0 0.0
      %3205 = vmatpush2.msra.mxu0 0.0
      %3206 = vmatprep.subr.mxu0 0.0
      %3207 = vmatpush2.msra.mxu0 0.0
      %3208 = vmatprep.subr.mxu0 0.0
      %3209 = vmatpush2.msra.mxu0 0.0
      %3210 = vmatprep.subr.mxu0 0.0
      %3211 = vmatpush2.msra.mxu0 0.0
      %3212 = vmatprep.subr.mxu0 0.0
      %3213 = vmatpush2.msra.mxu0 0.0
      %3214 = vmatprep.subr.mxu0 0.0
      %3215 = vmatpush2.msra.mxu0 0.0
      %3216 = vmatprep.subr.mxu0 0.0
      %3217 = vmatpush2.msra.mxu0 0.0
      %3218 = vmatprep.mubr.f32.mxu0 0.0
      %3219 = vmatmul.mubr.f32.gmra.mxu0 %v3010
      %v3220 = vpop.f32.mrf.mxu0
      %v3221 = vadd.f32 %v2948, %v3220
      %v3222 = vpop.f32.mrf.mxu0
      %v3223 = vadd.f32 %v2952, %v3222
      %3224 = vdwg.mxu0
      %3225 = vmatprep.subr.mxu0 0.0
      %3226 = vmatpush1.msra.mxu0 0.0
      %3227 = vmatprep.subr.mxu0 0.0
      %3228 = vmatpush1.msra.mxu0 0.0
      %3229 = vmatprep.subr.mxu0 0.0
      %3230 = vmatpush1.msra.mxu0 0.0
      %3231 = vmatprep.subr.mxu0 0.0
      %3232 = vmatpush1.msra.mxu0 0.0
      %3233 = vmatprep.subr.mxu0 0.0
      %3234 = vmatpush1.msra.mxu0 0.0
      %3235 = vmatprep.subr.mxu0 0.0
      %3236 = vmatpush1.msra.mxu0 0.0
      %3237 = vmatprep.subr.mxu0 0.0
      %3238 = vmatpush1.msra.mxu0 0.0
      %3239 = vmatprep.subr.mxu0 0.0
      %3240 = vmatpush1.msra.mxu0 0.0
      %3241 = vmatprep.subr.mxu0 0.0
      %3242 = vmatpush1.msra.mxu0 0.0
      %3243 = vmatprep.subr.mxu0 0.0
      %3244 = vmatpush1.msra.mxu0 0.0
      %3245 = vmatprep.subr.mxu0 0.0
      %3246 = vmatpush1.msra.mxu0 0.0
      %3247 = vmatprep.subr.mxu0 0.0
      %3248 = vmatpush1.msra.mxu0 0.0
      %3249 = vmatprep.subr.mxu0 %v2916
      %3250 = vmatpush1.msra.mxu0 %v2915
      %3251 = vmatprep.subr.mxu0 %v2900
      %3252 = vmatpush1.msra.mxu0 %v2899
      %3253 = vmatprep.subr.mxu0 %v2884
      %3254 = vmatpush1.msra.mxu0 %v2883
      %3255 = vmatprep.subr.mxu0 %v2868
      %3256 = vmatpush1.msra.mxu0 %v2867
      %3257 = vmatprep.subr.mxu0 0.0
      %3258 = vmatpush2.msra.mxu0 0.0
      %3259 = vmatprep.subr.mxu0 0.0
      %3260 = vmatpush2.msra.mxu0 0.0
      %3261 = vmatprep.subr.mxu0 0.0
      %3262 = vmatpush2.msra.mxu0 0.0
      %3263 = vmatprep.subr.mxu0 0.0
      %3264 = vmatpush2.msra.mxu0 0.0
      %3265 = vmatprep.subr.mxu0 0.0
      %3266 = vmatpush2.msra.mxu0 0.0
      %3267 = vmatprep.subr.mxu0 0.0
      %3268 = vmatpush2.msra.mxu0 0.0
      %3269 = vmatprep.subr.mxu0 0.0
      %3270 = vmatpush2.msra.mxu0 0.0
      %3271 = vmatprep.subr.mxu0 0.0
      %3272 = vmatpush2.msra.mxu0 0.0
      %3273 = vmatprep.subr.mxu0 0.0
      %3274 = vmatpush2.msra.mxu0 0.0
      %3275 = vmatprep.subr.mxu0 0.0
      %3276 = vmatpush2.msra.mxu0 0.0
      %3277 = vmatprep.subr.mxu0 0.0
      %3278 = vmatpush2.msra.mxu0 0.0
      %3279 = vmatprep.subr.mxu0 0.0
      %3280 = vmatpush2.msra.mxu0 0.0
      %3281 = vmatprep.subr.mxu0 0.0
      %3282 = vmatpush2.msra.mxu0 0.0
      %3283 = vmatprep.subr.mxu0 0.0
      %3284 = vmatpush2.msra.mxu0 0.0
      %3285 = vmatprep.subr.mxu0 0.0
      %3286 = vmatpush2.msra.mxu0 0.0
      %3287 = vmatprep.subr.mxu0 0.0
      %3288 = vmatpush2.msra.mxu0 0.0
      %3289 = vmatprep.mubr.f32.mxu0 0.0
      %3290 = vmatmul.mubr.f32.gmra.mxu0 %v3010
      %v3291 = vpop.f32.mrf.mxu0
      %v3292 = vadd.f32 %v2956, %v3291
      %v3293 = vpop.f32.mrf.mxu0
      %v3294 = vadd.f32 %v2960, %v3293
      %3295 = vdwg.mxu0
      %3296 = vmatprep.subr.mxu0 0.0
      %3297 = vmatpush1.msra.mxu0 0.0
      %3298 = vmatprep.subr.mxu0 0.0
      %3299 = vmatpush1.msra.mxu0 0.0
      %3300 = vmatprep.subr.mxu0 0.0
      %3301 = vmatpush1.msra.mxu0 0.0
      %3302 = vmatprep.subr.mxu0 0.0
      %3303 = vmatpush1.msra.mxu0 0.0
      %3304 = vmatprep.subr.mxu0 0.0
      %3305 = vmatpush1.msra.mxu0 0.0
      %3306 = vmatprep.subr.mxu0 0.0
      %3307 = vmatpush1.msra.mxu0 0.0
      %3308 = vmatprep.subr.mxu0 0.0
      %3309 = vmatpush1.msra.mxu0 0.0
      %3310 = vmatprep.subr.mxu0 0.0
      %3311 = vmatpush1.msra.mxu0 0.0
      %3312 = vmatprep.subr.mxu0 0.0
      %3313 = vmatpush1.msra.mxu0 0.0
      %3314 = vmatprep.subr.mxu0 0.0
      %3315 = vmatpush1.msra.mxu0 0.0
      %3316 = vmatprep.subr.mxu0 0.0
      %3317 = vmatpush1.msra.mxu0 0.0
      %3318 = vmatprep.subr.mxu0 0.0
      %3319 = vmatpush1.msra.mxu0 0.0
      %3320 = vmatprep.subr.mxu0 %v2918
      %3321 = vmatpush1.msra.mxu0 %v2917
      %3322 = vmatprep.subr.mxu0 %v2902
      %3323 = vmatpush1.msra.mxu0 %v2901
      %3324 = vmatprep.subr.mxu0 %v2886
      %3325 = vmatpush1.msra.mxu0 %v2885
      %3326 = vmatprep.subr.mxu0 %v2870
      %3327 = vmatpush1.msra.mxu0 %v2869
      %3328 = vmatprep.subr.mxu0 0.0
      %3329 = vmatpush2.msra.mxu0 0.0
      %3330 = vmatprep.subr.mxu0 0.0
      %3331 = vmatpush2.msra.mxu0 0.0
      %3332 = vmatprep.subr.mxu0 0.0
      %3333 = vmatpush2.msra.mxu0 0.0
      %3334 = vmatprep.subr.mxu0 0.0
      %3335 = vmatpush2.msra.mxu0 0.0
      %3336 = vmatprep.subr.mxu0 0.0
      %3337 = vmatpush2.msra.mxu0 0.0
      %3338 = vmatprep.subr.mxu0 0.0
      %3339 = vmatpush2.msra.mxu0 0.0
      %3340 = vmatprep.subr.mxu0 0.0
      %3341 = vmatpush2.msra.mxu0 0.0
      %3342 = vmatprep.subr.mxu0 0.0
      %3343 = vmatpush2.msra.mxu0 0.0
      %3344 = vmatprep.subr.mxu0 0.0
      %3345 = vmatpush2.msra.mxu0 0.0
      %3346 = vmatprep.subr.mxu0 0.0
      %3347 = vmatpush2.msra.mxu0 0.0
      %3348 = vmatprep.subr.mxu0 0.0
      %3349 = vmatpush2.msra.mxu0 0.0
      %3350 = vmatprep.subr.mxu0 0.0
      %3351 = vmatpush2.msra.mxu0 0.0
      %3352 = vmatprep.subr.mxu0 0.0
      %3353 = vmatpush2.msra.mxu0 0.0
      %3354 = vmatprep.subr.mxu0 0.0
      %3355 = vmatpush2.msra.mxu0 0.0
      %3356 = vmatprep.subr.mxu0 0.0
      %3357 = vmatpush2.msra.mxu0 0.0
      %3358 = vmatprep.subr.mxu0 0.0
      %3359 = vmatpush2.msra.mxu0 0.0
      %3360 = vmatprep.mubr.f32.mxu0 0.0
      %3361 = vmatmul.mubr.f32.gmra.mxu0 %v3010
      %v3362 = vpop.f32.mrf.mxu0
      %v3363 = vadd.f32 %v2964, %v3362
      %v3364 = vpop.f32.mrf.mxu0
      %v3365 = vadd.f32 %v2968, %v3364
      %3366 = vdwg.mxu0
      %3367 = vmatprep.subr.mxu0 0.0
      %3368 = vmatpush1.msra.mxu0 0.0
      %3369 = vmatprep.subr.mxu0 0.0
      %3370 = vmatpush1.msra.mxu0 0.0
      %3371 = vmatprep.subr.mxu0 0.0
      %3372 = vmatpush1.msra.mxu0 0.0
      %3373 = vmatprep.subr.mxu0 0.0
      %3374 = vmatpush1.msra.mxu0 0.0
      %3375 = vmatprep.subr.mxu0 0.0
      %3376 = vmatpush1.msra.mxu0 0.0
      %3377 = vmatprep.subr.mxu0 0.0
      %3378 = vmatpush1.msra.mxu0 0.0
      %3379 = vmatprep.subr.mxu0 0.0
      %3380 = vmatpush1.msra.mxu0 0.0
      %3381 = vmatprep.subr.mxu0 0.0
      %3382 = vmatpush1.msra.mxu0 0.0
      %3383 = vmatprep.subr.mxu0 0.0
      %3384 = vmatpush1.msra.mxu0 0.0
      %3385 = vmatprep.subr.mxu0 0.0
      %3386 = vmatpush1.msra.mxu0 0.0
      %3387 = vmatprep.subr.mxu0 0.0
      %3388 = vmatpush1.msra.mxu0 0.0
      %3389 = vmatprep.subr.mxu0 0.0
      %3390 = vmatpush1.msra.mxu0 0.0
      %3391 = vmatprep.subr.mxu0 %v2920
      %3392 = vmatpush1.msra.mxu0 %v2919
      %3393 = vmatprep.subr.mxu0 %v2904
      %3394 = vmatpush1.msra.mxu0 %v2903
      %3395 = vmatprep.subr.mxu0 %v2888
      %3396 = vmatpush1.msra.mxu0 %v2887
      %3397 = vmatprep.subr.mxu0 %v2872
      %3398 = vmatpush1.msra.mxu0 %v2871
      %3399 = vmatprep.subr.mxu0 0.0
      %3400 = vmatpush2.msra.mxu0 0.0
      %3401 = vmatprep.subr.mxu0 0.0
      %3402 = vmatpush2.msra.mxu0 0.0
      %3403 = vmatprep.subr.mxu0 0.0
      %3404 = vmatpush2.msra.mxu0 0.0
      %3405 = vmatprep.subr.mxu0 0.0
      %3406 = vmatpush2.msra.mxu0 0.0
      %3407 = vmatprep.subr.mxu0 0.0
      %3408 = vmatpush2.msra.mxu0 0.0
      %3409 = vmatprep.subr.mxu0 0.0
      %3410 = vmatpush2.msra.mxu0 0.0
      %3411 = vmatprep.subr.mxu0 0.0
      %3412 = vmatpush2.msra.mxu0 0.0
      %3413 = vmatprep.subr.mxu0 0.0
      %3414 = vmatpush2.msra.mxu0 0.0
      %3415 = vmatprep.subr.mxu0 0.0
      %3416 = vmatpush2.msra.mxu0 0.0
      %3417 = vmatprep.subr.mxu0 0.0
      %3418 = vmatpush2.msra.mxu0 0.0
      %3419 = vmatprep.subr.mxu0 0.0
      %3420 = vmatpush2.msra.mxu0 0.0
      %3421 = vmatprep.subr.mxu0 0.0
      %3422 = vmatpush2.msra.mxu0 0.0
      %3423 = vmatprep.subr.mxu0 0.0
      %3424 = vmatpush2.msra.mxu0 0.0
      %3425 = vmatprep.subr.mxu0 0.0
      %3426 = vmatpush2.msra.mxu0 0.0
      %3427 = vmatprep.subr.mxu0 0.0
      %3428 = vmatpush2.msra.mxu0 0.0
      %3429 = vmatprep.subr.mxu0 0.0
      %3430 = vmatpush2.msra.mxu0 0.0
      %3431 = vmatprep.mubr.f32.mxu0 0.0
      %3432 = vmatmul.mubr.f32.gmra.mxu0 %v3010
      %v3433 = vpop.f32.mrf.mxu0
      %v3434 = vadd.f32 %v2972, %v3433
      %v3435 = vpop.f32.mrf.mxu0
      %v3436 = vadd.f32 %v2976, %v3435
      %3437 = vdwg.mxu0
      %3438 = vmatprep.subr.mxu0 0.0
      %3439 = vmatpush1.msra.mxu0 0.0
      %3440 = vmatprep.subr.mxu0 0.0
      %3441 = vmatpush1.msra.mxu0 0.0
      %3442 = vmatprep.subr.mxu0 0.0
      %3443 = vmatpush1.msra.mxu0 0.0
      %3444 = vmatprep.subr.mxu0 0.0
      %3445 = vmatpush1.msra.mxu0 0.0
      %3446 = vmatprep.subr.mxu0 0.0
      %3447 = vmatpush1.msra.mxu0 0.0
      %3448 = vmatprep.subr.mxu0 0.0
      %3449 = vmatpush1.msra.mxu0 0.0
      %3450 = vmatprep.subr.mxu0 0.0
      %3451 = vmatpush1.msra.mxu0 0.0
      %3452 = vmatprep.subr.mxu0 0.0
      %3453 = vmatpush1.msra.mxu0 0.0
      %3454 = vmatprep.subr.mxu0 0.0
      %3455 = vmatpush1.msra.mxu0 0.0
      %3456 = vmatprep.subr.mxu0 0.0
      %3457 = vmatpush1.msra.mxu0 0.0
      %3458 = vmatprep.subr.mxu0 0.0
      %3459 = vmatpush1.msra.mxu0 0.0
      %3460 = vmatprep.subr.mxu0 0.0
      %3461 = vmatpush1.msra.mxu0 0.0
      %3462 = vmatprep.subr.mxu0 %v2922
      %3463 = vmatpush1.msra.mxu0 %v2921
      %3464 = vmatprep.subr.mxu0 %v2906
      %3465 = vmatpush1.msra.mxu0 %v2905
      %3466 = vmatprep.subr.mxu0 %v2890
      %3467 = vmatpush1.msra.mxu0 %v2889
      %3468 = vmatprep.subr.mxu0 %v2874
      %3469 = vmatpush1.msra.mxu0 %v2873
      %3470 = vmatprep.subr.mxu0 0.0
      %3471 = vmatpush2.msra.mxu0 0.0
      %3472 = vmatprep.subr.mxu0 0.0
      %3473 = vmatpush2.msra.mxu0 0.0
      %3474 = vmatprep.subr.mxu0 0.0
      %3475 = vmatpush2.msra.mxu0 0.0
      %3476 = vmatprep.subr.mxu0 0.0
      %3477 = vmatpush2.msra.mxu0 0.0
      %3478 = vmatprep.subr.mxu0 0.0
      %3479 = vmatpush2.msra.mxu0 0.0
      %3480 = vmatprep.subr.mxu0 0.0
      %3481 = vmatpush2.msra.mxu0 0.0
      %3482 = vmatprep.subr.mxu0 0.0
      %3483 = vmatpush2.msra.mxu0 0.0
      %3484 = vmatprep.subr.mxu0 0.0
      %3485 = vmatpush2.msra.mxu0 0.0
      %3486 = vmatprep.subr.mxu0 0.0
      %3487 = vmatpush2.msra.mxu0 0.0
      %3488 = vmatprep.subr.mxu0 0.0
      %3489 = vmatpush2.msra.mxu0 0.0
      %3490 = vmatprep.subr.mxu0 0.0
      %3491 = vmatpush2.msra.mxu0 0.0
      %3492 = vmatprep.subr.mxu0 0.0
      %3493 = vmatpush2.msra.mxu0 0.0
      %3494 = vmatprep.subr.mxu0 0.0
      %3495 = vmatpush2.msra.mxu0 0.0
      %3496 = vmatprep.subr.mxu0 0.0
      %3497 = vmatpush2.msra.mxu0 0.0
      %3498 = vmatprep.subr.mxu0 0.0
      %3499 = vmatpush2.msra.mxu0 0.0
      %3500 = vmatprep.subr.mxu0 0.0
      %3501 = vmatpush2.msra.mxu0 0.0
      %3502 = vmatprep.mubr.f32.mxu0 0.0
      %3503 = vmatmul.mubr.f32.gmra.mxu0 %v3010
      %v3504 = vpop.f32.mrf.mxu0
      %v3505 = vadd.f32 %v2980, %v3504
      %v3506 = vpop.f32.mrf.mxu0
      %v3507 = vadd.f32 %v2984, %v3506
      %3508 = vdwg.mxu0
      %3509 = vmatprep.subr.mxu0 0.0
      %3510 = vmatpush1.msra.mxu0 0.0
      %3511 = vmatprep.subr.mxu0 0.0
      %3512 = vmatpush1.msra.mxu0 0.0
      %3513 = vmatprep.subr.mxu0 0.0
      %3514 = vmatpush1.msra.mxu0 0.0
      %3515 = vmatprep.subr.mxu0 0.0
      %3516 = vmatpush1.msra.mxu0 0.0
      %3517 = vmatprep.subr.mxu0 0.0
      %3518 = vmatpush1.msra.mxu0 0.0
      %3519 = vmatprep.subr.mxu0 0.0
      %3520 = vmatpush1.msra.mxu0 0.0
      %3521 = vmatprep.subr.mxu0 0.0
      %3522 = vmatpush1.msra.mxu0 0.0
      %3523 = vmatprep.subr.mxu0 0.0
      %3524 = vmatpush1.msra.mxu0 0.0
      %3525 = vmatprep.subr.mxu0 0.0
      %3526 = vmatpush1.msra.mxu0 0.0
      %3527 = vmatprep.subr.mxu0 0.0
      %3528 = vmatpush1.msra.mxu0 0.0
      %3529 = vmatprep.subr.mxu0 0.0
      %3530 = vmatpush1.msra.mxu0 0.0
      %3531 = vmatprep.subr.mxu0 0.0
      %3532 = vmatpush1.msra.mxu0 0.0
      %3533 = vmatprep.subr.mxu0 %v2924
      %3534 = vmatpush1.msra.mxu0 %v2923
      %3535 = vmatprep.subr.mxu0 %v2908
      %3536 = vmatpush1.msra.mxu0 %v2907
      %3537 = vmatprep.subr.mxu0 %v2892
      %3538 = vmatpush1.msra.mxu0 %v2891
      %3539 = vmatprep.subr.mxu0 %v2876
      %3540 = vmatpush1.msra.mxu0 %v2875
      %3541 = vmatprep.subr.mxu0 0.0
      %3542 = vmatpush2.msra.mxu0 0.0
      %3543 = vmatprep.subr.mxu0 0.0
      %3544 = vmatpush2.msra.mxu0 0.0
      %3545 = vmatprep.subr.mxu0 0.0
      %3546 = vmatpush2.msra.mxu0 0.0
      %3547 = vmatprep.subr.mxu0 0.0
      %3548 = vmatpush2.msra.mxu0 0.0
      %3549 = vmatprep.subr.mxu0 0.0
      %3550 = vmatpush2.msra.mxu0 0.0
      %3551 = vmatprep.subr.mxu0 0.0
      %3552 = vmatpush2.msra.mxu0 0.0
      %3553 = vmatprep.subr.mxu0 0.0
      %3554 = vmatpush2.msra.mxu0 0.0
      %3555 = vmatprep.subr.mxu0 0.0
      %3556 = vmatpush2.msra.mxu0 0.0
      %3557 = vmatprep.subr.mxu0 0.0
      %3558 = vmatpush2.msra.mxu0 0.0
      %3559 = vmatprep.subr.mxu0 0.0
      %3560 = vmatpush2.msra.mxu0 0.0
      %3561 = vmatprep.subr.mxu0 0.0
      %3562 = vmatpush2.msra.mxu0 0.0
      %3563 = vmatprep.subr.mxu0 0.0
      %3564 = vmatpush2.msra.mxu0 0.0
      %3565 = vmatprep.subr.mxu0 0.0
      %3566 = vmatpush2.msra.mxu0 0.0
      %3567 = vmatprep.subr.mxu0 0.0
      %3568 = vmatpush2.msra.mxu0 0.0
      %3569 = vmatprep.subr.mxu0 0.0
      %3570 = vmatpush2.msra.mxu0 0.0
      %3571 = vmatprep.subr.mxu0 0.0
      %3572 = vmatpush2.msra.mxu0 0.0
      %3573 = vmatprep.mubr.f32.mxu0 0.0
      %3574 = vmatmul.mubr.f32.gmra.mxu0 %v3010
      %v3575 = vpop.f32.mrf.mxu0
      %v3576 = vadd.f32 %v2988, %v3575
      %v3577 = vpop.f32.mrf.mxu0
      %v3578 = vadd.f32 %v2992, %v3577
      %3579 = vdwg.mxu0
      %v3580 = vmax.f32 %v3079, 0.0
      %v3581 = vmax.f32 %v3081, 0.0
      %v3582 = vmax.f32 %v3150, 0.0
      %v3583 = vmax.f32 %v3152, 0.0
      %v3584 = vmax.f32 %v3221, 0.0
      %v3585 = vmax.f32 %v3223, 0.0
      %v3586 = vmax.f32 %v3292, 0.0
      %v3587 = vmax.f32 %v3294, 0.0
      %v3588 = vmax.f32 %v3363, 0.0
      %v3589 = vmax.f32 %v3365, 0.0
      %v3590 = vmax.f32 %v3434, 0.0
      %v3591 = vmax.f32 %v3436, 0.0
      %v3592 = vmax.f32 %v3505, 0.0
      %v3593 = vmax.f32 %v3507, 0.0
      %v3594 = vmax.f32 %v3576, 0.0
      %v3595 = vmax.f32 %v3578, 0.0
      %v3596 = vld [vmem:[%s15] sm:$0xff]
      %v3597 = vld [vmem:[%s15 + $0x8] sm:$0xff]
      %v3598 = vld [vmem:[%s15 + $0x10] sm:$0xff]
      %v3599 = vld [vmem:[%s15 + $0x18] sm:$0xff]
      %v3600 = vld [vmem:[%s15 + $0x20] sm:$0xff]
      %v3601 = vld [vmem:[%s15 + $0x28] sm:$0xff]
      %v3602 = vld [vmem:[%s15 + $0x30] sm:$0xff]
      %v3603 = vld [vmem:[%s15 + $0x38] sm:$0xff]
      %v3604 = vld [vmem:[%s15 + $0x40] sm:$0xff]
      %v3605 = vld [vmem:[%s15 + $0x48] sm:$0xff]
      %v3606 = vld [vmem:[%s15 + $0x50] sm:$0xff]
      %v3607 = vld [vmem:[%s15 + $0x58] sm:$0xff]
      %v3608 = vld [vmem:[%s15 + $0x60] sm:$0xff]
      %v3609 = vld [vmem:[%s15 + $0x68] sm:$0xff]
      %v3610 = vld [vmem:[%s15 + $0x70] sm:$0xff]
      %v3611 = vld [vmem:[%s15 + $0x78] sm:$0xff]
      %v3612 = vld [vmem:[%s15 + $0x80] sm:$0xff]
      %v3613 = vld [vmem:[%s15 + $0x88] sm:$0xff]
      %v3614 = vld [vmem:[%s15 + $0x90] sm:$0xff]
      %v3615 = vld [vmem:[%s15 + $0x98] sm:$0xff]
      %v3616 = vld [vmem:[%s15 + $0xa0] sm:$0xff]
      %v3617 = vld [vmem:[%s15 + $0xa8] sm:$0xff]
      %v3618 = vld [vmem:[%s15 + $0xb0] sm:$0xff]
      %v3619 = vld [vmem:[%s15 + $0xb8] sm:$0xff]
      %v3620 = vld [vmem:[%s15 + $0xc0] sm:$0xff]
      %v3621 = vld [vmem:[%s15 + $0xc8] sm:$0xff]
      %v3622 = vld [vmem:[%s15 + $0xd0] sm:$0xff]
      %v3623 = vld [vmem:[%s15 + $0xd8] sm:$0xff]
      %v3624 = vld [vmem:[%s15 + $0xe0] sm:$0xff]
      %v3625 = vld [vmem:[%s15 + $0xe8] sm:$0xff]
      %v3626 = vld [vmem:[%s15 + $0xf0] sm:$0xff]
      %v3627 = vld [vmem:[%s15 + $0xf8] sm:$0xff]
      %v3628 = vld [vmem:[%s15 + $0x100] sm:$0xff]
      %v3629 = vld [vmem:[%s15 + $0x108] sm:$0xff]
      %v3630 = vld [vmem:[%s15 + $0x110] sm:$0xff]
      %v3631 = vld [vmem:[%s15 + $0x118] sm:$0xff]
      %v3632 = vld [vmem:[%s15 + $0x120] sm:$0xff]
      %v3633 = vld [vmem:[%s15 + $0x128] sm:$0xff]
      %v3634 = vld [vmem:[%s15 + $0x130] sm:$0xff]
      %v3635 = vld [vmem:[%s15 + $0x138] sm:$0xff]
      %v3636 = vld [vmem:[%s15 + $0x140] sm:$0xff]
      %v3637 = vld [vmem:[%s15 + $0x148] sm:$0xff]
      %v3638 = vld [vmem:[%s15 + $0x150] sm:$0xff]
      %v3639 = vld [vmem:[%s15 + $0x158] sm:$0xff]
      %v3640 = vld [vmem:[%s15 + $0x160] sm:$0xff]
      %v3641 = vld [vmem:[%s15 + $0x168] sm:$0xff]
      %v3642 = vld [vmem:[%s15 + $0x170] sm:$0xff]
      %v3643 = vld [vmem:[%s15 + $0x178] sm:$0xff]
      %v3644 = vld [vmem:[%s15 + $0x180] sm:$0xff]
      %v3645 = vld [vmem:[%s15 + $0x188] sm:$0xff]
      %v3646 = vld [vmem:[%s15 + $0x190] sm:$0xff]
      %v3647 = vld [vmem:[%s15 + $0x198] sm:$0xff]
      %v3648 = vld [vmem:[%s15 + $0x1a0] sm:$0xff]
      %v3649 = vld [vmem:[%s15 + $0x1a8] sm:$0xff]
      %v3650 = vld [vmem:[%s15 + $0x1b0] sm:$0xff]
      %v3651 = vld [vmem:[%s15 + $0x1b8] sm:$0xff]
      %v3652 = vld [vmem:[%s15 + $0x1c0] sm:$0xff]
      %v3653 = vld [vmem:[%s15 + $0x1c8] sm:$0xff]
      %v3654 = vld [vmem:[%s15 + $0x1d0] sm:$0xff]
      %v3655 = vld [vmem:[%s15 + $0x1d8] sm:$0xff]
      %v3656 = vld [vmem:[%s15 + $0x1e0] sm:$0xff]
      %v3657 = vld [vmem:[%s15 + $0x1e8] sm:$0xff]
      %v3658 = vld [vmem:[%s15 + $0x1f0] sm:$0xff]
      %v3659 = vld [vmem:[%s15 + $0x1f8] sm:$0xff]
      %v3660 = vld [vmem:[%s15 + $0x200] sm:$0xff]
      %v3661 = vld [vmem:[%s15 + $0x208] sm:$0xff]
      %v3662 = vld [vmem:[%s15 + $0x210] sm:$0xff]
      %v3663 = vld [vmem:[%s15 + $0x218] sm:$0xff]
      %v3664 = vld [vmem:[%s15 + $0x220] sm:$0xff]
      %v3665 = vld [vmem:[%s15 + $0x228] sm:$0xff]
      %v3666 = vld [vmem:[%s15 + $0x230] sm:$0xff]
      %v3667 = vld [vmem:[%s15 + $0x238] sm:$0xff]
      %v3668 = vld [vmem:[%s15 + $0x240] sm:$0xff]
      %v3669 = vld [vmem:[%s15 + $0x248] sm:$0xff]
      %v3670 = vld [vmem:[%s15 + $0x250] sm:$0xff]
      %v3671 = vld [vmem:[%s15 + $0x258] sm:$0xff]
      %v3672 = vld [vmem:[%s15 + $0x260] sm:$0xff]
      %v3673 = vld [vmem:[%s15 + $0x268] sm:$0xff]
      %v3674 = vld [vmem:[%s15 + $0x270] sm:$0xff]
      %v3675 = vld [vmem:[%s15 + $0x278] sm:$0xff]
      %v3676 = vld [vmem:[%s15 + $0x280] sm:$0xff]
      %v3677 = vld [vmem:[%s15 + $0x288] sm:$0xff]
      %v3678 = vld [vmem:[%s15 + $0x290] sm:$0xff]
      %v3679 = vld [vmem:[%s15 + $0x298] sm:$0xff]
      %v3680 = vld [vmem:[%s15 + $0x2a0] sm:$0xff]
      %v3681 = vld [vmem:[%s15 + $0x2a8] sm:$0xff]
      %v3682 = vld [vmem:[%s15 + $0x2b0] sm:$0xff]
      %v3683 = vld [vmem:[%s15 + $0x2b8] sm:$0xff]
      %v3684 = vld [vmem:[%s15 + $0x2c0] sm:$0xff]
      %v3685 = vld [vmem:[%s15 + $0x2c8] sm:$0xff]
      %v3686 = vld [vmem:[%s15 + $0x2d0] sm:$0xff]
      %v3687 = vld [vmem:[%s15 + $0x2d8] sm:$0xff]
      %v3688 = vld [vmem:[%s15 + $0x2e0] sm:$0xff]
      %v3689 = vld [vmem:[%s15 + $0x2e8] sm:$0xff]
      %v3690 = vld [vmem:[%s15 + $0x2f0] sm:$0xff]
      %v3691 = vld [vmem:[%s15 + $0x2f8] sm:$0xff]
      %v3692 = vld [vmem:[%s15 + $0x300] sm:$0xff]
      %v3693 = vld [vmem:[%s15 + $0x308] sm:$0xff]
      %v3694 = vld [vmem:[%s15 + $0x310] sm:$0xff]
      %v3695 = vld [vmem:[%s15 + $0x318] sm:$0xff]
      %v3696 = vld [vmem:[%s15 + $0x320] sm:$0xff]
      %v3697 = vld [vmem:[%s15 + $0x328] sm:$0xff]
      %v3698 = vld [vmem:[%s15 + $0x330] sm:$0xff]
      %v3699 = vld [vmem:[%s15 + $0x338] sm:$0xff]
      %v3700 = vld [vmem:[%s15 + $0x340] sm:$0xff]
      %v3701 = vld [vmem:[%s15 + $0x348] sm:$0xff]
      %v3702 = vld [vmem:[%s15 + $0x350] sm:$0xff]
      %v3703 = vld [vmem:[%s15 + $0x358] sm:$0xff]
      %v3704 = vld [vmem:[%s15 + $0x360] sm:$0xff]
      %v3705 = vld [vmem:[%s15 + $0x368] sm:$0xff]
      %v3706 = vld [vmem:[%s15 + $0x370] sm:$0xff]
      %v3707 = vld [vmem:[%s15 + $0x378] sm:$0xff]
      %v3708 = vld [vmem:[%s15 + $0x380] sm:$0xff]
      %v3709 = vld [vmem:[%s15 + $0x388] sm:$0xff]
      %v3710 = vld [vmem:[%s15 + $0x390] sm:$0xff]
      %v3711 = vld [vmem:[%s15 + $0x398] sm:$0xff]
      %v3712 = vld [vmem:[%s15 + $0x3a0] sm:$0xff]
      %v3713 = vld [vmem:[%s15 + $0x3a8] sm:$0xff]
      %v3714 = vld [vmem:[%s15 + $0x3b0] sm:$0xff]
      %v3715 = vld [vmem:[%s15 + $0x3b8] sm:$0xff]
      %v3716 = vld [vmem:[%s15 + $0x3c0] sm:$0xff]
      %v3717 = vld [vmem:[%s15 + $0x3c8] sm:$0xff]
      %v3718 = vld [vmem:[%s15 + $0x3d0] sm:$0xff]
      %v3719 = vld [vmem:[%s15 + $0x3d8] sm:$0xff]
      %v3720 = vld [vmem:[%s15 + $0x3e0] sm:$0xff]
      %v3721 = vld [vmem:[%s15 + $0x3e8] sm:$0xff]
      %v3722 = vld [vmem:[%s15 + $0x3f0] sm:$0xff]
      %v3723 = vld [vmem:[%s15 + $0x3f8] sm:$0xff]
      %v3724 = vld [vmem:[%s15 + $0x400] sm:$0xff]
      %v3725 = vld [vmem:[%s15 + $0x408] sm:$0xff]
      %v3726 = vld [vmem:[%s15 + $0x410] sm:$0xff]
      %v3727 = vld [vmem:[%s15 + $0x418] sm:$0xff]
      %v3728 = vld [vmem:[%s15 + $0x420] sm:$0xff]
      %v3729 = vld [vmem:[%s15 + $0x428] sm:$0xff]
      %v3730 = vld [vmem:[%s15 + $0x430] sm:$0xff]
      %v3731 = vld [vmem:[%s15 + $0x438] sm:$0xff]
      %v3732 = vld [vmem:[%s15 + $0x440] sm:$0xff]
      %v3733 = vld [vmem:[%s15 + $0x448] sm:$0xff]
      %v3734 = vld [vmem:[%s15 + $0x450] sm:$0xff]
      %v3735 = vld [vmem:[%s15 + $0x458] sm:$0xff]
      %v3736 = vld [vmem:[%s15 + $0x460] sm:$0xff]
      %v3737 = vld [vmem:[%s15 + $0x468] sm:$0xff]
      %v3738 = vld [vmem:[%s15 + $0x470] sm:$0xff]
      %v3739 = vld [vmem:[%s15 + $0x478] sm:$0xff]
      %v3740 = vld [vmem:[%s15 + $0x480] sm:$0xff]
      %v3741 = vld [vmem:[%s15 + $0x488] sm:$0xff]
      %v3742 = vld [vmem:[%s15 + $0x490] sm:$0xff]
      %v3743 = vld [vmem:[%s15 + $0x498] sm:$0xff]
      %v3744 = vld [vmem:[%s15 + $0x4a0] sm:$0xff]
      %v3745 = vld [vmem:[%s15 + $0x4a8] sm:$0xff]
      %v3746 = vld [vmem:[%s15 + $0x4b0] sm:$0xff]
      %v3747 = vld [vmem:[%s15 + $0x4b8] sm:$0xff]
      %v3748 = vld [vmem:[%s15 + $0x4c0] sm:$0xff]
      %v3749 = vld [vmem:[%s15 + $0x4c8] sm:$0xff]
      %v3750 = vld [vmem:[%s15 + $0x4d0] sm:$0xff]
      %v3751 = vld [vmem:[%s15 + $0x4d8] sm:$0xff]
      %v3752 = vld [vmem:[%s15 + $0x4e0] sm:$0xff]
      %v3753 = vld [vmem:[%s15 + $0x4e8] sm:$0xff]
      %v3754 = vld [vmem:[%s15 + $0x4f0] sm:$0xff]
      %v3755 = vld [vmem:[%s15 + $0x4f8] sm:$0xff]
      %v3756 = vld [vmem:[%s15 + $0x500] sm:$0xff]
      %v3757 = vld [vmem:[%s15 + $0x508] sm:$0xff]
      %v3758 = vld [vmem:[%s15 + $0x510] sm:$0xff]
      %v3759 = vld [vmem:[%s15 + $0x518] sm:$0xff]
      %v3760 = vld [vmem:[%s15 + $0x520] sm:$0xff]
      %v3761 = vld [vmem:[%s15 + $0x528] sm:$0xff]
      %v3762 = vld [vmem:[%s15 + $0x530] sm:$0xff]
      %v3763 = vld [vmem:[%s15 + $0x538] sm:$0xff]
      %v3764 = vld [vmem:[%s15 + $0x540] sm:$0xff]
      %v3765 = vld [vmem:[%s15 + $0x548] sm:$0xff]
      %v3766 = vld [vmem:[%s15 + $0x550] sm:$0xff]
      %v3767 = vld [vmem:[%s15 + $0x558] sm:$0xff]
      %v3768 = vld [vmem:[%s15 + $0x560] sm:$0xff]
      %v3769 = vld [vmem:[%s15 + $0x568] sm:$0xff]
      %v3770 = vld [vmem:[%s15 + $0x570] sm:$0xff]
      %v3771 = vld [vmem:[%s15 + $0x578] sm:$0xff]
      %v3772 = vld [vmem:[%s15 + $0x580] sm:$0xff]
      %v3773 = vld [vmem:[%s15 + $0x588] sm:$0xff]
      %v3774 = vld [vmem:[%s15 + $0x590] sm:$0xff]
      %v3775 = vld [vmem:[%s15 + $0x598] sm:$0xff]
      %v3776 = vld [vmem:[%s15 + $0x5a0] sm:$0xff]
      %v3777 = vld [vmem:[%s15 + $0x5a8] sm:$0xff]
      %v3778 = vld [vmem:[%s15 + $0x5b0] sm:$0xff]
      %v3779 = vld [vmem:[%s15 + $0x5b8] sm:$0xff]
      %v3780 = vld [vmem:[%s15 + $0x5c0] sm:$0xff]
      %v3781 = vld [vmem:[%s15 + $0x5c8] sm:$0xff]
      %v3782 = vld [vmem:[%s15 + $0x5d0] sm:$0xff]
      %v3783 = vld [vmem:[%s15 + $0x5d8] sm:$0xff]
      %v3784 = vld [vmem:[%s15 + $0x5e0] sm:$0xff]
      %v3785 = vld [vmem:[%s15 + $0x5e8] sm:$0xff]
      %v3786 = vld [vmem:[%s15 + $0x5f0] sm:$0xff]
      %v3787 = vld [vmem:[%s15 + $0x5f8] sm:$0xff]
      %v3788 = vld [vmem:[%s15 + $0x600] sm:$0xff]
      %v3789 = vld [vmem:[%s15 + $0x608] sm:$0xff]
      %v3790 = vld [vmem:[%s15 + $0x610] sm:$0xff]
      %v3791 = vld [vmem:[%s15 + $0x618] sm:$0xff]
      %v3792 = vld [vmem:[%s15 + $0x620] sm:$0xff]
      %v3793 = vld [vmem:[%s15 + $0x628] sm:$0xff]
      %v3794 = vld [vmem:[%s15 + $0x630] sm:$0xff]
      %v3795 = vld [vmem:[%s15 + $0x638] sm:$0xff]
      %v3796 = vld [vmem:[%s15 + $0x640] sm:$0xff]
      %v3797 = vld [vmem:[%s15 + $0x648] sm:$0xff]
      %v3798 = vld [vmem:[%s15 + $0x650] sm:$0xff]
      %v3799 = vld [vmem:[%s15 + $0x658] sm:$0xff]
      %v3800 = vld [vmem:[%s15 + $0x660] sm:$0xff]
      %v3801 = vld [vmem:[%s15 + $0x668] sm:$0xff]
      %v3802 = vld [vmem:[%s15 + $0x670] sm:$0xff]
      %v3803 = vld [vmem:[%s15 + $0x678] sm:$0xff]
      %v3804 = vld [vmem:[%s15 + $0x680] sm:$0xff]
      %v3805 = vld [vmem:[%s15 + $0x688] sm:$0xff]
      %v3806 = vld [vmem:[%s15 + $0x690] sm:$0xff]
      %v3807 = vld [vmem:[%s15 + $0x698] sm:$0xff]
      %v3808 = vld [vmem:[%s15 + $0x6a0] sm:$0xff]
      %v3809 = vld [vmem:[%s15 + $0x6a8] sm:$0xff]
      %v3810 = vld [vmem:[%s15 + $0x6b0] sm:$0xff]
      %v3811 = vld [vmem:[%s15 + $0x6b8] sm:$0xff]
      %v3812 = vld [vmem:[%s15 + $0x6c0] sm:$0xff]
      %v3813 = vld [vmem:[%s15 + $0x6c8] sm:$0xff]
      %v3814 = vld [vmem:[%s15 + $0x6d0] sm:$0xff]
      %v3815 = vld [vmem:[%s15 + $0x6d8] sm:$0xff]
      %v3816 = vld [vmem:[%s15 + $0x6e0] sm:$0xff]
      %v3817 = vld [vmem:[%s15 + $0x6e8] sm:$0xff]
      %v3818 = vld [vmem:[%s15 + $0x6f0] sm:$0xff]
      %v3819 = vld [vmem:[%s15 + $0x6f8] sm:$0xff]
      %v3820 = vld [vmem:[%s15 + $0x700] sm:$0xff]
      %v3821 = vld [vmem:[%s15 + $0x708] sm:$0xff]
      %v3822 = vld [vmem:[%s15 + $0x710] sm:$0xff]
      %v3823 = vld [vmem:[%s15 + $0x718] sm:$0xff]
      %v3824 = vld [vmem:[%s15 + $0x720] sm:$0xff]
      %v3825 = vld [vmem:[%s15 + $0x728] sm:$0xff]
      %v3826 = vld [vmem:[%s15 + $0x730] sm:$0xff]
      %v3827 = vld [vmem:[%s15 + $0x738] sm:$0xff]
      %v3828 = vld [vmem:[%s15 + $0x740] sm:$0xff]
      %v3829 = vld [vmem:[%s15 + $0x748] sm:$0xff]
      %v3830 = vld [vmem:[%s15 + $0x750] sm:$0xff]
      %v3831 = vld [vmem:[%s15 + $0x758] sm:$0xff]
      %v3832 = vld [vmem:[%s15 + $0x760] sm:$0xff]
      %v3833 = vld [vmem:[%s15 + $0x768] sm:$0xff]
      %v3834 = vld [vmem:[%s15 + $0x770] sm:$0xff]
      %v3835 = vld [vmem:[%s15 + $0x778] sm:$0xff]
      %v3836 = vld [vmem:[%s15 + $0x780] sm:$0xff]
      %v3837 = vld [vmem:[%s15 + $0x788] sm:$0xff]
      %v3838 = vld [vmem:[%s15 + $0x790] sm:$0xff]
      %v3839 = vld [vmem:[%s15 + $0x798] sm:$0xff]
      %v3840 = vld [vmem:[%s15 + $0x7a0] sm:$0xff]
      %v3841 = vld [vmem:[%s15 + $0x7a8] sm:$0xff]
      %v3842 = vld [vmem:[%s15 + $0x7b0] sm:$0xff]
      %v3843 = vld [vmem:[%s15 + $0x7b8] sm:$0xff]
      %v3844 = vld [vmem:[%s15 + $0x7c0] sm:$0xff]
      %v3845 = vld [vmem:[%s15 + $0x7c8] sm:$0xff]
      %v3846 = vld [vmem:[%s15 + $0x7d0] sm:$0xff]
      %v3847 = vld [vmem:[%s15 + $0x7d8] sm:$0xff]
      %v3848 = vld [vmem:[%s15 + $0x7e0] sm:$0xff]
      %v3849 = vld [vmem:[%s15 + $0x7e8] sm:$0xff]
      %v3850 = vld [vmem:[%s15 + $0x7f0] sm:$0xff]
      %v3851 = vld [vmem:[%s15 + $0x7f8] sm:$0xff]
      %v3852 = vld [vmem:[%s16] sm:$0x1]
      %v3854 = vlaneseq
      %v3855 = vshrl.u32 %v3854, 7
      %v3856 = vsub.s32 0, %v3855
      %v3857 = vrot.slane %v3852, %v3856
      %3859 = vmatprep.subr.mxu0 0.0
      %3860 = vmatpush1.msra.mxu0 %v3611
      %3861 = vmatprep.subr.mxu0 0.0
      %3862 = vmatpush1.msra.mxu0 %v3610
      %3863 = vmatprep.subr.mxu0 0.0
      %3864 = vmatpush1.msra.mxu0 %v3609
      %3865 = vmatprep.subr.mxu0 0.0
      %3866 = vmatpush1.msra.mxu0 %v3608
      %3867 = vmatprep.subr.mxu0 0.0
      %3868 = vmatpush1.msra.mxu0 %v3607
      %3869 = vmatprep.subr.mxu0 0.0
      %3870 = vmatpush1.msra.mxu0 %v3606
      %3871 = vmatprep.subr.mxu0 0.0
      %3872 = vmatpush1.msra.mxu0 %v3605
      %3873 = vmatprep.subr.mxu0 0.0
      %3874 = vmatpush1.msra.mxu0 %v3604
      %3875 = vmatprep.subr.mxu0 0.0
      %3876 = vmatpush1.msra.mxu0 %v3603
      %3877 = vmatprep.subr.mxu0 0.0
      %3878 = vmatpush1.msra.mxu0 %v3602
      %3879 = vmatprep.subr.mxu0 0.0
      %3880 = vmatpush1.msra.mxu0 %v3601
      %3881 = vmatprep.subr.mxu0 0.0
      %3882 = vmatpush1.msra.mxu0 %v3600
      %3883 = vmatprep.subr.mxu0 0.0
      %3884 = vmatpush1.msra.mxu0 %v3599
      %3885 = vmatprep.subr.mxu0 0.0
      %3886 = vmatpush1.msra.mxu0 %v3598
      %3887 = vmatprep.subr.mxu0 0.0
      %3888 = vmatpush1.msra.mxu0 %v3597
      %3889 = vmatprep.subr.mxu0 0.0
      %3890 = vmatpush1.msra.mxu0 %v3596
      %3891 = vmatprep.subr.mxu0 0.0
      %3892 = vmatpush2.msra.mxu0 %v3627
      %3893 = vmatprep.subr.mxu0 0.0
      %3894 = vmatpush2.msra.mxu0 %v3626
      %3895 = vmatprep.subr.mxu0 0.0
      %3896 = vmatpush2.msra.mxu0 %v3625
      %3897 = vmatprep.subr.mxu0 0.0
      %3898 = vmatpush2.msra.mxu0 %v3624
      %3899 = vmatprep.subr.mxu0 0.0
      %3900 = vmatpush2.msra.mxu0 %v3623
      %3901 = vmatprep.subr.mxu0 0.0
      %3902 = vmatpush2.msra.mxu0 %v3622
      %3903 = vmatprep.subr.mxu0 0.0
      %3904 = vmatpush2.msra.mxu0 %v3621
      %3905 = vmatprep.subr.mxu0 0.0
      %3906 = vmatpush2.msra.mxu0 %v3620
      %3907 = vmatprep.subr.mxu0 0.0
      %3908 = vmatpush2.msra.mxu0 %v3619
      %3909 = vmatprep.subr.mxu0 0.0
      %3910 = vmatpush2.msra.mxu0 %v3618
      %3911 = vmatprep.subr.mxu0 0.0
      %3912 = vmatpush2.msra.mxu0 %v3617
      %3913 = vmatprep.subr.mxu0 0.0
      %3914 = vmatpush2.msra.mxu0 %v3616
      %3915 = vmatprep.subr.mxu0 0.0
      %3916 = vmatpush2.msra.mxu0 %v3615
      %3917 = vmatprep.subr.mxu0 0.0
      %3918 = vmatpush2.msra.mxu0 %v3614
      %3919 = vmatprep.subr.mxu0 0.0
      %3920 = vmatpush2.msra.mxu0 %v3613
      %3921 = vmatprep.subr.mxu0 0.0
      %3922 = vmatpush2.msra.mxu0 %v3612
      %3923 = vmatprep.mubr.f32.mxu0 %v3581
      %3924 = vmatmul.mubr.f32.gmra.mxu0 %v3580
      %v3925 = vpop.f32.mrf.mxu0
      %v3926 = vadd.f32 %v3857, %v3925
      %v3927 = vpop.f32.mrf.mxu0
      %3928 = vdwg.mxu0
      %3929 = vmatprep.subr.mxu0 0.0
      %3930 = vmatpush1.msra.mxu0 %v3643
      %3931 = vmatprep.subr.mxu0 0.0
      %3932 = vmatpush1.msra.mxu0 %v3642
      %3933 = vmatprep.subr.mxu0 0.0
      %3934 = vmatpush1.msra.mxu0 %v3641
      %3935 = vmatprep.subr.mxu0 0.0
      %3936 = vmatpush1.msra.mxu0 %v3640
      %3937 = vmatprep.subr.mxu0 0.0
      %3938 = vmatpush1.msra.mxu0 %v3639
      %3939 = vmatprep.subr.mxu0 0.0
      %3940 = vmatpush1.msra.mxu0 %v3638
      %3941 = vmatprep.subr.mxu0 0.0
      %3942 = vmatpush1.msra.mxu0 %v3637
      %3943 = vmatprep.subr.mxu0 0.0
      %3944 = vmatpush1.msra.mxu0 %v3636
      %3945 = vmatprep.subr.mxu0 0.0
      %3946 = vmatpush1.msra.mxu0 %v3635
      %3947 = vmatprep.subr.mxu0 0.0
      %3948 = vmatpush1.msra.mxu0 %v3634
      %3949 = vmatprep.subr.mxu0 0.0
      %3950 = vmatpush1.msra.mxu0 %v3633
      %3951 = vmatprep.subr.mxu0 0.0
      %3952 = vmatpush1.msra.mxu0 %v3632
      %3953 = vmatprep.subr.mxu0 0.0
      %3954 = vmatpush1.msra.mxu0 %v3631
      %3955 = vmatprep.subr.mxu0 0.0
      %3956 = vmatpush1.msra.mxu0 %v3630
      %3957 = vmatprep.subr.mxu0 0.0
      %3958 = vmatpush1.msra.mxu0 %v3629
      %3959 = vmatprep.subr.mxu0 0.0
      %3960 = vmatpush1.msra.mxu0 %v3628
      %3961 = vmatprep.subr.mxu0 0.0
      %3962 = vmatpush2.msra.mxu0 %v3659
      %3963 = vmatprep.subr.mxu0 0.0
      %3964 = vmatpush2.msra.mxu0 %v3658
      %3965 = vmatprep.subr.mxu0 0.0
      %3966 = vmatpush2.msra.mxu0 %v3657
      %3967 = vmatprep.subr.mxu0 0.0
      %3968 = vmatpush2.msra.mxu0 %v3656
      %3969 = vmatprep.subr.mxu0 0.0
      %3970 = vmatpush2.msra.mxu0 %v3655
      %3971 = vmatprep.subr.mxu0 0.0
      %3972 = vmatpush2.msra.mxu0 %v3654
      %3973 = vmatprep.subr.mxu0 0.0
      %3974 = vmatpush2.msra.mxu0 %v3653
      %3975 = vmatprep.subr.mxu0 0.0
      %3976 = vmatpush2.msra.mxu0 %v3652
      %3977 = vmatprep.subr.mxu0 0.0
      %3978 = vmatpush2.msra.mxu0 %v3651
      %3979 = vmatprep.subr.mxu0 0.0
      %3980 = vmatpush2.msra.mxu0 %v3650
      %3981 = vmatprep.subr.mxu0 0.0
      %3982 = vmatpush2.msra.mxu0 %v3649
      %3983 = vmatprep.subr.mxu0 0.0
      %3984 = vmatpush2.msra.mxu0 %v3648
      %3985 = vmatprep.subr.mxu0 0.0
      %3986 = vmatpush2.msra.mxu0 %v3647
      %3987 = vmatprep.subr.mxu0 0.0
      %3988 = vmatpush2.msra.mxu0 %v3646
      %3989 = vmatprep.subr.mxu0 0.0
      %3990 = vmatpush2.msra.mxu0 %v3645
      %3991 = vmatprep.subr.mxu0 0.0
      %3992 = vmatpush2.msra.mxu0 %v3644
      %3993 = vmatprep.mubr.f32.mxu0 %v3583
      %3994 = vmatmul.mubr.f32.gmra.mxu0 %v3582
      %v3995 = vpop.f32.mrf.mxu0
      %v3996 = vadd.f32 %v3926, %v3995
      %v3997 = vpop.f32.mrf.mxu0
      %3998 = vdwg.mxu0
      %3999 = vmatprep.subr.mxu0 0.0
      %4000 = vmatpush1.msra.mxu0 %v3675
      %4001 = vmatprep.subr.mxu0 0.0
      %4002 = vmatpush1.msra.mxu0 %v3674
      %4003 = vmatprep.subr.mxu0 0.0
      %4004 = vmatpush1.msra.mxu0 %v3673
      %4005 = vmatprep.subr.mxu0 0.0
      %4006 = vmatpush1.msra.mxu0 %v3672
      %4007 = vmatprep.subr.mxu0 0.0
      %4008 = vmatpush1.msra.mxu0 %v3671
      %4009 = vmatprep.subr.mxu0 0.0
      %4010 = vmatpush1.msra.mxu0 %v3670
      %4011 = vmatprep.subr.mxu0 0.0
      %4012 = vmatpush1.msra.mxu0 %v3669
      %4013 = vmatprep.subr.mxu0 0.0
      %4014 = vmatpush1.msra.mxu0 %v3668
      %4015 = vmatprep.subr.mxu0 0.0
      %4016 = vmatpush1.msra.mxu0 %v3667
      %4017 = vmatprep.subr.mxu0 0.0
      %4018 = vmatpush1.msra.mxu0 %v3666
      %4019 = vmatprep.subr.mxu0 0.0
      %4020 = vmatpush1.msra.mxu0 %v3665
      %4021 = vmatprep.subr.mxu0 0.0
      %4022 = vmatpush1.msra.mxu0 %v3664
      %4023 = vmatprep.subr.mxu0 0.0
      %4024 = vmatpush1.msra.mxu0 %v3663
      %4025 = vmatprep.subr.mxu0 0.0
      %4026 = vmatpush1.msra.mxu0 %v3662
      %4027 = vmatprep.subr.mxu0 0.0
      %4028 = vmatpush1.msra.mxu0 %v3661
      %4029 = vmatprep.subr.mxu0 0.0
      %4030 = vmatpush1.msra.mxu0 %v3660
      %4031 = vmatprep.subr.mxu0 0.0
      %4032 = vmatpush2.msra.mxu0 %v3691
      %4033 = vmatprep.subr.mxu0 0.0
      %4034 = vmatpush2.msra.mxu0 %v3690
      %4035 = vmatprep.subr.mxu0 0.0
      %4036 = vmatpush2.msra.mxu0 %v3689
      %4037 = vmatprep.subr.mxu0 0.0
      %4038 = vmatpush2.msra.mxu0 %v3688
      %4039 = vmatprep.subr.mxu0 0.0
      %4040 = vmatpush2.msra.mxu0 %v3687
      %4041 = vmatprep.subr.mxu0 0.0
      %4042 = vmatpush2.msra.mxu0 %v3686
      %4043 = vmatprep.subr.mxu0 0.0
      %4044 = vmatpush2.msra.mxu0 %v3685
      %4045 = vmatprep.subr.mxu0 0.0
      %4046 = vmatpush2.msra.mxu0 %v3684
      %4047 = vmatprep.subr.mxu0 0.0
      %4048 = vmatpush2.msra.mxu0 %v3683
      %4049 = vmatprep.subr.mxu0 0.0
      %4050 = vmatpush2.msra.mxu0 %v3682
      %4051 = vmatprep.subr.mxu0 0.0
      %4052 = vmatpush2.msra.mxu0 %v3681
      %4053 = vmatprep.subr.mxu0 0.0
      %4054 = vmatpush2.msra.mxu0 %v3680
      %4055 = vmatprep.subr.mxu0 0.0
      %4056 = vmatpush2.msra.mxu0 %v3679
      %4057 = vmatprep.subr.mxu0 0.0
      %4058 = vmatpush2.msra.mxu0 %v3678
      %4059 = vmatprep.subr.mxu0 0.0
      %4060 = vmatpush2.msra.mxu0 %v3677
      %4061 = vmatprep.subr.mxu0 0.0
      %4062 = vmatpush2.msra.mxu0 %v3676
      %4063 = vmatprep.mubr.f32.mxu0 %v3585
      %4064 = vmatmul.mubr.f32.gmra.mxu0 %v3584
      %v4065 = vpop.f32.mrf.mxu0
      %v4066 = vadd.f32 %v3996, %v4065
      %v4067 = vpop.f32.mrf.mxu0
      %4068 = vdwg.mxu0
      %4069 = vmatprep.subr.mxu0 0.0
      %4070 = vmatpush1.msra.mxu0 %v3707
      %4071 = vmatprep.subr.mxu0 0.0
      %4072 = vmatpush1.msra.mxu0 %v3706
      %4073 = vmatprep.subr.mxu0 0.0
      %4074 = vmatpush1.msra.mxu0 %v3705
      %4075 = vmatprep.subr.mxu0 0.0
      %4076 = vmatpush1.msra.mxu0 %v3704
      %4077 = vmatprep.subr.mxu0 0.0
      %4078 = vmatpush1.msra.mxu0 %v3703
      %4079 = vmatprep.subr.mxu0 0.0
      %4080 = vmatpush1.msra.mxu0 %v3702
      %4081 = vmatprep.subr.mxu0 0.0
      %4082 = vmatpush1.msra.mxu0 %v3701
      %4083 = vmatprep.subr.mxu0 0.0
      %4084 = vmatpush1.msra.mxu0 %v3700
      %4085 = vmatprep.subr.mxu0 0.0
      %4086 = vmatpush1.msra.mxu0 %v3699
      %4087 = vmatprep.subr.mxu0 0.0
      %4088 = vmatpush1.msra.mxu0 %v3698
      %4089 = vmatprep.subr.mxu0 0.0
      %4090 = vmatpush1.msra.mxu0 %v3697
      %4091 = vmatprep.subr.mxu0 0.0
      %4092 = vmatpush1.msra.mxu0 %v3696
      %4093 = vmatprep.subr.mxu0 0.0
      %4094 = vmatpush1.msra.mxu0 %v3695
      %4095 = vmatprep.subr.mxu0 0.0
      %4096 = vmatpush1.msra.mxu0 %v3694
      %4097 = vmatprep.subr.mxu0 0.0
      %4098 = vmatpush1.msra.mxu0 %v3693
      %4099 = vmatprep.subr.mxu0 0.0
      %4100 = vmatpush1.msra.mxu0 %v3692
      %4101 = vmatprep.subr.mxu0 0.0
      %4102 = vmatpush2.msra.mxu0 %v3723
      %4103 = vmatprep.subr.mxu0 0.0
      %4104 = vmatpush2.msra.mxu0 %v3722
      %4105 = vmatprep.subr.mxu0 0.0
      %4106 = vmatpush2.msra.mxu0 %v3721
      %4107 = vmatprep.subr.mxu0 0.0
      %4108 = vmatpush2.msra.mxu0 %v3720
      %4109 = vmatprep.subr.mxu0 0.0
      %4110 = vmatpush2.msra.mxu0 %v3719
      %4111 = vmatprep.subr.mxu0 0.0
      %4112 = vmatpush2.msra.mxu0 %v3718
      %4113 = vmatprep.subr.mxu0 0.0
      %4114 = vmatpush2.msra.mxu0 %v3717
      %4115 = vmatprep.subr.mxu0 0.0
      %4116 = vmatpush2.msra.mxu0 %v3716
      %4117 = vmatprep.subr.mxu0 0.0
      %4118 = vmatpush2.msra.mxu0 %v3715
      %4119 = vmatprep.subr.mxu0 0.0
      %4120 = vmatpush2.msra.mxu0 %v3714
      %4121 = vmatprep.subr.mxu0 0.0
      %4122 = vmatpush2.msra.mxu0 %v3713
      %4123 = vmatprep.subr.mxu0 0.0
      %4124 = vmatpush2.msra.mxu0 %v3712
      %4125 = vmatprep.subr.mxu0 0.0
      %4126 = vmatpush2.msra.mxu0 %v3711
      %4127 = vmatprep.subr.mxu0 0.0
      %4128 = vmatpush2.msra.mxu0 %v3710
      %4129 = vmatprep.subr.mxu0 0.0
      %4130 = vmatpush2.msra.mxu0 %v3709
      %4131 = vmatprep.subr.mxu0 0.0
      %4132 = vmatpush2.msra.mxu0 %v3708
      %4133 = vmatprep.mubr.f32.mxu0 %v3587
      %4134 = vmatmul.mubr.f32.gmra.mxu0 %v3586
      %v4135 = vpop.f32.mrf.mxu0
      %v4136 = vadd.f32 %v4066, %v4135
      %v4137 = vpop.f32.mrf.mxu0
      %4138 = vdwg.mxu0
      %4139 = vmatprep.subr.mxu0 0.0
      %4140 = vmatpush1.msra.mxu0 %v3739
      %4141 = vmatprep.subr.mxu0 0.0
      %4142 = vmatpush1.msra.mxu0 %v3738
      %4143 = vmatprep.subr.mxu0 0.0
      %4144 = vmatpush1.msra.mxu0 %v3737
      %4145 = vmatprep.subr.mxu0 0.0
      %4146 = vmatpush1.msra.mxu0 %v3736
      %4147 = vmatprep.subr.mxu0 0.0
      %4148 = vmatpush1.msra.mxu0 %v3735
      %4149 = vmatprep.subr.mxu0 0.0
      %4150 = vmatpush1.msra.mxu0 %v3734
      %4151 = vmatprep.subr.mxu0 0.0
      %4152 = vmatpush1.msra.mxu0 %v3733
      %4153 = vmatprep.subr.mxu0 0.0
      %4154 = vmatpush1.msra.mxu0 %v3732
      %4155 = vmatprep.subr.mxu0 0.0
      %4156 = vmatpush1.msra.mxu0 %v3731
      %4157 = vmatprep.subr.mxu0 0.0
      %4158 = vmatpush1.msra.mxu0 %v3730
      %4159 = vmatprep.subr.mxu0 0.0
      %4160 = vmatpush1.msra.mxu0 %v3729
      %4161 = vmatprep.subr.mxu0 0.0
      %4162 = vmatpush1.msra.mxu0 %v3728
      %4163 = vmatprep.subr.mxu0 0.0
      %4164 = vmatpush1.msra.mxu0 %v3727
      %4165 = vmatprep.subr.mxu0 0.0
      %4166 = vmatpush1.msra.mxu0 %v3726
      %4167 = vmatprep.subr.mxu0 0.0
      %4168 = vmatpush1.msra.mxu0 %v3725
      %4169 = vmatprep.subr.mxu0 0.0
      %4170 = vmatpush1.msra.mxu0 %v3724
      %4171 = vmatprep.subr.mxu0 0.0
      %4172 = vmatpush2.msra.mxu0 %v3755
      %4173 = vmatprep.subr.mxu0 0.0
      %4174 = vmatpush2.msra.mxu0 %v3754
      %4175 = vmatprep.subr.mxu0 0.0
      %4176 = vmatpush2.msra.mxu0 %v3753
      %4177 = vmatprep.subr.mxu0 0.0
      %4178 = vmatpush2.msra.mxu0 %v3752
      %4179 = vmatprep.subr.mxu0 0.0
      %4180 = vmatpush2.msra.mxu0 %v3751
      %4181 = vmatprep.subr.mxu0 0.0
      %4182 = vmatpush2.msra.mxu0 %v3750
      %4183 = vmatprep.subr.mxu0 0.0
      %4184 = vmatpush2.msra.mxu0 %v3749
      %4185 = vmatprep.subr.mxu0 0.0
      %4186 = vmatpush2.msra.mxu0 %v3748
      %4187 = vmatprep.subr.mxu0 0.0
      %4188 = vmatpush2.msra.mxu0 %v3747
      %4189 = vmatprep.subr.mxu0 0.0
      %4190 = vmatpush2.msra.mxu0 %v3746
      %4191 = vmatprep.subr.mxu0 0.0
      %4192 = vmatpush2.msra.mxu0 %v3745
      %4193 = vmatprep.subr.mxu0 0.0
      %4194 = vmatpush2.msra.mxu0 %v3744
      %4195 = vmatprep.subr.mxu0 0.0
      %4196 = vmatpush2.msra.mxu0 %v3743
      %4197 = vmatprep.subr.mxu0 0.0
      %4198 = vmatpush2.msra.mxu0 %v3742
      %4199 = vmatprep.subr.mxu0 0.0
      %4200 = vmatpush2.msra.mxu0 %v3741
      %4201 = vmatprep.subr.mxu0 0.0
      %4202 = vmatpush2.msra.mxu0 %v3740
      %4203 = vmatprep.mubr.f32.mxu0 %v3589
      %4204 = vmatmul.mubr.f32.gmra.mxu0 %v3588
      %v4205 = vpop.f32.mrf.mxu0
      %v4206 = vadd.f32 %v4136, %v4205
      %v4207 = vpop.f32.mrf.mxu0
      %4208 = vdwg.mxu0
      %4209 = vmatprep.subr.mxu0 0.0
      %4210 = vmatpush1.msra.mxu0 %v3771
      %4211 = vmatprep.subr.mxu0 0.0
      %4212 = vmatpush1.msra.mxu0 %v3770
      %4213 = vmatprep.subr.mxu0 0.0
      %4214 = vmatpush1.msra.mxu0 %v3769
      %4215 = vmatprep.subr.mxu0 0.0
      %4216 = vmatpush1.msra.mxu0 %v3768
      %4217 = vmatprep.subr.mxu0 0.0
      %4218 = vmatpush1.msra.mxu0 %v3767
      %4219 = vmatprep.subr.mxu0 0.0
      %4220 = vmatpush1.msra.mxu0 %v3766
      %4221 = vmatprep.subr.mxu0 0.0
      %4222 = vmatpush1.msra.mxu0 %v3765
      %4223 = vmatprep.subr.mxu0 0.0
      %4224 = vmatpush1.msra.mxu0 %v3764
      %4225 = vmatprep.subr.mxu0 0.0
      %4226 = vmatpush1.msra.mxu0 %v3763
      %4227 = vmatprep.subr.mxu0 0.0
      %4228 = vmatpush1.msra.mxu0 %v3762
      %4229 = vmatprep.subr.mxu0 0.0
      %4230 = vmatpush1.msra.mxu0 %v3761
      %4231 = vmatprep.subr.mxu0 0.0
      %4232 = vmatpush1.msra.mxu0 %v3760
      %4233 = vmatprep.subr.mxu0 0.0
      %4234 = vmatpush1.msra.mxu0 %v3759
      %4235 = vmatprep.subr.mxu0 0.0
      %4236 = vmatpush1.msra.mxu0 %v3758
      %4237 = vmatprep.subr.mxu0 0.0
      %4238 = vmatpush1.msra.mxu0 %v3757
      %4239 = vmatprep.subr.mxu0 0.0
      %4240 = vmatpush1.msra.mxu0 %v3756
      %4241 = vmatprep.subr.mxu0 0.0
      %4242 = vmatpush2.msra.mxu0 %v3787
      %4243 = vmatprep.subr.mxu0 0.0
      %4244 = vmatpush2.msra.mxu0 %v3786
      %4245 = vmatprep.subr.mxu0 0.0
      %4246 = vmatpush2.msra.mxu0 %v3785
      %4247 = vmatprep.subr.mxu0 0.0
      %4248 = vmatpush2.msra.mxu0 %v3784
      %4249 = vmatprep.subr.mxu0 0.0
      %4250 = vmatpush2.msra.mxu0 %v3783
      %4251 = vmatprep.subr.mxu0 0.0
      %4252 = vmatpush2.msra.mxu0 %v3782
      %4253 = vmatprep.subr.mxu0 0.0
      %4254 = vmatpush2.msra.mxu0 %v3781
      %4255 = vmatprep.subr.mxu0 0.0
      %4256 = vmatpush2.msra.mxu0 %v3780
      %4257 = vmatprep.subr.mxu0 0.0
      %4258 = vmatpush2.msra.mxu0 %v3779
      %4259 = vmatprep.subr.mxu0 0.0
      %4260 = vmatpush2.msra.mxu0 %v3778
      %4261 = vmatprep.subr.mxu0 0.0
      %4262 = vmatpush2.msra.mxu0 %v3777
      %4263 = vmatprep.subr.mxu0 0.0
      %4264 = vmatpush2.msra.mxu0 %v3776
      %4265 = vmatprep.subr.mxu0 0.0
      %4266 = vmatpush2.msra.mxu0 %v3775
      %4267 = vmatprep.subr.mxu0 0.0
      %4268 = vmatpush2.msra.mxu0 %v3774
      %4269 = vmatprep.subr.mxu0 0.0
      %4270 = vmatpush2.msra.mxu0 %v3773
      %4271 = vmatprep.subr.mxu0 0.0
      %4272 = vmatpush2.msra.mxu0 %v3772
      %4273 = vmatprep.mubr.f32.mxu0 %v3591
      %4274 = vmatmul.mubr.f32.gmra.mxu0 %v3590
      %v4275 = vpop.f32.mrf.mxu0
      %v4276 = vadd.f32 %v4206, %v4275
      %v4277 = vpop.f32.mrf.mxu0
      %4278 = vdwg.mxu0
      %4279 = vmatprep.subr.mxu0 0.0
      %4280 = vmatpush1.msra.mxu0 %v3803
      %4281 = vmatprep.subr.mxu0 0.0
      %4282 = vmatpush1.msra.mxu0 %v3802
      %4283 = vmatprep.subr.mxu0 0.0
      %4284 = vmatpush1.msra.mxu0 %v3801
      %4285 = vmatprep.subr.mxu0 0.0
      %4286 = vmatpush1.msra.mxu0 %v3800
      %4287 = vmatprep.subr.mxu0 0.0
      %4288 = vmatpush1.msra.mxu0 %v3799
      %4289 = vmatprep.subr.mxu0 0.0
      %4290 = vmatpush1.msra.mxu0 %v3798
      %4291 = vmatprep.subr.mxu0 0.0
      %4292 = vmatpush1.msra.mxu0 %v3797
      %4293 = vmatprep.subr.mxu0 0.0
      %4294 = vmatpush1.msra.mxu0 %v3796
      %4295 = vmatprep.subr.mxu0 0.0
      %4296 = vmatpush1.msra.mxu0 %v3795
      %4297 = vmatprep.subr.mxu0 0.0
      %4298 = vmatpush1.msra.mxu0 %v3794
      %4299 = vmatprep.subr.mxu0 0.0
      %4300 = vmatpush1.msra.mxu0 %v3793
      %4301 = vmatprep.subr.mxu0 0.0
      %4302 = vmatpush1.msra.mxu0 %v3792
      %4303 = vmatprep.subr.mxu0 0.0
      %4304 = vmatpush1.msra.mxu0 %v3791
      %4305 = vmatprep.subr.mxu0 0.0
      %4306 = vmatpush1.msra.mxu0 %v3790
      %4307 = vmatprep.subr.mxu0 0.0
      %4308 = vmatpush1.msra.mxu0 %v3789
      %4309 = vmatprep.subr.mxu0 0.0
      %4310 = vmatpush1.msra.mxu0 %v3788
      %4311 = vmatprep.subr.mxu0 0.0
      %4312 = vmatpush2.msra.mxu0 %v3819
      %4313 = vmatprep.subr.mxu0 0.0
      %4314 = vmatpush2.msra.mxu0 %v3818
      %4315 = vmatprep.subr.mxu0 0.0
      %4316 = vmatpush2.msra.mxu0 %v3817
      %4317 = vmatprep.subr.mxu0 0.0
      %4318 = vmatpush2.msra.mxu0 %v3816
      %4319 = vmatprep.subr.mxu0 0.0
      %4320 = vmatpush2.msra.mxu0 %v3815
      %4321 = vmatprep.subr.mxu0 0.0
      %4322 = vmatpush2.msra.mxu0 %v3814
      %4323 = vmatprep.subr.mxu0 0.0
      %4324 = vmatpush2.msra.mxu0 %v3813
      %4325 = vmatprep.subr.mxu0 0.0
      %4326 = vmatpush2.msra.mxu0 %v3812
      %4327 = vmatprep.subr.mxu0 0.0
      %4328 = vmatpush2.msra.mxu0 %v3811
      %4329 = vmatprep.subr.mxu0 0.0
      %4330 = vmatpush2.msra.mxu0 %v3810
      %4331 = vmatprep.subr.mxu0 0.0
      %4332 = vmatpush2.msra.mxu0 %v3809
      %4333 = vmatprep.subr.mxu0 0.0
      %4334 = vmatpush2.msra.mxu0 %v3808
      %4335 = vmatprep.subr.mxu0 0.0
      %4336 = vmatpush2.msra.mxu0 %v3807
      %4337 = vmatprep.subr.mxu0 0.0
      %4338 = vmatpush2.msra.mxu0 %v3806
      %4339 = vmatprep.subr.mxu0 0.0
      %4340 = vmatpush2.msra.mxu0 %v3805
      %4341 = vmatprep.subr.mxu0 0.0
      %4342 = vmatpush2.msra.mxu0 %v3804
      %4343 = vmatprep.mubr.f32.mxu0 %v3593
      %4344 = vmatmul.mubr.f32.gmra.mxu0 %v3592
      %v4345 = vpop.f32.mrf.mxu0
      %v4346 = vadd.f32 %v4276, %v4345
      %v4347 = vpop.f32.mrf.mxu0
      %4348 = vdwg.mxu0
      %4349 = vmatprep.subr.mxu0 0.0
      %4350 = vmatpush1.msra.mxu0 %v3835
      %4351 = vmatprep.subr.mxu0 0.0
      %4352 = vmatpush1.msra.mxu0 %v3834
      %4353 = vmatprep.subr.mxu0 0.0
      %4354 = vmatpush1.msra.mxu0 %v3833
      %4355 = vmatprep.subr.mxu0 0.0
      %4356 = vmatpush1.msra.mxu0 %v3832
      %4357 = vmatprep.subr.mxu0 0.0
      %4358 = vmatpush1.msra.mxu0 %v3831
      %4359 = vmatprep.subr.mxu0 0.0
      %4360 = vmatpush1.msra.mxu0 %v3830
      %4361 = vmatprep.subr.mxu0 0.0
      %4362 = vmatpush1.msra.mxu0 %v3829
      %4363 = vmatprep.subr.mxu0 0.0
      %4364 = vmatpush1.msra.mxu0 %v3828
      %4365 = vmatprep.subr.mxu0 0.0
      %4366 = vmatpush1.msra.mxu0 %v3827
      %4367 = vmatprep.subr.mxu0 0.0
      %4368 = vmatpush1.msra.mxu0 %v3826
      %4369 = vmatprep.subr.mxu0 0.0
      %4370 = vmatpush1.msra.mxu0 %v3825
      %4371 = vmatprep.subr.mxu0 0.0
      %4372 = vmatpush1.msra.mxu0 %v3824
      %4373 = vmatprep.subr.mxu0 0.0
      %4374 = vmatpush1.msra.mxu0 %v3823
      %4375 = vmatprep.subr.mxu0 0.0
      %4376 = vmatpush1.msra.mxu0 %v3822
      %4377 = vmatprep.subr.mxu0 0.0
      %4378 = vmatpush1.msra.mxu0 %v3821
      %4379 = vmatprep.subr.mxu0 0.0
      %4380 = vmatpush1.msra.mxu0 %v3820
      %4381 = vmatprep.subr.mxu0 0.0
      %4382 = vmatpush2.msra.mxu0 %v3851
      %4383 = vmatprep.subr.mxu0 0.0
      %4384 = vmatpush2.msra.mxu0 %v3850
      %4385 = vmatprep.subr.mxu0 0.0
      %4386 = vmatpush2.msra.mxu0 %v3849
      %4387 = vmatprep.subr.mxu0 0.0
      %4388 = vmatpush2.msra.mxu0 %v3848
      %4389 = vmatprep.subr.mxu0 0.0
      %4390 = vmatpush2.msra.mxu0 %v3847
      %4391 = vmatprep.subr.mxu0 0.0
      %4392 = vmatpush2.msra.mxu0 %v3846
      %4393 = vmatprep.subr.mxu0 0.0
      %4394 = vmatpush2.msra.mxu0 %v3845
      %4395 = vmatprep.subr.mxu0 0.0
      %4396 = vmatpush2.msra.mxu0 %v3844
      %4397 = vmatprep.subr.mxu0 0.0
      %4398 = vmatpush2.msra.mxu0 %v3843
      %4399 = vmatprep.subr.mxu0 0.0
      %4400 = vmatpush2.msra.mxu0 %v3842
      %4401 = vmatprep.subr.mxu0 0.0
      %4402 = vmatpush2.msra.mxu0 %v3841
      %4403 = vmatprep.subr.mxu0 0.0
      %4404 = vmatpush2.msra.mxu0 %v3840
      %4405 = vmatprep.subr.mxu0 0.0
      %4406 = vmatpush2.msra.mxu0 %v3839
      %4407 = vmatprep.subr.mxu0 0.0
      %4408 = vmatpush2.msra.mxu0 %v3838
      %4409 = vmatprep.subr.mxu0 0.0
      %4410 = vmatpush2.msra.mxu0 %v3837
      %4411 = vmatprep.subr.mxu0 0.0
      %4412 = vmatpush2.msra.mxu0 %v3836
      %4413 = vmatprep.mubr.f32.mxu0 %v3595
      %4414 = vmatmul.mubr.f32.gmra.mxu0 %v3594
      %v4415 = vpop.f32.mrf.mxu0
      %v4416 = vadd.f32 %v4346, %v4415
      %v4417 = vpop.f32.mrf.mxu0
      %4418 = vdwg.mxu0
      %v4419 = vadd.f32 %v4416, %v2860
      %v4420 = vld [vmem:[%s17] sm:$0x1]
      %v4421 = vld [vmem:[%s18] sm:$0x1]
      %v4422 = vsel %vm626, %v4419, 0.0
      %4423 = vadd.xlane.f32.xlu0 %v4422
      %v4424 = vpop.xlane.xlu0 %4423
      %v4425 = vmul.f32 %v4424, %v1680
      %v4426 = vsub.f32 %v4419, %v4425
      %v4427 = vmul.f32 %v4426, %v4426
      %v4428 = vsel %vm626, %v4427, 0.0
      %4429 = vadd.xlane.f32.xlu0 %v4428
      %v4430 = vpop.xlane.xlu0 %4429
      %v4431 = vmul.f32 %v4430, %v1680
      %v4432 = vadd.f32 %v4431, 1e-05
      %v4433 = vrsqrt.pop %v4432
      %v4434 = vmul.f32 %v4426, %v4433
      %v4436 = vlaneseq
      %v4437 = vshrl.u32 %v4436, 7
      %v4438 = vsub.s32 0, %v4437
      %v4439 = vrot.slane %v4420, %v4438
      %v4441 = vmul.f32 %v4434, %v4439
      %v4443 = vlaneseq
      %v4444 = vshrl.u32 %v4443, 7
      %v4445 = vsub.s32 0, %v4444
      %v4446 = vrot.slane %v4421, %v4445
      %v4448 = vadd.f32 %v4441, %v4446
      %4449 = vst.msk [vmem:[%s614] sm:$0xff] %vm626, %v4448
      %p4450 = scmp.lt.s32.totalorder %s30, 1
      %s4451 = scalar_select %p4450, %s30, 1
      %s4452 = smul.addr %s4451, 8
      %s4453 = scalar_lea.vmem %s19, %s4452
      // Predicated region
      $region97: #{transformer_forward.7} parent=95 // pred_check
        %p4454 = pneg %p457
      $region98: #{transformer_forward.7} parent=95 // pred_check_branch
        %4456 = sbr.rel (%p4454) target = $region100
      $region99: #{transformer_forward.7} parent=95 // pred_region
        _
      $region100: #{transformer_forward.7} parent=95 // pred_fallthru
        _
    $region96: #{transformer_forward.7} parent=5 // pred_fallthru
      _
    %p4457 = scmp.le.s32.totalorder 2, %s25
    // Predicated region
    $region101: #{transformer_forward.7} parent=5 // pred_check
      %p4458 = pneg %p4457
    $region102: #{transformer_forward.7} parent=5 // pred_check_branch
      %4460 = sbr.rel (%p4458) target = $region104
    $region103: #{transformer_forward.7} parent=5 // pred_region
      %s4461 = ssub.s32 %s25, 2
      // Predicated region
      $region105: #{transformer_forward.7} parent=103 // pred_check
        %p4462 = pneg %p463
      $region106: #{transformer_forward.7} parent=103 // pred_check_branch
        %4464 = sbr.rel (%p4462) target = $region108
      $region107: #{transformer_forward.7} parent=103 // pred_region
        %p4465 = scmp.lt.s32.totalorder %s31, 1
        %s4466 = scalar_select %p4465, %s31, 1
        %s4467 = smul.addr %s4466, 8
        %s4468 = scalar_lea.vmem %s19, %s4467
      $region108: #{transformer_forward.7} parent=103 // pred_fallthru
        _
    $region104: #{transformer_forward.7} parent=5 // pred_fallthru
      _
  $region6: #{transformer_forward.7} parent=0 // loop_footer
    %s29 = sadd.s32 1, %s25
  $region7: #{transformer_forward.7} parent=0 // loop_footer_branch
    %24 = sbr.rel target = $region3
  $region8: #{transformer_forward.7} parent=0 // loop_exit
    _

</llo_original>
